<compile_context>
chip_gen: v7x
topology: tpu7x:2x2x1
jax: 0.10.0
libtpu: 0.0.40
codegen_flags: <defaults>
</compile_context>

<pallas_src>
import jax
import jax.numpy as jnp
from jax.experimental import pallas as pl
from jax.experimental.pallas import tpu as pltpu

B = 8            # batch (number of sequences fed to BERT)
D = 768          # BERT hidden / LSTM input size
H = 384          # LSTM hidden size per direction
GP = 3 * H       # pruned gate width per direction: [i, g, o]  (f gate dead since c0 = 0)
G2 = 2 * GP      # fused fwd|bwd gate width
NCLS = 2


def _cell_from_gates(pre, off):
    """h = sigmoid(o) * tanh(sigmoid(i) * tanh(g)) from pre-activations pre[:, off:off+3H]."""
    i = jax.nn.sigmoid(pre[:, off:off + H])
    g = jnp.tanh(pre[:, off + H:off + 2 * H])
    o = jax.nn.sigmoid(pre[:, off + 2 * H:off + 3 * H])
    return o * jnp.tanh(i * g)            # c = i*g  (f * c0 == 0)


def net_kernel(x_ref, w1_ref, w2_hbm_ref, sb_ref, wt_ref, out_ref, w2_buf, w2_sem):
    # Kick off the layer-2 weight DMA immediately; it overlaps layer-1 compute.
    w2_cp = pltpu.make_async_copy(w2_hbm_ref, w2_buf, w2_sem)
    w2_cp.start()

    x = x_ref[...]                                                       # (B, 768) f32

    # Packed small operands: rows [s1, b1, s2, b2, bc(padded)]
    s1 = sb_ref[0:1, :]
    b1 = sb_ref[1:2, :]
    s2 = sb_ref[2:3, :]
    b2 = sb_ref[3:4, :]
    bc = sb_ref[4:5, 0:NCLS]                                             # (1, 2)

    # ---- LSTM layer 1: fused [fwd | bwd] gate matmul, int8 weights dequantized on
    # the fly (int8 -> bf16 cast on VPU, per-column scale applied to the f32 acc) ----
    pre1 = jnp.dot(x.astype(jnp.bfloat16), w1_ref[...].astype(jnp.bfloat16),
                   preferred_element_type=jnp.float32) * s1 + b1         # (B, 2*GP)
    h1 = jnp.concatenate(
        [_cell_from_gates(pre1, 0), _cell_from_gates(pre1, GP)], axis=-1)  # (B, 768)

    # ---- LSTM layer 2 (wait on the overlapped weight DMA only now) ----
    w2_cp.wait()
    pre2 = jnp.dot(h1.astype(jnp.bfloat16), w2_buf[...].astype(jnp.bfloat16),
                   preferred_element_type=jnp.float32) * s2 + b2         # (B, 2*GP)
    h2 = jnp.concatenate(
        [_cell_from_gates(pre2, 0), _cell_from_gates(pre2, GP)], axis=-1)  # (B, 768)

    # ---- Fused tail matmul: columns [0:2] = classifier logits, column [2] = attn score ----
    z = jnp.dot(h2.astype(jnp.bfloat16), wt_ref[...],
                preferred_element_type=jnp.float32)                      # (B, NCLS + 1)
    logits = z[:, 0:NCLS]                                                # (B, 2)
    score = z[:, NCLS:NCLS + 1]                                          # (B, 1)

    # softmax over the *batch* axis (matches F.softmax on the 1-D squeezed score);
    # exact divide: only 8 elements, and it matches the PyTorch reference bit-closer.
    score = score - jnp.max(score, axis=0, keepdims=True)
    e = jnp.exp(score)
    attn_w = e / jnp.sum(e, axis=0, keepdims=True)                       # (B, 1)

    # (h2 * attn_w) @ Wc + bc  ==  (h2 @ Wc) * attn_w + bc   (attn_w is per-row scalar)
    out_ref[...] = logits * attn_w + bc                                  # (B, 2)


def net_forward(x, params):
    w1_q, w2_q, sb, wt = params
    vmem_spec = pl.BlockSpec(memory_space=pltpu.MemorySpace.VMEM)  # whole array, no pipelining
    hbm_spec = pl.BlockSpec(memory_space=pl.ANY)                   # raw HBM ref, manual DMA
    return pl.pallas_call(
        net_kernel,
        out_shape=jax.ShapeDtypeStruct((B, NCLS), jnp.float32),
        in_specs=[vmem_spec,   # x
                  vmem_spec,   # w1 (int8, DMA'd in the prologue)
                  hbm_spec,    # w2 (int8, stays in HBM; copied during layer-1 compute)
                  vmem_spec,   # packed scales / biases
                  vmem_spec],  # fused tail weight
        out_specs=vmem_spec,
        scratch_shapes=[pltpu.VMEM((D, G2), jnp.int8),   # w2 landing buffer
                        pltpu.SemaphoreType.DMA],
        compiler_params=pltpu.CompilerParams(vmem_limit_bytes=16 * 1024 * 1024),
    )(x, w1_q, w2_q, sb, wt)


def init_params(key):
    """Synthetic parameters in the pruned / fused / quantized layout implied by Net.__init__.

    Mapping from a real PyTorch checkpoint (per layer l, direction d):
      take the [i, g, o] row-blocks of weight_ih_l{l}{d} (drop the forget gate),
      transpose to (d_in, 3H); bias = (b_ih + b_hh) rows [i, g, o].
      Concat fwd | bwd along the output axis. W_hh is unused (h0 = 0, seq_len = 1).
      Quantize the weight per output channel to int8: s_j = max|w[:,j]|/127,
      w_q = round(w/s); the kernel computes (x @ w_q) * s + b in f32.
      Tail weight = [classifier.weight.T | attention_vector] -> (768, 3) bf16.
      Small operands packed as rows [s1, b1, s2, b2, classifier_bias(padded)] -> (5, 2304) f32.
    """
    ks = jax.random.split(key, 6)

    def xavier(k, shape):
        fan_in, fan_out = shape[0], shape[1]
        std = (2.0 / (fan_in + fan_out)) ** 0.5
        return std * jax.random.normal(k, shape, dtype=jnp.float32)

    def quantize_cols(w):
        scale = jnp.max(jnp.abs(w), axis=0, keepdims=True) / 127.0       # (1, cols) f32
        scale = jnp.maximum(scale, 1e-8)
        w_q = jnp.clip(jnp.round(w / scale), -127.0, 127.0).astype(jnp.int8)
        return w_q, scale

    def lstm_layer(k, d_in):
        k_f, k_b, k_bias = jax.random.split(k, 3)
        w = jnp.concatenate([xavier(k_f, (d_in, GP)), xavier(k_b, (d_in, GP))],
                            axis=1)                                      # (d_in, 2*GP) f32
        b = 0.01 * jax.random.normal(k_bias, (1, G2), dtype=jnp.float32)
        w_q, s = quantize_cols(w)
        return w_q, s, b

    w1_q, s1, b1 = lstm_layer(ks[0], D)          # layer 1 input dim = 768
    w2_q, s2, b2 = lstm_layer(ks[1], 2 * H)      # layer 2 input dim = 768 (bi output of layer 1)
    wc = xavier(ks[2], (D, NCLS))                # classifier weight (transposed)
    attn = xavier(ks[3], (D, 1))                 # Attention(768) parameter
    wt = jnp.concatenate([wc, attn], axis=1).astype(jnp.bfloat16)        # (768, 3) bf16
    bc = 0.01 * jax.random.normal(ks[4], (NCLS,), dtype=jnp.float32)
    bc_row = jnp.zeros((1, G2), dtype=jnp.float32).at[0, 0:NCLS].set(bc)
    sb = jnp.concatenate([s1, b1, s2, b2, bc_row], axis=0)               # (5, 2*GP) f32
    return (w1_q, w2_q, sb, wt)


if __name__ == "__main__":
    key = jax.random.PRNGKey(0)
    k_x, k_p = jax.random.split(key)
    # x: pooled BERT output for B sequences (stand-in for BertModel's second return value)
    x = jax.random.normal(k_x, (B, D), dtype=jnp.float32)
    params = init_params(k_p)

    out = net_forward(x, params)
    out = jax.block_until_ready(out)
    assert out.shape == (B, NCLS) and out.dtype == jnp.float32
    assert bool(jnp.all(jnp.isfinite(out)))
    print("KERNEL_OK")
</pallas_src>

<mosaic_0001>
module attributes {stable_mosaic.version = 11 : i64} {
  func.func @net_kernel(%arg0: memref<8x768xf32, #tpu.memory_space<vmem>>, %arg1: memref<768x2304xi8, #tpu.memory_space<vmem>>, %arg2: memref<768x2304xi8, #tpu.memory_space<any>>, %arg3: memref<5x2304xf32, #tpu.memory_space<vmem>>, %arg4: memref<768x3xbf16, #tpu.memory_space<vmem>>, %arg5: memref<8x2xf32, #tpu.memory_space<vmem>>, %arg6: memref<768x2304xi8, #tpu.memory_space<vmem>>, %arg7: memref<!tpu.dma_semaphore, #tpu.memory_space<semaphore_mem>>) attributes {dimension_semantics = [], scalar_prefetch = 0 : i64, scratch_operands = 2 : i64, tpu.core_type = #tpu.core_type<tc>} {
    tpu.enqueue_dma source(%arg2 : memref<768x2304xi8, #tpu.memory_space<any>>) target(%arg6 : memref<768x2304xi8, #tpu.memory_space<vmem>>) target_semaphore(%arg7 : memref<!tpu.dma_semaphore, #tpu.memory_space<semaphore_mem>>)
    %c0 = arith.constant 0 : index
    %c0_0 = arith.constant 0 : index
    %0 = vector.load %arg0[%c0, %c0_0] : memref<8x768xf32, #tpu.memory_space<vmem>>, vector<8x768xf32>
    %c0_1 = arith.constant 0 : index
    %c0_2 = arith.constant 0 : index
    %1 = vector.load %arg3[%c0_1, %c0_2] : memref<5x2304xf32, #tpu.memory_space<vmem>>, vector<1x2304xf32>
    %c1 = arith.constant 1 : index
    %c0_3 = arith.constant 0 : index
    %2 = vector.load %arg3[%c1, %c0_3] : memref<5x2304xf32, #tpu.memory_space<vmem>>, vector<1x2304xf32>
    %c2 = arith.constant 2 : index
    %c0_4 = arith.constant 0 : index
    %3 = vector.load %arg3[%c2, %c0_4] : memref<5x2304xf32, #tpu.memory_space<vmem>>, vector<1x2304xf32>
    %c3 = arith.constant 3 : index
    %c0_5 = arith.constant 0 : index
    %4 = vector.load %arg3[%c3, %c0_5] : memref<5x2304xf32, #tpu.memory_space<vmem>>, vector<1x2304xf32>
    %c4 = arith.constant 4 : index
    %c0_6 = arith.constant 0 : index
    %5 = vector.load %arg3[%c4, %c0_6] : memref<5x2304xf32, #tpu.memory_space<vmem>>, vector<1x2xf32>
    %6 = arith.truncf %0 : vector<8x768xf32> to vector<8x768xbf16>
    %c0_7 = arith.constant 0 : index
    %c0_8 = arith.constant 0 : index
    %7 = vector.load %arg1[%c0_7, %c0_8] : memref<768x2304xi8, #tpu.memory_space<vmem>>, vector<768x2304xi8>
    %8 = arith.sitofp %7 : vector<768x2304xi8> to vector<768x2304xbf16>
    %cst = arith.constant dense<0.000000e+00> : vector<8x2304xf32>
    %9 = tpu.matmul %6, %8, %cst {dimension_numbers = #tpu.dot_dimension_numbers<[1], [0], [0], [1], [0, 0, 1, 1], [], []>} : vector<8x768xbf16>, vector<768x2304xbf16>, vector<8x2304xf32> -> vector<8x2304xf32>
    %10 = vector.broadcast %1 : vector<1x2304xf32> to vector<8x2304xf32>
    %11 = arith.mulf %9, %10 : vector<8x2304xf32>
    %12 = vector.broadcast %2 : vector<1x2304xf32> to vector<8x2304xf32>
    %13 = arith.addf %11, %12 : vector<8x2304xf32>
    %14 = vector.extract_strided_slice %13 {offsets = [0, 0], sizes = [8, 384], strides = [1, 1]} : vector<8x2304xf32> to vector<8x384xf32>
    %15 = arith.negf %14 : vector<8x384xf32>
    %16 = math.exp %15 : vector<8x384xf32>
    %cst_9 = arith.constant 1.000000e+00 : f32
    %17 = vector.broadcast %cst_9 : f32 to vector<8x384xf32>
    %18 = arith.addf %17, %16 : vector<8x384xf32>
    %19 = arith.divf %17, %18 : vector<8x384xf32>
    %20 = vector.extract_strided_slice %13 {offsets = [0, 384], sizes = [8, 384], strides = [1, 1]} : vector<8x2304xf32> to vector<8x384xf32>
    %21 = math.tanh %20 : vector<8x384xf32>
    %22 = vector.extract_strided_slice %13 {offsets = [0, 768], sizes = [8, 384], strides = [1, 1]} : vector<8x2304xf32> to vector<8x384xf32>
    %23 = arith.negf %22 : vector<8x384xf32>
    %24 = math.exp %23 : vector<8x384xf32>
    %cst_10 = arith.constant 1.000000e+00 : f32
    %25 = vector.broadcast %cst_10 : f32 to vector<8x384xf32>
    %26 = arith.addf %25, %24 : vector<8x384xf32>
    %27 = arith.divf %25, %26 : vector<8x384xf32>
    %28 = arith.mulf %19, %21 : vector<8x384xf32>
    %29 = math.tanh %28 : vector<8x384xf32>
    %30 = arith.mulf %27, %29 : vector<8x384xf32>
    %31 = vector.extract_strided_slice %13 {offsets = [0, 1152], sizes = [8, 384], strides = [1, 1]} : vector<8x2304xf32> to vector<8x384xf32>
    %32 = arith.negf %31 : vector<8x384xf32>
    %33 = math.exp %32 : vector<8x384xf32>
    %cst_11 = arith.constant 1.000000e+00 : f32
    %34 = vector.broadcast %cst_11 : f32 to vector<8x384xf32>
    %35 = arith.addf %34, %33 : vector<8x384xf32>
    %36 = arith.divf %34, %35 : vector<8x384xf32>
    %37 = vector.extract_strided_slice %13 {offsets = [0, 1536], sizes = [8, 384], strides = [1, 1]} : vector<8x2304xf32> to vector<8x384xf32>
    %38 = math.tanh %37 : vector<8x384xf32>
    %39 = vector.extract_strided_slice %13 {offsets = [0, 1920], sizes = [8, 384], strides = [1, 1]} : vector<8x2304xf32> to vector<8x384xf32>
    %40 = arith.negf %39 : vector<8x384xf32>
    %41 = math.exp %40 : vector<8x384xf32>
    %cst_12 = arith.constant 1.000000e+00 : f32
    %42 = vector.broadcast %cst_12 : f32 to vector<8x384xf32>
    %43 = arith.addf %42, %41 : vector<8x384xf32>
    %44 = arith.divf %42, %43 : vector<8x384xf32>
    %45 = arith.mulf %36, %38 : vector<8x384xf32>
    %46 = math.tanh %45 : vector<8x384xf32>
    %47 = arith.mulf %44, %46 : vector<8x384xf32>
    %48 = tpu.concatenate %30, %47 in 1 : vector<8x384xf32>, vector<8x384xf32> -> vector<8x768xf32>
    tpu.wait_dma2 semaphore(%arg7 : memref<!tpu.dma_semaphore, #tpu.memory_space<semaphore_mem>>) src(%arg2 : memref<768x2304xi8, #tpu.memory_space<any>>) dst(%arg6 : memref<768x2304xi8, #tpu.memory_space<vmem>>)
    %49 = arith.truncf %48 : vector<8x768xf32> to vector<8x768xbf16>
    %c0_13 = arith.constant 0 : index
    %c0_14 = arith.constant 0 : index
    %50 = vector.load %arg6[%c0_13, %c0_14] : memref<768x2304xi8, #tpu.memory_space<vmem>>, vector<768x2304xi8>
    %51 = arith.sitofp %50 : vector<768x2304xi8> to vector<768x2304xbf16>
    %cst_15 = arith.constant dense<0.000000e+00> : vector<8x2304xf32>
    %52 = tpu.matmul %49, %51, %cst_15 {dimension_numbers = #tpu.dot_dimension_numbers<[1], [0], [0], [1], [0, 0, 1, 1], [], []>} : vector<8x768xbf16>, vector<768x2304xbf16>, vector<8x2304xf32> -> vector<8x2304xf32>
    %53 = vector.broadcast %3 : vector<1x2304xf32> to vector<8x2304xf32>
    %54 = arith.mulf %52, %53 : vector<8x2304xf32>
    %55 = vector.broadcast %4 : vector<1x2304xf32> to vector<8x2304xf32>
    %56 = arith.addf %54, %55 : vector<8x2304xf32>
    %57 = vector.extract_strided_slice %56 {offsets = [0, 0], sizes = [8, 384], strides = [1, 1]} : vector<8x2304xf32> to vector<8x384xf32>
    %58 = arith.negf %57 : vector<8x384xf32>
    %59 = math.exp %58 : vector<8x384xf32>
    %cst_16 = arith.constant 1.000000e+00 : f32
    %60 = vector.broadcast %cst_16 : f32 to vector<8x384xf32>
    %61 = arith.addf %60, %59 : vector<8x384xf32>
    %62 = arith.divf %60, %61 : vector<8x384xf32>
    %63 = vector.extract_strided_slice %56 {offsets = [0, 384], sizes = [8, 384], strides = [1, 1]} : vector<8x2304xf32> to vector<8x384xf32>
    %64 = math.tanh %63 : vector<8x384xf32>
    %65 = vector.extract_strided_slice %56 {offsets = [0, 768], sizes = [8, 384], strides = [1, 1]} : vector<8x2304xf32> to vector<8x384xf32>
    %66 = arith.negf %65 : vector<8x384xf32>
    %67 = math.exp %66 : vector<8x384xf32>
    %cst_17 = arith.constant 1.000000e+00 : f32
    %68 = vector.broadcast %cst_17 : f32 to vector<8x384xf32>
    %69 = arith.addf %68, %67 : vector<8x384xf32>
    %70 = arith.divf %68, %69 : vector<8x384xf32>
    %71 = arith.mulf %62, %64 : vector<8x384xf32>
    %72 = math.tanh %71 : vector<8x384xf32>
    %73 = arith.mulf %70, %72 : vector<8x384xf32>
    %74 = vector.extract_strided_slice %56 {offsets = [0, 1152], sizes = [8, 384], strides = [1, 1]} : vector<8x2304xf32> to vector<8x384xf32>
    %75 = arith.negf %74 : vector<8x384xf32>
    %76 = math.exp %75 : vector<8x384xf32>
    %cst_18 = arith.constant 1.000000e+00 : f32
    %77 = vector.broadcast %cst_18 : f32 to vector<8x384xf32>
    %78 = arith.addf %77, %76 : vector<8x384xf32>
    %79 = arith.divf %77, %78 : vector<8x384xf32>
    %80 = vector.extract_strided_slice %56 {offsets = [0, 1536], sizes = [8, 384], strides = [1, 1]} : vector<8x2304xf32> to vector<8x384xf32>
    %81 = math.tanh %80 : vector<8x384xf32>
    %82 = vector.extract_strided_slice %56 {offsets = [0, 1920], sizes = [8, 384], strides = [1, 1]} : vector<8x2304xf32> to vector<8x384xf32>
    %83 = arith.negf %82 : vector<8x384xf32>
    %84 = math.exp %83 : vector<8x384xf32>
    %cst_19 = arith.constant 1.000000e+00 : f32
    %85 = vector.broadcast %cst_19 : f32 to vector<8x384xf32>
    %86 = arith.addf %85, %84 : vector<8x384xf32>
    %87 = arith.divf %85, %86 : vector<8x384xf32>
    %88 = arith.mulf %79, %81 : vector<8x384xf32>
    %89 = math.tanh %88 : vector<8x384xf32>
    %90 = arith.mulf %87, %89 : vector<8x384xf32>
    %91 = tpu.concatenate %73, %90 in 1 : vector<8x384xf32>, vector<8x384xf32> -> vector<8x768xf32>
    %92 = arith.truncf %91 : vector<8x768xf32> to vector<8x768xbf16>
    %c0_20 = arith.constant 0 : index
    %c0_21 = arith.constant 0 : index
    %93 = vector.load %arg4[%c0_20, %c0_21] : memref<768x3xbf16, #tpu.memory_space<vmem>>, vector<768x3xbf16>
    %cst_22 = arith.constant dense<0.000000e+00> : vector<8x3xf32>
    %94 = tpu.matmul %92, %93, %cst_22 {dimension_numbers = #tpu.dot_dimension_numbers<[1], [0], [0], [1], [0, 0, 1, 1], [], []>} : vector<8x768xbf16>, vector<768x3xbf16>, vector<8x3xf32> -> vector<8x3xf32>
    %95 = vector.extract_strided_slice %94 {offsets = [0, 0], sizes = [8, 2], strides = [1, 1]} : vector<8x3xf32> to vector<8x2xf32>
    %96 = vector.extract_strided_slice %94 {offsets = [0, 2], sizes = [8, 1], strides = [1, 1]} : vector<8x3xf32> to vector<8x1xf32>
    %cst_23 = arith.constant dense<0xFF800000> : vector<1xf32>
    %97 = vector.multi_reduction <maximumf>, %96, %cst_23 [0] : vector<8x1xf32> to vector<1xf32>
    %98 = vector.shape_cast %97 : vector<1xf32> to vector<1x1xf32>
    %99 = vector.broadcast %98 : vector<1x1xf32> to vector<8x1xf32>
    %100 = arith.subf %96, %99 : vector<8x1xf32>
    %101 = math.exp %100 : vector<8x1xf32>
    %cst_24 = arith.constant dense<0.000000e+00> : vector<1xf32>
    %102 = vector.multi_reduction <add>, %101, %cst_24 [0] : vector<8x1xf32> to vector<1xf32>
    %103 = vector.shape_cast %102 : vector<1xf32> to vector<1x1xf32>
    %104 = vector.broadcast %103 : vector<1x1xf32> to vector<8x1xf32>
    %105 = arith.divf %101, %104 : vector<8x1xf32>
    %106 = vector.broadcast %105 : vector<8x1xf32> to vector<8x2xf32>
    %107 = arith.mulf %95, %106 : vector<8x2xf32>
    %108 = vector.broadcast %5 : vector<1x2xf32> to vector<8x2xf32>
    %109 = arith.addf %107, %108 : vector<8x2xf32>
    %c0_25 = arith.constant 0 : index
    %c0_26 = arith.constant 0 : index
    %110 = vector.load %arg5[%c0_25, %c0_26] : memref<8x2xf32, #tpu.memory_space<vmem>>, vector<8x2xf32>
    tpu.vector_store %arg5[%c0_25, %c0_26], %109 {strides = array<i32>} : memref<8x2xf32, #tpu.memory_space<vmem>>, vector<8x2xf32>,
    return
  }
}

</mosaic_0001>

<llo_original>
// kernel: tpu_custom_call.1
$region0: #{tpu_custom_call.1}
  #allocation0 [shape = 'u32[]', space=smem, size = 0x4, offset = 0x4, fixed_abs, tag = 'smem constant byte address 0x4 - core index']
  #allocation1 [shape = 'u32[144,128]{1,0:T(1,128)}', space=vmem, size = 0x12000, scoped, tag = 'internal scratch']
  #allocation2 [shape = 's8[768,2304]{1,0:T(32,128)(4,1)}', space=vmem, size = 0x1b0000, scoped, tag = 'scratch operand']
  #allocation3 [shape = 's32[1]{0}', space=sflag, size = 0x4, scoped, tag = 'scratch operand']
  #allocation9 [shape = 's32[]', space=sflag, size = 0x4, offset = 0, fixed_abs, tag = 'sflag constant byte address 0x0 - dummy sync flag']
  #allocation10 [shape = 's32[]', space=sflag, size = 0x4, offset = 0, fixed_abs, tag = 'sflag constant byte address 0x0 - dummy sync flag']
  #allocation11 [shape = 'u32[]', space=smem, size = 0x4, offset = 0x44, fixed_abs, tag = 'smem constant byte address 0x44 - assertion arg 0']
  #allocation12 [shape = 'u32[]', space=smem, size = 0x4, offset = 0x48, fixed_abs, tag = 'smem constant byte address 0x48 - assertion arg 1']
  %s0 = inlined_call_operand.hbm [shape: f32[8,768], index: 0, kind: input, shape index: {}]
  %s1 = inlined_call_operand.hbm [shape: s8[768,2304], index: 1, kind: input, shape index: {}]
  %s2 = inlined_call_operand.hbm [shape: s8[768,2304], index: 2, kind: input, shape index: {}]
  %s3 = inlined_call_operand.hbm [shape: f32[5,2304], index: 3, kind: input, shape index: {}]
  %s4 = inlined_call_operand.vmem [shape: bf16[768,3], index: 4, kind: input, shape index: {}]
  %s5 = inlined_call_operand.vmem [shape: f32[8,2], index: 5, kind: output, shape index: {}]
  %s6 = sld [smem:[#allocation0]]
  $region42: #{tpu_custom_call.1} parent=0
    _
  %s8 = ssub.s32 1, %s6
  %s9 = scalar_select 0, %s8, %s6
  $region1: #{tpu_custom_call.1} parent=0
    #allocation4 [shape = 'u8[24576]{0}', space=vmem, size = 0x6000, scoped, tag = 'input window, operand 0, single buffered']
    #allocation5 [shape = 's32[1]{0}', space=sflag, size = 0x4, scoped, tag = 'scoped memory for tpu_custom_call.1']
    #allocation6 [shape = 'u8[1769472]{0}', space=vmem, size = 0x1b0000, scoped, tag = 'input window, operand 1, single buffered']
    #allocation7 [shape = 's32[1]{0}', space=sflag, size = 0x4, scoped, tag = 'scoped memory for tpu_custom_call.1']
    #allocation8 [shape = 'u8[73728]{0}', space=vmem, size = 0x12000, scoped, tag = 'input window, operand 3, single buffered']
    %10 = vsyncpa [#allocation5], 0
    %11 = vsyncpa [#allocation7], 0
    // Predicated region
    $region2: #{tpu_custom_call.1} parent=1 // pred_check
      _
    $region3: #{tpu_custom_call.1} parent=1 // pred_check_branch
      %13 = sbr.rel (0) target = $region5
    $region4: #{tpu_custom_call.1} parent=1 // pred_region
      %s15 = ssub.s32 768, 768
      %16 = vsyncadd [#allocation5], %s15
      %s18 = sshll.u32 [#allocation4], 4
      %s19 = int_to_ptr.vmem [resolvable:$true] %s18
      %21 = dma.hbm_to_vmem [thread:$0]  %s0, 768, %s19, [#allocation5]
    $region5: #{tpu_custom_call.1} parent=1 // pred_fallthru
      _
    // Predicated region
    $region6: #{tpu_custom_call.1} parent=1 // pred_check
      _
    $region7: #{tpu_custom_call.1} parent=1 // pred_check_branch
      %23 = sbr.rel (0) target = $region9
    $region8: #{tpu_custom_call.1} parent=1 // pred_region
      %s25 = ssub.s32 55296, 55296
      %26 = vsyncadd [#allocation7], %s25
      %s27 = sshll.u32 [#allocation6], 4
      %s28 = int_to_ptr.vmem [resolvable:$true] %s27
      %33 = dma.hbm_to_vmem [thread:$0]  %s1, 55296, %s28, [#allocation7], 2304, 2304, 144
    $region9: #{tpu_custom_call.1} parent=1 // pred_fallthru
      _
    // Predicated region
    $region10: #{tpu_custom_call.1} parent=1 // pred_check
      _
    $region11: #{tpu_custom_call.1} parent=1 // pred_check_branch
      %35 = sbr.rel (0) target = $region13
    $region12: #{tpu_custom_call.1} parent=1 // pred_region
      %s37 = ssub.s32 2304, 2304
      %38 = vsyncadd [#allocation7], %s37
      %s40 = sshll.u32 [#allocation8], 4
      %s41 = int_to_ptr.vmem [resolvable:$true] %s40
      %43 = dma.hbm_to_vmem [thread:$0]  %s3, 2304, %s41, [#allocation7]
    $region13: #{tpu_custom_call.1} parent=1 // pred_fallthru
      _
    // Predicated region
    $region14: #{tpu_custom_call.1} parent=1 // pred_check
      _
    $region15: #{tpu_custom_call.1} parent=1 // pred_check_branch
      %45 = sbr.rel (0) target = $region17
    $region16: #{tpu_custom_call.1} parent=1 // pred_region
      _
    $region17: #{tpu_custom_call.1} parent=1 // pred_fallthru
      _
    // Predicated region
    $region18: #{tpu_custom_call.1} parent=1 // pred_check
      _
    $region19: #{tpu_custom_call.1} parent=1 // pred_check_branch
      %47 = sbr.rel (0) target = $region21
    $region20: #{tpu_custom_call.1} parent=1 // pred_region
      %48 = dma.done [#allocation5], 768
    $region21: #{tpu_custom_call.1} parent=1 // pred_fallthru
      _
    // Predicated region
    $region22: #{tpu_custom_call.1} parent=1 // pred_check
      _
    $region23: #{tpu_custom_call.1} parent=1 // pred_check_branch
      %50 = sbr.rel (0) target = $region25
    $region24: #{tpu_custom_call.1} parent=1 // pred_region
      %51 = dma.done [#allocation7], 55296
    $region25: #{tpu_custom_call.1} parent=1 // pred_fallthru
      _
    // Predicated region
    $region26: #{tpu_custom_call.1} parent=1 // pred_check
      _
    $region27: #{tpu_custom_call.1} parent=1 // pred_check_branch
      %53 = sbr.rel (0) target = $region29
    $region28: #{tpu_custom_call.1} parent=1 // pred_region
      %54 = dma.done [#allocation7], 2304
    $region29: #{tpu_custom_call.1} parent=1 // pred_fallthru
      _
    // Predicated region
    $region30: #{tpu_custom_call.1} parent=1 // pred_check
      _
    $region31: #{tpu_custom_call.1} parent=1 // pred_check_branch
      %57 = sbr.rel target = $region33
    $region32: #{tpu_custom_call.1} parent=1 // pred_region
      %58 = sst [smem:[#allocation11]] [#allocation10]
      %59 = sst [smem:[#allocation12]] [#allocation9]
    $region33: #{tpu_custom_call.1} parent=1 // pred_fallthru
      _
    %61 = shalt.err (0)
    %s63 = sshll.u32 [#allocation2], 4
    %s64 = int_to_ptr.vmem [resolvable:$true] %s63
    %66 = dma.hbm_to_vmem [thread:$0]  %s2, 55296, %s64, [#allocation3]
    %v67 = vld [vmem:[#allocation4] sm:$0xff]
    %v68 = vld [vmem:[#allocation4 + $0x8] sm:$0xff]
    %v69 = vld [vmem:[#allocation4 + $0x10] sm:$0xff]
    %v70 = vld [vmem:[#allocation4 + $0x18] sm:$0xff]
    %v71 = vld [vmem:[#allocation4 + $0x20] sm:$0xff]
    %v72 = vld [vmem:[#allocation4 + $0x28] sm:$0xff]
    %v73 = vld [vmem:[#allocation8] ss:$8 sm:$0xf]
    %v74 = vld [vmem:[#allocation8] ss:$8 sm:$0xf0]
    %v75 = vor.u32 %v73, %v74
    %s76 = scalar_lea.vmem [#allocation8], 64
    %v77 = vld [vmem:[%s76] ss:$8 sm:$0xf]
    %v78 = vld [vmem:[%s76] ss:$8 sm:$0xf0]
    %v79 = vor.u32 %v77, %v78
    %s80 = scalar_lea.vmem [#allocation8], 128
    %v81 = vld [vmem:[%s80] ss:$8 sm:$0x3]
    %s82 = scalar_lea.vmem [#allocation8], 1
    %v83 = vld [vmem:[%s82] ss:$8 sm:$0xf]
    %v84 = vld [vmem:[%s82] ss:$8 sm:$0xf0]
    %v85 = vor.u32 %v83, %v84
    %s86 = scalar_lea.vmem [#allocation8], 65
    %v87 = vld [vmem:[%s86] ss:$8 sm:$0xf]
    %v88 = vld [vmem:[%s86] ss:$8 sm:$0xf0]
    %v89 = vor.u32 %v87, %v88
    %s90 = scalar_lea.vmem [#allocation8], 129
    %v91 = vld [vmem:[%s90] ss:$8 sm:$0x3]
    %s92 = scalar_lea.vmem [#allocation8], 2
    %v93 = vld [vmem:[%s92] ss:$8 sm:$0xf]
    %v94 = vld [vmem:[%s92] ss:$8 sm:$0xf0]
    %v95 = vor.u32 %v93, %v94
    %s96 = scalar_lea.vmem [#allocation8], 66
    %v97 = vld [vmem:[%s96] ss:$8 sm:$0xf]
    %v98 = vld [vmem:[%s96] ss:$8 sm:$0xf0]
    %v99 = vor.u32 %v97, %v98
    %s100 = scalar_lea.vmem [#allocation8], 130
    %v101 = vld [vmem:[%s100] ss:$8 sm:$0x3]
    %s102 = scalar_lea.vmem [#allocation8], 3
    %v103 = vld [vmem:[%s102] ss:$8 sm:$0xf]
    %v104 = vld [vmem:[%s102] ss:$8 sm:$0xf0]
    %v105 = vor.u32 %v103, %v104
    %s106 = scalar_lea.vmem [#allocation8], 67
    %v107 = vld [vmem:[%s106] ss:$8 sm:$0xf]
    %v108 = vld [vmem:[%s106] ss:$8 sm:$0xf0]
    %v109 = vor.u32 %v107, %v108
    %s110 = scalar_lea.vmem [#allocation8], 131
    %v111 = vld [vmem:[%s110] ss:$8 sm:$0x3]
    %v112 = vld [vmem:[#allocation8 + $0x4] ss:$0 sm:$0xff]
    %v113 = vpack.c.bf16 %v67, %v67
    %v114 = vpack.c.bf16 %v68, %v68
    %v115 = vpack.c.bf16 %v69, %v69
    %v116 = vpack.c.bf16 %v70, %v70
    %v117 = vpack.c.bf16 %v71, %v71
    %v118 = vpack.c.bf16 %v72, %v72
    %v119 = vld [vmem:[#allocation6] sm:$0xff]
    %v120 = vld [vmem:[#allocation6 + $0x8] sm:$0xff]
    %v121 = vld [vmem:[#allocation6 + $0x10] sm:$0xff]
    %v122 = vld [vmem:[#allocation6 + $0x18] sm:$0xff]
    %v123 = vld [vmem:[#allocation6 + $0x20] sm:$0xff]
    %v124 = vld [vmem:[#allocation6 + $0x28] sm:$0xff]
    %v125 = vld [vmem:[#allocation6 + $0x30] sm:$0xff]
    %v126 = vld [vmem:[#allocation6 + $0x38] sm:$0xff]
    %v127 = vld [vmem:[#allocation6 + $0x40] sm:$0xff]
    %v128 = vld [vmem:[#allocation6 + $0x48] sm:$0xff]
    %v129 = vld [vmem:[#allocation6 + $0x50] sm:$0xff]
    %v130 = vld [vmem:[#allocation6 + $0x58] sm:$0xff]
    %v131 = vld [vmem:[#allocation6 + $0x60] sm:$0xff]
    %v132 = vld [vmem:[#allocation6 + $0x68] sm:$0xff]
    %v133 = vld [vmem:[#allocation6 + $0x70] sm:$0xff]
    %v134 = vld [vmem:[#allocation6 + $0x78] sm:$0xff]
    %v135 = vld [vmem:[#allocation6 + $0x80] sm:$0xff]
    %v136 = vld [vmem:[#allocation6 + $0x88] sm:$0xff]
    %v137 = vld [vmem:[#allocation6 + $0x90] sm:$0xff]
    %v138 = vld [vmem:[#allocation6 + $0x98] sm:$0xff]
    %v139 = vld [vmem:[#allocation6 + $0xa0] sm:$0xff]
    %v140 = vld [vmem:[#allocation6 + $0xa8] sm:$0xff]
    %v141 = vld [vmem:[#allocation6 + $0xb0] sm:$0xff]
    %v142 = vld [vmem:[#allocation6 + $0xb8] sm:$0xff]
    %v143 = vld [vmem:[#allocation6 + $0xc0] sm:$0xff]
    %v144 = vld [vmem:[#allocation6 + $0xc8] sm:$0xff]
    %v145 = vld [vmem:[#allocation6 + $0xd0] sm:$0xff]
    %v146 = vld [vmem:[#allocation6 + $0xd8] sm:$0xff]
    %v147 = vld [vmem:[#allocation6 + $0xe0] sm:$0xff]
    %v148 = vld [vmem:[#allocation6 + $0xe8] sm:$0xff]
    %v149 = vld [vmem:[#allocation6 + $0xf0] sm:$0xff]
    %v150 = vld [vmem:[#allocation6 + $0xf8] sm:$0xff]
    %v151 = vld [vmem:[#allocation6 + $0x100] sm:$0xff]
    %v152 = vld [vmem:[#allocation6 + $0x108] sm:$0xff]
    %v153 = vld [vmem:[#allocation6 + $0x110] sm:$0xff]
    %v154 = vld [vmem:[#allocation6 + $0x118] sm:$0xff]
    %v155 = vld [vmem:[#allocation6 + $0x120] sm:$0xff]
    %v156 = vld [vmem:[#allocation6 + $0x128] sm:$0xff]
    %v157 = vld [vmem:[#allocation6 + $0x130] sm:$0xff]
    %v158 = vld [vmem:[#allocation6 + $0x138] sm:$0xff]
    %v159 = vld [vmem:[#allocation6 + $0x140] sm:$0xff]
    %v160 = vld [vmem:[#allocation6 + $0x148] sm:$0xff]
    %v161 = vld [vmem:[#allocation6 + $0x150] sm:$0xff]
    %v162 = vld [vmem:[#allocation6 + $0x158] sm:$0xff]
    %v163 = vld [vmem:[#allocation6 + $0x160] sm:$0xff]
    %v164 = vld [vmem:[#allocation6 + $0x168] sm:$0xff]
    %v165 = vld [vmem:[#allocation6 + $0x170] sm:$0xff]
    %v166 = vld [vmem:[#allocation6 + $0x178] sm:$0xff]
    %v167 = vld [vmem:[#allocation6 + $0x180] sm:$0xff]
    %v168 = vld [vmem:[#allocation6 + $0x188] sm:$0xff]
    %v169 = vld [vmem:[#allocation6 + $0x190] sm:$0xff]
    %v170 = vld [vmem:[#allocation6 + $0x198] sm:$0xff]
    %v171 = vld [vmem:[#allocation6 + $0x1a0] sm:$0xff]
    %v172 = vld [vmem:[#allocation6 + $0x1a8] sm:$0xff]
    %v173 = vld [vmem:[#allocation6 + $0x1b0] sm:$0xff]
    %v174 = vld [vmem:[#allocation6 + $0x1b8] sm:$0xff]
    %v175 = vld [vmem:[#allocation6 + $0x1c0] sm:$0xff]
    %v176 = vld [vmem:[#allocation6 + $0x1c8] sm:$0xff]
    %v177 = vld [vmem:[#allocation6 + $0x1d0] sm:$0xff]
    %v178 = vld [vmem:[#allocation6 + $0x1d8] sm:$0xff]
    %v179 = vld [vmem:[#allocation6 + $0x1e0] sm:$0xff]
    %v180 = vld [vmem:[#allocation6 + $0x1e8] sm:$0xff]
    %v181 = vld [vmem:[#allocation6 + $0x1f0] sm:$0xff]
    %v182 = vld [vmem:[#allocation6 + $0x1f8] sm:$0xff]
    %v183 = vld [vmem:[#allocation6 + $0x200] sm:$0xff]
    %v184 = vld [vmem:[#allocation6 + $0x208] sm:$0xff]
    %v185 = vld [vmem:[#allocation6 + $0x210] sm:$0xff]
    %v186 = vld [vmem:[#allocation6 + $0x218] sm:$0xff]
    %v187 = vld [vmem:[#allocation6 + $0x220] sm:$0xff]
    %v188 = vld [vmem:[#allocation6 + $0x228] sm:$0xff]
    %v189 = vld [vmem:[#allocation6 + $0x230] sm:$0xff]
    %v190 = vld [vmem:[#allocation6 + $0x238] sm:$0xff]
    %v191 = vld [vmem:[#allocation6 + $0x240] sm:$0xff]
    %v192 = vld [vmem:[#allocation6 + $0x248] sm:$0xff]
    %v193 = vld [vmem:[#allocation6 + $0x250] sm:$0xff]
    %v194 = vld [vmem:[#allocation6 + $0x258] sm:$0xff]
    %v195 = vld [vmem:[#allocation6 + $0x260] sm:$0xff]
    %v196 = vld [vmem:[#allocation6 + $0x268] sm:$0xff]
    %v197 = vld [vmem:[#allocation6 + $0x270] sm:$0xff]
    %v198 = vld [vmem:[#allocation6 + $0x278] sm:$0xff]
    %v199 = vld [vmem:[#allocation6 + $0x280] sm:$0xff]
    %v200 = vld [vmem:[#allocation6 + $0x288] sm:$0xff]
    %v201 = vld [vmem:[#allocation6 + $0x290] sm:$0xff]
    %v202 = vld [vmem:[#allocation6 + $0x298] sm:$0xff]
    %v203 = vld [vmem:[#allocation6 + $0x2a0] sm:$0xff]
    %v204 = vld [vmem:[#allocation6 + $0x2a8] sm:$0xff]
    %v205 = vld [vmem:[#allocation6 + $0x2b0] sm:$0xff]
    %v206 = vld [vmem:[#allocation6 + $0x2b8] sm:$0xff]
    %v207 = vld [vmem:[#allocation6 + $0x2c0] sm:$0xff]
    %v208 = vld [vmem:[#allocation6 + $0x2c8] sm:$0xff]
    %v209 = vld [vmem:[#allocation6 + $0x2d0] sm:$0xff]
    %v210 = vld [vmem:[#allocation6 + $0x2d8] sm:$0xff]
    %v211 = vld [vmem:[#allocation6 + $0x2e0] sm:$0xff]
    %v212 = vld [vmem:[#allocation6 + $0x2e8] sm:$0xff]
    %v213 = vld [vmem:[#allocation6 + $0x2f0] sm:$0xff]
    %v214 = vld [vmem:[#allocation6 + $0x2f8] sm:$0xff]
    %v215 = vld [vmem:[#allocation6 + $0x300] sm:$0xff]
    %v216 = vld [vmem:[#allocation6 + $0x308] sm:$0xff]
    %v217 = vld [vmem:[#allocation6 + $0x310] sm:$0xff]
    %v218 = vld [vmem:[#allocation6 + $0x318] sm:$0xff]
    %v219 = vld [vmem:[#allocation6 + $0x320] sm:$0xff]
    %v220 = vld [vmem:[#allocation6 + $0x328] sm:$0xff]
    %v221 = vld [vmem:[#allocation6 + $0x330] sm:$0xff]
    %v222 = vld [vmem:[#allocation6 + $0x338] sm:$0xff]
    %v223 = vld [vmem:[#allocation6 + $0x340] sm:$0xff]
    %v224 = vld [vmem:[#allocation6 + $0x348] sm:$0xff]
    %v225 = vld [vmem:[#allocation6 + $0x350] sm:$0xff]
    %v226 = vld [vmem:[#allocation6 + $0x358] sm:$0xff]
    %v227 = vld [vmem:[#allocation6 + $0x360] sm:$0xff]
    %v228 = vld [vmem:[#allocation6 + $0x368] sm:$0xff]
    %v229 = vld [vmem:[#allocation6 + $0x370] sm:$0xff]
    %v230 = vld [vmem:[#allocation6 + $0x378] sm:$0xff]
    %v231 = vld [vmem:[#allocation6 + $0x380] sm:$0xff]
    %v232 = vld [vmem:[#allocation6 + $0x388] sm:$0xff]
    %v233 = vld [vmem:[#allocation6 + $0x390] sm:$0xff]
    %v234 = vld [vmem:[#allocation6 + $0x398] sm:$0xff]
    %v235 = vld [vmem:[#allocation6 + $0x3a0] sm:$0xff]
    %v236 = vld [vmem:[#allocation6 + $0x3a8] sm:$0xff]
    %v237 = vld [vmem:[#allocation6 + $0x3b0] sm:$0xff]
    %v238 = vld [vmem:[#allocation6 + $0x3b8] sm:$0xff]
    %v239 = vld [vmem:[#allocation6 + $0x3c0] sm:$0xff]
    %v240 = vld [vmem:[#allocation6 + $0x3c8] sm:$0xff]
    %v241 = vld [vmem:[#allocation6 + $0x3d0] sm:$0xff]
    %v242 = vld [vmem:[#allocation6 + $0x3d8] sm:$0xff]
    %v243 = vld [vmem:[#allocation6 + $0x3e0] sm:$0xff]
    %v244 = vld [vmem:[#allocation6 + $0x3e8] sm:$0xff]
    %v245 = vld [vmem:[#allocation6 + $0x3f0] sm:$0xff]
    %v246 = vld [vmem:[#allocation6 + $0x3f8] sm:$0xff]
    %v247 = vld [vmem:[#allocation6 + $0x400] sm:$0xff]
    %v248 = vld [vmem:[#allocation6 + $0x408] sm:$0xff]
    %v249 = vld [vmem:[#allocation6 + $0x410] sm:$0xff]
    %v250 = vld [vmem:[#allocation6 + $0x418] sm:$0xff]
    %v251 = vld [vmem:[#allocation6 + $0x420] sm:$0xff]
    %v252 = vld [vmem:[#allocation6 + $0x428] sm:$0xff]
    %v253 = vld [vmem:[#allocation6 + $0x430] sm:$0xff]
    %v254 = vld [vmem:[#allocation6 + $0x438] sm:$0xff]
    %v255 = vld [vmem:[#allocation6 + $0x440] sm:$0xff]
    %v256 = vld [vmem:[#allocation6 + $0x448] sm:$0xff]
    %v257 = vld [vmem:[#allocation6 + $0x450] sm:$0xff]
    %v258 = vld [vmem:[#allocation6 + $0x458] sm:$0xff]
    %v259 = vld [vmem:[#allocation6 + $0x460] sm:$0xff]
    %v260 = vld [vmem:[#allocation6 + $0x468] sm:$0xff]
    %v261 = vld [vmem:[#allocation6 + $0x470] sm:$0xff]
    %v262 = vld [vmem:[#allocation6 + $0x478] sm:$0xff]
    %v263 = vld [vmem:[#allocation6 + $0x480] sm:$0xff]
    %v264 = vld [vmem:[#allocation6 + $0x488] sm:$0xff]
    %v265 = vld [vmem:[#allocation6 + $0x490] sm:$0xff]
    %v266 = vld [vmem:[#allocation6 + $0x498] sm:$0xff]
    %v267 = vld [vmem:[#allocation6 + $0x4a0] sm:$0xff]
    %v268 = vld [vmem:[#allocation6 + $0x4a8] sm:$0xff]
    %v269 = vld [vmem:[#allocation6 + $0x4b0] sm:$0xff]
    %v270 = vld [vmem:[#allocation6 + $0x4b8] sm:$0xff]
    %v271 = vld [vmem:[#allocation6 + $0x4c0] sm:$0xff]
    %v272 = vld [vmem:[#allocation6 + $0x4c8] sm:$0xff]
    %v273 = vld [vmem:[#allocation6 + $0x4d0] sm:$0xff]
    %v274 = vld [vmem:[#allocation6 + $0x4d8] sm:$0xff]
    %v275 = vld [vmem:[#allocation6 + $0x4e0] sm:$0xff]
    %v276 = vld [vmem:[#allocation6 + $0x4e8] sm:$0xff]
    %v277 = vld [vmem:[#allocation6 + $0x4f0] sm:$0xff]
    %v278 = vld [vmem:[#allocation6 + $0x4f8] sm:$0xff]
    %v279 = vld [vmem:[#allocation6 + $0x500] sm:$0xff]
    %v280 = vld [vmem:[#allocation6 + $0x508] sm:$0xff]
    %v281 = vld [vmem:[#allocation6 + $0x510] sm:$0xff]
    %v282 = vld [vmem:[#allocation6 + $0x518] sm:$0xff]
    %v283 = vld [vmem:[#allocation6 + $0x520] sm:$0xff]
    %v284 = vld [vmem:[#allocation6 + $0x528] sm:$0xff]
    %v285 = vld [vmem:[#allocation6 + $0x530] sm:$0xff]
    %v286 = vld [vmem:[#allocation6 + $0x538] sm:$0xff]
    %v287 = vld [vmem:[#allocation6 + $0x540] sm:$0xff]
    %v288 = vld [vmem:[#allocation6 + $0x548] sm:$0xff]
    %v289 = vld [vmem:[#allocation6 + $0x550] sm:$0xff]
    %v290 = vld [vmem:[#allocation6 + $0x558] sm:$0xff]
    %v291 = vld [vmem:[#allocation6 + $0x560] sm:$0xff]
    %v292 = vld [vmem:[#allocation6 + $0x568] sm:$0xff]
    %v293 = vld [vmem:[#allocation6 + $0x570] sm:$0xff]
    %v294 = vld [vmem:[#allocation6 + $0x578] sm:$0xff]
    %v295 = vld [vmem:[#allocation6 + $0x580] sm:$0xff]
    %v296 = vld [vmem:[#allocation6 + $0x588] sm:$0xff]
    %v297 = vld [vmem:[#allocation6 + $0x590] sm:$0xff]
    %v298 = vld [vmem:[#allocation6 + $0x598] sm:$0xff]
    %v299 = vld [vmem:[#allocation6 + $0x5a0] sm:$0xff]
    %v300 = vld [vmem:[#allocation6 + $0x5a8] sm:$0xff]
    %v301 = vld [vmem:[#allocation6 + $0x5b0] sm:$0xff]
    %v302 = vld [vmem:[#allocation6 + $0x5b8] sm:$0xff]
    %v303 = vld [vmem:[#allocation6 + $0x5c0] sm:$0xff]
    %v304 = vld [vmem:[#allocation6 + $0x5c8] sm:$0xff]
    %v305 = vld [vmem:[#allocation6 + $0x5d0] sm:$0xff]
    %v306 = vld [vmem:[#allocation6 + $0x5d8] sm:$0xff]
    %v307 = vld [vmem:[#allocation6 + $0x5e0] sm:$0xff]
    %v308 = vld [vmem:[#allocation6 + $0x5e8] sm:$0xff]
    %v309 = vld [vmem:[#allocation6 + $0x5f0] sm:$0xff]
    %v310 = vld [vmem:[#allocation6 + $0x5f8] sm:$0xff]
    %v311 = vld [vmem:[#allocation6 + $0x600] sm:$0xff]
    %v312 = vld [vmem:[#allocation6 + $0x608] sm:$0xff]
    %v313 = vld [vmem:[#allocation6 + $0x610] sm:$0xff]
    %v314 = vld [vmem:[#allocation6 + $0x618] sm:$0xff]
    %v315 = vld [vmem:[#allocation6 + $0x620] sm:$0xff]
    %v316 = vld [vmem:[#allocation6 + $0x628] sm:$0xff]
    %v317 = vld [vmem:[#allocation6 + $0x630] sm:$0xff]
    %v318 = vld [vmem:[#allocation6 + $0x638] sm:$0xff]
    %v319 = vld [vmem:[#allocation6 + $0x640] sm:$0xff]
    %v320 = vld [vmem:[#allocation6 + $0x648] sm:$0xff]
    %v321 = vld [vmem:[#allocation6 + $0x650] sm:$0xff]
    %v322 = vld [vmem:[#allocation6 + $0x658] sm:$0xff]
    %v323 = vld [vmem:[#allocation6 + $0x660] sm:$0xff]
    %v324 = vld [vmem:[#allocation6 + $0x668] sm:$0xff]
    %v325 = vld [vmem:[#allocation6 + $0x670] sm:$0xff]
    %v326 = vld [vmem:[#allocation6 + $0x678] sm:$0xff]
    %v327 = vld [vmem:[#allocation6 + $0x680] sm:$0xff]
    %v328 = vld [vmem:[#allocation6 + $0x688] sm:$0xff]
    %v329 = vld [vmem:[#allocation6 + $0x690] sm:$0xff]
    %v330 = vld [vmem:[#allocation6 + $0x698] sm:$0xff]
    %v331 = vld [vmem:[#allocation6 + $0x6a0] sm:$0xff]
    %v332 = vld [vmem:[#allocation6 + $0x6a8] sm:$0xff]
    %v333 = vld [vmem:[#allocation6 + $0x6b0] sm:$0xff]
    %v334 = vld [vmem:[#allocation6 + $0x6b8] sm:$0xff]
    %v335 = vld [vmem:[#allocation6 + $0x6c0] sm:$0xff]
    %v336 = vld [vmem:[#allocation6 + $0x6c8] sm:$0xff]
    %v337 = vld [vmem:[#allocation6 + $0x6d0] sm:$0xff]
    %v338 = vld [vmem:[#allocation6 + $0x6d8] sm:$0xff]
    %v339 = vld [vmem:[#allocation6 + $0x6e0] sm:$0xff]
    %v340 = vld [vmem:[#allocation6 + $0x6e8] sm:$0xff]
    %v341 = vld [vmem:[#allocation6 + $0x6f0] sm:$0xff]
    %v342 = vld [vmem:[#allocation6 + $0x6f8] sm:$0xff]
    %v343 = vld [vmem:[#allocation6 + $0x700] sm:$0xff]
    %v344 = vld [vmem:[#allocation6 + $0x708] sm:$0xff]
    %v345 = vld [vmem:[#allocation6 + $0x710] sm:$0xff]
    %v346 = vld [vmem:[#allocation6 + $0x718] sm:$0xff]
    %v347 = vld [vmem:[#allocation6 + $0x720] sm:$0xff]
    %v348 = vld [vmem:[#allocation6 + $0x728] sm:$0xff]
    %v349 = vld [vmem:[#allocation6 + $0x730] sm:$0xff]
    %v350 = vld [vmem:[#allocation6 + $0x738] sm:$0xff]
    %v351 = vld [vmem:[#allocation6 + $0x740] sm:$0xff]
    %v352 = vld [vmem:[#allocation6 + $0x748] sm:$0xff]
    %v353 = vld [vmem:[#allocation6 + $0x750] sm:$0xff]
    %v354 = vld [vmem:[#allocation6 + $0x758] sm:$0xff]
    %v355 = vld [vmem:[#allocation6 + $0x760] sm:$0xff]
    %v356 = vld [vmem:[#allocation6 + $0x768] sm:$0xff]
    %v357 = vld [vmem:[#allocation6 + $0x770] sm:$0xff]
    %v358 = vld [vmem:[#allocation6 + $0x778] sm:$0xff]
    %v359 = vld [vmem:[#allocation6 + $0x780] sm:$0xff]
    %v360 = vld [vmem:[#allocation6 + $0x788] sm:$0xff]
    %v361 = vld [vmem:[#allocation6 + $0x790] sm:$0xff]
    %v362 = vld [vmem:[#allocation6 + $0x798] sm:$0xff]
    %v363 = vld [vmem:[#allocation6 + $0x7a0] sm:$0xff]
    %v364 = vld [vmem:[#allocation6 + $0x7a8] sm:$0xff]
    %v365 = vld [vmem:[#allocation6 + $0x7b0] sm:$0xff]
    %v366 = vld [vmem:[#allocation6 + $0x7b8] sm:$0xff]
    %v367 = vld [vmem:[#allocation6 + $0x7c0] sm:$0xff]
    %v368 = vld [vmem:[#allocation6 + $0x7c8] sm:$0xff]
    %v369 = vld [vmem:[#allocation6 + $0x7d0] sm:$0xff]
    %v370 = vld [vmem:[#allocation6 + $0x7d8] sm:$0xff]
    %v371 = vld [vmem:[#allocation6 + $0x7e0] sm:$0xff]
    %v372 = vld [vmem:[#allocation6 + $0x7e8] sm:$0xff]
    %v373 = vld [vmem:[#allocation6 + $0x7f0] sm:$0xff]
    %v374 = vld [vmem:[#allocation6 + $0x7f8] sm:$0xff]
    %v375 = vld [vmem:[#allocation6 + $0x800] sm:$0xff]
    %v376 = vld [vmem:[#allocation6 + $0x808] sm:$0xff]
    %v377 = vld [vmem:[#allocation6 + $0x810] sm:$0xff]
    %v378 = vld [vmem:[#allocation6 + $0x818] sm:$0xff]
    %v379 = vld [vmem:[#allocation6 + $0x820] sm:$0xff]
    %v380 = vld [vmem:[#allocation6 + $0x828] sm:$0xff]
    %v381 = vld [vmem:[#allocation6 + $0x830] sm:$0xff]
    %v382 = vld [vmem:[#allocation6 + $0x838] sm:$0xff]
    %v383 = vld [vmem:[#allocation6 + $0x840] sm:$0xff]
    %v384 = vld [vmem:[#allocation6 + $0x848] sm:$0xff]
    %v385 = vld [vmem:[#allocation6 + $0x850] sm:$0xff]
    %v386 = vld [vmem:[#allocation6 + $0x858] sm:$0xff]
    %v387 = vld [vmem:[#allocation6 + $0x860] sm:$0xff]
    %v388 = vld [vmem:[#allocation6 + $0x868] sm:$0xff]
    %v389 = vld [vmem:[#allocation6 + $0x870] sm:$0xff]
    %v390 = vld [vmem:[#allocation6 + $0x878] sm:$0xff]
    %v391 = vld [vmem:[#allocation6 + $0x880] sm:$0xff]
    %v392 = vld [vmem:[#allocation6 + $0x888] sm:$0xff]
    %v393 = vld [vmem:[#allocation6 + $0x890] sm:$0xff]
    %v394 = vld [vmem:[#allocation6 + $0x898] sm:$0xff]
    %v395 = vld [vmem:[#allocation6 + $0x8a0] sm:$0xff]
    %v396 = vld [vmem:[#allocation6 + $0x8a8] sm:$0xff]
    %v397 = vld [vmem:[#allocation6 + $0x8b0] sm:$0xff]
    %v398 = vld [vmem:[#allocation6 + $0x8b8] sm:$0xff]
    %v399 = vld [vmem:[#allocation6 + $0x8c0] sm:$0xff]
    %v400 = vld [vmem:[#allocation6 + $0x8c8] sm:$0xff]
    %v401 = vld [vmem:[#allocation6 + $0x8d0] sm:$0xff]
    %v402 = vld [vmem:[#allocation6 + $0x8d8] sm:$0xff]
    %v403 = vld [vmem:[#allocation6 + $0x8e0] sm:$0xff]
    %v404 = vld [vmem:[#allocation6 + $0x8e8] sm:$0xff]
    %v405 = vld [vmem:[#allocation6 + $0x8f0] sm:$0xff]
    %v406 = vld [vmem:[#allocation6 + $0x8f8] sm:$0xff]
    %v407 = vld [vmem:[#allocation6 + $0x900] sm:$0xff]
    %v408 = vld [vmem:[#allocation6 + $0x908] sm:$0xff]
    %v409 = vld [vmem:[#allocation6 + $0x910] sm:$0xff]
    %v410 = vld [vmem:[#allocation6 + $0x918] sm:$0xff]
    %v411 = vld [vmem:[#allocation6 + $0x920] sm:$0xff]
    %v412 = vld [vmem:[#allocation6 + $0x928] sm:$0xff]
    %v413 = vld [vmem:[#allocation6 + $0x930] sm:$0xff]
    %v414 = vld [vmem:[#allocation6 + $0x938] sm:$0xff]
    %v415 = vld [vmem:[#allocation6 + $0x940] sm:$0xff]
    %v416 = vld [vmem:[#allocation6 + $0x948] sm:$0xff]
    %v417 = vld [vmem:[#allocation6 + $0x950] sm:$0xff]
    %v418 = vld [vmem:[#allocation6 + $0x958] sm:$0xff]
    %v419 = vld [vmem:[#allocation6 + $0x960] sm:$0xff]
    %v420 = vld [vmem:[#allocation6 + $0x968] sm:$0xff]
    %v421 = vld [vmem:[#allocation6 + $0x970] sm:$0xff]
    %v422 = vld [vmem:[#allocation6 + $0x978] sm:$0xff]
    %v423 = vld [vmem:[#allocation6 + $0x980] sm:$0xff]
    %v424 = vld [vmem:[#allocation6 + $0x988] sm:$0xff]
    %v425 = vld [vmem:[#allocation6 + $0x990] sm:$0xff]
    %v426 = vld [vmem:[#allocation6 + $0x998] sm:$0xff]
    %v427 = vld [vmem:[#allocation6 + $0x9a0] sm:$0xff]
    %v428 = vld [vmem:[#allocation6 + $0x9a8] sm:$0xff]
    %v429 = vld [vmem:[#allocation6 + $0x9b0] sm:$0xff]
    %v430 = vld [vmem:[#allocation6 + $0x9b8] sm:$0xff]
    %v431 = vld [vmem:[#allocation6 + $0x9c0] sm:$0xff]
    %v432 = vld [vmem:[#allocation6 + $0x9c8] sm:$0xff]
    %v433 = vld [vmem:[#allocation6 + $0x9d0] sm:$0xff]
    %v434 = vld [vmem:[#allocation6 + $0x9d8] sm:$0xff]
    %v435 = vld [vmem:[#allocation6 + $0x9e0] sm:$0xff]
    %v436 = vld [vmem:[#allocation6 + $0x9e8] sm:$0xff]
    %v437 = vld [vmem:[#allocation6 + $0x9f0] sm:$0xff]
    %v438 = vld [vmem:[#allocation6 + $0x9f8] sm:$0xff]
    %v439 = vld [vmem:[#allocation6 + $0xa00] sm:$0xff]
    %v440 = vld [vmem:[#allocation6 + $0xa08] sm:$0xff]
    %v441 = vld [vmem:[#allocation6 + $0xa10] sm:$0xff]
    %v442 = vld [vmem:[#allocation6 + $0xa18] sm:$0xff]
    %v443 = vld [vmem:[#allocation6 + $0xa20] sm:$0xff]
    %v444 = vld [vmem:[#allocation6 + $0xa28] sm:$0xff]
    %v445 = vld [vmem:[#allocation6 + $0xa30] sm:$0xff]
    %v446 = vld [vmem:[#allocation6 + $0xa38] sm:$0xff]
    %v447 = vld [vmem:[#allocation6 + $0xa40] sm:$0xff]
    %v448 = vld [vmem:[#allocation6 + $0xa48] sm:$0xff]
    %v449 = vld [vmem:[#allocation6 + $0xa50] sm:$0xff]
    %v450 = vld [vmem:[#allocation6 + $0xa58] sm:$0xff]
    %v451 = vld [vmem:[#allocation6 + $0xa60] sm:$0xff]
    %v452 = vld [vmem:[#allocation6 + $0xa68] sm:$0xff]
    %v453 = vld [vmem:[#allocation6 + $0xa70] sm:$0xff]
    %v454 = vld [vmem:[#allocation6 + $0xa78] sm:$0xff]
    %v455 = vld [vmem:[#allocation6 + $0xa80] sm:$0xff]
    %v456 = vld [vmem:[#allocation6 + $0xa88] sm:$0xff]
    %v457 = vld [vmem:[#allocation6 + $0xa90] sm:$0xff]
    %v458 = vld [vmem:[#allocation6 + $0xa98] sm:$0xff]
    %v459 = vld [vmem:[#allocation6 + $0xaa0] sm:$0xff]
    %v460 = vld [vmem:[#allocation6 + $0xaa8] sm:$0xff]
    %v461 = vld [vmem:[#allocation6 + $0xab0] sm:$0xff]
    %v462 = vld [vmem:[#allocation6 + $0xab8] sm:$0xff]
    %v463 = vld [vmem:[#allocation6 + $0xac0] sm:$0xff]
    %v464 = vld [vmem:[#allocation6 + $0xac8] sm:$0xff]
    %v465 = vld [vmem:[#allocation6 + $0xad0] sm:$0xff]
    %v466 = vld [vmem:[#allocation6 + $0xad8] sm:$0xff]
    %v467 = vld [vmem:[#allocation6 + $0xae0] sm:$0xff]
    %v468 = vld [vmem:[#allocation6 + $0xae8] sm:$0xff]
    %v469 = vld [vmem:[#allocation6 + $0xaf0] sm:$0xff]
    %v470 = vld [vmem:[#allocation6 + $0xaf8] sm:$0xff]
    %v471 = vld [vmem:[#allocation6 + $0xb00] sm:$0xff]
    %v472 = vld [vmem:[#allocation6 + $0xb08] sm:$0xff]
    %v473 = vld [vmem:[#allocation6 + $0xb10] sm:$0xff]
    %v474 = vld [vmem:[#allocation6 + $0xb18] sm:$0xff]
    %v475 = vld [vmem:[#allocation6 + $0xb20] sm:$0xff]
    %v476 = vld [vmem:[#allocation6 + $0xb28] sm:$0xff]
    %v477 = vld [vmem:[#allocation6 + $0xb30] sm:$0xff]
    %v478 = vld [vmem:[#allocation6 + $0xb38] sm:$0xff]
    %v479 = vld [vmem:[#allocation6 + $0xb40] sm:$0xff]
    %v480 = vld [vmem:[#allocation6 + $0xb48] sm:$0xff]
    %v481 = vld [vmem:[#allocation6 + $0xb50] sm:$0xff]
    %v482 = vld [vmem:[#allocation6 + $0xb58] sm:$0xff]
    %v483 = vld [vmem:[#allocation6 + $0xb60] sm:$0xff]
    %v484 = vld [vmem:[#allocation6 + $0xb68] sm:$0xff]
    %v485 = vld [vmem:[#allocation6 + $0xb70] sm:$0xff]
    %v486 = vld [vmem:[#allocation6 + $0xb78] sm:$0xff]
    %v487 = vld [vmem:[#allocation6 + $0xb80] sm:$0xff]
    %v488 = vld [vmem:[#allocation6 + $0xb88] sm:$0xff]
    %v489 = vld [vmem:[#allocation6 + $0xb90] sm:$0xff]
    %v490 = vld [vmem:[#allocation6 + $0xb98] sm:$0xff]
    %v491 = vld [vmem:[#allocation6 + $0xba0] sm:$0xff]
    %v492 = vld [vmem:[#allocation6 + $0xba8] sm:$0xff]
    %v493 = vld [vmem:[#allocation6 + $0xbb0] sm:$0xff]
    %v494 = vld [vmem:[#allocation6 + $0xbb8] sm:$0xff]
    %v495 = vld [vmem:[#allocation6 + $0xbc0] sm:$0xff]
    %v496 = vld [vmem:[#allocation6 + $0xbc8] sm:$0xff]
    %v497 = vld [vmem:[#allocation6 + $0xbd0] sm:$0xff]
    %v498 = vld [vmem:[#allocation6 + $0xbd8] sm:$0xff]
    %v499 = vld [vmem:[#allocation6 + $0xbe0] sm:$0xff]
    %v500 = vld [vmem:[#allocation6 + $0xbe8] sm:$0xff]
    %v501 = vld [vmem:[#allocation6 + $0xbf0] sm:$0xff]
    %v502 = vld [vmem:[#allocation6 + $0xbf8] sm:$0xff]
    %v503 = vld [vmem:[#allocation6 + $0xc00] sm:$0xff]
    %v504 = vld [vmem:[#allocation6 + $0xc08] sm:$0xff]
    %v505 = vld [vmem:[#allocation6 + $0xc10] sm:$0xff]
    %v506 = vld [vmem:[#allocation6 + $0xc18] sm:$0xff]
    %v507 = vld [vmem:[#allocation6 + $0xc20] sm:$0xff]
    %v508 = vld [vmem:[#allocation6 + $0xc28] sm:$0xff]
    %v509 = vld [vmem:[#allocation6 + $0xc30] sm:$0xff]
    %v510 = vld [vmem:[#allocation6 + $0xc38] sm:$0xff]
    %v511 = vld [vmem:[#allocation6 + $0xc40] sm:$0xff]
    %v512 = vld [vmem:[#allocation6 + $0xc48] sm:$0xff]
    %v513 = vld [vmem:[#allocation6 + $0xc50] sm:$0xff]
    %v514 = vld [vmem:[#allocation6 + $0xc58] sm:$0xff]
    %v515 = vld [vmem:[#allocation6 + $0xc60] sm:$0xff]
    %v516 = vld [vmem:[#allocation6 + $0xc68] sm:$0xff]
    %v517 = vld [vmem:[#allocation6 + $0xc70] sm:$0xff]
    %v518 = vld [vmem:[#allocation6 + $0xc78] sm:$0xff]
    %v519 = vld [vmem:[#allocation6 + $0xc80] sm:$0xff]
    %v520 = vld [vmem:[#allocation6 + $0xc88] sm:$0xff]
    %v521 = vld [vmem:[#allocation6 + $0xc90] sm:$0xff]
    %v522 = vld [vmem:[#allocation6 + $0xc98] sm:$0xff]
    %v523 = vld [vmem:[#allocation6 + $0xca0] sm:$0xff]
    %v524 = vld [vmem:[#allocation6 + $0xca8] sm:$0xff]
    %v525 = vld [vmem:[#allocation6 + $0xcb0] sm:$0xff]
    %v526 = vld [vmem:[#allocation6 + $0xcb8] sm:$0xff]
    %v527 = vld [vmem:[#allocation6 + $0xcc0] sm:$0xff]
    %v528 = vld [vmem:[#allocation6 + $0xcc8] sm:$0xff]
    %v529 = vld [vmem:[#allocation6 + $0xcd0] sm:$0xff]
    %v530 = vld [vmem:[#allocation6 + $0xcd8] sm:$0xff]
    %v531 = vld [vmem:[#allocation6 + $0xce0] sm:$0xff]
    %v532 = vld [vmem:[#allocation6 + $0xce8] sm:$0xff]
    %v533 = vld [vmem:[#allocation6 + $0xcf0] sm:$0xff]
    %v534 = vld [vmem:[#allocation6 + $0xcf8] sm:$0xff]
    %v535 = vld [vmem:[#allocation6 + $0xd00] sm:$0xff]
    %v536 = vld [vmem:[#allocation6 + $0xd08] sm:$0xff]
    %v537 = vld [vmem:[#allocation6 + $0xd10] sm:$0xff]
    %v538 = vld [vmem:[#allocation6 + $0xd18] sm:$0xff]
    %v539 = vld [vmem:[#allocation6 + $0xd20] sm:$0xff]
    %v540 = vld [vmem:[#allocation6 + $0xd28] sm:$0xff]
    %v541 = vld [vmem:[#allocation6 + $0xd30] sm:$0xff]
    %v542 = vld [vmem:[#allocation6 + $0xd38] sm:$0xff]
    %v543 = vld [vmem:[#allocation6 + $0xd40] sm:$0xff]
    %v544 = vld [vmem:[#allocation6 + $0xd48] sm:$0xff]
    %v545 = vld [vmem:[#allocation6 + $0xd50] sm:$0xff]
    %v546 = vld [vmem:[#allocation6 + $0xd58] sm:$0xff]
    %v547 = vld [vmem:[#allocation6 + $0xd60] sm:$0xff]
    %v548 = vld [vmem:[#allocation6 + $0xd68] sm:$0xff]
    %v549 = vld [vmem:[#allocation6 + $0xd70] sm:$0xff]
    %v550 = vld [vmem:[#allocation6 + $0xd78] sm:$0xff]
    %v551 = vunpack.c.l.s8.bf16 %v119
    %v552 = vunpack.c.l.s8.bf16 %v120
    %v553 = vunpack.c.l.s8.bf16 %v121
    %v554 = vunpack.c.l.s8.bf16 %v122
    %v555 = vunpack.c.l.s8.bf16 %v123
    %v556 = vunpack.c.l.s8.bf16 %v124
    %v557 = vunpack.c.l.s8.bf16 %v125
    %v558 = vunpack.c.l.s8.bf16 %v126
    %v559 = vunpack.c.l.s8.bf16 %v127
    %v560 = vunpack.c.l.s8.bf16 %v128
    %v561 = vunpack.c.l.s8.bf16 %v129
    %v562 = vunpack.c.l.s8.bf16 %v130
    %v563 = vunpack.c.l.s8.bf16 %v131
    %v564 = vunpack.c.l.s8.bf16 %v132
    %v565 = vunpack.c.l.s8.bf16 %v133
    %v566 = vunpack.c.l.s8.bf16 %v134
    %v567 = vunpack.c.l.s8.bf16 %v135
    %v568 = vunpack.c.l.s8.bf16 %v136
    %v569 = vunpack.c.h.s8.bf16 %v119
    %v570 = vunpack.c.h.s8.bf16 %v120
    %v571 = vunpack.c.h.s8.bf16 %v121
    %v572 = vunpack.c.h.s8.bf16 %v122
    %v573 = vunpack.c.h.s8.bf16 %v123
    %v574 = vunpack.c.h.s8.bf16 %v124
    %v575 = vunpack.c.h.s8.bf16 %v125
    %v576 = vunpack.c.h.s8.bf16 %v126
    %v577 = vunpack.c.h.s8.bf16 %v127
    %v578 = vunpack.c.h.s8.bf16 %v128
    %v579 = vunpack.c.h.s8.bf16 %v129
    %v580 = vunpack.c.h.s8.bf16 %v130
    %v581 = vunpack.c.h.s8.bf16 %v131
    %v582 = vunpack.c.h.s8.bf16 %v132
    %v583 = vunpack.c.h.s8.bf16 %v133
    %v584 = vunpack.c.h.s8.bf16 %v134
    %v585 = vunpack.c.h.s8.bf16 %v135
    %v586 = vunpack.c.h.s8.bf16 %v136
    %v587 = vunpack.c.l.s8.bf16 %v137
    %v588 = vunpack.c.l.s8.bf16 %v138
    %v589 = vunpack.c.l.s8.bf16 %v139
    %v590 = vunpack.c.l.s8.bf16 %v140
    %v591 = vunpack.c.l.s8.bf16 %v141
    %v592 = vunpack.c.l.s8.bf16 %v142
    %v593 = vunpack.c.l.s8.bf16 %v143
    %v594 = vunpack.c.l.s8.bf16 %v144
    %v595 = vunpack.c.l.s8.bf16 %v145
    %v596 = vunpack.c.l.s8.bf16 %v146
    %v597 = vunpack.c.l.s8.bf16 %v147
    %v598 = vunpack.c.l.s8.bf16 %v148
    %v599 = vunpack.c.l.s8.bf16 %v149
    %v600 = vunpack.c.l.s8.bf16 %v150
    %v601 = vunpack.c.l.s8.bf16 %v151
    %v602 = vunpack.c.l.s8.bf16 %v152
    %v603 = vunpack.c.l.s8.bf16 %v153
    %v604 = vunpack.c.l.s8.bf16 %v154
    %v605 = vunpack.c.h.s8.bf16 %v137
    %v606 = vunpack.c.h.s8.bf16 %v138
    %v607 = vunpack.c.h.s8.bf16 %v139
    %v608 = vunpack.c.h.s8.bf16 %v140
    %v609 = vunpack.c.h.s8.bf16 %v141
    %v610 = vunpack.c.h.s8.bf16 %v142
    %v611 = vunpack.c.h.s8.bf16 %v143
    %v612 = vunpack.c.h.s8.bf16 %v144
    %v613 = vunpack.c.h.s8.bf16 %v145
    %v614 = vunpack.c.h.s8.bf16 %v146
    %v615 = vunpack.c.h.s8.bf16 %v147
    %v616 = vunpack.c.h.s8.bf16 %v148
    %v617 = vunpack.c.h.s8.bf16 %v149
    %v618 = vunpack.c.h.s8.bf16 %v150
    %v619 = vunpack.c.h.s8.bf16 %v151
    %v620 = vunpack.c.h.s8.bf16 %v152
    %v621 = vunpack.c.h.s8.bf16 %v153
    %v622 = vunpack.c.h.s8.bf16 %v154
    %v623 = vunpack.c.l.s8.bf16 %v155
    %v624 = vunpack.c.l.s8.bf16 %v156
    %v625 = vunpack.c.l.s8.bf16 %v157
    %v626 = vunpack.c.l.s8.bf16 %v158
    %v627 = vunpack.c.l.s8.bf16 %v159
    %v628 = vunpack.c.l.s8.bf16 %v160
    %v629 = vunpack.c.l.s8.bf16 %v161
    %v630 = vunpack.c.l.s8.bf16 %v162
    %v631 = vunpack.c.l.s8.bf16 %v163
    %v632 = vunpack.c.l.s8.bf16 %v164
    %v633 = vunpack.c.l.s8.bf16 %v165
    %v634 = vunpack.c.l.s8.bf16 %v166
    %v635 = vunpack.c.l.s8.bf16 %v167
    %v636 = vunpack.c.l.s8.bf16 %v168
    %v637 = vunpack.c.l.s8.bf16 %v169
    %v638 = vunpack.c.l.s8.bf16 %v170
    %v639 = vunpack.c.l.s8.bf16 %v171
    %v640 = vunpack.c.l.s8.bf16 %v172
    %v641 = vunpack.c.h.s8.bf16 %v155
    %v642 = vunpack.c.h.s8.bf16 %v156
    %v643 = vunpack.c.h.s8.bf16 %v157
    %v644 = vunpack.c.h.s8.bf16 %v158
    %v645 = vunpack.c.h.s8.bf16 %v159
    %v646 = vunpack.c.h.s8.bf16 %v160
    %v647 = vunpack.c.h.s8.bf16 %v161
    %v648 = vunpack.c.h.s8.bf16 %v162
    %v649 = vunpack.c.h.s8.bf16 %v163
    %v650 = vunpack.c.h.s8.bf16 %v164
    %v651 = vunpack.c.h.s8.bf16 %v165
    %v652 = vunpack.c.h.s8.bf16 %v166
    %v653 = vunpack.c.h.s8.bf16 %v167
    %v654 = vunpack.c.h.s8.bf16 %v168
    %v655 = vunpack.c.h.s8.bf16 %v169
    %v656 = vunpack.c.h.s8.bf16 %v170
    %v657 = vunpack.c.h.s8.bf16 %v171
    %v658 = vunpack.c.h.s8.bf16 %v172
    %v659 = vunpack.c.l.s8.bf16 %v173
    %v660 = vunpack.c.l.s8.bf16 %v174
    %v661 = vunpack.c.l.s8.bf16 %v175
    %v662 = vunpack.c.l.s8.bf16 %v176
    %v663 = vunpack.c.l.s8.bf16 %v177
    %v664 = vunpack.c.l.s8.bf16 %v178
    %v665 = vunpack.c.l.s8.bf16 %v179
    %v666 = vunpack.c.l.s8.bf16 %v180
    %v667 = vunpack.c.l.s8.bf16 %v181
    %v668 = vunpack.c.l.s8.bf16 %v182
    %v669 = vunpack.c.l.s8.bf16 %v183
    %v670 = vunpack.c.l.s8.bf16 %v184
    %v671 = vunpack.c.l.s8.bf16 %v185
    %v672 = vunpack.c.l.s8.bf16 %v186
    %v673 = vunpack.c.l.s8.bf16 %v187
    %v674 = vunpack.c.l.s8.bf16 %v188
    %v675 = vunpack.c.l.s8.bf16 %v189
    %v676 = vunpack.c.l.s8.bf16 %v190
    %v677 = vunpack.c.h.s8.bf16 %v173
    %v678 = vunpack.c.h.s8.bf16 %v174
    %v679 = vunpack.c.h.s8.bf16 %v175
    %v680 = vunpack.c.h.s8.bf16 %v176
    %v681 = vunpack.c.h.s8.bf16 %v177
    %v682 = vunpack.c.h.s8.bf16 %v178
    %v683 = vunpack.c.h.s8.bf16 %v179
    %v684 = vunpack.c.h.s8.bf16 %v180
    %v685 = vunpack.c.h.s8.bf16 %v181
    %v686 = vunpack.c.h.s8.bf16 %v182
    %v687 = vunpack.c.h.s8.bf16 %v183
    %v688 = vunpack.c.h.s8.bf16 %v184
    %v689 = vunpack.c.h.s8.bf16 %v185
    %v690 = vunpack.c.h.s8.bf16 %v186
    %v691 = vunpack.c.h.s8.bf16 %v187
    %v692 = vunpack.c.h.s8.bf16 %v188
    %v693 = vunpack.c.h.s8.bf16 %v189
    %v694 = vunpack.c.h.s8.bf16 %v190
    %v695 = vunpack.c.l.s8.bf16 %v191
    %v696 = vunpack.c.l.s8.bf16 %v192
    %v697 = vunpack.c.l.s8.bf16 %v193
    %v698 = vunpack.c.l.s8.bf16 %v194
    %v699 = vunpack.c.l.s8.bf16 %v195
    %v700 = vunpack.c.l.s8.bf16 %v196
    %v701 = vunpack.c.l.s8.bf16 %v197
    %v702 = vunpack.c.l.s8.bf16 %v198
    %v703 = vunpack.c.l.s8.bf16 %v199
    %v704 = vunpack.c.l.s8.bf16 %v200
    %v705 = vunpack.c.l.s8.bf16 %v201
    %v706 = vunpack.c.l.s8.bf16 %v202
    %v707 = vunpack.c.l.s8.bf16 %v203
    %v708 = vunpack.c.l.s8.bf16 %v204
    %v709 = vunpack.c.l.s8.bf16 %v205
    %v710 = vunpack.c.l.s8.bf16 %v206
    %v711 = vunpack.c.l.s8.bf16 %v207
    %v712 = vunpack.c.l.s8.bf16 %v208
    %v713 = vunpack.c.h.s8.bf16 %v191
    %v714 = vunpack.c.h.s8.bf16 %v192
    %v715 = vunpack.c.h.s8.bf16 %v193
    %v716 = vunpack.c.h.s8.bf16 %v194
    %v717 = vunpack.c.h.s8.bf16 %v195
    %v718 = vunpack.c.h.s8.bf16 %v196
    %v719 = vunpack.c.h.s8.bf16 %v197
    %v720 = vunpack.c.h.s8.bf16 %v198
    %v721 = vunpack.c.h.s8.bf16 %v199
    %v722 = vunpack.c.h.s8.bf16 %v200
    %v723 = vunpack.c.h.s8.bf16 %v201
    %v724 = vunpack.c.h.s8.bf16 %v202
    %v725 = vunpack.c.h.s8.bf16 %v203
    %v726 = vunpack.c.h.s8.bf16 %v204
    %v727 = vunpack.c.h.s8.bf16 %v205
    %v728 = vunpack.c.h.s8.bf16 %v206
    %v729 = vunpack.c.h.s8.bf16 %v207
    %v730 = vunpack.c.h.s8.bf16 %v208
    %v731 = vunpack.c.l.s8.bf16 %v209
    %v732 = vunpack.c.l.s8.bf16 %v210
    %v733 = vunpack.c.l.s8.bf16 %v211
    %v734 = vunpack.c.l.s8.bf16 %v212
    %v735 = vunpack.c.l.s8.bf16 %v213
    %v736 = vunpack.c.l.s8.bf16 %v214
    %v737 = vunpack.c.l.s8.bf16 %v215
    %v738 = vunpack.c.l.s8.bf16 %v216
    %v739 = vunpack.c.l.s8.bf16 %v217
    %v740 = vunpack.c.l.s8.bf16 %v218
    %v741 = vunpack.c.l.s8.bf16 %v219
    %v742 = vunpack.c.l.s8.bf16 %v220
    %v743 = vunpack.c.l.s8.bf16 %v221
    %v744 = vunpack.c.l.s8.bf16 %v222
    %v745 = vunpack.c.l.s8.bf16 %v223
    %v746 = vunpack.c.l.s8.bf16 %v224
    %v747 = vunpack.c.l.s8.bf16 %v225
    %v748 = vunpack.c.l.s8.bf16 %v226
    %v749 = vunpack.c.h.s8.bf16 %v209
    %v750 = vunpack.c.h.s8.bf16 %v210
    %v751 = vunpack.c.h.s8.bf16 %v211
    %v752 = vunpack.c.h.s8.bf16 %v212
    %v753 = vunpack.c.h.s8.bf16 %v213
    %v754 = vunpack.c.h.s8.bf16 %v214
    %v755 = vunpack.c.h.s8.bf16 %v215
    %v756 = vunpack.c.h.s8.bf16 %v216
    %v757 = vunpack.c.h.s8.bf16 %v217
    %v758 = vunpack.c.h.s8.bf16 %v218
    %v759 = vunpack.c.h.s8.bf16 %v219
    %v760 = vunpack.c.h.s8.bf16 %v220
    %v761 = vunpack.c.h.s8.bf16 %v221
    %v762 = vunpack.c.h.s8.bf16 %v222
    %v763 = vunpack.c.h.s8.bf16 %v223
    %v764 = vunpack.c.h.s8.bf16 %v224
    %v765 = vunpack.c.h.s8.bf16 %v225
    %v766 = vunpack.c.h.s8.bf16 %v226
    %v767 = vunpack.c.l.s8.bf16 %v227
    %v768 = vunpack.c.l.s8.bf16 %v228
    %v769 = vunpack.c.l.s8.bf16 %v229
    %v770 = vunpack.c.l.s8.bf16 %v230
    %v771 = vunpack.c.l.s8.bf16 %v231
    %v772 = vunpack.c.l.s8.bf16 %v232
    %v773 = vunpack.c.l.s8.bf16 %v233
    %v774 = vunpack.c.l.s8.bf16 %v234
    %v775 = vunpack.c.l.s8.bf16 %v235
    %v776 = vunpack.c.l.s8.bf16 %v236
    %v777 = vunpack.c.l.s8.bf16 %v237
    %v778 = vunpack.c.l.s8.bf16 %v238
    %v779 = vunpack.c.l.s8.bf16 %v239
    %v780 = vunpack.c.l.s8.bf16 %v240
    %v781 = vunpack.c.l.s8.bf16 %v241
    %v782 = vunpack.c.l.s8.bf16 %v242
    %v783 = vunpack.c.l.s8.bf16 %v243
    %v784 = vunpack.c.l.s8.bf16 %v244
    %v785 = vunpack.c.h.s8.bf16 %v227
    %v786 = vunpack.c.h.s8.bf16 %v228
    %v787 = vunpack.c.h.s8.bf16 %v229
    %v788 = vunpack.c.h.s8.bf16 %v230
    %v789 = vunpack.c.h.s8.bf16 %v231
    %v790 = vunpack.c.h.s8.bf16 %v232
    %v791 = vunpack.c.h.s8.bf16 %v233
    %v792 = vunpack.c.h.s8.bf16 %v234
    %v793 = vunpack.c.h.s8.bf16 %v235
    %v794 = vunpack.c.h.s8.bf16 %v236
    %v795 = vunpack.c.h.s8.bf16 %v237
    %v796 = vunpack.c.h.s8.bf16 %v238
    %v797 = vunpack.c.h.s8.bf16 %v239
    %v798 = vunpack.c.h.s8.bf16 %v240
    %v799 = vunpack.c.h.s8.bf16 %v241
    %v800 = vunpack.c.h.s8.bf16 %v242
    %v801 = vunpack.c.h.s8.bf16 %v243
    %v802 = vunpack.c.h.s8.bf16 %v244
    %v803 = vunpack.c.l.s8.bf16 %v245
    %v804 = vunpack.c.l.s8.bf16 %v246
    %v805 = vunpack.c.l.s8.bf16 %v247
    %v806 = vunpack.c.l.s8.bf16 %v248
    %v807 = vunpack.c.l.s8.bf16 %v249
    %v808 = vunpack.c.l.s8.bf16 %v250
    %v809 = vunpack.c.l.s8.bf16 %v251
    %v810 = vunpack.c.l.s8.bf16 %v252
    %v811 = vunpack.c.l.s8.bf16 %v253
    %v812 = vunpack.c.l.s8.bf16 %v254
    %v813 = vunpack.c.l.s8.bf16 %v255
    %v814 = vunpack.c.l.s8.bf16 %v256
    %v815 = vunpack.c.l.s8.bf16 %v257
    %v816 = vunpack.c.l.s8.bf16 %v258
    %v817 = vunpack.c.l.s8.bf16 %v259
    %v818 = vunpack.c.l.s8.bf16 %v260
    %v819 = vunpack.c.l.s8.bf16 %v261
    %v820 = vunpack.c.l.s8.bf16 %v262
    %v821 = vunpack.c.h.s8.bf16 %v245
    %v822 = vunpack.c.h.s8.bf16 %v246
    %v823 = vunpack.c.h.s8.bf16 %v247
    %v824 = vunpack.c.h.s8.bf16 %v248
    %v825 = vunpack.c.h.s8.bf16 %v249
    %v826 = vunpack.c.h.s8.bf16 %v250
    %v827 = vunpack.c.h.s8.bf16 %v251
    %v828 = vunpack.c.h.s8.bf16 %v252
    %v829 = vunpack.c.h.s8.bf16 %v253
    %v830 = vunpack.c.h.s8.bf16 %v254
    %v831 = vunpack.c.h.s8.bf16 %v255
    %v832 = vunpack.c.h.s8.bf16 %v256
    %v833 = vunpack.c.h.s8.bf16 %v257
    %v834 = vunpack.c.h.s8.bf16 %v258
    %v835 = vunpack.c.h.s8.bf16 %v259
    %v836 = vunpack.c.h.s8.bf16 %v260
    %v837 = vunpack.c.h.s8.bf16 %v261
    %v838 = vunpack.c.h.s8.bf16 %v262
    %v839 = vunpack.c.l.s8.bf16 %v263
    %v840 = vunpack.c.l.s8.bf16 %v264
    %v841 = vunpack.c.l.s8.bf16 %v265
    %v842 = vunpack.c.l.s8.bf16 %v266
    %v843 = vunpack.c.l.s8.bf16 %v267
    %v844 = vunpack.c.l.s8.bf16 %v268
    %v845 = vunpack.c.l.s8.bf16 %v269
    %v846 = vunpack.c.l.s8.bf16 %v270
    %v847 = vunpack.c.l.s8.bf16 %v271
    %v848 = vunpack.c.l.s8.bf16 %v272
    %v849 = vunpack.c.l.s8.bf16 %v273
    %v850 = vunpack.c.l.s8.bf16 %v274
    %v851 = vunpack.c.l.s8.bf16 %v275
    %v852 = vunpack.c.l.s8.bf16 %v276
    %v853 = vunpack.c.l.s8.bf16 %v277
    %v854 = vunpack.c.l.s8.bf16 %v278
    %v855 = vunpack.c.l.s8.bf16 %v279
    %v856 = vunpack.c.l.s8.bf16 %v280
    %v857 = vunpack.c.h.s8.bf16 %v263
    %v858 = vunpack.c.h.s8.bf16 %v264
    %v859 = vunpack.c.h.s8.bf16 %v265
    %v860 = vunpack.c.h.s8.bf16 %v266
    %v861 = vunpack.c.h.s8.bf16 %v267
    %v862 = vunpack.c.h.s8.bf16 %v268
    %v863 = vunpack.c.h.s8.bf16 %v269
    %v864 = vunpack.c.h.s8.bf16 %v270
    %v865 = vunpack.c.h.s8.bf16 %v271
    %v866 = vunpack.c.h.s8.bf16 %v272
    %v867 = vunpack.c.h.s8.bf16 %v273
    %v868 = vunpack.c.h.s8.bf16 %v274
    %v869 = vunpack.c.h.s8.bf16 %v275
    %v870 = vunpack.c.h.s8.bf16 %v276
    %v871 = vunpack.c.h.s8.bf16 %v277
    %v872 = vunpack.c.h.s8.bf16 %v278
    %v873 = vunpack.c.h.s8.bf16 %v279
    %v874 = vunpack.c.h.s8.bf16 %v280
    %v875 = vunpack.c.l.s8.bf16 %v281
    %v876 = vunpack.c.l.s8.bf16 %v282
    %v877 = vunpack.c.l.s8.bf16 %v283
    %v878 = vunpack.c.l.s8.bf16 %v284
    %v879 = vunpack.c.l.s8.bf16 %v285
    %v880 = vunpack.c.l.s8.bf16 %v286
    %v881 = vunpack.c.l.s8.bf16 %v287
    %v882 = vunpack.c.l.s8.bf16 %v288
    %v883 = vunpack.c.l.s8.bf16 %v289
    %v884 = vunpack.c.l.s8.bf16 %v290
    %v885 = vunpack.c.l.s8.bf16 %v291
    %v886 = vunpack.c.l.s8.bf16 %v292
    %v887 = vunpack.c.l.s8.bf16 %v293
    %v888 = vunpack.c.l.s8.bf16 %v294
    %v889 = vunpack.c.l.s8.bf16 %v295
    %v890 = vunpack.c.l.s8.bf16 %v296
    %v891 = vunpack.c.l.s8.bf16 %v297
    %v892 = vunpack.c.l.s8.bf16 %v298
    %v893 = vunpack.c.h.s8.bf16 %v281
    %v894 = vunpack.c.h.s8.bf16 %v282
    %v895 = vunpack.c.h.s8.bf16 %v283
    %v896 = vunpack.c.h.s8.bf16 %v284
    %v897 = vunpack.c.h.s8.bf16 %v285
    %v898 = vunpack.c.h.s8.bf16 %v286
    %v899 = vunpack.c.h.s8.bf16 %v287
    %v900 = vunpack.c.h.s8.bf16 %v288
    %v901 = vunpack.c.h.s8.bf16 %v289
    %v902 = vunpack.c.h.s8.bf16 %v290
    %v903 = vunpack.c.h.s8.bf16 %v291
    %v904 = vunpack.c.h.s8.bf16 %v292
    %v905 = vunpack.c.h.s8.bf16 %v293
    %v906 = vunpack.c.h.s8.bf16 %v294
    %v907 = vunpack.c.h.s8.bf16 %v295
    %v908 = vunpack.c.h.s8.bf16 %v296
    %v909 = vunpack.c.h.s8.bf16 %v297
    %v910 = vunpack.c.h.s8.bf16 %v298
    %v911 = vunpack.c.l.s8.bf16 %v299
    %v912 = vunpack.c.l.s8.bf16 %v300
    %v913 = vunpack.c.l.s8.bf16 %v301
    %v914 = vunpack.c.l.s8.bf16 %v302
    %v915 = vunpack.c.l.s8.bf16 %v303
    %v916 = vunpack.c.l.s8.bf16 %v304
    %v917 = vunpack.c.l.s8.bf16 %v305
    %v918 = vunpack.c.l.s8.bf16 %v306
    %v919 = vunpack.c.l.s8.bf16 %v307
    %v920 = vunpack.c.l.s8.bf16 %v308
    %v921 = vunpack.c.l.s8.bf16 %v309
    %v922 = vunpack.c.l.s8.bf16 %v310
    %v923 = vunpack.c.l.s8.bf16 %v311
    %v924 = vunpack.c.l.s8.bf16 %v312
    %v925 = vunpack.c.l.s8.bf16 %v313
    %v926 = vunpack.c.l.s8.bf16 %v314
    %v927 = vunpack.c.l.s8.bf16 %v315
    %v928 = vunpack.c.l.s8.bf16 %v316
    %v929 = vunpack.c.h.s8.bf16 %v299
    %v930 = vunpack.c.h.s8.bf16 %v300
    %v931 = vunpack.c.h.s8.bf16 %v301
    %v932 = vunpack.c.h.s8.bf16 %v302
    %v933 = vunpack.c.h.s8.bf16 %v303
    %v934 = vunpack.c.h.s8.bf16 %v304
    %v935 = vunpack.c.h.s8.bf16 %v305
    %v936 = vunpack.c.h.s8.bf16 %v306
    %v937 = vunpack.c.h.s8.bf16 %v307
    %v938 = vunpack.c.h.s8.bf16 %v308
    %v939 = vunpack.c.h.s8.bf16 %v309
    %v940 = vunpack.c.h.s8.bf16 %v310
    %v941 = vunpack.c.h.s8.bf16 %v311
    %v942 = vunpack.c.h.s8.bf16 %v312
    %v943 = vunpack.c.h.s8.bf16 %v313
    %v944 = vunpack.c.h.s8.bf16 %v314
    %v945 = vunpack.c.h.s8.bf16 %v315
    %v946 = vunpack.c.h.s8.bf16 %v316
    %v947 = vunpack.c.l.s8.bf16 %v317
    %v948 = vunpack.c.l.s8.bf16 %v318
    %v949 = vunpack.c.l.s8.bf16 %v319
    %v950 = vunpack.c.l.s8.bf16 %v320
    %v951 = vunpack.c.l.s8.bf16 %v321
    %v952 = vunpack.c.l.s8.bf16 %v322
    %v953 = vunpack.c.l.s8.bf16 %v323
    %v954 = vunpack.c.l.s8.bf16 %v324
    %v955 = vunpack.c.l.s8.bf16 %v325
    %v956 = vunpack.c.l.s8.bf16 %v326
    %v957 = vunpack.c.l.s8.bf16 %v327
    %v958 = vunpack.c.l.s8.bf16 %v328
    %v959 = vunpack.c.l.s8.bf16 %v329
    %v960 = vunpack.c.l.s8.bf16 %v330
    %v961 = vunpack.c.l.s8.bf16 %v331
    %v962 = vunpack.c.l.s8.bf16 %v332
    %v963 = vunpack.c.l.s8.bf16 %v333
    %v964 = vunpack.c.l.s8.bf16 %v334
    %v965 = vunpack.c.h.s8.bf16 %v317
    %v966 = vunpack.c.h.s8.bf16 %v318
    %v967 = vunpack.c.h.s8.bf16 %v319
    %v968 = vunpack.c.h.s8.bf16 %v320
    %v969 = vunpack.c.h.s8.bf16 %v321
    %v970 = vunpack.c.h.s8.bf16 %v322
    %v971 = vunpack.c.h.s8.bf16 %v323
    %v972 = vunpack.c.h.s8.bf16 %v324
    %v973 = vunpack.c.h.s8.bf16 %v325
    %v974 = vunpack.c.h.s8.bf16 %v326
    %v975 = vunpack.c.h.s8.bf16 %v327
    %v976 = vunpack.c.h.s8.bf16 %v328
    %v977 = vunpack.c.h.s8.bf16 %v329
    %v978 = vunpack.c.h.s8.bf16 %v330
    %v979 = vunpack.c.h.s8.bf16 %v331
    %v980 = vunpack.c.h.s8.bf16 %v332
    %v981 = vunpack.c.h.s8.bf16 %v333
    %v982 = vunpack.c.h.s8.bf16 %v334
    %v983 = vunpack.c.l.s8.bf16 %v335
    %v984 = vunpack.c.l.s8.bf16 %v336
    %v985 = vunpack.c.l.s8.bf16 %v337
    %v986 = vunpack.c.l.s8.bf16 %v338
    %v987 = vunpack.c.l.s8.bf16 %v339
    %v988 = vunpack.c.l.s8.bf16 %v340
    %v989 = vunpack.c.l.s8.bf16 %v341
    %v990 = vunpack.c.l.s8.bf16 %v342
    %v991 = vunpack.c.l.s8.bf16 %v343
    %v992 = vunpack.c.l.s8.bf16 %v344
    %v993 = vunpack.c.l.s8.bf16 %v345
    %v994 = vunpack.c.l.s8.bf16 %v346
    %v995 = vunpack.c.l.s8.bf16 %v347
    %v996 = vunpack.c.l.s8.bf16 %v348
    %v997 = vunpack.c.l.s8.bf16 %v349
    %v998 = vunpack.c.l.s8.bf16 %v350
    %v999 = vunpack.c.l.s8.bf16 %v351
    %v1000 = vunpack.c.l.s8.bf16 %v352
    %v1001 = vunpack.c.h.s8.bf16 %v335
    %v1002 = vunpack.c.h.s8.bf16 %v336
    %v1003 = vunpack.c.h.s8.bf16 %v337
    %v1004 = vunpack.c.h.s8.bf16 %v338
    %v1005 = vunpack.c.h.s8.bf16 %v339
    %v1006 = vunpack.c.h.s8.bf16 %v340
    %v1007 = vunpack.c.h.s8.bf16 %v341
    %v1008 = vunpack.c.h.s8.bf16 %v342
    %v1009 = vunpack.c.h.s8.bf16 %v343
    %v1010 = vunpack.c.h.s8.bf16 %v344
    %v1011 = vunpack.c.h.s8.bf16 %v345
    %v1012 = vunpack.c.h.s8.bf16 %v346
    %v1013 = vunpack.c.h.s8.bf16 %v347
    %v1014 = vunpack.c.h.s8.bf16 %v348
    %v1015 = vunpack.c.h.s8.bf16 %v349
    %v1016 = vunpack.c.h.s8.bf16 %v350
    %v1017 = vunpack.c.h.s8.bf16 %v351
    %v1018 = vunpack.c.h.s8.bf16 %v352
    %v1019 = vunpack.c.l.s8.bf16 %v353
    %v1020 = vunpack.c.l.s8.bf16 %v354
    %v1021 = vunpack.c.l.s8.bf16 %v355
    %v1022 = vunpack.c.l.s8.bf16 %v356
    %v1023 = vunpack.c.l.s8.bf16 %v357
    %v1024 = vunpack.c.l.s8.bf16 %v358
    %v1025 = vunpack.c.l.s8.bf16 %v359
    %v1026 = vunpack.c.l.s8.bf16 %v360
    %v1027 = vunpack.c.l.s8.bf16 %v361
    %v1028 = vunpack.c.l.s8.bf16 %v362
    %v1029 = vunpack.c.l.s8.bf16 %v363
    %v1030 = vunpack.c.l.s8.bf16 %v364
    %v1031 = vunpack.c.l.s8.bf16 %v365
    %v1032 = vunpack.c.l.s8.bf16 %v366
    %v1033 = vunpack.c.l.s8.bf16 %v367
    %v1034 = vunpack.c.l.s8.bf16 %v368
    %v1035 = vunpack.c.l.s8.bf16 %v369
    %v1036 = vunpack.c.l.s8.bf16 %v370
    %v1037 = vunpack.c.h.s8.bf16 %v353
    %v1038 = vunpack.c.h.s8.bf16 %v354
    %v1039 = vunpack.c.h.s8.bf16 %v355
    %v1040 = vunpack.c.h.s8.bf16 %v356
    %v1041 = vunpack.c.h.s8.bf16 %v357
    %v1042 = vunpack.c.h.s8.bf16 %v358
    %v1043 = vunpack.c.h.s8.bf16 %v359
    %v1044 = vunpack.c.h.s8.bf16 %v360
    %v1045 = vunpack.c.h.s8.bf16 %v361
    %v1046 = vunpack.c.h.s8.bf16 %v362
    %v1047 = vunpack.c.h.s8.bf16 %v363
    %v1048 = vunpack.c.h.s8.bf16 %v364
    %v1049 = vunpack.c.h.s8.bf16 %v365
    %v1050 = vunpack.c.h.s8.bf16 %v366
    %v1051 = vunpack.c.h.s8.bf16 %v367
    %v1052 = vunpack.c.h.s8.bf16 %v368
    %v1053 = vunpack.c.h.s8.bf16 %v369
    %v1054 = vunpack.c.h.s8.bf16 %v370
    %v1055 = vunpack.c.l.s8.bf16 %v371
    %v1056 = vunpack.c.l.s8.bf16 %v372
    %v1057 = vunpack.c.l.s8.bf16 %v373
    %v1058 = vunpack.c.l.s8.bf16 %v374
    %v1059 = vunpack.c.l.s8.bf16 %v375
    %v1060 = vunpack.c.l.s8.bf16 %v376
    %v1061 = vunpack.c.l.s8.bf16 %v377
    %v1062 = vunpack.c.l.s8.bf16 %v378
    %v1063 = vunpack.c.l.s8.bf16 %v379
    %v1064 = vunpack.c.l.s8.bf16 %v380
    %v1065 = vunpack.c.l.s8.bf16 %v381
    %v1066 = vunpack.c.l.s8.bf16 %v382
    %v1067 = vunpack.c.l.s8.bf16 %v383
    %v1068 = vunpack.c.l.s8.bf16 %v384
    %v1069 = vunpack.c.l.s8.bf16 %v385
    %v1070 = vunpack.c.l.s8.bf16 %v386
    %v1071 = vunpack.c.l.s8.bf16 %v387
    %v1072 = vunpack.c.l.s8.bf16 %v388
    %v1073 = vunpack.c.h.s8.bf16 %v371
    %v1074 = vunpack.c.h.s8.bf16 %v372
    %v1075 = vunpack.c.h.s8.bf16 %v373
    %v1076 = vunpack.c.h.s8.bf16 %v374
    %v1077 = vunpack.c.h.s8.bf16 %v375
    %v1078 = vunpack.c.h.s8.bf16 %v376
    %v1079 = vunpack.c.h.s8.bf16 %v377
    %v1080 = vunpack.c.h.s8.bf16 %v378
    %v1081 = vunpack.c.h.s8.bf16 %v379
    %v1082 = vunpack.c.h.s8.bf16 %v380
    %v1083 = vunpack.c.h.s8.bf16 %v381
    %v1084 = vunpack.c.h.s8.bf16 %v382
    %v1085 = vunpack.c.h.s8.bf16 %v383
    %v1086 = vunpack.c.h.s8.bf16 %v384
    %v1087 = vunpack.c.h.s8.bf16 %v385
    %v1088 = vunpack.c.h.s8.bf16 %v386
    %v1089 = vunpack.c.h.s8.bf16 %v387
    %v1090 = vunpack.c.h.s8.bf16 %v388
    %v1091 = vunpack.c.l.s8.bf16 %v389
    %v1092 = vunpack.c.l.s8.bf16 %v390
    %v1093 = vunpack.c.l.s8.bf16 %v391
    %v1094 = vunpack.c.l.s8.bf16 %v392
    %v1095 = vunpack.c.l.s8.bf16 %v393
    %v1096 = vunpack.c.l.s8.bf16 %v394
    %v1097 = vunpack.c.l.s8.bf16 %v395
    %v1098 = vunpack.c.l.s8.bf16 %v396
    %v1099 = vunpack.c.l.s8.bf16 %v397
    %v1100 = vunpack.c.l.s8.bf16 %v398
    %v1101 = vunpack.c.l.s8.bf16 %v399
    %v1102 = vunpack.c.l.s8.bf16 %v400
    %v1103 = vunpack.c.l.s8.bf16 %v401
    %v1104 = vunpack.c.l.s8.bf16 %v402
    %v1105 = vunpack.c.l.s8.bf16 %v403
    %v1106 = vunpack.c.l.s8.bf16 %v404
    %v1107 = vunpack.c.l.s8.bf16 %v405
    %v1108 = vunpack.c.l.s8.bf16 %v406
    %v1109 = vunpack.c.h.s8.bf16 %v389
    %v1110 = vunpack.c.h.s8.bf16 %v390
    %v1111 = vunpack.c.h.s8.bf16 %v391
    %v1112 = vunpack.c.h.s8.bf16 %v392
    %v1113 = vunpack.c.h.s8.bf16 %v393
    %v1114 = vunpack.c.h.s8.bf16 %v394
    %v1115 = vunpack.c.h.s8.bf16 %v395
    %v1116 = vunpack.c.h.s8.bf16 %v396
    %v1117 = vunpack.c.h.s8.bf16 %v397
    %v1118 = vunpack.c.h.s8.bf16 %v398
    %v1119 = vunpack.c.h.s8.bf16 %v399
    %v1120 = vunpack.c.h.s8.bf16 %v400
    %v1121 = vunpack.c.h.s8.bf16 %v401
    %v1122 = vunpack.c.h.s8.bf16 %v402
    %v1123 = vunpack.c.h.s8.bf16 %v403
    %v1124 = vunpack.c.h.s8.bf16 %v404
    %v1125 = vunpack.c.h.s8.bf16 %v405
    %v1126 = vunpack.c.h.s8.bf16 %v406
    %v1127 = vunpack.c.l.s8.bf16 %v407
    %v1128 = vunpack.c.l.s8.bf16 %v408
    %v1129 = vunpack.c.l.s8.bf16 %v409
    %v1130 = vunpack.c.l.s8.bf16 %v410
    %v1131 = vunpack.c.l.s8.bf16 %v411
    %v1132 = vunpack.c.l.s8.bf16 %v412
    %v1133 = vunpack.c.l.s8.bf16 %v413
    %v1134 = vunpack.c.l.s8.bf16 %v414
    %v1135 = vunpack.c.l.s8.bf16 %v415
    %v1136 = vunpack.c.l.s8.bf16 %v416
    %v1137 = vunpack.c.l.s8.bf16 %v417
    %v1138 = vunpack.c.l.s8.bf16 %v418
    %v1139 = vunpack.c.l.s8.bf16 %v419
    %v1140 = vunpack.c.l.s8.bf16 %v420
    %v1141 = vunpack.c.l.s8.bf16 %v421
    %v1142 = vunpack.c.l.s8.bf16 %v422
    %v1143 = vunpack.c.l.s8.bf16 %v423
    %v1144 = vunpack.c.l.s8.bf16 %v424
    %v1145 = vunpack.c.h.s8.bf16 %v407
    %v1146 = vunpack.c.h.s8.bf16 %v408
    %v1147 = vunpack.c.h.s8.bf16 %v409
    %v1148 = vunpack.c.h.s8.bf16 %v410
    %v1149 = vunpack.c.h.s8.bf16 %v411
    %v1150 = vunpack.c.h.s8.bf16 %v412
    %v1151 = vunpack.c.h.s8.bf16 %v413
    %v1152 = vunpack.c.h.s8.bf16 %v414
    %v1153 = vunpack.c.h.s8.bf16 %v415
    %v1154 = vunpack.c.h.s8.bf16 %v416
    %v1155 = vunpack.c.h.s8.bf16 %v417
    %v1156 = vunpack.c.h.s8.bf16 %v418
    %v1157 = vunpack.c.h.s8.bf16 %v419
    %v1158 = vunpack.c.h.s8.bf16 %v420
    %v1159 = vunpack.c.h.s8.bf16 %v421
    %v1160 = vunpack.c.h.s8.bf16 %v422
    %v1161 = vunpack.c.h.s8.bf16 %v423
    %v1162 = vunpack.c.h.s8.bf16 %v424
    %v1163 = vunpack.c.l.s8.bf16 %v425
    %v1164 = vunpack.c.l.s8.bf16 %v426
    %v1165 = vunpack.c.l.s8.bf16 %v427
    %v1166 = vunpack.c.l.s8.bf16 %v428
    %v1167 = vunpack.c.l.s8.bf16 %v429
    %v1168 = vunpack.c.l.s8.bf16 %v430
    %v1169 = vunpack.c.l.s8.bf16 %v431
    %v1170 = vunpack.c.l.s8.bf16 %v432
    %v1171 = vunpack.c.l.s8.bf16 %v433
    %v1172 = vunpack.c.l.s8.bf16 %v434
    %v1173 = vunpack.c.l.s8.bf16 %v435
    %v1174 = vunpack.c.l.s8.bf16 %v436
    %v1175 = vunpack.c.l.s8.bf16 %v437
    %v1176 = vunpack.c.l.s8.bf16 %v438
    %v1177 = vunpack.c.l.s8.bf16 %v439
    %v1178 = vunpack.c.l.s8.bf16 %v440
    %v1179 = vunpack.c.l.s8.bf16 %v441
    %v1180 = vunpack.c.l.s8.bf16 %v442
    %v1181 = vunpack.c.h.s8.bf16 %v425
    %v1182 = vunpack.c.h.s8.bf16 %v426
    %v1183 = vunpack.c.h.s8.bf16 %v427
    %v1184 = vunpack.c.h.s8.bf16 %v428
    %v1185 = vunpack.c.h.s8.bf16 %v429
    %v1186 = vunpack.c.h.s8.bf16 %v430
    %v1187 = vunpack.c.h.s8.bf16 %v431
    %v1188 = vunpack.c.h.s8.bf16 %v432
    %v1189 = vunpack.c.h.s8.bf16 %v433
    %v1190 = vunpack.c.h.s8.bf16 %v434
    %v1191 = vunpack.c.h.s8.bf16 %v435
    %v1192 = vunpack.c.h.s8.bf16 %v436
    %v1193 = vunpack.c.h.s8.bf16 %v437
    %v1194 = vunpack.c.h.s8.bf16 %v438
    %v1195 = vunpack.c.h.s8.bf16 %v439
    %v1196 = vunpack.c.h.s8.bf16 %v440
    %v1197 = vunpack.c.h.s8.bf16 %v441
    %v1198 = vunpack.c.h.s8.bf16 %v442
    %v1199 = vunpack.c.l.s8.bf16 %v443
    %v1200 = vunpack.c.l.s8.bf16 %v444
    %v1201 = vunpack.c.l.s8.bf16 %v445
    %v1202 = vunpack.c.l.s8.bf16 %v446
    %v1203 = vunpack.c.l.s8.bf16 %v447
    %v1204 = vunpack.c.l.s8.bf16 %v448
    %v1205 = vunpack.c.l.s8.bf16 %v449
    %v1206 = vunpack.c.l.s8.bf16 %v450
    %v1207 = vunpack.c.l.s8.bf16 %v451
    %v1208 = vunpack.c.l.s8.bf16 %v452
    %v1209 = vunpack.c.l.s8.bf16 %v453
    %v1210 = vunpack.c.l.s8.bf16 %v454
    %v1211 = vunpack.c.l.s8.bf16 %v455
    %v1212 = vunpack.c.l.s8.bf16 %v456
    %v1213 = vunpack.c.l.s8.bf16 %v457
    %v1214 = vunpack.c.l.s8.bf16 %v458
    %v1215 = vunpack.c.l.s8.bf16 %v459
    %v1216 = vunpack.c.l.s8.bf16 %v460
    %v1217 = vunpack.c.h.s8.bf16 %v443
    %v1218 = vunpack.c.h.s8.bf16 %v444
    %v1219 = vunpack.c.h.s8.bf16 %v445
    %v1220 = vunpack.c.h.s8.bf16 %v446
    %v1221 = vunpack.c.h.s8.bf16 %v447
    %v1222 = vunpack.c.h.s8.bf16 %v448
    %v1223 = vunpack.c.h.s8.bf16 %v449
    %v1224 = vunpack.c.h.s8.bf16 %v450
    %v1225 = vunpack.c.h.s8.bf16 %v451
    %v1226 = vunpack.c.h.s8.bf16 %v452
    %v1227 = vunpack.c.h.s8.bf16 %v453
    %v1228 = vunpack.c.h.s8.bf16 %v454
    %v1229 = vunpack.c.h.s8.bf16 %v455
    %v1230 = vunpack.c.h.s8.bf16 %v456
    %v1231 = vunpack.c.h.s8.bf16 %v457
    %v1232 = vunpack.c.h.s8.bf16 %v458
    %v1233 = vunpack.c.h.s8.bf16 %v459
    %v1234 = vunpack.c.h.s8.bf16 %v460
    %v1235 = vunpack.c.l.s8.bf16 %v461
    %v1236 = vunpack.c.l.s8.bf16 %v462
    %v1237 = vunpack.c.l.s8.bf16 %v463
    %v1238 = vunpack.c.l.s8.bf16 %v464
    %v1239 = vunpack.c.l.s8.bf16 %v465
    %v1240 = vunpack.c.l.s8.bf16 %v466
    %v1241 = vunpack.c.l.s8.bf16 %v467
    %v1242 = vunpack.c.l.s8.bf16 %v468
    %v1243 = vunpack.c.l.s8.bf16 %v469
    %v1244 = vunpack.c.l.s8.bf16 %v470
    %v1245 = vunpack.c.l.s8.bf16 %v471
    %v1246 = vunpack.c.l.s8.bf16 %v472
    %v1247 = vunpack.c.l.s8.bf16 %v473
    %v1248 = vunpack.c.l.s8.bf16 %v474
    %v1249 = vunpack.c.l.s8.bf16 %v475
    %v1250 = vunpack.c.l.s8.bf16 %v476
    %v1251 = vunpack.c.l.s8.bf16 %v477
    %v1252 = vunpack.c.l.s8.bf16 %v478
    %v1253 = vunpack.c.h.s8.bf16 %v461
    %v1254 = vunpack.c.h.s8.bf16 %v462
    %v1255 = vunpack.c.h.s8.bf16 %v463
    %v1256 = vunpack.c.h.s8.bf16 %v464
    %v1257 = vunpack.c.h.s8.bf16 %v465
    %v1258 = vunpack.c.h.s8.bf16 %v466
    %v1259 = vunpack.c.h.s8.bf16 %v467
    %v1260 = vunpack.c.h.s8.bf16 %v468
    %v1261 = vunpack.c.h.s8.bf16 %v469
    %v1262 = vunpack.c.h.s8.bf16 %v470
    %v1263 = vunpack.c.h.s8.bf16 %v471
    %v1264 = vunpack.c.h.s8.bf16 %v472
    %v1265 = vunpack.c.h.s8.bf16 %v473
    %v1266 = vunpack.c.h.s8.bf16 %v474
    %v1267 = vunpack.c.h.s8.bf16 %v475
    %v1268 = vunpack.c.h.s8.bf16 %v476
    %v1269 = vunpack.c.h.s8.bf16 %v477
    %v1270 = vunpack.c.h.s8.bf16 %v478
    %v1271 = vunpack.c.l.s8.bf16 %v479
    %v1272 = vunpack.c.l.s8.bf16 %v480
    %v1273 = vunpack.c.l.s8.bf16 %v481
    %v1274 = vunpack.c.l.s8.bf16 %v482
    %v1275 = vunpack.c.l.s8.bf16 %v483
    %v1276 = vunpack.c.l.s8.bf16 %v484
    %v1277 = vunpack.c.l.s8.bf16 %v485
    %v1278 = vunpack.c.l.s8.bf16 %v486
    %v1279 = vunpack.c.l.s8.bf16 %v487
    %v1280 = vunpack.c.l.s8.bf16 %v488
    %v1281 = vunpack.c.l.s8.bf16 %v489
    %v1282 = vunpack.c.l.s8.bf16 %v490
    %v1283 = vunpack.c.l.s8.bf16 %v491
    %v1284 = vunpack.c.l.s8.bf16 %v492
    %v1285 = vunpack.c.l.s8.bf16 %v493
    %v1286 = vunpack.c.l.s8.bf16 %v494
    %v1287 = vunpack.c.l.s8.bf16 %v495
    %v1288 = vunpack.c.l.s8.bf16 %v496
    %v1289 = vunpack.c.h.s8.bf16 %v479
    %v1290 = vunpack.c.h.s8.bf16 %v480
    %v1291 = vunpack.c.h.s8.bf16 %v481
    %v1292 = vunpack.c.h.s8.bf16 %v482
    %v1293 = vunpack.c.h.s8.bf16 %v483
    %v1294 = vunpack.c.h.s8.bf16 %v484
    %v1295 = vunpack.c.h.s8.bf16 %v485
    %v1296 = vunpack.c.h.s8.bf16 %v486
    %v1297 = vunpack.c.h.s8.bf16 %v487
    %v1298 = vunpack.c.h.s8.bf16 %v488
    %v1299 = vunpack.c.h.s8.bf16 %v489
    %v1300 = vunpack.c.h.s8.bf16 %v490
    %v1301 = vunpack.c.h.s8.bf16 %v491
    %v1302 = vunpack.c.h.s8.bf16 %v492
    %v1303 = vunpack.c.h.s8.bf16 %v493
    %v1304 = vunpack.c.h.s8.bf16 %v494
    %v1305 = vunpack.c.h.s8.bf16 %v495
    %v1306 = vunpack.c.h.s8.bf16 %v496
    %v1307 = vunpack.c.l.s8.bf16 %v497
    %v1308 = vunpack.c.l.s8.bf16 %v498
    %v1309 = vunpack.c.l.s8.bf16 %v499
    %v1310 = vunpack.c.l.s8.bf16 %v500
    %v1311 = vunpack.c.l.s8.bf16 %v501
    %v1312 = vunpack.c.l.s8.bf16 %v502
    %v1313 = vunpack.c.l.s8.bf16 %v503
    %v1314 = vunpack.c.l.s8.bf16 %v504
    %v1315 = vunpack.c.l.s8.bf16 %v505
    %v1316 = vunpack.c.l.s8.bf16 %v506
    %v1317 = vunpack.c.l.s8.bf16 %v507
    %v1318 = vunpack.c.l.s8.bf16 %v508
    %v1319 = vunpack.c.l.s8.bf16 %v509
    %v1320 = vunpack.c.l.s8.bf16 %v510
    %v1321 = vunpack.c.l.s8.bf16 %v511
    %v1322 = vunpack.c.l.s8.bf16 %v512
    %v1323 = vunpack.c.l.s8.bf16 %v513
    %v1324 = vunpack.c.l.s8.bf16 %v514
    %v1325 = vunpack.c.h.s8.bf16 %v497
    %v1326 = vunpack.c.h.s8.bf16 %v498
    %v1327 = vunpack.c.h.s8.bf16 %v499
    %v1328 = vunpack.c.h.s8.bf16 %v500
    %v1329 = vunpack.c.h.s8.bf16 %v501
    %v1330 = vunpack.c.h.s8.bf16 %v502
    %v1331 = vunpack.c.h.s8.bf16 %v503
    %v1332 = vunpack.c.h.s8.bf16 %v504
    %v1333 = vunpack.c.h.s8.bf16 %v505
    %v1334 = vunpack.c.h.s8.bf16 %v506
    %v1335 = vunpack.c.h.s8.bf16 %v507
    %v1336 = vunpack.c.h.s8.bf16 %v508
    %v1337 = vunpack.c.h.s8.bf16 %v509
    %v1338 = vunpack.c.h.s8.bf16 %v510
    %v1339 = vunpack.c.h.s8.bf16 %v511
    %v1340 = vunpack.c.h.s8.bf16 %v512
    %v1341 = vunpack.c.h.s8.bf16 %v513
    %v1342 = vunpack.c.h.s8.bf16 %v514
    %v1343 = vunpack.c.l.s8.bf16 %v515
    %v1344 = vunpack.c.l.s8.bf16 %v516
    %v1345 = vunpack.c.l.s8.bf16 %v517
    %v1346 = vunpack.c.l.s8.bf16 %v518
    %v1347 = vunpack.c.l.s8.bf16 %v519
    %v1348 = vunpack.c.l.s8.bf16 %v520
    %v1349 = vunpack.c.l.s8.bf16 %v521
    %v1350 = vunpack.c.l.s8.bf16 %v522
    %v1351 = vunpack.c.l.s8.bf16 %v523
    %v1352 = vunpack.c.l.s8.bf16 %v524
    %v1353 = vunpack.c.l.s8.bf16 %v525
    %v1354 = vunpack.c.l.s8.bf16 %v526
    %v1355 = vunpack.c.l.s8.bf16 %v527
    %v1356 = vunpack.c.l.s8.bf16 %v528
    %v1357 = vunpack.c.l.s8.bf16 %v529
    %v1358 = vunpack.c.l.s8.bf16 %v530
    %v1359 = vunpack.c.l.s8.bf16 %v531
    %v1360 = vunpack.c.l.s8.bf16 %v532
    %v1361 = vunpack.c.h.s8.bf16 %v515
    %v1362 = vunpack.c.h.s8.bf16 %v516
    %v1363 = vunpack.c.h.s8.bf16 %v517
    %v1364 = vunpack.c.h.s8.bf16 %v518
    %v1365 = vunpack.c.h.s8.bf16 %v519
    %v1366 = vunpack.c.h.s8.bf16 %v520
    %v1367 = vunpack.c.h.s8.bf16 %v521
    %v1368 = vunpack.c.h.s8.bf16 %v522
    %v1369 = vunpack.c.h.s8.bf16 %v523
    %v1370 = vunpack.c.h.s8.bf16 %v524
    %v1371 = vunpack.c.h.s8.bf16 %v525
    %v1372 = vunpack.c.h.s8.bf16 %v526
    %v1373 = vunpack.c.h.s8.bf16 %v527
    %v1374 = vunpack.c.h.s8.bf16 %v528
    %v1375 = vunpack.c.h.s8.bf16 %v529
    %v1376 = vunpack.c.h.s8.bf16 %v530
    %v1377 = vunpack.c.h.s8.bf16 %v531
    %v1378 = vunpack.c.h.s8.bf16 %v532
    %v1379 = vunpack.c.l.s8.bf16 %v533
    %v1380 = vunpack.c.l.s8.bf16 %v534
    %v1381 = vunpack.c.l.s8.bf16 %v535
    %v1382 = vunpack.c.l.s8.bf16 %v536
    %v1383 = vunpack.c.l.s8.bf16 %v537
    %v1384 = vunpack.c.l.s8.bf16 %v538
    %v1385 = vunpack.c.l.s8.bf16 %v539
    %v1386 = vunpack.c.l.s8.bf16 %v540
    %v1387 = vunpack.c.l.s8.bf16 %v541
    %v1388 = vunpack.c.l.s8.bf16 %v542
    %v1389 = vunpack.c.l.s8.bf16 %v543
    %v1390 = vunpack.c.l.s8.bf16 %v544
    %v1391 = vunpack.c.l.s8.bf16 %v545
    %v1392 = vunpack.c.l.s8.bf16 %v546
    %v1393 = vunpack.c.l.s8.bf16 %v547
    %v1394 = vunpack.c.l.s8.bf16 %v548
    %v1395 = vunpack.c.l.s8.bf16 %v549
    %v1396 = vunpack.c.l.s8.bf16 %v550
    %v1397 = vunpack.c.h.s8.bf16 %v533
    %v1398 = vunpack.c.h.s8.bf16 %v534
    %v1399 = vunpack.c.h.s8.bf16 %v535
    %v1400 = vunpack.c.h.s8.bf16 %v536
    %v1401 = vunpack.c.h.s8.bf16 %v537
    %v1402 = vunpack.c.h.s8.bf16 %v538
    %v1403 = vunpack.c.h.s8.bf16 %v539
    %v1404 = vunpack.c.h.s8.bf16 %v540
    %v1405 = vunpack.c.h.s8.bf16 %v541
    %v1406 = vunpack.c.h.s8.bf16 %v542
    %v1407 = vunpack.c.h.s8.bf16 %v543
    %v1408 = vunpack.c.h.s8.bf16 %v544
    %v1409 = vunpack.c.h.s8.bf16 %v545
    %v1410 = vunpack.c.h.s8.bf16 %v546
    %v1411 = vunpack.c.h.s8.bf16 %v547
    %v1412 = vunpack.c.h.s8.bf16 %v548
    %v1413 = vunpack.c.h.s8.bf16 %v549
    %v1414 = vunpack.c.h.s8.bf16 %v550
    %1415 = vmatprep.subr.bf16.mxu0 %v552
    %1416 = vmatpush1.bf16.msra.mxu0 %v551
    %1417 = vmatprep.subr.bf16.mxu0 %v570
    %1418 = vmatpush1.bf16.msra.mxu0 %v569
    %1419 = vmatprep.subr.bf16.mxu0 %v588
    %1420 = vmatpush1.bf16.msra.mxu0 %v587
    %1421 = vmatprep.subr.bf16.mxu0 %v606
    %1422 = vmatpush1.bf16.msra.mxu0 %v605
    %1423 = vmatprep.subr.bf16.mxu0 %v624
    %1424 = vmatpush1.bf16.msra.mxu0 %v623
    %1425 = vmatprep.subr.bf16.mxu0 %v642
    %1426 = vmatpush1.bf16.msra.mxu0 %v641
    %1427 = vmatprep.subr.bf16.mxu0 %v660
    %1428 = vmatpush1.bf16.msra.mxu0 %v659
    %1429 = vmatprep.subr.bf16.mxu0 %v678
    %1430 = vmatpush1.bf16.msra.mxu0 %v677
    %1431 = vmatprep.subr.bf16.mxu0 %v696
    %1432 = vmatpush1.bf16.msra.mxu0 %v695
    %1433 = vmatprep.subr.bf16.mxu0 %v714
    %1434 = vmatpush1.bf16.msra.mxu0 %v713
    %1435 = vmatprep.subr.bf16.mxu0 %v732
    %1436 = vmatpush1.bf16.msra.mxu0 %v731
    %1437 = vmatprep.subr.bf16.mxu0 %v750
    %1438 = vmatpush1.bf16.msra.mxu0 %v749
    %1439 = vmatprep.subr.bf16.mxu0 %v768
    %1440 = vmatpush1.bf16.msra.mxu0 %v767
    %1441 = vmatprep.subr.bf16.mxu0 %v786
    %1442 = vmatpush1.bf16.msra.mxu0 %v785
    %1443 = vmatprep.subr.bf16.mxu0 %v804
    %1444 = vmatpush1.bf16.msra.mxu0 %v803
    %1445 = vmatprep.subr.bf16.mxu0 %v822
    %1446 = vmatpush1.bf16.msra.mxu0 %v821
    %1447 = vmatprep.mubr.bf16.mxu0 %v114
    %1448 = vmatmul.mubr.bf16.gmra.mrb[0].mxu0 %v113
    %v1449 = vpop.f32.mrb[0].mxu0
    %v1450 = vadd.f32 0.0, %v1449
    %v1451 = vpop.f32.mrb[0].mxu0
    %v1452 = vadd.f32 0.0, %v1451
    %v1453 = vpop.f32.mrb[0].mxu0
    %v1454 = vpop.f32.mrb[0].mxu0
    %1455 = vdwg.mxu0
    %1456 = vmatprep.subr.bf16.mxu0 %v840
    %1457 = vmatpush1.bf16.msra.mxu0 %v839
    %1458 = vmatprep.subr.bf16.mxu0 %v858
    %1459 = vmatpush1.bf16.msra.mxu0 %v857
    %1460 = vmatprep.subr.bf16.mxu0 %v876
    %1461 = vmatpush1.bf16.msra.mxu0 %v875
    %1462 = vmatprep.subr.bf16.mxu0 %v894
    %1463 = vmatpush1.bf16.msra.mxu0 %v893
    %1464 = vmatprep.subr.bf16.mxu0 %v912
    %1465 = vmatpush1.bf16.msra.mxu0 %v911
    %1466 = vmatprep.subr.bf16.mxu0 %v930
    %1467 = vmatpush1.bf16.msra.mxu0 %v929
    %1468 = vmatprep.subr.bf16.mxu0 %v948
    %1469 = vmatpush1.bf16.msra.mxu0 %v947
    %1470 = vmatprep.subr.bf16.mxu0 %v966
    %1471 = vmatpush1.bf16.msra.mxu0 %v965
    %1472 = vmatprep.subr.bf16.mxu0 %v984
    %1473 = vmatpush1.bf16.msra.mxu0 %v983
    %1474 = vmatprep.subr.bf16.mxu0 %v1002
    %1475 = vmatpush1.bf16.msra.mxu0 %v1001
    %1476 = vmatprep.subr.bf16.mxu0 %v1020
    %1477 = vmatpush1.bf16.msra.mxu0 %v1019
    %1478 = vmatprep.subr.bf16.mxu0 %v1038
    %1479 = vmatpush1.bf16.msra.mxu0 %v1037
    %1480 = vmatprep.subr.bf16.mxu0 %v1056
    %1481 = vmatpush1.bf16.msra.mxu0 %v1055
    %1482 = vmatprep.subr.bf16.mxu0 %v1074
    %1483 = vmatpush1.bf16.msra.mxu0 %v1073
    %1484 = vmatprep.subr.bf16.mxu0 %v1092
    %1485 = vmatpush1.bf16.msra.mxu0 %v1091
    %1486 = vmatprep.subr.bf16.mxu0 %v1110
    %1487 = vmatpush1.bf16.msra.mxu0 %v1109
    %1488 = vmatprep.mubr.bf16.mxu0 %v116
    %1489 = vmatmul.mubr.bf16.gmra.mrb[0].mxu0 %v115
    %v1490 = vpop.f32.mrb[0].mxu0
    %v1491 = vadd.f32 %v1450, %v1490
    %v1492 = vpop.f32.mrb[0].mxu0
    %v1493 = vadd.f32 %v1452, %v1492
    %v1494 = vpop.f32.mrb[0].mxu0
    %v1495 = vpop.f32.mrb[0].mxu0
    %1496 = vdwg.mxu0
    %1497 = vmatprep.subr.bf16.mxu0 %v1128
    %1498 = vmatpush1.bf16.msra.mxu0 %v1127
    %1499 = vmatprep.subr.bf16.mxu0 %v1146
    %1500 = vmatpush1.bf16.msra.mxu0 %v1145
    %1501 = vmatprep.subr.bf16.mxu0 %v1164
    %1502 = vmatpush1.bf16.msra.mxu0 %v1163
    %1503 = vmatprep.subr.bf16.mxu0 %v1182
    %1504 = vmatpush1.bf16.msra.mxu0 %v1181
    %1505 = vmatprep.subr.bf16.mxu0 %v1200
    %1506 = vmatpush1.bf16.msra.mxu0 %v1199
    %1507 = vmatprep.subr.bf16.mxu0 %v1218
    %1508 = vmatpush1.bf16.msra.mxu0 %v1217
    %1509 = vmatprep.subr.bf16.mxu0 %v1236
    %1510 = vmatpush1.bf16.msra.mxu0 %v1235
    %1511 = vmatprep.subr.bf16.mxu0 %v1254
    %1512 = vmatpush1.bf16.msra.mxu0 %v1253
    %1513 = vmatprep.subr.bf16.mxu0 %v1272
    %1514 = vmatpush1.bf16.msra.mxu0 %v1271
    %1515 = vmatprep.subr.bf16.mxu0 %v1290
    %1516 = vmatpush1.bf16.msra.mxu0 %v1289
    %1517 = vmatprep.subr.bf16.mxu0 %v1308
    %1518 = vmatpush1.bf16.msra.mxu0 %v1307
    %1519 = vmatprep.subr.bf16.mxu0 %v1326
    %1520 = vmatpush1.bf16.msra.mxu0 %v1325
    %1521 = vmatprep.subr.bf16.mxu0 %v1344
    %1522 = vmatpush1.bf16.msra.mxu0 %v1343
    %1523 = vmatprep.subr.bf16.mxu0 %v1362
    %1524 = vmatpush1.bf16.msra.mxu0 %v1361
    %1525 = vmatprep.subr.bf16.mxu0 %v1380
    %1526 = vmatpush1.bf16.msra.mxu0 %v1379
    %1527 = vmatprep.subr.bf16.mxu0 %v1398
    %1528 = vmatpush1.bf16.msra.mxu0 %v1397
    %1529 = vmatprep.mubr.bf16.mxu0 %v118
    %1530 = vmatmul.mubr.bf16.gmra.mrb[0].mxu0 %v117
    %v1531 = vpop.f32.mrb[0].mxu0
    %v1532 = vadd.f32 %v1491, %v1531
    %v1533 = vpop.f32.mrb[0].mxu0
    %v1534 = vadd.f32 %v1493, %v1533
    %v1535 = vpop.f32.mrb[0].mxu0
    %v1536 = vpop.f32.mrb[0].mxu0
    %1537 = vdwg.mxu0
    %1538 = vmatprep.subr.bf16.mxu0 %v554
    %1539 = vmatpush1.bf16.msra.mxu0 %v553
    %1540 = vmatprep.subr.bf16.mxu0 %v572
    %1541 = vmatpush1.bf16.msra.mxu0 %v571
    %1542 = vmatprep.subr.bf16.mxu0 %v590
    %1543 = vmatpush1.bf16.msra.mxu0 %v589
    %1544 = vmatprep.subr.bf16.mxu0 %v608
    %1545 = vmatpush1.bf16.msra.mxu0 %v607
    %1546 = vmatprep.subr.bf16.mxu0 %v626
    %1547 = vmatpush1.bf16.msra.mxu0 %v625
    %1548 = vmatprep.subr.bf16.mxu0 %v644
    %1549 = vmatpush1.bf16.msra.mxu0 %v643
    %1550 = vmatprep.subr.bf16.mxu0 %v662
    %1551 = vmatpush1.bf16.msra.mxu0 %v661
    %1552 = vmatprep.subr.bf16.mxu0 %v680
    %1553 = vmatpush1.bf16.msra.mxu0 %v679
    %1554 = vmatprep.subr.bf16.mxu0 %v698
    %1555 = vmatpush1.bf16.msra.mxu0 %v697
    %1556 = vmatprep.subr.bf16.mxu0 %v716
    %1557 = vmatpush1.bf16.msra.mxu0 %v715
    %1558 = vmatprep.subr.bf16.mxu0 %v734
    %1559 = vmatpush1.bf16.msra.mxu0 %v733
    %1560 = vmatprep.subr.bf16.mxu0 %v752
    %1561 = vmatpush1.bf16.msra.mxu0 %v751
    %1562 = vmatprep.subr.bf16.mxu0 %v770
    %1563 = vmatpush1.bf16.msra.mxu0 %v769
    %1564 = vmatprep.subr.bf16.mxu0 %v788
    %1565 = vmatpush1.bf16.msra.mxu0 %v787
    %1566 = vmatprep.subr.bf16.mxu0 %v806
    %1567 = vmatpush1.bf16.msra.mxu0 %v805
    %1568 = vmatprep.subr.bf16.mxu0 %v824
    %1569 = vmatpush1.bf16.msra.mxu0 %v823
    %1570 = vmatprep.mubr.bf16.mxu0 %v114
    %1571 = vmatmul.mubr.bf16.gmra.mrb[0].mxu0 %v113
    %v1572 = vpop.f32.mrb[0].mxu0
    %v1573 = vadd.f32 0.0, %v1572
    %v1574 = vpop.f32.mrb[0].mxu0
    %v1575 = vadd.f32 0.0, %v1574
    %v1576 = vpop.f32.mrb[0].mxu0
    %v1577 = vpop.f32.mrb[0].mxu0
    %1578 = vdwg.mxu0
    %1579 = vmatprep.subr.bf16.mxu0 %v842
    %1580 = vmatpush1.bf16.msra.mxu0 %v841
    %1581 = vmatprep.subr.bf16.mxu0 %v860
    %1582 = vmatpush1.bf16.msra.mxu0 %v859
    %1583 = vmatprep.subr.bf16.mxu0 %v878
    %1584 = vmatpush1.bf16.msra.mxu0 %v877
    %1585 = vmatprep.subr.bf16.mxu0 %v896
    %1586 = vmatpush1.bf16.msra.mxu0 %v895
    %1587 = vmatprep.subr.bf16.mxu0 %v914
    %1588 = vmatpush1.bf16.msra.mxu0 %v913
    %1589 = vmatprep.subr.bf16.mxu0 %v932
    %1590 = vmatpush1.bf16.msra.mxu0 %v931
    %1591 = vmatprep.subr.bf16.mxu0 %v950
    %1592 = vmatpush1.bf16.msra.mxu0 %v949
    %1593 = vmatprep.subr.bf16.mxu0 %v968
    %1594 = vmatpush1.bf16.msra.mxu0 %v967
    %1595 = vmatprep.subr.bf16.mxu0 %v986
    %1596 = vmatpush1.bf16.msra.mxu0 %v985
    %1597 = vmatprep.subr.bf16.mxu0 %v1004
    %1598 = vmatpush1.bf16.msra.mxu0 %v1003
    %1599 = vmatprep.subr.bf16.mxu0 %v1022
    %1600 = vmatpush1.bf16.msra.mxu0 %v1021
    %1601 = vmatprep.subr.bf16.mxu0 %v1040
    %1602 = vmatpush1.bf16.msra.mxu0 %v1039
    %1603 = vmatprep.subr.bf16.mxu0 %v1058
    %1604 = vmatpush1.bf16.msra.mxu0 %v1057
    %1605 = vmatprep.subr.bf16.mxu0 %v1076
    %1606 = vmatpush1.bf16.msra.mxu0 %v1075
    %1607 = vmatprep.subr.bf16.mxu0 %v1094
    %1608 = vmatpush1.bf16.msra.mxu0 %v1093
    %1609 = vmatprep.subr.bf16.mxu0 %v1112
    %1610 = vmatpush1.bf16.msra.mxu0 %v1111
    %1611 = vmatprep.mubr.bf16.mxu0 %v116
    %1612 = vmatmul.mubr.bf16.gmra.mrb[0].mxu0 %v115
    %v1613 = vpop.f32.mrb[0].mxu0
    %v1614 = vadd.f32 %v1573, %v1613
    %v1615 = vpop.f32.mrb[0].mxu0
    %v1616 = vadd.f32 %v1575, %v1615
    %v1617 = vpop.f32.mrb[0].mxu0
    %v1618 = vpop.f32.mrb[0].mxu0
    %1619 = vdwg.mxu0
    %1620 = vmatprep.subr.bf16.mxu0 %v1130
    %1621 = vmatpush1.bf16.msra.mxu0 %v1129
    %1622 = vmatprep.subr.bf16.mxu0 %v1148
    %1623 = vmatpush1.bf16.msra.mxu0 %v1147
    %1624 = vmatprep.subr.bf16.mxu0 %v1166
    %1625 = vmatpush1.bf16.msra.mxu0 %v1165
    %1626 = vmatprep.subr.bf16.mxu0 %v1184
    %1627 = vmatpush1.bf16.msra.mxu0 %v1183
    %1628 = vmatprep.subr.bf16.mxu0 %v1202
    %1629 = vmatpush1.bf16.msra.mxu0 %v1201
    %1630 = vmatprep.subr.bf16.mxu0 %v1220
    %1631 = vmatpush1.bf16.msra.mxu0 %v1219
    %1632 = vmatprep.subr.bf16.mxu0 %v1238
    %1633 = vmatpush1.bf16.msra.mxu0 %v1237
    %1634 = vmatprep.subr.bf16.mxu0 %v1256
    %1635 = vmatpush1.bf16.msra.mxu0 %v1255
    %1636 = vmatprep.subr.bf16.mxu0 %v1274
    %1637 = vmatpush1.bf16.msra.mxu0 %v1273
    %1638 = vmatprep.subr.bf16.mxu0 %v1292
    %1639 = vmatpush1.bf16.msra.mxu0 %v1291
    %1640 = vmatprep.subr.bf16.mxu0 %v1310
    %1641 = vmatpush1.bf16.msra.mxu0 %v1309
    %1642 = vmatprep.subr.bf16.mxu0 %v1328
    %1643 = vmatpush1.bf16.msra.mxu0 %v1327
    %1644 = vmatprep.subr.bf16.mxu0 %v1346
    %1645 = vmatpush1.bf16.msra.mxu0 %v1345
    %1646 = vmatprep.subr.bf16.mxu0 %v1364
    %1647 = vmatpush1.bf16.msra.mxu0 %v1363
    %1648 = vmatprep.subr.bf16.mxu0 %v1382
    %1649 = vmatpush1.bf16.msra.mxu0 %v1381
    %1650 = vmatprep.subr.bf16.mxu0 %v1400
    %1651 = vmatpush1.bf16.msra.mxu0 %v1399
    %1652 = vmatprep.mubr.bf16.mxu0 %v118
    %1653 = vmatmul.mubr.bf16.gmra.mrb[0].mxu0 %v117
    %v1654 = vpop.f32.mrb[0].mxu0
    %v1655 = vadd.f32 %v1614, %v1654
    %v1656 = vpop.f32.mrb[0].mxu0
    %v1657 = vadd.f32 %v1616, %v1656
    %v1658 = vpop.f32.mrb[0].mxu0
    %v1659 = vpop.f32.mrb[0].mxu0
    %1660 = vdwg.mxu0
    %1661 = vmatprep.subr.bf16.mxu0 %v556
    %1662 = vmatpush1.bf16.msra.mxu0 %v555
    %1663 = vmatprep.subr.bf16.mxu0 %v574
    %1664 = vmatpush1.bf16.msra.mxu0 %v573
    %1665 = vmatprep.subr.bf16.mxu0 %v592
    %1666 = vmatpush1.bf16.msra.mxu0 %v591
    %1667 = vmatprep.subr.bf16.mxu0 %v610
    %1668 = vmatpush1.bf16.msra.mxu0 %v609
    %1669 = vmatprep.subr.bf16.mxu0 %v628
    %1670 = vmatpush1.bf16.msra.mxu0 %v627
    %1671 = vmatprep.subr.bf16.mxu0 %v646
    %1672 = vmatpush1.bf16.msra.mxu0 %v645
    %1673 = vmatprep.subr.bf16.mxu0 %v664
    %1674 = vmatpush1.bf16.msra.mxu0 %v663
    %1675 = vmatprep.subr.bf16.mxu0 %v682
    %1676 = vmatpush1.bf16.msra.mxu0 %v681
    %1677 = vmatprep.subr.bf16.mxu0 %v700
    %1678 = vmatpush1.bf16.msra.mxu0 %v699
    %1679 = vmatprep.subr.bf16.mxu0 %v718
    %1680 = vmatpush1.bf16.msra.mxu0 %v717
    %1681 = vmatprep.subr.bf16.mxu0 %v736
    %1682 = vmatpush1.bf16.msra.mxu0 %v735
    %1683 = vmatprep.subr.bf16.mxu0 %v754
    %1684 = vmatpush1.bf16.msra.mxu0 %v753
    %1685 = vmatprep.subr.bf16.mxu0 %v772
    %1686 = vmatpush1.bf16.msra.mxu0 %v771
    %1687 = vmatprep.subr.bf16.mxu0 %v790
    %1688 = vmatpush1.bf16.msra.mxu0 %v789
    %1689 = vmatprep.subr.bf16.mxu0 %v808
    %1690 = vmatpush1.bf16.msra.mxu0 %v807
    %1691 = vmatprep.subr.bf16.mxu0 %v826
    %1692 = vmatpush1.bf16.msra.mxu0 %v825
    %1693 = vmatprep.mubr.bf16.mxu0 %v114
    %1694 = vmatmul.mubr.bf16.gmra.mrb[0].mxu0 %v113
    %v1695 = vpop.f32.mrb[0].mxu0
    %v1696 = vadd.f32 0.0, %v1695
    %v1697 = vpop.f32.mrb[0].mxu0
    %v1698 = vadd.f32 0.0, %v1697
    %v1699 = vpop.f32.mrb[0].mxu0
    %v1700 = vpop.f32.mrb[0].mxu0
    %1701 = vdwg.mxu0
    %1702 = vmatprep.subr.bf16.mxu0 %v844
    %1703 = vmatpush1.bf16.msra.mxu0 %v843
    %1704 = vmatprep.subr.bf16.mxu0 %v862
    %1705 = vmatpush1.bf16.msra.mxu0 %v861
    %1706 = vmatprep.subr.bf16.mxu0 %v880
    %1707 = vmatpush1.bf16.msra.mxu0 %v879
    %1708 = vmatprep.subr.bf16.mxu0 %v898
    %1709 = vmatpush1.bf16.msra.mxu0 %v897
    %1710 = vmatprep.subr.bf16.mxu0 %v916
    %1711 = vmatpush1.bf16.msra.mxu0 %v915
    %1712 = vmatprep.subr.bf16.mxu0 %v934
    %1713 = vmatpush1.bf16.msra.mxu0 %v933
    %1714 = vmatprep.subr.bf16.mxu0 %v952
    %1715 = vmatpush1.bf16.msra.mxu0 %v951
    %1716 = vmatprep.subr.bf16.mxu0 %v970
    %1717 = vmatpush1.bf16.msra.mxu0 %v969
    %1718 = vmatprep.subr.bf16.mxu0 %v988
    %1719 = vmatpush1.bf16.msra.mxu0 %v987
    %1720 = vmatprep.subr.bf16.mxu0 %v1006
    %1721 = vmatpush1.bf16.msra.mxu0 %v1005
    %1722 = vmatprep.subr.bf16.mxu0 %v1024
    %1723 = vmatpush1.bf16.msra.mxu0 %v1023
    %1724 = vmatprep.subr.bf16.mxu0 %v1042
    %1725 = vmatpush1.bf16.msra.mxu0 %v1041
    %1726 = vmatprep.subr.bf16.mxu0 %v1060
    %1727 = vmatpush1.bf16.msra.mxu0 %v1059
    %1728 = vmatprep.subr.bf16.mxu0 %v1078
    %1729 = vmatpush1.bf16.msra.mxu0 %v1077
    %1730 = vmatprep.subr.bf16.mxu0 %v1096
    %1731 = vmatpush1.bf16.msra.mxu0 %v1095
    %1732 = vmatprep.subr.bf16.mxu0 %v1114
    %1733 = vmatpush1.bf16.msra.mxu0 %v1113
    %1734 = vmatprep.mubr.bf16.mxu0 %v116
    %1735 = vmatmul.mubr.bf16.gmra.mrb[0].mxu0 %v115
    %v1736 = vpop.f32.mrb[0].mxu0
    %v1737 = vadd.f32 %v1696, %v1736
    %v1738 = vpop.f32.mrb[0].mxu0
    %v1739 = vadd.f32 %v1698, %v1738
    %v1740 = vpop.f32.mrb[0].mxu0
    %v1741 = vpop.f32.mrb[0].mxu0
    %1742 = vdwg.mxu0
    %1743 = vmatprep.subr.bf16.mxu0 %v1132
    %1744 = vmatpush1.bf16.msra.mxu0 %v1131
    %1745 = vmatprep.subr.bf16.mxu0 %v1150
    %1746 = vmatpush1.bf16.msra.mxu0 %v1149
    %1747 = vmatprep.subr.bf16.mxu0 %v1168
    %1748 = vmatpush1.bf16.msra.mxu0 %v1167
    %1749 = vmatprep.subr.bf16.mxu0 %v1186
    %1750 = vmatpush1.bf16.msra.mxu0 %v1185
    %1751 = vmatprep.subr.bf16.mxu0 %v1204
    %1752 = vmatpush1.bf16.msra.mxu0 %v1203
    %1753 = vmatprep.subr.bf16.mxu0 %v1222
    %1754 = vmatpush1.bf16.msra.mxu0 %v1221
    %1755 = vmatprep.subr.bf16.mxu0 %v1240
    %1756 = vmatpush1.bf16.msra.mxu0 %v1239
    %1757 = vmatprep.subr.bf16.mxu0 %v1258
    %1758 = vmatpush1.bf16.msra.mxu0 %v1257
    %1759 = vmatprep.subr.bf16.mxu0 %v1276
    %1760 = vmatpush1.bf16.msra.mxu0 %v1275
    %1761 = vmatprep.subr.bf16.mxu0 %v1294
    %1762 = vmatpush1.bf16.msra.mxu0 %v1293
    %1763 = vmatprep.subr.bf16.mxu0 %v1312
    %1764 = vmatpush1.bf16.msra.mxu0 %v1311
    %1765 = vmatprep.subr.bf16.mxu0 %v1330
    %1766 = vmatpush1.bf16.msra.mxu0 %v1329
    %1767 = vmatprep.subr.bf16.mxu0 %v1348
    %1768 = vmatpush1.bf16.msra.mxu0 %v1347
    %1769 = vmatprep.subr.bf16.mxu0 %v1366
    %1770 = vmatpush1.bf16.msra.mxu0 %v1365
    %1771 = vmatprep.subr.bf16.mxu0 %v1384
    %1772 = vmatpush1.bf16.msra.mxu0 %v1383
    %1773 = vmatprep.subr.bf16.mxu0 %v1402
    %1774 = vmatpush1.bf16.msra.mxu0 %v1401
    %1775 = vmatprep.mubr.bf16.mxu0 %v118
    %1776 = vmatmul.mubr.bf16.gmra.mrb[0].mxu0 %v117
    %v1777 = vpop.f32.mrb[0].mxu0
    %v1778 = vadd.f32 %v1737, %v1777
    %v1779 = vpop.f32.mrb[0].mxu0
    %v1780 = vadd.f32 %v1739, %v1779
    %v1781 = vpop.f32.mrb[0].mxu0
    %v1782 = vpop.f32.mrb[0].mxu0
    %1783 = vdwg.mxu0
    %1784 = vmatprep.subr.bf16.mxu0 %v558
    %1785 = vmatpush1.bf16.msra.mxu0 %v557
    %1786 = vmatprep.subr.bf16.mxu0 %v576
    %1787 = vmatpush1.bf16.msra.mxu0 %v575
    %1788 = vmatprep.subr.bf16.mxu0 %v594
    %1789 = vmatpush1.bf16.msra.mxu0 %v593
    %1790 = vmatprep.subr.bf16.mxu0 %v612
    %1791 = vmatpush1.bf16.msra.mxu0 %v611
    %1792 = vmatprep.subr.bf16.mxu0 %v630
    %1793 = vmatpush1.bf16.msra.mxu0 %v629
    %1794 = vmatprep.subr.bf16.mxu0 %v648
    %1795 = vmatpush1.bf16.msra.mxu0 %v647
    %1796 = vmatprep.subr.bf16.mxu0 %v666
    %1797 = vmatpush1.bf16.msra.mxu0 %v665
    %1798 = vmatprep.subr.bf16.mxu0 %v684
    %1799 = vmatpush1.bf16.msra.mxu0 %v683
    %1800 = vmatprep.subr.bf16.mxu0 %v702
    %1801 = vmatpush1.bf16.msra.mxu0 %v701
    %1802 = vmatprep.subr.bf16.mxu0 %v720
    %1803 = vmatpush1.bf16.msra.mxu0 %v719
    %1804 = vmatprep.subr.bf16.mxu0 %v738
    %1805 = vmatpush1.bf16.msra.mxu0 %v737
    %1806 = vmatprep.subr.bf16.mxu0 %v756
    %1807 = vmatpush1.bf16.msra.mxu0 %v755
    %1808 = vmatprep.subr.bf16.mxu0 %v774
    %1809 = vmatpush1.bf16.msra.mxu0 %v773
    %1810 = vmatprep.subr.bf16.mxu0 %v792
    %1811 = vmatpush1.bf16.msra.mxu0 %v791
    %1812 = vmatprep.subr.bf16.mxu0 %v810
    %1813 = vmatpush1.bf16.msra.mxu0 %v809
    %1814 = vmatprep.subr.bf16.mxu0 %v828
    %1815 = vmatpush1.bf16.msra.mxu0 %v827
    %1816 = vmatprep.mubr.bf16.mxu0 %v114
    %1817 = vmatmul.mubr.bf16.gmra.mrb[0].mxu0 %v113
    %v1818 = vpop.f32.mrb[0].mxu0
    %v1819 = vadd.f32 0.0, %v1818
    %v1820 = vpop.f32.mrb[0].mxu0
    %v1821 = vadd.f32 0.0, %v1820
    %v1822 = vpop.f32.mrb[0].mxu0
    %v1823 = vpop.f32.mrb[0].mxu0
    %1824 = vdwg.mxu0
    %1825 = vmatprep.subr.bf16.mxu0 %v846
    %1826 = vmatpush1.bf16.msra.mxu0 %v845
    %1827 = vmatprep.subr.bf16.mxu0 %v864
    %1828 = vmatpush1.bf16.msra.mxu0 %v863
    %1829 = vmatprep.subr.bf16.mxu0 %v882
    %1830 = vmatpush1.bf16.msra.mxu0 %v881
    %1831 = vmatprep.subr.bf16.mxu0 %v900
    %1832 = vmatpush1.bf16.msra.mxu0 %v899
    %1833 = vmatprep.subr.bf16.mxu0 %v918
    %1834 = vmatpush1.bf16.msra.mxu0 %v917
    %1835 = vmatprep.subr.bf16.mxu0 %v936
    %1836 = vmatpush1.bf16.msra.mxu0 %v935
    %1837 = vmatprep.subr.bf16.mxu0 %v954
    %1838 = vmatpush1.bf16.msra.mxu0 %v953
    %1839 = vmatprep.subr.bf16.mxu0 %v972
    %1840 = vmatpush1.bf16.msra.mxu0 %v971
    %1841 = vmatprep.subr.bf16.mxu0 %v990
    %1842 = vmatpush1.bf16.msra.mxu0 %v989
    %1843 = vmatprep.subr.bf16.mxu0 %v1008
    %1844 = vmatpush1.bf16.msra.mxu0 %v1007
    %1845 = vmatprep.subr.bf16.mxu0 %v1026
    %1846 = vmatpush1.bf16.msra.mxu0 %v1025
    %1847 = vmatprep.subr.bf16.mxu0 %v1044
    %1848 = vmatpush1.bf16.msra.mxu0 %v1043
    %1849 = vmatprep.subr.bf16.mxu0 %v1062
    %1850 = vmatpush1.bf16.msra.mxu0 %v1061
    %1851 = vmatprep.subr.bf16.mxu0 %v1080
    %1852 = vmatpush1.bf16.msra.mxu0 %v1079
    %1853 = vmatprep.subr.bf16.mxu0 %v1098
    %1854 = vmatpush1.bf16.msra.mxu0 %v1097
    %1855 = vmatprep.subr.bf16.mxu0 %v1116
    %1856 = vmatpush1.bf16.msra.mxu0 %v1115
    %1857 = vmatprep.mubr.bf16.mxu0 %v116
    %1858 = vmatmul.mubr.bf16.gmra.mrb[0].mxu0 %v115
    %v1859 = vpop.f32.mrb[0].mxu0
    %v1860 = vadd.f32 %v1819, %v1859
    %v1861 = vpop.f32.mrb[0].mxu0
    %v1862 = vadd.f32 %v1821, %v1861
    %v1863 = vpop.f32.mrb[0].mxu0
    %v1864 = vpop.f32.mrb[0].mxu0
    %1865 = vdwg.mxu0
    %1866 = vmatprep.subr.bf16.mxu0 %v1134
    %1867 = vmatpush1.bf16.msra.mxu0 %v1133
    %1868 = vmatprep.subr.bf16.mxu0 %v1152
    %1869 = vmatpush1.bf16.msra.mxu0 %v1151
    %1870 = vmatprep.subr.bf16.mxu0 %v1170
    %1871 = vmatpush1.bf16.msra.mxu0 %v1169
    %1872 = vmatprep.subr.bf16.mxu0 %v1188
    %1873 = vmatpush1.bf16.msra.mxu0 %v1187
    %1874 = vmatprep.subr.bf16.mxu0 %v1206
    %1875 = vmatpush1.bf16.msra.mxu0 %v1205
    %1876 = vmatprep.subr.bf16.mxu0 %v1224
    %1877 = vmatpush1.bf16.msra.mxu0 %v1223
    %1878 = vmatprep.subr.bf16.mxu0 %v1242
    %1879 = vmatpush1.bf16.msra.mxu0 %v1241
    %1880 = vmatprep.subr.bf16.mxu0 %v1260
    %1881 = vmatpush1.bf16.msra.mxu0 %v1259
    %1882 = vmatprep.subr.bf16.mxu0 %v1278
    %1883 = vmatpush1.bf16.msra.mxu0 %v1277
    %1884 = vmatprep.subr.bf16.mxu0 %v1296
    %1885 = vmatpush1.bf16.msra.mxu0 %v1295
    %1886 = vmatprep.subr.bf16.mxu0 %v1314
    %1887 = vmatpush1.bf16.msra.mxu0 %v1313
    %1888 = vmatprep.subr.bf16.mxu0 %v1332
    %1889 = vmatpush1.bf16.msra.mxu0 %v1331
    %1890 = vmatprep.subr.bf16.mxu0 %v1350
    %1891 = vmatpush1.bf16.msra.mxu0 %v1349
    %1892 = vmatprep.subr.bf16.mxu0 %v1368
    %1893 = vmatpush1.bf16.msra.mxu0 %v1367
    %1894 = vmatprep.subr.bf16.mxu0 %v1386
    %1895 = vmatpush1.bf16.msra.mxu0 %v1385
    %1896 = vmatprep.subr.bf16.mxu0 %v1404
    %1897 = vmatpush1.bf16.msra.mxu0 %v1403
    %1898 = vmatprep.mubr.bf16.mxu0 %v118
    %1899 = vmatmul.mubr.bf16.gmra.mrb[0].mxu0 %v117
    %v1900 = vpop.f32.mrb[0].mxu0
    %v1901 = vadd.f32 %v1860, %v1900
    %v1902 = vpop.f32.mrb[0].mxu0
    %v1903 = vadd.f32 %v1862, %v1902
    %v1904 = vpop.f32.mrb[0].mxu0
    %v1905 = vpop.f32.mrb[0].mxu0
    %1906 = vdwg.mxu0
    %1907 = vmatprep.subr.bf16.mxu0 %v560
    %1908 = vmatpush1.bf16.msra.mxu0 %v559
    %1909 = vmatprep.subr.bf16.mxu0 %v578
    %1910 = vmatpush1.bf16.msra.mxu0 %v577
    %1911 = vmatprep.subr.bf16.mxu0 %v596
    %1912 = vmatpush1.bf16.msra.mxu0 %v595
    %1913 = vmatprep.subr.bf16.mxu0 %v614
    %1914 = vmatpush1.bf16.msra.mxu0 %v613
    %1915 = vmatprep.subr.bf16.mxu0 %v632
    %1916 = vmatpush1.bf16.msra.mxu0 %v631
    %1917 = vmatprep.subr.bf16.mxu0 %v650
    %1918 = vmatpush1.bf16.msra.mxu0 %v649
    %1919 = vmatprep.subr.bf16.mxu0 %v668
    %1920 = vmatpush1.bf16.msra.mxu0 %v667
    %1921 = vmatprep.subr.bf16.mxu0 %v686
    %1922 = vmatpush1.bf16.msra.mxu0 %v685
    %1923 = vmatprep.subr.bf16.mxu0 %v704
    %1924 = vmatpush1.bf16.msra.mxu0 %v703
    %1925 = vmatprep.subr.bf16.mxu0 %v722
    %1926 = vmatpush1.bf16.msra.mxu0 %v721
    %1927 = vmatprep.subr.bf16.mxu0 %v740
    %1928 = vmatpush1.bf16.msra.mxu0 %v739
    %1929 = vmatprep.subr.bf16.mxu0 %v758
    %1930 = vmatpush1.bf16.msra.mxu0 %v757
    %1931 = vmatprep.subr.bf16.mxu0 %v776
    %1932 = vmatpush1.bf16.msra.mxu0 %v775
    %1933 = vmatprep.subr.bf16.mxu0 %v794
    %1934 = vmatpush1.bf16.msra.mxu0 %v793
    %1935 = vmatprep.subr.bf16.mxu0 %v812
    %1936 = vmatpush1.bf16.msra.mxu0 %v811
    %1937 = vmatprep.subr.bf16.mxu0 %v830
    %1938 = vmatpush1.bf16.msra.mxu0 %v829
    %1939 = vmatprep.mubr.bf16.mxu0 %v114
    %1940 = vmatmul.mubr.bf16.gmra.mrb[0].mxu0 %v113
    %v1941 = vpop.f32.mrb[0].mxu0
    %v1942 = vadd.f32 0.0, %v1941
    %v1943 = vpop.f32.mrb[0].mxu0
    %v1944 = vadd.f32 0.0, %v1943
    %v1945 = vpop.f32.mrb[0].mxu0
    %v1946 = vpop.f32.mrb[0].mxu0
    %1947 = vdwg.mxu0
    %1948 = vmatprep.subr.bf16.mxu0 %v848
    %1949 = vmatpush1.bf16.msra.mxu0 %v847
    %1950 = vmatprep.subr.bf16.mxu0 %v866
    %1951 = vmatpush1.bf16.msra.mxu0 %v865
    %1952 = vmatprep.subr.bf16.mxu0 %v884
    %1953 = vmatpush1.bf16.msra.mxu0 %v883
    %1954 = vmatprep.subr.bf16.mxu0 %v902
    %1955 = vmatpush1.bf16.msra.mxu0 %v901
    %1956 = vmatprep.subr.bf16.mxu0 %v920
    %1957 = vmatpush1.bf16.msra.mxu0 %v919
    %1958 = vmatprep.subr.bf16.mxu0 %v938
    %1959 = vmatpush1.bf16.msra.mxu0 %v937
    %1960 = vmatprep.subr.bf16.mxu0 %v956
    %1961 = vmatpush1.bf16.msra.mxu0 %v955
    %1962 = vmatprep.subr.bf16.mxu0 %v974
    %1963 = vmatpush1.bf16.msra.mxu0 %v973
    %1964 = vmatprep.subr.bf16.mxu0 %v992
    %1965 = vmatpush1.bf16.msra.mxu0 %v991
    %1966 = vmatprep.subr.bf16.mxu0 %v1010
    %1967 = vmatpush1.bf16.msra.mxu0 %v1009
    %1968 = vmatprep.subr.bf16.mxu0 %v1028
    %1969 = vmatpush1.bf16.msra.mxu0 %v1027
    %1970 = vmatprep.subr.bf16.mxu0 %v1046
    %1971 = vmatpush1.bf16.msra.mxu0 %v1045
    %1972 = vmatprep.subr.bf16.mxu0 %v1064
    %1973 = vmatpush1.bf16.msra.mxu0 %v1063
    %1974 = vmatprep.subr.bf16.mxu0 %v1082
    %1975 = vmatpush1.bf16.msra.mxu0 %v1081
    %1976 = vmatprep.subr.bf16.mxu0 %v1100
    %1977 = vmatpush1.bf16.msra.mxu0 %v1099
    %1978 = vmatprep.subr.bf16.mxu0 %v1118
    %1979 = vmatpush1.bf16.msra.mxu0 %v1117
    %1980 = vmatprep.mubr.bf16.mxu0 %v116
    %1981 = vmatmul.mubr.bf16.gmra.mrb[0].mxu0 %v115
    %v1982 = vpop.f32.mrb[0].mxu0
    %v1983 = vadd.f32 %v1942, %v1982
    %v1984 = vpop.f32.mrb[0].mxu0
    %v1985 = vadd.f32 %v1944, %v1984
    %v1986 = vpop.f32.mrb[0].mxu0
    %v1987 = vpop.f32.mrb[0].mxu0
    %1988 = vdwg.mxu0
    %1989 = vmatprep.subr.bf16.mxu0 %v1136
    %1990 = vmatpush1.bf16.msra.mxu0 %v1135
    %1991 = vmatprep.subr.bf16.mxu0 %v1154
    %1992 = vmatpush1.bf16.msra.mxu0 %v1153
    %1993 = vmatprep.subr.bf16.mxu0 %v1172
    %1994 = vmatpush1.bf16.msra.mxu0 %v1171
    %1995 = vmatprep.subr.bf16.mxu0 %v1190
    %1996 = vmatpush1.bf16.msra.mxu0 %v1189
    %1997 = vmatprep.subr.bf16.mxu0 %v1208
    %1998 = vmatpush1.bf16.msra.mxu0 %v1207
    %1999 = vmatprep.subr.bf16.mxu0 %v1226
    %2000 = vmatpush1.bf16.msra.mxu0 %v1225
    %2001 = vmatprep.subr.bf16.mxu0 %v1244
    %2002 = vmatpush1.bf16.msra.mxu0 %v1243
    %2003 = vmatprep.subr.bf16.mxu0 %v1262
    %2004 = vmatpush1.bf16.msra.mxu0 %v1261
    %2005 = vmatprep.subr.bf16.mxu0 %v1280
    %2006 = vmatpush1.bf16.msra.mxu0 %v1279
    %2007 = vmatprep.subr.bf16.mxu0 %v1298
    %2008 = vmatpush1.bf16.msra.mxu0 %v1297
    %2009 = vmatprep.subr.bf16.mxu0 %v1316
    %2010 = vmatpush1.bf16.msra.mxu0 %v1315
    %2011 = vmatprep.subr.bf16.mxu0 %v1334
    %2012 = vmatpush1.bf16.msra.mxu0 %v1333
    %2013 = vmatprep.subr.bf16.mxu0 %v1352
    %2014 = vmatpush1.bf16.msra.mxu0 %v1351
    %2015 = vmatprep.subr.bf16.mxu0 %v1370
    %2016 = vmatpush1.bf16.msra.mxu0 %v1369
    %2017 = vmatprep.subr.bf16.mxu0 %v1388
    %2018 = vmatpush1.bf16.msra.mxu0 %v1387
    %2019 = vmatprep.subr.bf16.mxu0 %v1406
    %2020 = vmatpush1.bf16.msra.mxu0 %v1405
    %2021 = vmatprep.mubr.bf16.mxu0 %v118
    %2022 = vmatmul.mubr.bf16.gmra.mrb[0].mxu0 %v117
    %v2023 = vpop.f32.mrb[0].mxu0
    %v2024 = vadd.f32 %v1983, %v2023
    %v2025 = vpop.f32.mrb[0].mxu0
    %v2026 = vadd.f32 %v1985, %v2025
    %v2027 = vpop.f32.mrb[0].mxu0
    %v2028 = vpop.f32.mrb[0].mxu0
    %2029 = vdwg.mxu0
    %2030 = vmatprep.subr.bf16.mxu0 %v562
    %2031 = vmatpush1.bf16.msra.mxu0 %v561
    %2032 = vmatprep.subr.bf16.mxu0 %v580
    %2033 = vmatpush1.bf16.msra.mxu0 %v579
    %2034 = vmatprep.subr.bf16.mxu0 %v598
    %2035 = vmatpush1.bf16.msra.mxu0 %v597
    %2036 = vmatprep.subr.bf16.mxu0 %v616
    %2037 = vmatpush1.bf16.msra.mxu0 %v615
    %2038 = vmatprep.subr.bf16.mxu0 %v634
    %2039 = vmatpush1.bf16.msra.mxu0 %v633
    %2040 = vmatprep.subr.bf16.mxu0 %v652
    %2041 = vmatpush1.bf16.msra.mxu0 %v651
    %2042 = vmatprep.subr.bf16.mxu0 %v670
    %2043 = vmatpush1.bf16.msra.mxu0 %v669
    %2044 = vmatprep.subr.bf16.mxu0 %v688
    %2045 = vmatpush1.bf16.msra.mxu0 %v687
    %2046 = vmatprep.subr.bf16.mxu0 %v706
    %2047 = vmatpush1.bf16.msra.mxu0 %v705
    %2048 = vmatprep.subr.bf16.mxu0 %v724
    %2049 = vmatpush1.bf16.msra.mxu0 %v723
    %2050 = vmatprep.subr.bf16.mxu0 %v742
    %2051 = vmatpush1.bf16.msra.mxu0 %v741
    %2052 = vmatprep.subr.bf16.mxu0 %v760
    %2053 = vmatpush1.bf16.msra.mxu0 %v759
    %2054 = vmatprep.subr.bf16.mxu0 %v778
    %2055 = vmatpush1.bf16.msra.mxu0 %v777
    %2056 = vmatprep.subr.bf16.mxu0 %v796
    %2057 = vmatpush1.bf16.msra.mxu0 %v795
    %2058 = vmatprep.subr.bf16.mxu0 %v814
    %2059 = vmatpush1.bf16.msra.mxu0 %v813
    %2060 = vmatprep.subr.bf16.mxu0 %v832
    %2061 = vmatpush1.bf16.msra.mxu0 %v831
    %2062 = vmatprep.mubr.bf16.mxu0 %v114
    %2063 = vmatmul.mubr.bf16.gmra.mrb[0].mxu0 %v113
    %v2064 = vpop.f32.mrb[0].mxu0
    %v2065 = vadd.f32 0.0, %v2064
    %v2066 = vpop.f32.mrb[0].mxu0
    %v2067 = vadd.f32 0.0, %v2066
    %v2068 = vpop.f32.mrb[0].mxu0
    %v2069 = vpop.f32.mrb[0].mxu0
    %2070 = vdwg.mxu0
    %2071 = vmatprep.subr.bf16.mxu0 %v850
    %2072 = vmatpush1.bf16.msra.mxu0 %v849
    %2073 = vmatprep.subr.bf16.mxu0 %v868
    %2074 = vmatpush1.bf16.msra.mxu0 %v867
    %2075 = vmatprep.subr.bf16.mxu0 %v886
    %2076 = vmatpush1.bf16.msra.mxu0 %v885
    %2077 = vmatprep.subr.bf16.mxu0 %v904
    %2078 = vmatpush1.bf16.msra.mxu0 %v903
    %2079 = vmatprep.subr.bf16.mxu0 %v922
    %2080 = vmatpush1.bf16.msra.mxu0 %v921
    %2081 = vmatprep.subr.bf16.mxu0 %v940
    %2082 = vmatpush1.bf16.msra.mxu0 %v939
    %2083 = vmatprep.subr.bf16.mxu0 %v958
    %2084 = vmatpush1.bf16.msra.mxu0 %v957
    %2085 = vmatprep.subr.bf16.mxu0 %v976
    %2086 = vmatpush1.bf16.msra.mxu0 %v975
    %2087 = vmatprep.subr.bf16.mxu0 %v994
    %2088 = vmatpush1.bf16.msra.mxu0 %v993
    %2089 = vmatprep.subr.bf16.mxu0 %v1012
    %2090 = vmatpush1.bf16.msra.mxu0 %v1011
    %2091 = vmatprep.subr.bf16.mxu0 %v1030
    %2092 = vmatpush1.bf16.msra.mxu0 %v1029
    %2093 = vmatprep.subr.bf16.mxu0 %v1048
    %2094 = vmatpush1.bf16.msra.mxu0 %v1047
    %2095 = vmatprep.subr.bf16.mxu0 %v1066
    %2096 = vmatpush1.bf16.msra.mxu0 %v1065
    %2097 = vmatprep.subr.bf16.mxu0 %v1084
    %2098 = vmatpush1.bf16.msra.mxu0 %v1083
    %2099 = vmatprep.subr.bf16.mxu0 %v1102
    %2100 = vmatpush1.bf16.msra.mxu0 %v1101
    %2101 = vmatprep.subr.bf16.mxu0 %v1120
    %2102 = vmatpush1.bf16.msra.mxu0 %v1119
    %2103 = vmatprep.mubr.bf16.mxu0 %v116
    %2104 = vmatmul.mubr.bf16.gmra.mrb[0].mxu0 %v115
    %v2105 = vpop.f32.mrb[0].mxu0
    %v2106 = vadd.f32 %v2065, %v2105
    %v2107 = vpop.f32.mrb[0].mxu0
    %v2108 = vadd.f32 %v2067, %v2107
    %v2109 = vpop.f32.mrb[0].mxu0
    %v2110 = vpop.f32.mrb[0].mxu0
    %2111 = vdwg.mxu0
    %2112 = vmatprep.subr.bf16.mxu0 %v1138
    %2113 = vmatpush1.bf16.msra.mxu0 %v1137
    %2114 = vmatprep.subr.bf16.mxu0 %v1156
    %2115 = vmatpush1.bf16.msra.mxu0 %v1155
    %2116 = vmatprep.subr.bf16.mxu0 %v1174
    %2117 = vmatpush1.bf16.msra.mxu0 %v1173
    %2118 = vmatprep.subr.bf16.mxu0 %v1192
    %2119 = vmatpush1.bf16.msra.mxu0 %v1191
    %2120 = vmatprep.subr.bf16.mxu0 %v1210
    %2121 = vmatpush1.bf16.msra.mxu0 %v1209
    %2122 = vmatprep.subr.bf16.mxu0 %v1228
    %2123 = vmatpush1.bf16.msra.mxu0 %v1227
    %2124 = vmatprep.subr.bf16.mxu0 %v1246
    %2125 = vmatpush1.bf16.msra.mxu0 %v1245
    %2126 = vmatprep.subr.bf16.mxu0 %v1264
    %2127 = vmatpush1.bf16.msra.mxu0 %v1263
    %2128 = vmatprep.subr.bf16.mxu0 %v1282
    %2129 = vmatpush1.bf16.msra.mxu0 %v1281
    %2130 = vmatprep.subr.bf16.mxu0 %v1300
    %2131 = vmatpush1.bf16.msra.mxu0 %v1299
    %2132 = vmatprep.subr.bf16.mxu0 %v1318
    %2133 = vmatpush1.bf16.msra.mxu0 %v1317
    %2134 = vmatprep.subr.bf16.mxu0 %v1336
    %2135 = vmatpush1.bf16.msra.mxu0 %v1335
    %2136 = vmatprep.subr.bf16.mxu0 %v1354
    %2137 = vmatpush1.bf16.msra.mxu0 %v1353
    %2138 = vmatprep.subr.bf16.mxu0 %v1372
    %2139 = vmatpush1.bf16.msra.mxu0 %v1371
    %2140 = vmatprep.subr.bf16.mxu0 %v1390
    %2141 = vmatpush1.bf16.msra.mxu0 %v1389
    %2142 = vmatprep.subr.bf16.mxu0 %v1408
    %2143 = vmatpush1.bf16.msra.mxu0 %v1407
    %2144 = vmatprep.mubr.bf16.mxu0 %v118
    %2145 = vmatmul.mubr.bf16.gmra.mrb[0].mxu0 %v117
    %v2146 = vpop.f32.mrb[0].mxu0
    %v2147 = vadd.f32 %v2106, %v2146
    %v2148 = vpop.f32.mrb[0].mxu0
    %v2149 = vadd.f32 %v2108, %v2148
    %v2150 = vpop.f32.mrb[0].mxu0
    %v2151 = vpop.f32.mrb[0].mxu0
    %2152 = vdwg.mxu0
    %2153 = vmatprep.subr.bf16.mxu0 %v564
    %2154 = vmatpush1.bf16.msra.mxu0 %v563
    %2155 = vmatprep.subr.bf16.mxu0 %v582
    %2156 = vmatpush1.bf16.msra.mxu0 %v581
    %2157 = vmatprep.subr.bf16.mxu0 %v600
    %2158 = vmatpush1.bf16.msra.mxu0 %v599
    %2159 = vmatprep.subr.bf16.mxu0 %v618
    %2160 = vmatpush1.bf16.msra.mxu0 %v617
    %2161 = vmatprep.subr.bf16.mxu0 %v636
    %2162 = vmatpush1.bf16.msra.mxu0 %v635
    %2163 = vmatprep.subr.bf16.mxu0 %v654
    %2164 = vmatpush1.bf16.msra.mxu0 %v653
    %2165 = vmatprep.subr.bf16.mxu0 %v672
    %2166 = vmatpush1.bf16.msra.mxu0 %v671
    %2167 = vmatprep.subr.bf16.mxu0 %v690
    %2168 = vmatpush1.bf16.msra.mxu0 %v689
    %2169 = vmatprep.subr.bf16.mxu0 %v708
    %2170 = vmatpush1.bf16.msra.mxu0 %v707
    %2171 = vmatprep.subr.bf16.mxu0 %v726
    %2172 = vmatpush1.bf16.msra.mxu0 %v725
    %2173 = vmatprep.subr.bf16.mxu0 %v744
    %2174 = vmatpush1.bf16.msra.mxu0 %v743
    %2175 = vmatprep.subr.bf16.mxu0 %v762
    %2176 = vmatpush1.bf16.msra.mxu0 %v761
    %2177 = vmatprep.subr.bf16.mxu0 %v780
    %2178 = vmatpush1.bf16.msra.mxu0 %v779
    %2179 = vmatprep.subr.bf16.mxu0 %v798
    %2180 = vmatpush1.bf16.msra.mxu0 %v797
    %2181 = vmatprep.subr.bf16.mxu0 %v816
    %2182 = vmatpush1.bf16.msra.mxu0 %v815
    %2183 = vmatprep.subr.bf16.mxu0 %v834
    %2184 = vmatpush1.bf16.msra.mxu0 %v833
    %2185 = vmatprep.mubr.bf16.mxu0 %v114
    %2186 = vmatmul.mubr.bf16.gmra.mrb[0].mxu0 %v113
    %v2187 = vpop.f32.mrb[0].mxu0
    %v2188 = vadd.f32 0.0, %v2187
    %v2189 = vpop.f32.mrb[0].mxu0
    %v2190 = vadd.f32 0.0, %v2189
    %v2191 = vpop.f32.mrb[0].mxu0
    %v2192 = vpop.f32.mrb[0].mxu0
    %2193 = vdwg.mxu0
    %2194 = vmatprep.subr.bf16.mxu0 %v852
    %2195 = vmatpush1.bf16.msra.mxu0 %v851
    %2196 = vmatprep.subr.bf16.mxu0 %v870
    %2197 = vmatpush1.bf16.msra.mxu0 %v869
    %2198 = vmatprep.subr.bf16.mxu0 %v888
    %2199 = vmatpush1.bf16.msra.mxu0 %v887
    %2200 = vmatprep.subr.bf16.mxu0 %v906
    %2201 = vmatpush1.bf16.msra.mxu0 %v905
    %2202 = vmatprep.subr.bf16.mxu0 %v924
    %2203 = vmatpush1.bf16.msra.mxu0 %v923
    %2204 = vmatprep.subr.bf16.mxu0 %v942
    %2205 = vmatpush1.bf16.msra.mxu0 %v941
    %2206 = vmatprep.subr.bf16.mxu0 %v960
    %2207 = vmatpush1.bf16.msra.mxu0 %v959
    %2208 = vmatprep.subr.bf16.mxu0 %v978
    %2209 = vmatpush1.bf16.msra.mxu0 %v977
    %2210 = vmatprep.subr.bf16.mxu0 %v996
    %2211 = vmatpush1.bf16.msra.mxu0 %v995
    %2212 = vmatprep.subr.bf16.mxu0 %v1014
    %2213 = vmatpush1.bf16.msra.mxu0 %v1013
    %2214 = vmatprep.subr.bf16.mxu0 %v1032
    %2215 = vmatpush1.bf16.msra.mxu0 %v1031
    %2216 = vmatprep.subr.bf16.mxu0 %v1050
    %2217 = vmatpush1.bf16.msra.mxu0 %v1049
    %2218 = vmatprep.subr.bf16.mxu0 %v1068
    %2219 = vmatpush1.bf16.msra.mxu0 %v1067
    %2220 = vmatprep.subr.bf16.mxu0 %v1086
    %2221 = vmatpush1.bf16.msra.mxu0 %v1085
    %2222 = vmatprep.subr.bf16.mxu0 %v1104
    %2223 = vmatpush1.bf16.msra.mxu0 %v1103
    %2224 = vmatprep.subr.bf16.mxu0 %v1122
    %2225 = vmatpush1.bf16.msra.mxu0 %v1121
    %2226 = vmatprep.mubr.bf16.mxu0 %v116
    %2227 = vmatmul.mubr.bf16.gmra.mrb[0].mxu0 %v115
    %v2228 = vpop.f32.mrb[0].mxu0
    %v2229 = vadd.f32 %v2188, %v2228
    %v2230 = vpop.f32.mrb[0].mxu0
    %v2231 = vadd.f32 %v2190, %v2230
    %v2232 = vpop.f32.mrb[0].mxu0
    %v2233 = vpop.f32.mrb[0].mxu0
    %2234 = vdwg.mxu0
    %2235 = vmatprep.subr.bf16.mxu0 %v1140
    %2236 = vmatpush1.bf16.msra.mxu0 %v1139
    %2237 = vmatprep.subr.bf16.mxu0 %v1158
    %2238 = vmatpush1.bf16.msra.mxu0 %v1157
    %2239 = vmatprep.subr.bf16.mxu0 %v1176
    %2240 = vmatpush1.bf16.msra.mxu0 %v1175
    %2241 = vmatprep.subr.bf16.mxu0 %v1194
    %2242 = vmatpush1.bf16.msra.mxu0 %v1193
    %2243 = vmatprep.subr.bf16.mxu0 %v1212
    %2244 = vmatpush1.bf16.msra.mxu0 %v1211
    %2245 = vmatprep.subr.bf16.mxu0 %v1230
    %2246 = vmatpush1.bf16.msra.mxu0 %v1229
    %2247 = vmatprep.subr.bf16.mxu0 %v1248
    %2248 = vmatpush1.bf16.msra.mxu0 %v1247
    %2249 = vmatprep.subr.bf16.mxu0 %v1266
    %2250 = vmatpush1.bf16.msra.mxu0 %v1265
    %2251 = vmatprep.subr.bf16.mxu0 %v1284
    %2252 = vmatpush1.bf16.msra.mxu0 %v1283
    %2253 = vmatprep.subr.bf16.mxu0 %v1302
    %2254 = vmatpush1.bf16.msra.mxu0 %v1301
    %2255 = vmatprep.subr.bf16.mxu0 %v1320
    %2256 = vmatpush1.bf16.msra.mxu0 %v1319
    %2257 = vmatprep.subr.bf16.mxu0 %v1338
    %2258 = vmatpush1.bf16.msra.mxu0 %v1337
    %2259 = vmatprep.subr.bf16.mxu0 %v1356
    %2260 = vmatpush1.bf16.msra.mxu0 %v1355
    %2261 = vmatprep.subr.bf16.mxu0 %v1374
    %2262 = vmatpush1.bf16.msra.mxu0 %v1373
    %2263 = vmatprep.subr.bf16.mxu0 %v1392
    %2264 = vmatpush1.bf16.msra.mxu0 %v1391
    %2265 = vmatprep.subr.bf16.mxu0 %v1410
    %2266 = vmatpush1.bf16.msra.mxu0 %v1409
    %2267 = vmatprep.mubr.bf16.mxu0 %v118
    %2268 = vmatmul.mubr.bf16.gmra.mrb[0].mxu0 %v117
    %v2269 = vpop.f32.mrb[0].mxu0
    %v2270 = vadd.f32 %v2229, %v2269
    %v2271 = vpop.f32.mrb[0].mxu0
    %v2272 = vadd.f32 %v2231, %v2271
    %v2273 = vpop.f32.mrb[0].mxu0
    %v2274 = vpop.f32.mrb[0].mxu0
    %2275 = vdwg.mxu0
    %2276 = vmatprep.subr.bf16.mxu0 %v566
    %2277 = vmatpush1.bf16.msra.mxu0 %v565
    %2278 = vmatprep.subr.bf16.mxu0 %v584
    %2279 = vmatpush1.bf16.msra.mxu0 %v583
    %2280 = vmatprep.subr.bf16.mxu0 %v602
    %2281 = vmatpush1.bf16.msra.mxu0 %v601
    %2282 = vmatprep.subr.bf16.mxu0 %v620
    %2283 = vmatpush1.bf16.msra.mxu0 %v619
    %2284 = vmatprep.subr.bf16.mxu0 %v638
    %2285 = vmatpush1.bf16.msra.mxu0 %v637
    %2286 = vmatprep.subr.bf16.mxu0 %v656
    %2287 = vmatpush1.bf16.msra.mxu0 %v655
    %2288 = vmatprep.subr.bf16.mxu0 %v674
    %2289 = vmatpush1.bf16.msra.mxu0 %v673
    %2290 = vmatprep.subr.bf16.mxu0 %v692
    %2291 = vmatpush1.bf16.msra.mxu0 %v691
    %2292 = vmatprep.subr.bf16.mxu0 %v710
    %2293 = vmatpush1.bf16.msra.mxu0 %v709
    %2294 = vmatprep.subr.bf16.mxu0 %v728
    %2295 = vmatpush1.bf16.msra.mxu0 %v727
    %2296 = vmatprep.subr.bf16.mxu0 %v746
    %2297 = vmatpush1.bf16.msra.mxu0 %v745
    %2298 = vmatprep.subr.bf16.mxu0 %v764
    %2299 = vmatpush1.bf16.msra.mxu0 %v763
    %2300 = vmatprep.subr.bf16.mxu0 %v782
    %2301 = vmatpush1.bf16.msra.mxu0 %v781
    %2302 = vmatprep.subr.bf16.mxu0 %v800
    %2303 = vmatpush1.bf16.msra.mxu0 %v799
    %2304 = vmatprep.subr.bf16.mxu0 %v818
    %2305 = vmatpush1.bf16.msra.mxu0 %v817
    %2306 = vmatprep.subr.bf16.mxu0 %v836
    %2307 = vmatpush1.bf16.msra.mxu0 %v835
    %2308 = vmatprep.mubr.bf16.mxu0 %v114
    %2309 = vmatmul.mubr.bf16.gmra.mrb[0].mxu0 %v113
    %v2310 = vpop.f32.mrb[0].mxu0
    %v2311 = vadd.f32 0.0, %v2310
    %v2312 = vpop.f32.mrb[0].mxu0
    %v2313 = vadd.f32 0.0, %v2312
    %v2314 = vpop.f32.mrb[0].mxu0
    %v2315 = vpop.f32.mrb[0].mxu0
    %2316 = vdwg.mxu0
    %2317 = vmatprep.subr.bf16.mxu0 %v854
    %2318 = vmatpush1.bf16.msra.mxu0 %v853
    %2319 = vmatprep.subr.bf16.mxu0 %v872
    %2320 = vmatpush1.bf16.msra.mxu0 %v871
    %2321 = vmatprep.subr.bf16.mxu0 %v890
    %2322 = vmatpush1.bf16.msra.mxu0 %v889
    %2323 = vmatprep.subr.bf16.mxu0 %v908
    %2324 = vmatpush1.bf16.msra.mxu0 %v907
    %2325 = vmatprep.subr.bf16.mxu0 %v926
    %2326 = vmatpush1.bf16.msra.mxu0 %v925
    %2327 = vmatprep.subr.bf16.mxu0 %v944
    %2328 = vmatpush1.bf16.msra.mxu0 %v943
    %2329 = vmatprep.subr.bf16.mxu0 %v962
    %2330 = vmatpush1.bf16.msra.mxu0 %v961
    %2331 = vmatprep.subr.bf16.mxu0 %v980
    %2332 = vmatpush1.bf16.msra.mxu0 %v979
    %2333 = vmatprep.subr.bf16.mxu0 %v998
    %2334 = vmatpush1.bf16.msra.mxu0 %v997
    %2335 = vmatprep.subr.bf16.mxu0 %v1016
    %2336 = vmatpush1.bf16.msra.mxu0 %v1015
    %2337 = vmatprep.subr.bf16.mxu0 %v1034
    %2338 = vmatpush1.bf16.msra.mxu0 %v1033
    %2339 = vmatprep.subr.bf16.mxu0 %v1052
    %2340 = vmatpush1.bf16.msra.mxu0 %v1051
    %2341 = vmatprep.subr.bf16.mxu0 %v1070
    %2342 = vmatpush1.bf16.msra.mxu0 %v1069
    %2343 = vmatprep.subr.bf16.mxu0 %v1088
    %2344 = vmatpush1.bf16.msra.mxu0 %v1087
    %2345 = vmatprep.subr.bf16.mxu0 %v1106
    %2346 = vmatpush1.bf16.msra.mxu0 %v1105
    %2347 = vmatprep.subr.bf16.mxu0 %v1124
    %2348 = vmatpush1.bf16.msra.mxu0 %v1123
    %2349 = vmatprep.mubr.bf16.mxu0 %v116
    %2350 = vmatmul.mubr.bf16.gmra.mrb[0].mxu0 %v115
    %v2351 = vpop.f32.mrb[0].mxu0
    %v2352 = vadd.f32 %v2311, %v2351
    %v2353 = vpop.f32.mrb[0].mxu0
    %v2354 = vadd.f32 %v2313, %v2353
    %v2355 = vpop.f32.mrb[0].mxu0
    %v2356 = vpop.f32.mrb[0].mxu0
    %2357 = vdwg.mxu0
    %2358 = vmatprep.subr.bf16.mxu0 %v1142
    %2359 = vmatpush1.bf16.msra.mxu0 %v1141
    %2360 = vmatprep.subr.bf16.mxu0 %v1160
    %2361 = vmatpush1.bf16.msra.mxu0 %v1159
    %2362 = vmatprep.subr.bf16.mxu0 %v1178
    %2363 = vmatpush1.bf16.msra.mxu0 %v1177
    %2364 = vmatprep.subr.bf16.mxu0 %v1196
    %2365 = vmatpush1.bf16.msra.mxu0 %v1195
    %2366 = vmatprep.subr.bf16.mxu0 %v1214
    %2367 = vmatpush1.bf16.msra.mxu0 %v1213
    %2368 = vmatprep.subr.bf16.mxu0 %v1232
    %2369 = vmatpush1.bf16.msra.mxu0 %v1231
    %2370 = vmatprep.subr.bf16.mxu0 %v1250
    %2371 = vmatpush1.bf16.msra.mxu0 %v1249
    %2372 = vmatprep.subr.bf16.mxu0 %v1268
    %2373 = vmatpush1.bf16.msra.mxu0 %v1267
    %2374 = vmatprep.subr.bf16.mxu0 %v1286
    %2375 = vmatpush1.bf16.msra.mxu0 %v1285
    %2376 = vmatprep.subr.bf16.mxu0 %v1304
    %2377 = vmatpush1.bf16.msra.mxu0 %v1303
    %2378 = vmatprep.subr.bf16.mxu0 %v1322
    %2379 = vmatpush1.bf16.msra.mxu0 %v1321
    %2380 = vmatprep.subr.bf16.mxu0 %v1340
    %2381 = vmatpush1.bf16.msra.mxu0 %v1339
    %2382 = vmatprep.subr.bf16.mxu0 %v1358
    %2383 = vmatpush1.bf16.msra.mxu0 %v1357
    %2384 = vmatprep.subr.bf16.mxu0 %v1376
    %2385 = vmatpush1.bf16.msra.mxu0 %v1375
    %2386 = vmatprep.subr.bf16.mxu0 %v1394
    %2387 = vmatpush1.bf16.msra.mxu0 %v1393
    %2388 = vmatprep.subr.bf16.mxu0 %v1412
    %2389 = vmatpush1.bf16.msra.mxu0 %v1411
    %2390 = vmatprep.mubr.bf16.mxu0 %v118
    %2391 = vmatmul.mubr.bf16.gmra.mrb[0].mxu0 %v117
    %v2392 = vpop.f32.mrb[0].mxu0
    %v2393 = vadd.f32 %v2352, %v2392
    %v2394 = vpop.f32.mrb[0].mxu0
    %v2395 = vadd.f32 %v2354, %v2394
    %v2396 = vpop.f32.mrb[0].mxu0
    %v2397 = vpop.f32.mrb[0].mxu0
    %2398 = vdwg.mxu0
    %2399 = vmatprep.subr.bf16.mxu0 %v568
    %2400 = vmatpush1.bf16.msra.mxu0 %v567
    %2401 = vmatprep.subr.bf16.mxu0 %v586
    %2402 = vmatpush1.bf16.msra.mxu0 %v585
    %2403 = vmatprep.subr.bf16.mxu0 %v604
    %2404 = vmatpush1.bf16.msra.mxu0 %v603
    %2405 = vmatprep.subr.bf16.mxu0 %v622
    %2406 = vmatpush1.bf16.msra.mxu0 %v621
    %2407 = vmatprep.subr.bf16.mxu0 %v640
    %2408 = vmatpush1.bf16.msra.mxu0 %v639
    %2409 = vmatprep.subr.bf16.mxu0 %v658
    %2410 = vmatpush1.bf16.msra.mxu0 %v657
    %2411 = vmatprep.subr.bf16.mxu0 %v676
    %2412 = vmatpush1.bf16.msra.mxu0 %v675
    %2413 = vmatprep.subr.bf16.mxu0 %v694
    %2414 = vmatpush1.bf16.msra.mxu0 %v693
    %2415 = vmatprep.subr.bf16.mxu0 %v712
    %2416 = vmatpush1.bf16.msra.mxu0 %v711
    %2417 = vmatprep.subr.bf16.mxu0 %v730
    %2418 = vmatpush1.bf16.msra.mxu0 %v729
    %2419 = vmatprep.subr.bf16.mxu0 %v748
    %2420 = vmatpush1.bf16.msra.mxu0 %v747
    %2421 = vmatprep.subr.bf16.mxu0 %v766
    %2422 = vmatpush1.bf16.msra.mxu0 %v765
    %2423 = vmatprep.subr.bf16.mxu0 %v784
    %2424 = vmatpush1.bf16.msra.mxu0 %v783
    %2425 = vmatprep.subr.bf16.mxu0 %v802
    %2426 = vmatpush1.bf16.msra.mxu0 %v801
    %2427 = vmatprep.subr.bf16.mxu0 %v820
    %2428 = vmatpush1.bf16.msra.mxu0 %v819
    %2429 = vmatprep.subr.bf16.mxu0 %v838
    %2430 = vmatpush1.bf16.msra.mxu0 %v837
    %2431 = vmatprep.mubr.bf16.mxu0 %v114
    %2432 = vmatmul.mubr.bf16.gmra.mrb[0].mxu0 %v113
    %v2433 = vpop.f32.mrb[0].mxu0
    %v2434 = vadd.f32 0.0, %v2433
    %v2435 = vpop.f32.mrb[0].mxu0
    %v2436 = vadd.f32 0.0, %v2435
    %v2437 = vpop.f32.mrb[0].mxu0
    %v2438 = vpop.f32.mrb[0].mxu0
    %2439 = vdwg.mxu0
    %2440 = vmatprep.subr.bf16.mxu0 %v856
    %2441 = vmatpush1.bf16.msra.mxu0 %v855
    %2442 = vmatprep.subr.bf16.mxu0 %v874
    %2443 = vmatpush1.bf16.msra.mxu0 %v873
    %2444 = vmatprep.subr.bf16.mxu0 %v892
    %2445 = vmatpush1.bf16.msra.mxu0 %v891
    %2446 = vmatprep.subr.bf16.mxu0 %v910
    %2447 = vmatpush1.bf16.msra.mxu0 %v909
    %2448 = vmatprep.subr.bf16.mxu0 %v928
    %2449 = vmatpush1.bf16.msra.mxu0 %v927
    %2450 = vmatprep.subr.bf16.mxu0 %v946
    %2451 = vmatpush1.bf16.msra.mxu0 %v945
    %2452 = vmatprep.subr.bf16.mxu0 %v964
    %2453 = vmatpush1.bf16.msra.mxu0 %v963
    %2454 = vmatprep.subr.bf16.mxu0 %v982
    %2455 = vmatpush1.bf16.msra.mxu0 %v981
    %2456 = vmatprep.subr.bf16.mxu0 %v1000
    %2457 = vmatpush1.bf16.msra.mxu0 %v999
    %2458 = vmatprep.subr.bf16.mxu0 %v1018
    %2459 = vmatpush1.bf16.msra.mxu0 %v1017
    %2460 = vmatprep.subr.bf16.mxu0 %v1036
    %2461 = vmatpush1.bf16.msra.mxu0 %v1035
    %2462 = vmatprep.subr.bf16.mxu0 %v1054
    %2463 = vmatpush1.bf16.msra.mxu0 %v1053
    %2464 = vmatprep.subr.bf16.mxu0 %v1072
    %2465 = vmatpush1.bf16.msra.mxu0 %v1071
    %2466 = vmatprep.subr.bf16.mxu0 %v1090
    %2467 = vmatpush1.bf16.msra.mxu0 %v1089
    %2468 = vmatprep.subr.bf16.mxu0 %v1108
    %2469 = vmatpush1.bf16.msra.mxu0 %v1107
    %2470 = vmatprep.subr.bf16.mxu0 %v1126
    %2471 = vmatpush1.bf16.msra.mxu0 %v1125
    %2472 = vmatprep.mubr.bf16.mxu0 %v116
    %2473 = vmatmul.mubr.bf16.gmra.mrb[0].mxu0 %v115
    %v2474 = vpop.f32.mrb[0].mxu0
    %v2475 = vadd.f32 %v2434, %v2474
    %v2476 = vpop.f32.mrb[0].mxu0
    %v2477 = vadd.f32 %v2436, %v2476
    %v2478 = vpop.f32.mrb[0].mxu0
    %v2479 = vpop.f32.mrb[0].mxu0
    %2480 = vdwg.mxu0
    %2481 = vmatprep.subr.bf16.mxu0 %v1144
    %2482 = vmatpush1.bf16.msra.mxu0 %v1143
    %2483 = vmatprep.subr.bf16.mxu0 %v1162
    %2484 = vmatpush1.bf16.msra.mxu0 %v1161
    %2485 = vmatprep.subr.bf16.mxu0 %v1180
    %2486 = vmatpush1.bf16.msra.mxu0 %v1179
    %2487 = vmatprep.subr.bf16.mxu0 %v1198
    %2488 = vmatpush1.bf16.msra.mxu0 %v1197
    %2489 = vmatprep.subr.bf16.mxu0 %v1216
    %2490 = vmatpush1.bf16.msra.mxu0 %v1215
    %2491 = vmatprep.subr.bf16.mxu0 %v1234
    %2492 = vmatpush1.bf16.msra.mxu0 %v1233
    %2493 = vmatprep.subr.bf16.mxu0 %v1252
    %2494 = vmatpush1.bf16.msra.mxu0 %v1251
    %2495 = vmatprep.subr.bf16.mxu0 %v1270
    %2496 = vmatpush1.bf16.msra.mxu0 %v1269
    %2497 = vmatprep.subr.bf16.mxu0 %v1288
    %2498 = vmatpush1.bf16.msra.mxu0 %v1287
    %2499 = vmatprep.subr.bf16.mxu0 %v1306
    %2500 = vmatpush1.bf16.msra.mxu0 %v1305
    %2501 = vmatprep.subr.bf16.mxu0 %v1324
    %2502 = vmatpush1.bf16.msra.mxu0 %v1323
    %2503 = vmatprep.subr.bf16.mxu0 %v1342
    %2504 = vmatpush1.bf16.msra.mxu0 %v1341
    %2505 = vmatprep.subr.bf16.mxu0 %v1360
    %2506 = vmatpush1.bf16.msra.mxu0 %v1359
    %2507 = vmatprep.subr.bf16.mxu0 %v1378
    %2508 = vmatpush1.bf16.msra.mxu0 %v1377
    %2509 = vmatprep.subr.bf16.mxu0 %v1396
    %2510 = vmatpush1.bf16.msra.mxu0 %v1395
    %2511 = vmatprep.subr.bf16.mxu0 %v1414
    %2512 = vmatpush1.bf16.msra.mxu0 %v1413
    %2513 = vmatprep.mubr.bf16.mxu0 %v118
    %2514 = vmatmul.mubr.bf16.gmra.mrb[0].mxu0 %v117
    %v2515 = vpop.f32.mrb[0].mxu0
    %v2516 = vadd.f32 %v2475, %v2515
    %v2517 = vpop.f32.mrb[0].mxu0
    %v2518 = vadd.f32 %v2477, %v2517
    %v2519 = vpop.f32.mrb[0].mxu0
    %v2520 = vpop.f32.mrb[0].mxu0
    %2521 = vdwg.mxu0
    %v2525 = vlaneseq
    %v2526 = vshrl.u32 %v2525, 7
    %v2527 = vsub.s32 0, %v2526
    %v2528 = vrot.slane %v75, %v2527
    %v2529 = vlaneseq
    %v2530 = vshrl.u32 %v2529, 7
    %v2531 = vsub.s32 1, %v2530
    %v2532 = vrot.slane %v75, %v2531
    %v2533 = vlaneseq
    %v2534 = vshrl.u32 %v2533, 7
    %v2535 = vsub.s32 2, %v2534
    %v2536 = vrot.slane %v75, %v2535
    %v2537 = vlaneseq
    %v2538 = vshrl.u32 %v2537, 7
    %v2539 = vsub.s32 3, %v2538
    %v2540 = vrot.slane %v75, %v2539
    %v2541 = vlaneseq
    %v2542 = vshrl.u32 %v2541, 7
    %v2543 = vsub.s32 4, %v2542
    %v2544 = vrot.slane %v75, %v2543
    %v2545 = vlaneseq
    %v2546 = vshrl.u32 %v2545, 7
    %v2547 = vsub.s32 5, %v2546
    %v2548 = vrot.slane %v75, %v2547
    %v2549 = vlaneseq
    %v2550 = vshrl.u32 %v2549, 7
    %v2551 = vsub.s32 6, %v2550
    %v2552 = vrot.slane %v75, %v2551
    %v2553 = vlaneseq
    %v2554 = vshrl.u32 %v2553, 7
    %v2555 = vsub.s32 7, %v2554
    %v2556 = vrot.slane %v75, %v2555
    %v2557 = vlaneseq
    %v2558 = vshrl.u32 %v2557, 7
    %v2559 = vsub.s32 0, %v2558
    %v2560 = vrot.slane %v79, %v2559
    %v2561 = vlaneseq
    %v2562 = vshrl.u32 %v2561, 7
    %v2563 = vsub.s32 1, %v2562
    %v2564 = vrot.slane %v79, %v2563
    %v2565 = vlaneseq
    %v2566 = vshrl.u32 %v2565, 7
    %v2567 = vsub.s32 2, %v2566
    %v2568 = vrot.slane %v79, %v2567
    %v2569 = vlaneseq
    %v2570 = vshrl.u32 %v2569, 7
    %v2571 = vsub.s32 3, %v2570
    %v2572 = vrot.slane %v79, %v2571
    %v2573 = vlaneseq
    %v2574 = vshrl.u32 %v2573, 7
    %v2575 = vsub.s32 4, %v2574
    %v2576 = vrot.slane %v79, %v2575
    %v2577 = vlaneseq
    %v2578 = vshrl.u32 %v2577, 7
    %v2579 = vsub.s32 5, %v2578
    %v2580 = vrot.slane %v79, %v2579
    %v2581 = vlaneseq
    %v2582 = vshrl.u32 %v2581, 7
    %v2583 = vsub.s32 6, %v2582
    %v2584 = vrot.slane %v79, %v2583
    %v2585 = vlaneseq
    %v2586 = vshrl.u32 %v2585, 7
    %v2587 = vsub.s32 7, %v2586
    %v2588 = vrot.slane %v79, %v2587
    %v2589 = vlaneseq
    %v2590 = vshrl.u32 %v2589, 7
    %v2591 = vsub.s32 0, %v2590
    %v2592 = vrot.slane %v81, %v2591
    %v2593 = vlaneseq
    %v2594 = vshrl.u32 %v2593, 7
    %v2595 = vsub.s32 1, %v2594
    %v2596 = vrot.slane %v81, %v2595
    %v2615 = vmul.f32 %v1532, %v2528
    %v2616 = vmul.f32 %v1534, %v2532
    %v2617 = vmul.f32 %v1655, %v2536
    %v2618 = vmul.f32 %v1657, %v2540
    %v2619 = vmul.f32 %v1778, %v2544
    %v2620 = vmul.f32 %v1780, %v2548
    %v2621 = vmul.f32 %v1901, %v2552
    %v2622 = vmul.f32 %v1903, %v2556
    %v2623 = vmul.f32 %v2024, %v2560
    %v2624 = vmul.f32 %v2026, %v2564
    %v2625 = vmul.f32 %v2147, %v2568
    %v2626 = vmul.f32 %v2149, %v2572
    %v2627 = vmul.f32 %v2270, %v2576
    %v2628 = vmul.f32 %v2272, %v2580
    %v2629 = vmul.f32 %v2393, %v2584
    %v2630 = vmul.f32 %v2395, %v2588
    %v2631 = vmul.f32 %v2516, %v2592
    %v2632 = vmul.f32 %v2518, %v2596
    %v2636 = vlaneseq
    %v2637 = vshrl.u32 %v2636, 7
    %v2638 = vsub.s32 0, %v2637
    %v2639 = vrot.slane %v85, %v2638
    %v2640 = vlaneseq
    %v2641 = vshrl.u32 %v2640, 7
    %v2642 = vsub.s32 1, %v2641
    %v2643 = vrot.slane %v85, %v2642
    %v2644 = vlaneseq
    %v2645 = vshrl.u32 %v2644, 7
    %v2646 = vsub.s32 2, %v2645
    %v2647 = vrot.slane %v85, %v2646
    %v2648 = vlaneseq
    %v2649 = vshrl.u32 %v2648, 7
    %v2650 = vsub.s32 3, %v2649
    %v2651 = vrot.slane %v85, %v2650
    %v2652 = vlaneseq
    %v2653 = vshrl.u32 %v2652, 7
    %v2654 = vsub.s32 4, %v2653
    %v2655 = vrot.slane %v85, %v2654
    %v2656 = vlaneseq
    %v2657 = vshrl.u32 %v2656, 7
    %v2658 = vsub.s32 5, %v2657
    %v2659 = vrot.slane %v85, %v2658
    %v2660 = vlaneseq
    %v2661 = vshrl.u32 %v2660, 7
    %v2662 = vsub.s32 6, %v2661
    %v2663 = vrot.slane %v85, %v2662
    %v2664 = vlaneseq
    %v2665 = vshrl.u32 %v2664, 7
    %v2666 = vsub.s32 7, %v2665
    %v2667 = vrot.slane %v85, %v2666
    %v2668 = vlaneseq
    %v2669 = vshrl.u32 %v2668, 7
    %v2670 = vsub.s32 0, %v2669
    %v2671 = vrot.slane %v89, %v2670
    %v2672 = vlaneseq
    %v2673 = vshrl.u32 %v2672, 7
    %v2674 = vsub.s32 1, %v2673
    %v2675 = vrot.slane %v89, %v2674
    %v2676 = vlaneseq
    %v2677 = vshrl.u32 %v2676, 7
    %v2678 = vsub.s32 2, %v2677
    %v2679 = vrot.slane %v89, %v2678
    %v2680 = vlaneseq
    %v2681 = vshrl.u32 %v2680, 7
    %v2682 = vsub.s32 3, %v2681
    %v2683 = vrot.slane %v89, %v2682
    %v2684 = vlaneseq
    %v2685 = vshrl.u32 %v2684, 7
    %v2686 = vsub.s32 4, %v2685
    %v2687 = vrot.slane %v89, %v2686
    %v2688 = vlaneseq
    %v2689 = vshrl.u32 %v2688, 7
    %v2690 = vsub.s32 5, %v2689
    %v2691 = vrot.slane %v89, %v2690
    %v2692 = vlaneseq
    %v2693 = vshrl.u32 %v2692, 7
    %v2694 = vsub.s32 6, %v2693
    %v2695 = vrot.slane %v89, %v2694
    %v2696 = vlaneseq
    %v2697 = vshrl.u32 %v2696, 7
    %v2698 = vsub.s32 7, %v2697
    %v2699 = vrot.slane %v89, %v2698
    %v2700 = vlaneseq
    %v2701 = vshrl.u32 %v2700, 7
    %v2702 = vsub.s32 0, %v2701
    %v2703 = vrot.slane %v91, %v2702
    %v2704 = vlaneseq
    %v2705 = vshrl.u32 %v2704, 7
    %v2706 = vsub.s32 1, %v2705
    %v2707 = vrot.slane %v91, %v2706
    %v2726 = vadd.f32 %v2615, %v2639
    %v2727 = vadd.f32 %v2616, %v2643
    %v2728 = vadd.f32 %v2617, %v2647
    %v2729 = vadd.f32 %v2618, %v2651
    %v2730 = vadd.f32 %v2619, %v2655
    %v2731 = vadd.f32 %v2620, %v2659
    %v2732 = vadd.f32 %v2621, %v2663
    %v2733 = vadd.f32 %v2622, %v2667
    %v2734 = vadd.f32 %v2623, %v2671
    %v2735 = vadd.f32 %v2624, %v2675
    %v2736 = vadd.f32 %v2625, %v2679
    %v2737 = vadd.f32 %v2626, %v2683
    %v2738 = vadd.f32 %v2627, %v2687
    %v2739 = vadd.f32 %v2628, %v2691
    %v2740 = vadd.f32 %v2629, %v2695
    %v2741 = vadd.f32 %v2630, %v2699
    %v2742 = vadd.f32 %v2631, %v2703
    %v2743 = vadd.f32 %v2632, %v2707
    %v2744 = vxor.u32 %v2726, 2147483648
    %v2745 = vxor.u32 %v2727, 2147483648
    %v2746 = vxor.u32 %v2728, 2147483648
    %v2747 = vmul.f32 %v2744, 1.442695
    %v2748 = vpow.pop %v2747
    %v2749 = vmul.f32 %v2745, 1.442695
    %v2750 = vpow.pop %v2749
    %v2751 = vmul.f32 %v2746, 1.442695
    %v2752 = vpow.pop %v2751
    %v2753 = vadd.f32 %v2748, 1.0
    %v2754 = vadd.f32 %v2750, 1.0
    %v2755 = vadd.f32 %v2752, 1.0
    %v2756 = vrcp.pop %v2753
    %v2757 = vmul.f32 1.0, %v2756
    %v2758 = vrcp.pop %v2754
    %v2759 = vmul.f32 1.0, %v2758
    %v2760 = vrcp.pop %v2755
    %v2761 = vmul.f32 1.0, %v2760
    %v2762 = vtanh.pop %v2729
    %v2763 = vtanh.pop %v2730
    %v2764 = vtanh.pop %v2731
    %v2765 = vxor.u32 %v2732, 2147483648
    %v2766 = vxor.u32 %v2733, 2147483648
    %v2767 = vxor.u32 %v2734, 2147483648
    %v2768 = vmul.f32 %v2765, 1.442695
    %v2769 = vpow.pop %v2768
    %v2770 = vmul.f32 %v2766, 1.442695
    %v2771 = vpow.pop %v2770
    %v2772 = vmul.f32 %v2767, 1.442695
    %v2773 = vpow.pop %v2772
    %v2774 = vadd.f32 %v2769, 1.0
    %v2775 = vadd.f32 %v2771, 1.0
    %v2776 = vadd.f32 %v2773, 1.0
    %v2777 = vrcp.pop %v2774
    %v2778 = vmul.f32 1.0, %v2777
    %v2779 = vrcp.pop %v2775
    %v2780 = vmul.f32 1.0, %v2779
    %v2781 = vrcp.pop %v2776
    %v2782 = vmul.f32 1.0, %v2781
    %v2783 = vmul.f32 %v2757, %v2762
    %v2784 = vmul.f32 %v2759, %v2763
    %v2785 = vmul.f32 %v2761, %v2764
    %v2786 = vtanh.pop %v2783
    %v2787 = vtanh.pop %v2784
    %v2788 = vtanh.pop %v2785
    %v2789 = vmul.f32 %v2778, %v2786
    %v2790 = vmul.f32 %v2780, %v2787
    %v2791 = vmul.f32 %v2782, %v2788
    %v2792 = vxor.u32 %v2735, 2147483648
    %v2793 = vxor.u32 %v2736, 2147483648
    %v2794 = vxor.u32 %v2737, 2147483648
    %v2795 = vmul.f32 %v2792, 1.442695
    %v2796 = vpow.pop %v2795
    %v2797 = vmul.f32 %v2793, 1.442695
    %v2798 = vpow.pop %v2797
    %v2799 = vmul.f32 %v2794, 1.442695
    %v2800 = vpow.pop %v2799
    %v2801 = vadd.f32 %v2796, 1.0
    %v2802 = vadd.f32 %v2798, 1.0
    %v2803 = vadd.f32 %v2800, 1.0
    %v2804 = vrcp.pop %v2801
    %v2805 = vmul.f32 1.0, %v2804
    %v2806 = vrcp.pop %v2802
    %v2807 = vmul.f32 1.0, %v2806
    %v2808 = vrcp.pop %v2803
    %v2809 = vmul.f32 1.0, %v2808
    %v2810 = vtanh.pop %v2738
    %v2811 = vtanh.pop %v2739
    %v2812 = vtanh.pop %v2740
    %v2813 = vxor.u32 %v2741, 2147483648
    %v2814 = vxor.u32 %v2742, 2147483648
    %v2815 = vxor.u32 %v2743, 2147483648
    %v2816 = vmul.f32 %v2813, 1.442695
    %v2817 = vpow.pop %v2816
    %v2818 = vmul.f32 %v2814, 1.442695
    %v2819 = vpow.pop %v2818
    %v2820 = vmul.f32 %v2815, 1.442695
    %v2821 = vpow.pop %v2820
    %v2822 = vadd.f32 %v2817, 1.0
    %v2823 = vadd.f32 %v2819, 1.0
    %v2824 = vadd.f32 %v2821, 1.0
    %v2825 = vrcp.pop %v2822
    %v2826 = vmul.f32 1.0, %v2825
    %v2827 = vrcp.pop %v2823
    %v2828 = vmul.f32 1.0, %v2827
    %v2829 = vrcp.pop %v2824
    %v2830 = vmul.f32 1.0, %v2829
    %v2831 = vmul.f32 %v2805, %v2810
    %v2832 = vmul.f32 %v2807, %v2811
    %v2833 = vmul.f32 %v2809, %v2812
    %v2834 = vtanh.pop %v2831
    %v2835 = vtanh.pop %v2832
    %v2836 = vtanh.pop %v2833
    %v2837 = vmul.f32 %v2826, %v2834
    %v2838 = vmul.f32 %v2828, %v2835
    %v2839 = vmul.f32 %v2830, %v2836
    %s2840 = smul.u32 2, 96
    %s2841 = smul.u32 %s2840, 18
    %s2842 = sshll.u32 %s2841, 4
    %2843 = dma.done [#allocation3], %s2842
    %v2844 = vpack.c.bf16 %v2789, %v2789
    %v2845 = vpack.c.bf16 %v2790, %v2790
    %v2846 = vpack.c.bf16 %v2791, %v2791
    %v2847 = vpack.c.bf16 %v2837, %v2837
    %v2848 = vpack.c.bf16 %v2838, %v2838
    %v2849 = vpack.c.bf16 %v2839, %v2839
    %v2850 = vld [vmem:[#allocation2] sm:$0xff]
    %v2851 = vld [vmem:[#allocation2 + $0x8] sm:$0xff]
    %v2852 = vld [vmem:[#allocation2 + $0x10] sm:$0xff]
    %v2853 = vld [vmem:[#allocation2 + $0x18] sm:$0xff]
    %v2854 = vld [vmem:[#allocation2 + $0x20] sm:$0xff]
    %v2855 = vld [vmem:[#allocation2 + $0x28] sm:$0xff]
    %v2856 = vld [vmem:[#allocation2 + $0x30] sm:$0xff]
    %v2857 = vld [vmem:[#allocation2 + $0x38] sm:$0xff]
    %v2858 = vld [vmem:[#allocation2 + $0x40] sm:$0xff]
    %v2859 = vld [vmem:[#allocation2 + $0x48] sm:$0xff]
    %v2860 = vld [vmem:[#allocation2 + $0x50] sm:$0xff]
    %v2861 = vld [vmem:[#allocation2 + $0x58] sm:$0xff]
    %v2862 = vld [vmem:[#allocation2 + $0x60] sm:$0xff]
    %v2863 = vld [vmem:[#allocation2 + $0x68] sm:$0xff]
    %v2864 = vld [vmem:[#allocation2 + $0x70] sm:$0xff]
    %v2865 = vld [vmem:[#allocation2 + $0x78] sm:$0xff]
    %v2866 = vld [vmem:[#allocation2 + $0x80] sm:$0xff]
    %v2867 = vld [vmem:[#allocation2 + $0x88] sm:$0xff]
    %v2868 = vld [vmem:[#allocation2 + $0x90] sm:$0xff]
    %v2869 = vld [vmem:[#allocation2 + $0x98] sm:$0xff]
    %v2870 = vld [vmem:[#allocation2 + $0xa0] sm:$0xff]
    %v2871 = vld [vmem:[#allocation2 + $0xa8] sm:$0xff]
    %v2872 = vld [vmem:[#allocation2 + $0xb0] sm:$0xff]
    %v2873 = vld [vmem:[#allocation2 + $0xb8] sm:$0xff]
    %v2874 = vld [vmem:[#allocation2 + $0xc0] sm:$0xff]
    %v2875 = vld [vmem:[#allocation2 + $0xc8] sm:$0xff]
    %v2876 = vld [vmem:[#allocation2 + $0xd0] sm:$0xff]
    %v2877 = vld [vmem:[#allocation2 + $0xd8] sm:$0xff]
    %v2878 = vld [vmem:[#allocation2 + $0xe0] sm:$0xff]
    %v2879 = vld [vmem:[#allocation2 + $0xe8] sm:$0xff]
    %v2880 = vld [vmem:[#allocation2 + $0xf0] sm:$0xff]
    %v2881 = vld [vmem:[#allocation2 + $0xf8] sm:$0xff]
    %v2882 = vld [vmem:[#allocation2 + $0x100] sm:$0xff]
    %v2883 = vld [vmem:[#allocation2 + $0x108] sm:$0xff]
    %v2884 = vld [vmem:[#allocation2 + $0x110] sm:$0xff]
    %v2885 = vld [vmem:[#allocation2 + $0x118] sm:$0xff]
    %v2886 = vld [vmem:[#allocation2 + $0x120] sm:$0xff]
    %v2887 = vld [vmem:[#allocation2 + $0x128] sm:$0xff]
    %v2888 = vld [vmem:[#allocation2 + $0x130] sm:$0xff]
    %v2889 = vld [vmem:[#allocation2 + $0x138] sm:$0xff]
    %v2890 = vld [vmem:[#allocation2 + $0x140] sm:$0xff]
    %v2891 = vld [vmem:[#allocation2 + $0x148] sm:$0xff]
    %v2892 = vld [vmem:[#allocation2 + $0x150] sm:$0xff]
    %v2893 = vld [vmem:[#allocation2 + $0x158] sm:$0xff]
    %v2894 = vld [vmem:[#allocation2 + $0x160] sm:$0xff]
    %v2895 = vld [vmem:[#allocation2 + $0x168] sm:$0xff]
    %v2896 = vld [vmem:[#allocation2 + $0x170] sm:$0xff]
    %v2897 = vld [vmem:[#allocation2 + $0x178] sm:$0xff]
    %v2898 = vld [vmem:[#allocation2 + $0x180] sm:$0xff]
    %v2899 = vld [vmem:[#allocation2 + $0x188] sm:$0xff]
    %v2900 = vld [vmem:[#allocation2 + $0x190] sm:$0xff]
    %v2901 = vld [vmem:[#allocation2 + $0x198] sm:$0xff]
    %v2902 = vld [vmem:[#allocation2 + $0x1a0] sm:$0xff]
    %v2903 = vld [vmem:[#allocation2 + $0x1a8] sm:$0xff]
    %v2904 = vld [vmem:[#allocation2 + $0x1b0] sm:$0xff]
    %v2905 = vld [vmem:[#allocation2 + $0x1b8] sm:$0xff]
    %v2906 = vld [vmem:[#allocation2 + $0x1c0] sm:$0xff]
    %v2907 = vld [vmem:[#allocation2 + $0x1c8] sm:$0xff]
    %v2908 = vld [vmem:[#allocation2 + $0x1d0] sm:$0xff]
    %v2909 = vld [vmem:[#allocation2 + $0x1d8] sm:$0xff]
    %v2910 = vld [vmem:[#allocation2 + $0x1e0] sm:$0xff]
    %v2911 = vld [vmem:[#allocation2 + $0x1e8] sm:$0xff]
    %v2912 = vld [vmem:[#allocation2 + $0x1f0] sm:$0xff]
    %v2913 = vld [vmem:[#allocation2 + $0x1f8] sm:$0xff]
    %v2914 = vld [vmem:[#allocation2 + $0x200] sm:$0xff]
    %v2915 = vld [vmem:[#allocation2 + $0x208] sm:$0xff]
    %v2916 = vld [vmem:[#allocation2 + $0x210] sm:$0xff]
    %v2917 = vld [vmem:[#allocation2 + $0x218] sm:$0xff]
    %v2918 = vld [vmem:[#allocation2 + $0x220] sm:$0xff]
    %v2919 = vld [vmem:[#allocation2 + $0x228] sm:$0xff]
    %v2920 = vld [vmem:[#allocation2 + $0x230] sm:$0xff]
    %v2921 = vld [vmem:[#allocation2 + $0x238] sm:$0xff]
    %v2922 = vld [vmem:[#allocation2 + $0x240] sm:$0xff]
    %v2923 = vld [vmem:[#allocation2 + $0x248] sm:$0xff]
    %v2924 = vld [vmem:[#allocation2 + $0x250] sm:$0xff]
    %v2925 = vld [vmem:[#allocation2 + $0x258] sm:$0xff]
    %v2926 = vld [vmem:[#allocation2 + $0x260] sm:$0xff]
    %v2927 = vld [vmem:[#allocation2 + $0x268] sm:$0xff]
    %v2928 = vld [vmem:[#allocation2 + $0x270] sm:$0xff]
    %v2929 = vld [vmem:[#allocation2 + $0x278] sm:$0xff]
    %v2930 = vld [vmem:[#allocation2 + $0x280] sm:$0xff]
    %v2931 = vld [vmem:[#allocation2 + $0x288] sm:$0xff]
    %v2932 = vld [vmem:[#allocation2 + $0x290] sm:$0xff]
    %v2933 = vld [vmem:[#allocation2 + $0x298] sm:$0xff]
    %v2934 = vld [vmem:[#allocation2 + $0x2a0] sm:$0xff]
    %v2935 = vld [vmem:[#allocation2 + $0x2a8] sm:$0xff]
    %v2936 = vld [vmem:[#allocation2 + $0x2b0] sm:$0xff]
    %v2937 = vld [vmem:[#allocation2 + $0x2b8] sm:$0xff]
    %v2938 = vld [vmem:[#allocation2 + $0x2c0] sm:$0xff]
    %v2939 = vld [vmem:[#allocation2 + $0x2c8] sm:$0xff]
    %v2940 = vld [vmem:[#allocation2 + $0x2d0] sm:$0xff]
    %v2941 = vld [vmem:[#allocation2 + $0x2d8] sm:$0xff]
    %v2942 = vld [vmem:[#allocation2 + $0x2e0] sm:$0xff]
    %v2943 = vld [vmem:[#allocation2 + $0x2e8] sm:$0xff]
    %v2944 = vld [vmem:[#allocation2 + $0x2f0] sm:$0xff]
    %v2945 = vld [vmem:[#allocation2 + $0x2f8] sm:$0xff]
    %v2946 = vld [vmem:[#allocation2 + $0x300] sm:$0xff]
    %v2947 = vld [vmem:[#allocation2 + $0x308] sm:$0xff]
    %v2948 = vld [vmem:[#allocation2 + $0x310] sm:$0xff]
    %v2949 = vld [vmem:[#allocation2 + $0x318] sm:$0xff]
    %v2950 = vld [vmem:[#allocation2 + $0x320] sm:$0xff]
    %v2951 = vld [vmem:[#allocation2 + $0x328] sm:$0xff]
    %v2952 = vld [vmem:[#allocation2 + $0x330] sm:$0xff]
    %v2953 = vld [vmem:[#allocation2 + $0x338] sm:$0xff]
    %v2954 = vld [vmem:[#allocation2 + $0x340] sm:$0xff]
    %v2955 = vld [vmem:[#allocation2 + $0x348] sm:$0xff]
    %v2956 = vld [vmem:[#allocation2 + $0x350] sm:$0xff]
    %v2957 = vld [vmem:[#allocation2 + $0x358] sm:$0xff]
    %v2958 = vld [vmem:[#allocation2 + $0x360] sm:$0xff]
    %v2959 = vld [vmem:[#allocation2 + $0x368] sm:$0xff]
    %v2960 = vld [vmem:[#allocation2 + $0x370] sm:$0xff]
    %v2961 = vld [vmem:[#allocation2 + $0x378] sm:$0xff]
    %v2962 = vld [vmem:[#allocation2 + $0x380] sm:$0xff]
    %v2963 = vld [vmem:[#allocation2 + $0x388] sm:$0xff]
    %v2964 = vld [vmem:[#allocation2 + $0x390] sm:$0xff]
    %v2965 = vld [vmem:[#allocation2 + $0x398] sm:$0xff]
    %v2966 = vld [vmem:[#allocation2 + $0x3a0] sm:$0xff]
    %v2967 = vld [vmem:[#allocation2 + $0x3a8] sm:$0xff]
    %v2968 = vld [vmem:[#allocation2 + $0x3b0] sm:$0xff]
    %v2969 = vld [vmem:[#allocation2 + $0x3b8] sm:$0xff]
    %v2970 = vld [vmem:[#allocation2 + $0x3c0] sm:$0xff]
    %v2971 = vld [vmem:[#allocation2 + $0x3c8] sm:$0xff]
    %v2972 = vld [vmem:[#allocation2 + $0x3d0] sm:$0xff]
    %v2973 = vld [vmem:[#allocation2 + $0x3d8] sm:$0xff]
    %v2974 = vld [vmem:[#allocation2 + $0x3e0] sm:$0xff]
    %v2975 = vld [vmem:[#allocation2 + $0x3e8] sm:$0xff]
    %v2976 = vld [vmem:[#allocation2 + $0x3f0] sm:$0xff]
    %v2977 = vld [vmem:[#allocation2 + $0x3f8] sm:$0xff]
    %v2978 = vld [vmem:[#allocation2 + $0x400] sm:$0xff]
    %v2979 = vld [vmem:[#allocation2 + $0x408] sm:$0xff]
    %v2980 = vld [vmem:[#allocation2 + $0x410] sm:$0xff]
    %v2981 = vld [vmem:[#allocation2 + $0x418] sm:$0xff]
    %v2982 = vld [vmem:[#allocation2 + $0x420] sm:$0xff]
    %v2983 = vld [vmem:[#allocation2 + $0x428] sm:$0xff]
    %v2984 = vld [vmem:[#allocation2 + $0x430] sm:$0xff]
    %v2985 = vld [vmem:[#allocation2 + $0x438] sm:$0xff]
    %v2986 = vld [vmem:[#allocation2 + $0x440] sm:$0xff]
    %v2987 = vld [vmem:[#allocation2 + $0x448] sm:$0xff]
    %v2988 = vld [vmem:[#allocation2 + $0x450] sm:$0xff]
    %v2989 = vld [vmem:[#allocation2 + $0x458] sm:$0xff]
    %v2990 = vld [vmem:[#allocation2 + $0x460] sm:$0xff]
    %v2991 = vld [vmem:[#allocation2 + $0x468] sm:$0xff]
    %v2992 = vld [vmem:[#allocation2 + $0x470] sm:$0xff]
    %v2993 = vld [vmem:[#allocation2 + $0x478] sm:$0xff]
    %v2994 = vld [vmem:[#allocation2 + $0x480] sm:$0xff]
    %v2995 = vld [vmem:[#allocation2 + $0x488] sm:$0xff]
    %v2996 = vld [vmem:[#allocation2 + $0x490] sm:$0xff]
    %v2997 = vld [vmem:[#allocation2 + $0x498] sm:$0xff]
    %v2998 = vld [vmem:[#allocation2 + $0x4a0] sm:$0xff]
    %v2999 = vld [vmem:[#allocation2 + $0x4a8] sm:$0xff]
    %v3000 = vld [vmem:[#allocation2 + $0x4b0] sm:$0xff]
    %v3001 = vld [vmem:[#allocation2 + $0x4b8] sm:$0xff]
    %v3002 = vld [vmem:[#allocation2 + $0x4c0] sm:$0xff]
    %v3003 = vld [vmem:[#allocation2 + $0x4c8] sm:$0xff]
    %v3004 = vld [vmem:[#allocation2 + $0x4d0] sm:$0xff]
    %v3005 = vld [vmem:[#allocation2 + $0x4d8] sm:$0xff]
    %v3006 = vld [vmem:[#allocation2 + $0x4e0] sm:$0xff]
    %v3007 = vld [vmem:[#allocation2 + $0x4e8] sm:$0xff]
    %v3008 = vld [vmem:[#allocation2 + $0x4f0] sm:$0xff]
    %v3009 = vld [vmem:[#allocation2 + $0x4f8] sm:$0xff]
    %v3010 = vld [vmem:[#allocation2 + $0x500] sm:$0xff]
    %v3011 = vld [vmem:[#allocation2 + $0x508] sm:$0xff]
    %v3012 = vld [vmem:[#allocation2 + $0x510] sm:$0xff]
    %v3013 = vld [vmem:[#allocation2 + $0x518] sm:$0xff]
    %v3014 = vld [vmem:[#allocation2 + $0x520] sm:$0xff]
    %v3015 = vld [vmem:[#allocation2 + $0x528] sm:$0xff]
    %v3016 = vld [vmem:[#allocation2 + $0x530] sm:$0xff]
    %v3017 = vld [vmem:[#allocation2 + $0x538] sm:$0xff]
    %v3018 = vld [vmem:[#allocation2 + $0x540] sm:$0xff]
    %v3019 = vld [vmem:[#allocation2 + $0x548] sm:$0xff]
    %v3020 = vld [vmem:[#allocation2 + $0x550] sm:$0xff]
    %v3021 = vld [vmem:[#allocation2 + $0x558] sm:$0xff]
    %v3022 = vld [vmem:[#allocation2 + $0x560] sm:$0xff]
    %v3023 = vld [vmem:[#allocation2 + $0x568] sm:$0xff]
    %v3024 = vld [vmem:[#allocation2 + $0x570] sm:$0xff]
    %v3025 = vld [vmem:[#allocation2 + $0x578] sm:$0xff]
    %v3026 = vld [vmem:[#allocation2 + $0x580] sm:$0xff]
    %v3027 = vld [vmem:[#allocation2 + $0x588] sm:$0xff]
    %v3028 = vld [vmem:[#allocation2 + $0x590] sm:$0xff]
    %v3029 = vld [vmem:[#allocation2 + $0x598] sm:$0xff]
    %v3030 = vld [vmem:[#allocation2 + $0x5a0] sm:$0xff]
    %v3031 = vld [vmem:[#allocation2 + $0x5a8] sm:$0xff]
    %v3032 = vld [vmem:[#allocation2 + $0x5b0] sm:$0xff]
    %v3033 = vld [vmem:[#allocation2 + $0x5b8] sm:$0xff]
    %v3034 = vld [vmem:[#allocation2 + $0x5c0] sm:$0xff]
    %v3035 = vld [vmem:[#allocation2 + $0x5c8] sm:$0xff]
    %v3036 = vld [vmem:[#allocation2 + $0x5d0] sm:$0xff]
    %v3037 = vld [vmem:[#allocation2 + $0x5d8] sm:$0xff]
    %v3038 = vld [vmem:[#allocation2 + $0x5e0] sm:$0xff]
    %v3039 = vld [vmem:[#allocation2 + $0x5e8] sm:$0xff]
    %v3040 = vld [vmem:[#allocation2 + $0x5f0] sm:$0xff]
    %v3041 = vld [vmem:[#allocation2 + $0x5f8] sm:$0xff]
    %v3042 = vld [vmem:[#allocation2 + $0x600] sm:$0xff]
    %v3043 = vld [vmem:[#allocation2 + $0x608] sm:$0xff]
    %v3044 = vld [vmem:[#allocation2 + $0x610] sm:$0xff]
    %v3045 = vld [vmem:[#allocation2 + $0x618] sm:$0xff]
    %v3046 = vld [vmem:[#allocation2 + $0x620] sm:$0xff]
    %v3047 = vld [vmem:[#allocation2 + $0x628] sm:$0xff]
    %v3048 = vld [vmem:[#allocation2 + $0x630] sm:$0xff]
    %v3049 = vld [vmem:[#allocation2 + $0x638] sm:$0xff]
    %v3050 = vld [vmem:[#allocation2 + $0x640] sm:$0xff]
    %v3051 = vld [vmem:[#allocation2 + $0x648] sm:$0xff]
    %v3052 = vld [vmem:[#allocation2 + $0x650] sm:$0xff]
    %v3053 = vld [vmem:[#allocation2 + $0x658] sm:$0xff]
    %v3054 = vld [vmem:[#allocation2 + $0x660] sm:$0xff]
    %v3055 = vld [vmem:[#allocation2 + $0x668] sm:$0xff]
    %v3056 = vld [vmem:[#allocation2 + $0x670] sm:$0xff]
    %v3057 = vld [vmem:[#allocation2 + $0x678] sm:$0xff]
    %v3058 = vld [vmem:[#allocation2 + $0x680] sm:$0xff]
    %v3059 = vld [vmem:[#allocation2 + $0x688] sm:$0xff]
    %v3060 = vld [vmem:[#allocation2 + $0x690] sm:$0xff]
    %v3061 = vld [vmem:[#allocation2 + $0x698] sm:$0xff]
    %v3062 = vld [vmem:[#allocation2 + $0x6a0] sm:$0xff]
    %v3063 = vld [vmem:[#allocation2 + $0x6a8] sm:$0xff]
    %v3064 = vld [vmem:[#allocation2 + $0x6b0] sm:$0xff]
    %v3065 = vld [vmem:[#allocation2 + $0x6b8] sm:$0xff]
    %v3066 = vld [vmem:[#allocation2 + $0x6c0] sm:$0xff]
    %v3067 = vld [vmem:[#allocation2 + $0x6c8] sm:$0xff]
    %v3068 = vld [vmem:[#allocation2 + $0x6d0] sm:$0xff]
    %v3069 = vld [vmem:[#allocation2 + $0x6d8] sm:$0xff]
    %v3070 = vld [vmem:[#allocation2 + $0x6e0] sm:$0xff]
    %v3071 = vld [vmem:[#allocation2 + $0x6e8] sm:$0xff]
    %v3072 = vld [vmem:[#allocation2 + $0x6f0] sm:$0xff]
    %v3073 = vld [vmem:[#allocation2 + $0x6f8] sm:$0xff]
    %v3074 = vld [vmem:[#allocation2 + $0x700] sm:$0xff]
    %v3075 = vld [vmem:[#allocation2 + $0x708] sm:$0xff]
    %v3076 = vld [vmem:[#allocation2 + $0x710] sm:$0xff]
    %v3077 = vld [vmem:[#allocation2 + $0x718] sm:$0xff]
    %v3078 = vld [vmem:[#allocation2 + $0x720] sm:$0xff]
    %v3079 = vld [vmem:[#allocation2 + $0x728] sm:$0xff]
    %v3080 = vld [vmem:[#allocation2 + $0x730] sm:$0xff]
    %v3081 = vld [vmem:[#allocation2 + $0x738] sm:$0xff]
    %v3082 = vld [vmem:[#allocation2 + $0x740] sm:$0xff]
    %v3083 = vld [vmem:[#allocation2 + $0x748] sm:$0xff]
    %v3084 = vld [vmem:[#allocation2 + $0x750] sm:$0xff]
    %v3085 = vld [vmem:[#allocation2 + $0x758] sm:$0xff]
    %v3086 = vld [vmem:[#allocation2 + $0x760] sm:$0xff]
    %v3087 = vld [vmem:[#allocation2 + $0x768] sm:$0xff]
    %v3088 = vld [vmem:[#allocation2 + $0x770] sm:$0xff]
    %v3089 = vld [vmem:[#allocation2 + $0x778] sm:$0xff]
    %v3090 = vld [vmem:[#allocation2 + $0x780] sm:$0xff]
    %v3091 = vld [vmem:[#allocation2 + $0x788] sm:$0xff]
    %v3092 = vld [vmem:[#allocation2 + $0x790] sm:$0xff]
    %v3093 = vld [vmem:[#allocation2 + $0x798] sm:$0xff]
    %v3094 = vld [vmem:[#allocation2 + $0x7a0] sm:$0xff]
    %v3095 = vld [vmem:[#allocation2 + $0x7a8] sm:$0xff]
    %v3096 = vld [vmem:[#allocation2 + $0x7b0] sm:$0xff]
    %v3097 = vld [vmem:[#allocation2 + $0x7b8] sm:$0xff]
    %v3098 = vld [vmem:[#allocation2 + $0x7c0] sm:$0xff]
    %v3099 = vld [vmem:[#allocation2 + $0x7c8] sm:$0xff]
    %v3100 = vld [vmem:[#allocation2 + $0x7d0] sm:$0xff]
    %v3101 = vld [vmem:[#allocation2 + $0x7d8] sm:$0xff]
    %v3102 = vld [vmem:[#allocation2 + $0x7e0] sm:$0xff]
    %v3103 = vld [vmem:[#allocation2 + $0x7e8] sm:$0xff]
    %v3104 = vld [vmem:[#allocation2 + $0x7f0] sm:$0xff]
    %v3105 = vld [vmem:[#allocation2 + $0x7f8] sm:$0xff]
    %v3106 = vld [vmem:[#allocation2 + $0x800] sm:$0xff]
    %v3107 = vld [vmem:[#allocation2 + $0x808] sm:$0xff]
    %v3108 = vld [vmem:[#allocation2 + $0x810] sm:$0xff]
    %v3109 = vld [vmem:[#allocation2 + $0x818] sm:$0xff]
    %v3110 = vld [vmem:[#allocation2 + $0x820] sm:$0xff]
    %v3111 = vld [vmem:[#allocation2 + $0x828] sm:$0xff]
    %v3112 = vld [vmem:[#allocation2 + $0x830] sm:$0xff]
    %v3113 = vld [vmem:[#allocation2 + $0x838] sm:$0xff]
    %v3114 = vld [vmem:[#allocation2 + $0x840] sm:$0xff]
    %v3115 = vld [vmem:[#allocation2 + $0x848] sm:$0xff]
    %v3116 = vld [vmem:[#allocation2 + $0x850] sm:$0xff]
    %v3117 = vld [vmem:[#allocation2 + $0x858] sm:$0xff]
    %v3118 = vld [vmem:[#allocation2 + $0x860] sm:$0xff]
    %v3119 = vld [vmem:[#allocation2 + $0x868] sm:$0xff]
    %v3120 = vld [vmem:[#allocation2 + $0x870] sm:$0xff]
    %v3121 = vld [vmem:[#allocation2 + $0x878] sm:$0xff]
    %v3122 = vld [vmem:[#allocation2 + $0x880] sm:$0xff]
    %v3123 = vld [vmem:[#allocation2 + $0x888] sm:$0xff]
    %v3124 = vld [vmem:[#allocation2 + $0x890] sm:$0xff]
    %v3125 = vld [vmem:[#allocation2 + $0x898] sm:$0xff]
    %v3126 = vld [vmem:[#allocation2 + $0x8a0] sm:$0xff]
    %v3127 = vld [vmem:[#allocation2 + $0x8a8] sm:$0xff]
    %v3128 = vld [vmem:[#allocation2 + $0x8b0] sm:$0xff]
    %v3129 = vld [vmem:[#allocation2 + $0x8b8] sm:$0xff]
    %v3130 = vld [vmem:[#allocation2 + $0x8c0] sm:$0xff]
    %v3131 = vld [vmem:[#allocation2 + $0x8c8] sm:$0xff]
    %v3132 = vld [vmem:[#allocation2 + $0x8d0] sm:$0xff]
    %v3133 = vld [vmem:[#allocation2 + $0x8d8] sm:$0xff]
    %v3134 = vld [vmem:[#allocation2 + $0x8e0] sm:$0xff]
    %v3135 = vld [vmem:[#allocation2 + $0x8e8] sm:$0xff]
    %v3136 = vld [vmem:[#allocation2 + $0x8f0] sm:$0xff]
    %v3137 = vld [vmem:[#allocation2 + $0x8f8] sm:$0xff]
    %v3138 = vld [vmem:[#allocation2 + $0x900] sm:$0xff]
    %v3139 = vld [vmem:[#allocation2 + $0x908] sm:$0xff]
    %v3140 = vld [vmem:[#allocation2 + $0x910] sm:$0xff]
    %v3141 = vld [vmem:[#allocation2 + $0x918] sm:$0xff]
    %v3142 = vld [vmem:[#allocation2 + $0x920] sm:$0xff]
    %v3143 = vld [vmem:[#allocation2 + $0x928] sm:$0xff]
    %v3144 = vld [vmem:[#allocation2 + $0x930] sm:$0xff]
    %v3145 = vld [vmem:[#allocation2 + $0x938] sm:$0xff]
    %v3146 = vld [vmem:[#allocation2 + $0x940] sm:$0xff]
    %v3147 = vld [vmem:[#allocation2 + $0x948] sm:$0xff]
    %v3148 = vld [vmem:[#allocation2 + $0x950] sm:$0xff]
    %v3149 = vld [vmem:[#allocation2 + $0x958] sm:$0xff]
    %v3150 = vld [vmem:[#allocation2 + $0x960] sm:$0xff]
    %v3151 = vld [vmem:[#allocation2 + $0x968] sm:$0xff]
    %v3152 = vld [vmem:[#allocation2 + $0x970] sm:$0xff]
    %v3153 = vld [vmem:[#allocation2 + $0x978] sm:$0xff]
    %v3154 = vld [vmem:[#allocation2 + $0x980] sm:$0xff]
    %v3155 = vld [vmem:[#allocation2 + $0x988] sm:$0xff]
    %v3156 = vld [vmem:[#allocation2 + $0x990] sm:$0xff]
    %v3157 = vld [vmem:[#allocation2 + $0x998] sm:$0xff]
    %v3158 = vld [vmem:[#allocation2 + $0x9a0] sm:$0xff]
    %v3159 = vld [vmem:[#allocation2 + $0x9a8] sm:$0xff]
    %v3160 = vld [vmem:[#allocation2 + $0x9b0] sm:$0xff]
    %v3161 = vld [vmem:[#allocation2 + $0x9b8] sm:$0xff]
    %v3162 = vld [vmem:[#allocation2 + $0x9c0] sm:$0xff]
    %v3163 = vld [vmem:[#allocation2 + $0x9c8] sm:$0xff]
    %v3164 = vld [vmem:[#allocation2 + $0x9d0] sm:$0xff]
    %v3165 = vld [vmem:[#allocation2 + $0x9d8] sm:$0xff]
    %v3166 = vld [vmem:[#allocation2 + $0x9e0] sm:$0xff]
    %v3167 = vld [vmem:[#allocation2 + $0x9e8] sm:$0xff]
    %v3168 = vld [vmem:[#allocation2 + $0x9f0] sm:$0xff]
    %v3169 = vld [vmem:[#allocation2 + $0x9f8] sm:$0xff]
    %v3170 = vld [vmem:[#allocation2 + $0xa00] sm:$0xff]
    %v3171 = vld [vmem:[#allocation2 + $0xa08] sm:$0xff]
    %v3172 = vld [vmem:[#allocation2 + $0xa10] sm:$0xff]
    %v3173 = vld [vmem:[#allocation2 + $0xa18] sm:$0xff]
    %v3174 = vld [vmem:[#allocation2 + $0xa20] sm:$0xff]
    %v3175 = vld [vmem:[#allocation2 + $0xa28] sm:$0xff]
    %v3176 = vld [vmem:[#allocation2 + $0xa30] sm:$0xff]
    %v3177 = vld [vmem:[#allocation2 + $0xa38] sm:$0xff]
    %v3178 = vld [vmem:[#allocation2 + $0xa40] sm:$0xff]
    %v3179 = vld [vmem:[#allocation2 + $0xa48] sm:$0xff]
    %v3180 = vld [vmem:[#allocation2 + $0xa50] sm:$0xff]
    %v3181 = vld [vmem:[#allocation2 + $0xa58] sm:$0xff]
    %v3182 = vld [vmem:[#allocation2 + $0xa60] sm:$0xff]
    %v3183 = vld [vmem:[#allocation2 + $0xa68] sm:$0xff]
    %v3184 = vld [vmem:[#allocation2 + $0xa70] sm:$0xff]
    %v3185 = vld [vmem:[#allocation2 + $0xa78] sm:$0xff]
    %v3186 = vld [vmem:[#allocation2 + $0xa80] sm:$0xff]
    %v3187 = vld [vmem:[#allocation2 + $0xa88] sm:$0xff]
    %v3188 = vld [vmem:[#allocation2 + $0xa90] sm:$0xff]
    %v3189 = vld [vmem:[#allocation2 + $0xa98] sm:$0xff]
    %v3190 = vld [vmem:[#allocation2 + $0xaa0] sm:$0xff]
    %v3191 = vld [vmem:[#allocation2 + $0xaa8] sm:$0xff]
    %v3192 = vld [vmem:[#allocation2 + $0xab0] sm:$0xff]
    %v3193 = vld [vmem:[#allocation2 + $0xab8] sm:$0xff]
    %v3194 = vld [vmem:[#allocation2 + $0xac0] sm:$0xff]
    %v3195 = vld [vmem:[#allocation2 + $0xac8] sm:$0xff]
    %v3196 = vld [vmem:[#allocation2 + $0xad0] sm:$0xff]
    %v3197 = vld [vmem:[#allocation2 + $0xad8] sm:$0xff]
    %v3198 = vld [vmem:[#allocation2 + $0xae0] sm:$0xff]
    %v3199 = vld [vmem:[#allocation2 + $0xae8] sm:$0xff]
    %v3200 = vld [vmem:[#allocation2 + $0xaf0] sm:$0xff]
    %v3201 = vld [vmem:[#allocation2 + $0xaf8] sm:$0xff]
    %v3202 = vld [vmem:[#allocation2 + $0xb00] sm:$0xff]
    %v3203 = vld [vmem:[#allocation2 + $0xb08] sm:$0xff]
    %v3204 = vld [vmem:[#allocation2 + $0xb10] sm:$0xff]
    %v3205 = vld [vmem:[#allocation2 + $0xb18] sm:$0xff]
    %v3206 = vld [vmem:[#allocation2 + $0xb20] sm:$0xff]
    %v3207 = vld [vmem:[#allocation2 + $0xb28] sm:$0xff]
    %v3208 = vld [vmem:[#allocation2 + $0xb30] sm:$0xff]
    %v3209 = vld [vmem:[#allocation2 + $0xb38] sm:$0xff]
    %v3210 = vld [vmem:[#allocation2 + $0xb40] sm:$0xff]
    %v3211 = vld [vmem:[#allocation2 + $0xb48] sm:$0xff]
    %v3212 = vld [vmem:[#allocation2 + $0xb50] sm:$0xff]
    %v3213 = vld [vmem:[#allocation2 + $0xb58] sm:$0xff]
    %v3214 = vld [vmem:[#allocation2 + $0xb60] sm:$0xff]
    %v3215 = vld [vmem:[#allocation2 + $0xb68] sm:$0xff]
    %v3216 = vld [vmem:[#allocation2 + $0xb70] sm:$0xff]
    %v3217 = vld [vmem:[#allocation2 + $0xb78] sm:$0xff]
    %v3218 = vld [vmem:[#allocation2 + $0xb80] sm:$0xff]
    %v3219 = vld [vmem:[#allocation2 + $0xb88] sm:$0xff]
    %v3220 = vld [vmem:[#allocation2 + $0xb90] sm:$0xff]
    %v3221 = vld [vmem:[#allocation2 + $0xb98] sm:$0xff]
    %v3222 = vld [vmem:[#allocation2 + $0xba0] sm:$0xff]
    %v3223 = vld [vmem:[#allocation2 + $0xba8] sm:$0xff]
    %v3224 = vld [vmem:[#allocation2 + $0xbb0] sm:$0xff]
    %v3225 = vld [vmem:[#allocation2 + $0xbb8] sm:$0xff]
    %v3226 = vld [vmem:[#allocation2 + $0xbc0] sm:$0xff]
    %v3227 = vld [vmem:[#allocation2 + $0xbc8] sm:$0xff]
    %v3228 = vld [vmem:[#allocation2 + $0xbd0] sm:$0xff]
    %v3229 = vld [vmem:[#allocation2 + $0xbd8] sm:$0xff]
    %v3230 = vld [vmem:[#allocation2 + $0xbe0] sm:$0xff]
    %v3231 = vld [vmem:[#allocation2 + $0xbe8] sm:$0xff]
    %v3232 = vld [vmem:[#allocation2 + $0xbf0] sm:$0xff]
    %v3233 = vld [vmem:[#allocation2 + $0xbf8] sm:$0xff]
    %v3234 = vld [vmem:[#allocation2 + $0xc00] sm:$0xff]
    %v3235 = vld [vmem:[#allocation2 + $0xc08] sm:$0xff]
    %v3236 = vld [vmem:[#allocation2 + $0xc10] sm:$0xff]
    %v3237 = vld [vmem:[#allocation2 + $0xc18] sm:$0xff]
    %v3238 = vld [vmem:[#allocation2 + $0xc20] sm:$0xff]
    %v3239 = vld [vmem:[#allocation2 + $0xc28] sm:$0xff]
    %v3240 = vld [vmem:[#allocation2 + $0xc30] sm:$0xff]
    %v3241 = vld [vmem:[#allocation2 + $0xc38] sm:$0xff]
    %v3242 = vld [vmem:[#allocation2 + $0xc40] sm:$0xff]
    %v3243 = vld [vmem:[#allocation2 + $0xc48] sm:$0xff]
    %v3244 = vld [vmem:[#allocation2 + $0xc50] sm:$0xff]
    %v3245 = vld [vmem:[#allocation2 + $0xc58] sm:$0xff]
    %v3246 = vld [vmem:[#allocation2 + $0xc60] sm:$0xff]
    %v3247 = vld [vmem:[#allocation2 + $0xc68] sm:$0xff]
    %v3248 = vld [vmem:[#allocation2 + $0xc70] sm:$0xff]
    %v3249 = vld [vmem:[#allocation2 + $0xc78] sm:$0xff]
    %v3250 = vld [vmem:[#allocation2 + $0xc80] sm:$0xff]
    %v3251 = vld [vmem:[#allocation2 + $0xc88] sm:$0xff]
    %v3252 = vld [vmem:[#allocation2 + $0xc90] sm:$0xff]
    %v3253 = vld [vmem:[#allocation2 + $0xc98] sm:$0xff]
    %v3254 = vld [vmem:[#allocation2 + $0xca0] sm:$0xff]
    %v3255 = vld [vmem:[#allocation2 + $0xca8] sm:$0xff]
    %v3256 = vld [vmem:[#allocation2 + $0xcb0] sm:$0xff]
    %v3257 = vld [vmem:[#allocation2 + $0xcb8] sm:$0xff]
    %v3258 = vld [vmem:[#allocation2 + $0xcc0] sm:$0xff]
    %v3259 = vld [vmem:[#allocation2 + $0xcc8] sm:$0xff]
    %v3260 = vld [vmem:[#allocation2 + $0xcd0] sm:$0xff]
    %v3261 = vld [vmem:[#allocation2 + $0xcd8] sm:$0xff]
    %v3262 = vld [vmem:[#allocation2 + $0xce0] sm:$0xff]
    %v3263 = vld [vmem:[#allocation2 + $0xce8] sm:$0xff]
    %v3264 = vld [vmem:[#allocation2 + $0xcf0] sm:$0xff]
    %v3265 = vld [vmem:[#allocation2 + $0xcf8] sm:$0xff]
    %v3266 = vld [vmem:[#allocation2 + $0xd00] sm:$0xff]
    %v3267 = vld [vmem:[#allocation2 + $0xd08] sm:$0xff]
    %v3268 = vld [vmem:[#allocation2 + $0xd10] sm:$0xff]
    %v3269 = vld [vmem:[#allocation2 + $0xd18] sm:$0xff]
    %v3270 = vld [vmem:[#allocation2 + $0xd20] sm:$0xff]
    %v3271 = vld [vmem:[#allocation2 + $0xd28] sm:$0xff]
    %v3272 = vld [vmem:[#allocation2 + $0xd30] sm:$0xff]
    %v3273 = vld [vmem:[#allocation2 + $0xd38] sm:$0xff]
    %v3274 = vld [vmem:[#allocation2 + $0xd40] sm:$0xff]
    %v3275 = vld [vmem:[#allocation2 + $0xd48] sm:$0xff]
    %v3276 = vld [vmem:[#allocation2 + $0xd50] sm:$0xff]
    %v3277 = vld [vmem:[#allocation2 + $0xd58] sm:$0xff]
    %v3278 = vld [vmem:[#allocation2 + $0xd60] sm:$0xff]
    %v3279 = vld [vmem:[#allocation2 + $0xd68] sm:$0xff]
    %v3280 = vld [vmem:[#allocation2 + $0xd70] sm:$0xff]
    %v3281 = vld [vmem:[#allocation2 + $0xd78] sm:$0xff]
    %v3282 = vunpack.c.l.s8.bf16 %v2850
    %v3283 = vunpack.c.l.s8.bf16 %v2851
    %v3284 = vunpack.c.l.s8.bf16 %v2852
    %v3285 = vunpack.c.l.s8.bf16 %v2853
    %v3286 = vunpack.c.l.s8.bf16 %v2854
    %v3287 = vunpack.c.l.s8.bf16 %v2855
    %v3288 = vunpack.c.l.s8.bf16 %v2856
    %v3289 = vunpack.c.l.s8.bf16 %v2857
    %v3290 = vunpack.c.l.s8.bf16 %v2858
    %v3291 = vunpack.c.l.s8.bf16 %v2859
    %v3292 = vunpack.c.l.s8.bf16 %v2860
    %v3293 = vunpack.c.l.s8.bf16 %v2861
    %v3294 = vunpack.c.l.s8.bf16 %v2862
    %v3295 = vunpack.c.l.s8.bf16 %v2863
    %v3296 = vunpack.c.l.s8.bf16 %v2864
    %v3297 = vunpack.c.l.s8.bf16 %v2865
    %v3298 = vunpack.c.l.s8.bf16 %v2866
    %v3299 = vunpack.c.l.s8.bf16 %v2867
    %v3300 = vunpack.c.h.s8.bf16 %v2850
    %v3301 = vunpack.c.h.s8.bf16 %v2851
    %v3302 = vunpack.c.h.s8.bf16 %v2852
    %v3303 = vunpack.c.h.s8.bf16 %v2853
    %v3304 = vunpack.c.h.s8.bf16 %v2854
    %v3305 = vunpack.c.h.s8.bf16 %v2855
    %v3306 = vunpack.c.h.s8.bf16 %v2856
    %v3307 = vunpack.c.h.s8.bf16 %v2857
    %v3308 = vunpack.c.h.s8.bf16 %v2858
    %v3309 = vunpack.c.h.s8.bf16 %v2859
    %v3310 = vunpack.c.h.s8.bf16 %v2860
    %v3311 = vunpack.c.h.s8.bf16 %v2861
    %v3312 = vunpack.c.h.s8.bf16 %v2862
    %v3313 = vunpack.c.h.s8.bf16 %v2863
    %v3314 = vunpack.c.h.s8.bf16 %v2864
    %v3315 = vunpack.c.h.s8.bf16 %v2865
    %v3316 = vunpack.c.h.s8.bf16 %v2866
    %v3317 = vunpack.c.h.s8.bf16 %v2867
    %v3318 = vunpack.c.l.s8.bf16 %v2868
    %v3319 = vunpack.c.l.s8.bf16 %v2869
    %v3320 = vunpack.c.l.s8.bf16 %v2870
    %v3321 = vunpack.c.l.s8.bf16 %v2871
    %v3322 = vunpack.c.l.s8.bf16 %v2872
    %v3323 = vunpack.c.l.s8.bf16 %v2873
    %v3324 = vunpack.c.l.s8.bf16 %v2874
    %v3325 = vunpack.c.l.s8.bf16 %v2875
    %v3326 = vunpack.c.l.s8.bf16 %v2876
    %v3327 = vunpack.c.l.s8.bf16 %v2877
    %v3328 = vunpack.c.l.s8.bf16 %v2878
    %v3329 = vunpack.c.l.s8.bf16 %v2879
    %v3330 = vunpack.c.l.s8.bf16 %v2880
    %v3331 = vunpack.c.l.s8.bf16 %v2881
    %v3332 = vunpack.c.l.s8.bf16 %v2882
    %v3333 = vunpack.c.l.s8.bf16 %v2883
    %v3334 = vunpack.c.l.s8.bf16 %v2884
    %v3335 = vunpack.c.l.s8.bf16 %v2885
    %v3336 = vunpack.c.h.s8.bf16 %v2868
    %v3337 = vunpack.c.h.s8.bf16 %v2869
    %v3338 = vunpack.c.h.s8.bf16 %v2870
    %v3339 = vunpack.c.h.s8.bf16 %v2871
    %v3340 = vunpack.c.h.s8.bf16 %v2872
    %v3341 = vunpack.c.h.s8.bf16 %v2873
    %v3342 = vunpack.c.h.s8.bf16 %v2874
    %v3343 = vunpack.c.h.s8.bf16 %v2875
    %v3344 = vunpack.c.h.s8.bf16 %v2876
    %v3345 = vunpack.c.h.s8.bf16 %v2877
    %v3346 = vunpack.c.h.s8.bf16 %v2878
    %v3347 = vunpack.c.h.s8.bf16 %v2879
    %v3348 = vunpack.c.h.s8.bf16 %v2880
    %v3349 = vunpack.c.h.s8.bf16 %v2881
    %v3350 = vunpack.c.h.s8.bf16 %v2882
    %v3351 = vunpack.c.h.s8.bf16 %v2883
    %v3352 = vunpack.c.h.s8.bf16 %v2884
    %v3353 = vunpack.c.h.s8.bf16 %v2885
    %v3354 = vunpack.c.l.s8.bf16 %v2886
    %v3355 = vunpack.c.l.s8.bf16 %v2887
    %v3356 = vunpack.c.l.s8.bf16 %v2888
    %v3357 = vunpack.c.l.s8.bf16 %v2889
    %v3358 = vunpack.c.l.s8.bf16 %v2890
    %v3359 = vunpack.c.l.s8.bf16 %v2891
    %v3360 = vunpack.c.l.s8.bf16 %v2892
    %v3361 = vunpack.c.l.s8.bf16 %v2893
    %v3362 = vunpack.c.l.s8.bf16 %v2894
    %v3363 = vunpack.c.l.s8.bf16 %v2895
    %v3364 = vunpack.c.l.s8.bf16 %v2896
    %v3365 = vunpack.c.l.s8.bf16 %v2897
    %v3366 = vunpack.c.l.s8.bf16 %v2898
    %v3367 = vunpack.c.l.s8.bf16 %v2899
    %v3368 = vunpack.c.l.s8.bf16 %v2900
    %v3369 = vunpack.c.l.s8.bf16 %v2901
    %v3370 = vunpack.c.l.s8.bf16 %v2902
    %v3371 = vunpack.c.l.s8.bf16 %v2903
    %v3372 = vunpack.c.h.s8.bf16 %v2886
    %v3373 = vunpack.c.h.s8.bf16 %v2887
    %v3374 = vunpack.c.h.s8.bf16 %v2888
    %v3375 = vunpack.c.h.s8.bf16 %v2889
    %v3376 = vunpack.c.h.s8.bf16 %v2890
    %v3377 = vunpack.c.h.s8.bf16 %v2891
    %v3378 = vunpack.c.h.s8.bf16 %v2892
    %v3379 = vunpack.c.h.s8.bf16 %v2893
    %v3380 = vunpack.c.h.s8.bf16 %v2894
    %v3381 = vunpack.c.h.s8.bf16 %v2895
    %v3382 = vunpack.c.h.s8.bf16 %v2896
    %v3383 = vunpack.c.h.s8.bf16 %v2897
    %v3384 = vunpack.c.h.s8.bf16 %v2898
    %v3385 = vunpack.c.h.s8.bf16 %v2899
    %v3386 = vunpack.c.h.s8.bf16 %v2900
    %v3387 = vunpack.c.h.s8.bf16 %v2901
    %v3388 = vunpack.c.h.s8.bf16 %v2902
    %v3389 = vunpack.c.h.s8.bf16 %v2903
    %v3390 = vunpack.c.l.s8.bf16 %v2904
    %v3391 = vunpack.c.l.s8.bf16 %v2905
    %v3392 = vunpack.c.l.s8.bf16 %v2906
    %v3393 = vunpack.c.l.s8.bf16 %v2907
    %v3394 = vunpack.c.l.s8.bf16 %v2908
    %v3395 = vunpack.c.l.s8.bf16 %v2909
    %v3396 = vunpack.c.l.s8.bf16 %v2910
    %v3397 = vunpack.c.l.s8.bf16 %v2911
    %v3398 = vunpack.c.l.s8.bf16 %v2912
    %v3399 = vunpack.c.l.s8.bf16 %v2913
    %v3400 = vunpack.c.l.s8.bf16 %v2914
    %v3401 = vunpack.c.l.s8.bf16 %v2915
    %v3402 = vunpack.c.l.s8.bf16 %v2916
    %v3403 = vunpack.c.l.s8.bf16 %v2917
    %v3404 = vunpack.c.l.s8.bf16 %v2918
    %v3405 = vunpack.c.l.s8.bf16 %v2919
    %v3406 = vunpack.c.l.s8.bf16 %v2920
    %v3407 = vunpack.c.l.s8.bf16 %v2921
    %v3408 = vunpack.c.h.s8.bf16 %v2904
    %v3409 = vunpack.c.h.s8.bf16 %v2905
    %v3410 = vunpack.c.h.s8.bf16 %v2906
    %v3411 = vunpack.c.h.s8.bf16 %v2907
    %v3412 = vunpack.c.h.s8.bf16 %v2908
    %v3413 = vunpack.c.h.s8.bf16 %v2909
    %v3414 = vunpack.c.h.s8.bf16 %v2910
    %v3415 = vunpack.c.h.s8.bf16 %v2911
    %v3416 = vunpack.c.h.s8.bf16 %v2912
    %v3417 = vunpack.c.h.s8.bf16 %v2913
    %v3418 = vunpack.c.h.s8.bf16 %v2914
    %v3419 = vunpack.c.h.s8.bf16 %v2915
    %v3420 = vunpack.c.h.s8.bf16 %v2916
    %v3421 = vunpack.c.h.s8.bf16 %v2917
    %v3422 = vunpack.c.h.s8.bf16 %v2918
    %v3423 = vunpack.c.h.s8.bf16 %v2919
    %v3424 = vunpack.c.h.s8.bf16 %v2920
    %v3425 = vunpack.c.h.s8.bf16 %v2921
    %v3426 = vunpack.c.l.s8.bf16 %v2922
    %v3427 = vunpack.c.l.s8.bf16 %v2923
    %v3428 = vunpack.c.l.s8.bf16 %v2924
    %v3429 = vunpack.c.l.s8.bf16 %v2925
    %v3430 = vunpack.c.l.s8.bf16 %v2926
    %v3431 = vunpack.c.l.s8.bf16 %v2927
    %v3432 = vunpack.c.l.s8.bf16 %v2928
    %v3433 = vunpack.c.l.s8.bf16 %v2929
    %v3434 = vunpack.c.l.s8.bf16 %v2930
    %v3435 = vunpack.c.l.s8.bf16 %v2931
    %v3436 = vunpack.c.l.s8.bf16 %v2932
    %v3437 = vunpack.c.l.s8.bf16 %v2933
    %v3438 = vunpack.c.l.s8.bf16 %v2934
    %v3439 = vunpack.c.l.s8.bf16 %v2935
    %v3440 = vunpack.c.l.s8.bf16 %v2936
    %v3441 = vunpack.c.l.s8.bf16 %v2937
    %v3442 = vunpack.c.l.s8.bf16 %v2938
    %v3443 = vunpack.c.l.s8.bf16 %v2939
    %v3444 = vunpack.c.h.s8.bf16 %v2922
    %v3445 = vunpack.c.h.s8.bf16 %v2923
    %v3446 = vunpack.c.h.s8.bf16 %v2924
    %v3447 = vunpack.c.h.s8.bf16 %v2925
    %v3448 = vunpack.c.h.s8.bf16 %v2926
    %v3449 = vunpack.c.h.s8.bf16 %v2927
    %v3450 = vunpack.c.h.s8.bf16 %v2928
    %v3451 = vunpack.c.h.s8.bf16 %v2929
    %v3452 = vunpack.c.h.s8.bf16 %v2930
    %v3453 = vunpack.c.h.s8.bf16 %v2931
    %v3454 = vunpack.c.h.s8.bf16 %v2932
    %v3455 = vunpack.c.h.s8.bf16 %v2933
    %v3456 = vunpack.c.h.s8.bf16 %v2934
    %v3457 = vunpack.c.h.s8.bf16 %v2935
    %v3458 = vunpack.c.h.s8.bf16 %v2936
    %v3459 = vunpack.c.h.s8.bf16 %v2937
    %v3460 = vunpack.c.h.s8.bf16 %v2938
    %v3461 = vunpack.c.h.s8.bf16 %v2939
    %v3462 = vunpack.c.l.s8.bf16 %v2940
    %v3463 = vunpack.c.l.s8.bf16 %v2941
    %v3464 = vunpack.c.l.s8.bf16 %v2942
    %v3465 = vunpack.c.l.s8.bf16 %v2943
    %v3466 = vunpack.c.l.s8.bf16 %v2944
    %v3467 = vunpack.c.l.s8.bf16 %v2945
    %v3468 = vunpack.c.l.s8.bf16 %v2946
    %v3469 = vunpack.c.l.s8.bf16 %v2947
    %v3470 = vunpack.c.l.s8.bf16 %v2948
    %v3471 = vunpack.c.l.s8.bf16 %v2949
    %v3472 = vunpack.c.l.s8.bf16 %v2950
    %v3473 = vunpack.c.l.s8.bf16 %v2951
    %v3474 = vunpack.c.l.s8.bf16 %v2952
    %v3475 = vunpack.c.l.s8.bf16 %v2953
    %v3476 = vunpack.c.l.s8.bf16 %v2954
    %v3477 = vunpack.c.l.s8.bf16 %v2955
    %v3478 = vunpack.c.l.s8.bf16 %v2956
    %v3479 = vunpack.c.l.s8.bf16 %v2957
    %v3480 = vunpack.c.h.s8.bf16 %v2940
    %v3481 = vunpack.c.h.s8.bf16 %v2941
    %v3482 = vunpack.c.h.s8.bf16 %v2942
    %v3483 = vunpack.c.h.s8.bf16 %v2943
    %v3484 = vunpack.c.h.s8.bf16 %v2944
    %v3485 = vunpack.c.h.s8.bf16 %v2945
    %v3486 = vunpack.c.h.s8.bf16 %v2946
    %v3487 = vunpack.c.h.s8.bf16 %v2947
    %v3488 = vunpack.c.h.s8.bf16 %v2948
    %v3489 = vunpack.c.h.s8.bf16 %v2949
    %v3490 = vunpack.c.h.s8.bf16 %v2950
    %v3491 = vunpack.c.h.s8.bf16 %v2951
    %v3492 = vunpack.c.h.s8.bf16 %v2952
    %v3493 = vunpack.c.h.s8.bf16 %v2953
    %v3494 = vunpack.c.h.s8.bf16 %v2954
    %v3495 = vunpack.c.h.s8.bf16 %v2955
    %v3496 = vunpack.c.h.s8.bf16 %v2956
    %v3497 = vunpack.c.h.s8.bf16 %v2957
    %v3498 = vunpack.c.l.s8.bf16 %v2958
    %v3499 = vunpack.c.l.s8.bf16 %v2959
    %v3500 = vunpack.c.l.s8.bf16 %v2960
    %v3501 = vunpack.c.l.s8.bf16 %v2961
    %v3502 = vunpack.c.l.s8.bf16 %v2962
    %v3503 = vunpack.c.l.s8.bf16 %v2963
    %v3504 = vunpack.c.l.s8.bf16 %v2964
    %v3505 = vunpack.c.l.s8.bf16 %v2965
    %v3506 = vunpack.c.l.s8.bf16 %v2966
    %v3507 = vunpack.c.l.s8.bf16 %v2967
    %v3508 = vunpack.c.l.s8.bf16 %v2968
    %v3509 = vunpack.c.l.s8.bf16 %v2969
    %v3510 = vunpack.c.l.s8.bf16 %v2970
    %v3511 = vunpack.c.l.s8.bf16 %v2971
    %v3512 = vunpack.c.l.s8.bf16 %v2972
    %v3513 = vunpack.c.l.s8.bf16 %v2973
    %v3514 = vunpack.c.l.s8.bf16 %v2974
    %v3515 = vunpack.c.l.s8.bf16 %v2975
    %v3516 = vunpack.c.h.s8.bf16 %v2958
    %v3517 = vunpack.c.h.s8.bf16 %v2959
    %v3518 = vunpack.c.h.s8.bf16 %v2960
    %v3519 = vunpack.c.h.s8.bf16 %v2961
    %v3520 = vunpack.c.h.s8.bf16 %v2962
    %v3521 = vunpack.c.h.s8.bf16 %v2963
    %v3522 = vunpack.c.h.s8.bf16 %v2964
    %v3523 = vunpack.c.h.s8.bf16 %v2965
    %v3524 = vunpack.c.h.s8.bf16 %v2966
    %v3525 = vunpack.c.h.s8.bf16 %v2967
    %v3526 = vunpack.c.h.s8.bf16 %v2968
    %v3527 = vunpack.c.h.s8.bf16 %v2969
    %v3528 = vunpack.c.h.s8.bf16 %v2970
    %v3529 = vunpack.c.h.s8.bf16 %v2971
    %v3530 = vunpack.c.h.s8.bf16 %v2972
    %v3531 = vunpack.c.h.s8.bf16 %v2973
    %v3532 = vunpack.c.h.s8.bf16 %v2974
    %v3533 = vunpack.c.h.s8.bf16 %v2975
    %v3534 = vunpack.c.l.s8.bf16 %v2976
    %v3535 = vunpack.c.l.s8.bf16 %v2977
    %v3536 = vunpack.c.l.s8.bf16 %v2978
    %v3537 = vunpack.c.l.s8.bf16 %v2979
    %v3538 = vunpack.c.l.s8.bf16 %v2980
    %v3539 = vunpack.c.l.s8.bf16 %v2981
    %v3540 = vunpack.c.l.s8.bf16 %v2982
    %v3541 = vunpack.c.l.s8.bf16 %v2983
    %v3542 = vunpack.c.l.s8.bf16 %v2984
    %v3543 = vunpack.c.l.s8.bf16 %v2985
    %v3544 = vunpack.c.l.s8.bf16 %v2986
    %v3545 = vunpack.c.l.s8.bf16 %v2987
    %v3546 = vunpack.c.l.s8.bf16 %v2988
    %v3547 = vunpack.c.l.s8.bf16 %v2989
    %v3548 = vunpack.c.l.s8.bf16 %v2990
    %v3549 = vunpack.c.l.s8.bf16 %v2991
    %v3550 = vunpack.c.l.s8.bf16 %v2992
    %v3551 = vunpack.c.l.s8.bf16 %v2993
    %v3552 = vunpack.c.h.s8.bf16 %v2976
    %v3553 = vunpack.c.h.s8.bf16 %v2977
    %v3554 = vunpack.c.h.s8.bf16 %v2978
    %v3555 = vunpack.c.h.s8.bf16 %v2979
    %v3556 = vunpack.c.h.s8.bf16 %v2980
    %v3557 = vunpack.c.h.s8.bf16 %v2981
    %v3558 = vunpack.c.h.s8.bf16 %v2982
    %v3559 = vunpack.c.h.s8.bf16 %v2983
    %v3560 = vunpack.c.h.s8.bf16 %v2984
    %v3561 = vunpack.c.h.s8.bf16 %v2985
    %v3562 = vunpack.c.h.s8.bf16 %v2986
    %v3563 = vunpack.c.h.s8.bf16 %v2987
    %v3564 = vunpack.c.h.s8.bf16 %v2988
    %v3565 = vunpack.c.h.s8.bf16 %v2989
    %v3566 = vunpack.c.h.s8.bf16 %v2990
    %v3567 = vunpack.c.h.s8.bf16 %v2991
    %v3568 = vunpack.c.h.s8.bf16 %v2992
    %v3569 = vunpack.c.h.s8.bf16 %v2993
    %v3570 = vunpack.c.l.s8.bf16 %v2994
    %v3571 = vunpack.c.l.s8.bf16 %v2995
    %v3572 = vunpack.c.l.s8.bf16 %v2996
    %v3573 = vunpack.c.l.s8.bf16 %v2997
    %v3574 = vunpack.c.l.s8.bf16 %v2998
    %v3575 = vunpack.c.l.s8.bf16 %v2999
    %v3576 = vunpack.c.l.s8.bf16 %v3000
    %v3577 = vunpack.c.l.s8.bf16 %v3001
    %v3578 = vunpack.c.l.s8.bf16 %v3002
    %v3579 = vunpack.c.l.s8.bf16 %v3003
    %v3580 = vunpack.c.l.s8.bf16 %v3004
    %v3581 = vunpack.c.l.s8.bf16 %v3005
    %v3582 = vunpack.c.l.s8.bf16 %v3006
    %v3583 = vunpack.c.l.s8.bf16 %v3007
    %v3584 = vunpack.c.l.s8.bf16 %v3008
    %v3585 = vunpack.c.l.s8.bf16 %v3009
    %v3586 = vunpack.c.l.s8.bf16 %v3010
    %v3587 = vunpack.c.l.s8.bf16 %v3011
    %v3588 = vunpack.c.h.s8.bf16 %v2994
    %v3589 = vunpack.c.h.s8.bf16 %v2995
    %v3590 = vunpack.c.h.s8.bf16 %v2996
    %v3591 = vunpack.c.h.s8.bf16 %v2997
    %v3592 = vunpack.c.h.s8.bf16 %v2998
    %v3593 = vunpack.c.h.s8.bf16 %v2999
    %v3594 = vunpack.c.h.s8.bf16 %v3000
    %v3595 = vunpack.c.h.s8.bf16 %v3001
    %v3596 = vunpack.c.h.s8.bf16 %v3002
    %v3597 = vunpack.c.h.s8.bf16 %v3003
    %v3598 = vunpack.c.h.s8.bf16 %v3004
    %v3599 = vunpack.c.h.s8.bf16 %v3005
    %v3600 = vunpack.c.h.s8.bf16 %v3006
    %v3601 = vunpack.c.h.s8.bf16 %v3007
    %v3602 = vunpack.c.h.s8.bf16 %v3008
    %v3603 = vunpack.c.h.s8.bf16 %v3009
    %v3604 = vunpack.c.h.s8.bf16 %v3010
    %v3605 = vunpack.c.h.s8.bf16 %v3011
    %v3606 = vunpack.c.l.s8.bf16 %v3012
    %v3607 = vunpack.c.l.s8.bf16 %v3013
    %v3608 = vunpack.c.l.s8.bf16 %v3014
    %v3609 = vunpack.c.l.s8.bf16 %v3015
    %v3610 = vunpack.c.l.s8.bf16 %v3016
    %v3611 = vunpack.c.l.s8.bf16 %v3017
    %v3612 = vunpack.c.l.s8.bf16 %v3018
    %v3613 = vunpack.c.l.s8.bf16 %v3019
    %v3614 = vunpack.c.l.s8.bf16 %v3020
    %v3615 = vunpack.c.l.s8.bf16 %v3021
    %v3616 = vunpack.c.l.s8.bf16 %v3022
    %v3617 = vunpack.c.l.s8.bf16 %v3023
    %v3618 = vunpack.c.l.s8.bf16 %v3024
    %v3619 = vunpack.c.l.s8.bf16 %v3025
    %v3620 = vunpack.c.l.s8.bf16 %v3026
    %v3621 = vunpack.c.l.s8.bf16 %v3027
    %v3622 = vunpack.c.l.s8.bf16 %v3028
    %v3623 = vunpack.c.l.s8.bf16 %v3029
    %v3624 = vunpack.c.h.s8.bf16 %v3012
    %v3625 = vunpack.c.h.s8.bf16 %v3013
    %v3626 = vunpack.c.h.s8.bf16 %v3014
    %v3627 = vunpack.c.h.s8.bf16 %v3015
    %v3628 = vunpack.c.h.s8.bf16 %v3016
    %v3629 = vunpack.c.h.s8.bf16 %v3017
    %v3630 = vunpack.c.h.s8.bf16 %v3018
    %v3631 = vunpack.c.h.s8.bf16 %v3019
    %v3632 = vunpack.c.h.s8.bf16 %v3020
    %v3633 = vunpack.c.h.s8.bf16 %v3021
    %v3634 = vunpack.c.h.s8.bf16 %v3022
    %v3635 = vunpack.c.h.s8.bf16 %v3023
    %v3636 = vunpack.c.h.s8.bf16 %v3024
    %v3637 = vunpack.c.h.s8.bf16 %v3025
    %v3638 = vunpack.c.h.s8.bf16 %v3026
    %v3639 = vunpack.c.h.s8.bf16 %v3027
    %v3640 = vunpack.c.h.s8.bf16 %v3028
    %v3641 = vunpack.c.h.s8.bf16 %v3029
    %v3642 = vunpack.c.l.s8.bf16 %v3030
    %v3643 = vunpack.c.l.s8.bf16 %v3031
    %v3644 = vunpack.c.l.s8.bf16 %v3032
    %v3645 = vunpack.c.l.s8.bf16 %v3033
    %v3646 = vunpack.c.l.s8.bf16 %v3034
    %v3647 = vunpack.c.l.s8.bf16 %v3035
    %v3648 = vunpack.c.l.s8.bf16 %v3036
    %v3649 = vunpack.c.l.s8.bf16 %v3037
    %v3650 = vunpack.c.l.s8.bf16 %v3038
    %v3651 = vunpack.c.l.s8.bf16 %v3039
    %v3652 = vunpack.c.l.s8.bf16 %v3040
    %v3653 = vunpack.c.l.s8.bf16 %v3041
    %v3654 = vunpack.c.l.s8.bf16 %v3042
    %v3655 = vunpack.c.l.s8.bf16 %v3043
    %v3656 = vunpack.c.l.s8.bf16 %v3044
    %v3657 = vunpack.c.l.s8.bf16 %v3045
    %v3658 = vunpack.c.l.s8.bf16 %v3046
    %v3659 = vunpack.c.l.s8.bf16 %v3047
    %v3660 = vunpack.c.h.s8.bf16 %v3030
    %v3661 = vunpack.c.h.s8.bf16 %v3031
    %v3662 = vunpack.c.h.s8.bf16 %v3032
    %v3663 = vunpack.c.h.s8.bf16 %v3033
    %v3664 = vunpack.c.h.s8.bf16 %v3034
    %v3665 = vunpack.c.h.s8.bf16 %v3035
    %v3666 = vunpack.c.h.s8.bf16 %v3036
    %v3667 = vunpack.c.h.s8.bf16 %v3037
    %v3668 = vunpack.c.h.s8.bf16 %v3038
    %v3669 = vunpack.c.h.s8.bf16 %v3039
    %v3670 = vunpack.c.h.s8.bf16 %v3040
    %v3671 = vunpack.c.h.s8.bf16 %v3041
    %v3672 = vunpack.c.h.s8.bf16 %v3042
    %v3673 = vunpack.c.h.s8.bf16 %v3043
    %v3674 = vunpack.c.h.s8.bf16 %v3044
    %v3675 = vunpack.c.h.s8.bf16 %v3045
    %v3676 = vunpack.c.h.s8.bf16 %v3046
    %v3677 = vunpack.c.h.s8.bf16 %v3047
    %v3678 = vunpack.c.l.s8.bf16 %v3048
    %v3679 = vunpack.c.l.s8.bf16 %v3049
    %v3680 = vunpack.c.l.s8.bf16 %v3050
    %v3681 = vunpack.c.l.s8.bf16 %v3051
    %v3682 = vunpack.c.l.s8.bf16 %v3052
    %v3683 = vunpack.c.l.s8.bf16 %v3053
    %v3684 = vunpack.c.l.s8.bf16 %v3054
    %v3685 = vunpack.c.l.s8.bf16 %v3055
    %v3686 = vunpack.c.l.s8.bf16 %v3056
    %v3687 = vunpack.c.l.s8.bf16 %v3057
    %v3688 = vunpack.c.l.s8.bf16 %v3058
    %v3689 = vunpack.c.l.s8.bf16 %v3059
    %v3690 = vunpack.c.l.s8.bf16 %v3060
    %v3691 = vunpack.c.l.s8.bf16 %v3061
    %v3692 = vunpack.c.l.s8.bf16 %v3062
    %v3693 = vunpack.c.l.s8.bf16 %v3063
    %v3694 = vunpack.c.l.s8.bf16 %v3064
    %v3695 = vunpack.c.l.s8.bf16 %v3065
    %v3696 = vunpack.c.h.s8.bf16 %v3048
    %v3697 = vunpack.c.h.s8.bf16 %v3049
    %v3698 = vunpack.c.h.s8.bf16 %v3050
    %v3699 = vunpack.c.h.s8.bf16 %v3051
    %v3700 = vunpack.c.h.s8.bf16 %v3052
    %v3701 = vunpack.c.h.s8.bf16 %v3053
    %v3702 = vunpack.c.h.s8.bf16 %v3054
    %v3703 = vunpack.c.h.s8.bf16 %v3055
    %v3704 = vunpack.c.h.s8.bf16 %v3056
    %v3705 = vunpack.c.h.s8.bf16 %v3057
    %v3706 = vunpack.c.h.s8.bf16 %v3058
    %v3707 = vunpack.c.h.s8.bf16 %v3059
    %v3708 = vunpack.c.h.s8.bf16 %v3060
    %v3709 = vunpack.c.h.s8.bf16 %v3061
    %v3710 = vunpack.c.h.s8.bf16 %v3062
    %v3711 = vunpack.c.h.s8.bf16 %v3063
    %v3712 = vunpack.c.h.s8.bf16 %v3064
    %v3713 = vunpack.c.h.s8.bf16 %v3065
    %v3714 = vunpack.c.l.s8.bf16 %v3066
    %v3715 = vunpack.c.l.s8.bf16 %v3067
    %v3716 = vunpack.c.l.s8.bf16 %v3068
    %v3717 = vunpack.c.l.s8.bf16 %v3069
    %v3718 = vunpack.c.l.s8.bf16 %v3070
    %v3719 = vunpack.c.l.s8.bf16 %v3071
    %v3720 = vunpack.c.l.s8.bf16 %v3072
    %v3721 = vunpack.c.l.s8.bf16 %v3073
    %v3722 = vunpack.c.l.s8.bf16 %v3074
    %v3723 = vunpack.c.l.s8.bf16 %v3075
    %v3724 = vunpack.c.l.s8.bf16 %v3076
    %v3725 = vunpack.c.l.s8.bf16 %v3077
    %v3726 = vunpack.c.l.s8.bf16 %v3078
    %v3727 = vunpack.c.l.s8.bf16 %v3079
    %v3728 = vunpack.c.l.s8.bf16 %v3080
    %v3729 = vunpack.c.l.s8.bf16 %v3081
    %v3730 = vunpack.c.l.s8.bf16 %v3082
    %v3731 = vunpack.c.l.s8.bf16 %v3083
    %v3732 = vunpack.c.h.s8.bf16 %v3066
    %v3733 = vunpack.c.h.s8.bf16 %v3067
    %v3734 = vunpack.c.h.s8.bf16 %v3068
    %v3735 = vunpack.c.h.s8.bf16 %v3069
    %v3736 = vunpack.c.h.s8.bf16 %v3070
    %v3737 = vunpack.c.h.s8.bf16 %v3071
    %v3738 = vunpack.c.h.s8.bf16 %v3072
    %v3739 = vunpack.c.h.s8.bf16 %v3073
    %v3740 = vunpack.c.h.s8.bf16 %v3074
    %v3741 = vunpack.c.h.s8.bf16 %v3075
    %v3742 = vunpack.c.h.s8.bf16 %v3076
    %v3743 = vunpack.c.h.s8.bf16 %v3077
    %v3744 = vunpack.c.h.s8.bf16 %v3078
    %v3745 = vunpack.c.h.s8.bf16 %v3079
    %v3746 = vunpack.c.h.s8.bf16 %v3080
    %v3747 = vunpack.c.h.s8.bf16 %v3081
    %v3748 = vunpack.c.h.s8.bf16 %v3082
    %v3749 = vunpack.c.h.s8.bf16 %v3083
    %v3750 = vunpack.c.l.s8.bf16 %v3084
    %v3751 = vunpack.c.l.s8.bf16 %v3085
    %v3752 = vunpack.c.l.s8.bf16 %v3086
    %v3753 = vunpack.c.l.s8.bf16 %v3087
    %v3754 = vunpack.c.l.s8.bf16 %v3088
    %v3755 = vunpack.c.l.s8.bf16 %v3089
    %v3756 = vunpack.c.l.s8.bf16 %v3090
    %v3757 = vunpack.c.l.s8.bf16 %v3091
    %v3758 = vunpack.c.l.s8.bf16 %v3092
    %v3759 = vunpack.c.l.s8.bf16 %v3093
    %v3760 = vunpack.c.l.s8.bf16 %v3094
    %v3761 = vunpack.c.l.s8.bf16 %v3095
    %v3762 = vunpack.c.l.s8.bf16 %v3096
    %v3763 = vunpack.c.l.s8.bf16 %v3097
    %v3764 = vunpack.c.l.s8.bf16 %v3098
    %v3765 = vunpack.c.l.s8.bf16 %v3099
    %v3766 = vunpack.c.l.s8.bf16 %v3100
    %v3767 = vunpack.c.l.s8.bf16 %v3101
    %v3768 = vunpack.c.h.s8.bf16 %v3084
    %v3769 = vunpack.c.h.s8.bf16 %v3085
    %v3770 = vunpack.c.h.s8.bf16 %v3086
    %v3771 = vunpack.c.h.s8.bf16 %v3087
    %v3772 = vunpack.c.h.s8.bf16 %v3088
    %v3773 = vunpack.c.h.s8.bf16 %v3089
    %v3774 = vunpack.c.h.s8.bf16 %v3090
    %v3775 = vunpack.c.h.s8.bf16 %v3091
    %v3776 = vunpack.c.h.s8.bf16 %v3092
    %v3777 = vunpack.c.h.s8.bf16 %v3093
    %v3778 = vunpack.c.h.s8.bf16 %v3094
    %v3779 = vunpack.c.h.s8.bf16 %v3095
    %v3780 = vunpack.c.h.s8.bf16 %v3096
    %v3781 = vunpack.c.h.s8.bf16 %v3097
    %v3782 = vunpack.c.h.s8.bf16 %v3098
    %v3783 = vunpack.c.h.s8.bf16 %v3099
    %v3784 = vunpack.c.h.s8.bf16 %v3100
    %v3785 = vunpack.c.h.s8.bf16 %v3101
    %v3786 = vunpack.c.l.s8.bf16 %v3102
    %v3787 = vunpack.c.l.s8.bf16 %v3103
    %v3788 = vunpack.c.l.s8.bf16 %v3104
    %v3789 = vunpack.c.l.s8.bf16 %v3105
    %v3790 = vunpack.c.l.s8.bf16 %v3106
    %v3791 = vunpack.c.l.s8.bf16 %v3107
    %v3792 = vunpack.c.l.s8.bf16 %v3108
    %v3793 = vunpack.c.l.s8.bf16 %v3109
    %v3794 = vunpack.c.l.s8.bf16 %v3110
    %v3795 = vunpack.c.l.s8.bf16 %v3111
    %v3796 = vunpack.c.l.s8.bf16 %v3112
    %v3797 = vunpack.c.l.s8.bf16 %v3113
    %v3798 = vunpack.c.l.s8.bf16 %v3114
    %v3799 = vunpack.c.l.s8.bf16 %v3115
    %v3800 = vunpack.c.l.s8.bf16 %v3116
    %v3801 = vunpack.c.l.s8.bf16 %v3117
    %v3802 = vunpack.c.l.s8.bf16 %v3118
    %v3803 = vunpack.c.l.s8.bf16 %v3119
    %v3804 = vunpack.c.h.s8.bf16 %v3102
    %v3805 = vunpack.c.h.s8.bf16 %v3103
    %v3806 = vunpack.c.h.s8.bf16 %v3104
    %v3807 = vunpack.c.h.s8.bf16 %v3105
    %v3808 = vunpack.c.h.s8.bf16 %v3106
    %v3809 = vunpack.c.h.s8.bf16 %v3107
    %v3810 = vunpack.c.h.s8.bf16 %v3108
    %v3811 = vunpack.c.h.s8.bf16 %v3109
    %v3812 = vunpack.c.h.s8.bf16 %v3110
    %v3813 = vunpack.c.h.s8.bf16 %v3111
    %v3814 = vunpack.c.h.s8.bf16 %v3112
    %v3815 = vunpack.c.h.s8.bf16 %v3113
    %v3816 = vunpack.c.h.s8.bf16 %v3114
    %v3817 = vunpack.c.h.s8.bf16 %v3115
    %v3818 = vunpack.c.h.s8.bf16 %v3116
    %v3819 = vunpack.c.h.s8.bf16 %v3117
    %v3820 = vunpack.c.h.s8.bf16 %v3118
    %v3821 = vunpack.c.h.s8.bf16 %v3119
    %v3822 = vunpack.c.l.s8.bf16 %v3120
    %v3823 = vunpack.c.l.s8.bf16 %v3121
    %v3824 = vunpack.c.l.s8.bf16 %v3122
    %v3825 = vunpack.c.l.s8.bf16 %v3123
    %v3826 = vunpack.c.l.s8.bf16 %v3124
    %v3827 = vunpack.c.l.s8.bf16 %v3125
    %v3828 = vunpack.c.l.s8.bf16 %v3126
    %v3829 = vunpack.c.l.s8.bf16 %v3127
    %v3830 = vunpack.c.l.s8.bf16 %v3128
    %v3831 = vunpack.c.l.s8.bf16 %v3129
    %v3832 = vunpack.c.l.s8.bf16 %v3130
    %v3833 = vunpack.c.l.s8.bf16 %v3131
    %v3834 = vunpack.c.l.s8.bf16 %v3132
    %v3835 = vunpack.c.l.s8.bf16 %v3133
    %v3836 = vunpack.c.l.s8.bf16 %v3134
    %v3837 = vunpack.c.l.s8.bf16 %v3135
    %v3838 = vunpack.c.l.s8.bf16 %v3136
    %v3839 = vunpack.c.l.s8.bf16 %v3137
    %v3840 = vunpack.c.h.s8.bf16 %v3120
    %v3841 = vunpack.c.h.s8.bf16 %v3121
    %v3842 = vunpack.c.h.s8.bf16 %v3122
    %v3843 = vunpack.c.h.s8.bf16 %v3123
    %v3844 = vunpack.c.h.s8.bf16 %v3124
    %v3845 = vunpack.c.h.s8.bf16 %v3125
    %v3846 = vunpack.c.h.s8.bf16 %v3126
    %v3847 = vunpack.c.h.s8.bf16 %v3127
    %v3848 = vunpack.c.h.s8.bf16 %v3128
    %v3849 = vunpack.c.h.s8.bf16 %v3129
    %v3850 = vunpack.c.h.s8.bf16 %v3130
    %v3851 = vunpack.c.h.s8.bf16 %v3131
    %v3852 = vunpack.c.h.s8.bf16 %v3132
    %v3853 = vunpack.c.h.s8.bf16 %v3133
    %v3854 = vunpack.c.h.s8.bf16 %v3134
    %v3855 = vunpack.c.h.s8.bf16 %v3135
    %v3856 = vunpack.c.h.s8.bf16 %v3136
    %v3857 = vunpack.c.h.s8.bf16 %v3137
    %v3858 = vunpack.c.l.s8.bf16 %v3138
    %v3859 = vunpack.c.l.s8.bf16 %v3139
    %v3860 = vunpack.c.l.s8.bf16 %v3140
    %v3861 = vunpack.c.l.s8.bf16 %v3141
    %v3862 = vunpack.c.l.s8.bf16 %v3142
    %v3863 = vunpack.c.l.s8.bf16 %v3143
    %v3864 = vunpack.c.l.s8.bf16 %v3144
    %v3865 = vunpack.c.l.s8.bf16 %v3145
    %v3866 = vunpack.c.l.s8.bf16 %v3146
    %v3867 = vunpack.c.l.s8.bf16 %v3147
    %v3868 = vunpack.c.l.s8.bf16 %v3148
    %v3869 = vunpack.c.l.s8.bf16 %v3149
    %v3870 = vunpack.c.l.s8.bf16 %v3150
    %v3871 = vunpack.c.l.s8.bf16 %v3151
    %v3872 = vunpack.c.l.s8.bf16 %v3152
    %v3873 = vunpack.c.l.s8.bf16 %v3153
    %v3874 = vunpack.c.l.s8.bf16 %v3154
    %v3875 = vunpack.c.l.s8.bf16 %v3155
    %v3876 = vunpack.c.h.s8.bf16 %v3138
    %v3877 = vunpack.c.h.s8.bf16 %v3139
    %v3878 = vunpack.c.h.s8.bf16 %v3140
    %v3879 = vunpack.c.h.s8.bf16 %v3141
    %v3880 = vunpack.c.h.s8.bf16 %v3142
    %v3881 = vunpack.c.h.s8.bf16 %v3143
    %v3882 = vunpack.c.h.s8.bf16 %v3144
    %v3883 = vunpack.c.h.s8.bf16 %v3145
    %v3884 = vunpack.c.h.s8.bf16 %v3146
    %v3885 = vunpack.c.h.s8.bf16 %v3147
    %v3886 = vunpack.c.h.s8.bf16 %v3148
    %v3887 = vunpack.c.h.s8.bf16 %v3149
    %v3888 = vunpack.c.h.s8.bf16 %v3150
    %v3889 = vunpack.c.h.s8.bf16 %v3151
    %v3890 = vunpack.c.h.s8.bf16 %v3152
    %v3891 = vunpack.c.h.s8.bf16 %v3153
    %v3892 = vunpack.c.h.s8.bf16 %v3154
    %v3893 = vunpack.c.h.s8.bf16 %v3155
    %v3894 = vunpack.c.l.s8.bf16 %v3156
    %v3895 = vunpack.c.l.s8.bf16 %v3157
    %v3896 = vunpack.c.l.s8.bf16 %v3158
    %v3897 = vunpack.c.l.s8.bf16 %v3159
    %v3898 = vunpack.c.l.s8.bf16 %v3160
    %v3899 = vunpack.c.l.s8.bf16 %v3161
    %v3900 = vunpack.c.l.s8.bf16 %v3162
    %v3901 = vunpack.c.l.s8.bf16 %v3163
    %v3902 = vunpack.c.l.s8.bf16 %v3164
    %v3903 = vunpack.c.l.s8.bf16 %v3165
    %v3904 = vunpack.c.l.s8.bf16 %v3166
    %v3905 = vunpack.c.l.s8.bf16 %v3167
    %v3906 = vunpack.c.l.s8.bf16 %v3168
    %v3907 = vunpack.c.l.s8.bf16 %v3169
    %v3908 = vunpack.c.l.s8.bf16 %v3170
    %v3909 = vunpack.c.l.s8.bf16 %v3171
    %v3910 = vunpack.c.l.s8.bf16 %v3172
    %v3911 = vunpack.c.l.s8.bf16 %v3173
    %v3912 = vunpack.c.h.s8.bf16 %v3156
    %v3913 = vunpack.c.h.s8.bf16 %v3157
    %v3914 = vunpack.c.h.s8.bf16 %v3158
    %v3915 = vunpack.c.h.s8.bf16 %v3159
    %v3916 = vunpack.c.h.s8.bf16 %v3160
    %v3917 = vunpack.c.h.s8.bf16 %v3161
    %v3918 = vunpack.c.h.s8.bf16 %v3162
    %v3919 = vunpack.c.h.s8.bf16 %v3163
    %v3920 = vunpack.c.h.s8.bf16 %v3164
    %v3921 = vunpack.c.h.s8.bf16 %v3165
    %v3922 = vunpack.c.h.s8.bf16 %v3166
    %v3923 = vunpack.c.h.s8.bf16 %v3167
    %v3924 = vunpack.c.h.s8.bf16 %v3168
    %v3925 = vunpack.c.h.s8.bf16 %v3169
    %v3926 = vunpack.c.h.s8.bf16 %v3170
    %v3927 = vunpack.c.h.s8.bf16 %v3171
    %v3928 = vunpack.c.h.s8.bf16 %v3172
    %v3929 = vunpack.c.h.s8.bf16 %v3173
    %v3930 = vunpack.c.l.s8.bf16 %v3174
    %v3931 = vunpack.c.l.s8.bf16 %v3175
    %v3932 = vunpack.c.l.s8.bf16 %v3176
    %v3933 = vunpack.c.l.s8.bf16 %v3177
    %v3934 = vunpack.c.l.s8.bf16 %v3178
    %v3935 = vunpack.c.l.s8.bf16 %v3179
    %v3936 = vunpack.c.l.s8.bf16 %v3180
    %v3937 = vunpack.c.l.s8.bf16 %v3181
    %v3938 = vunpack.c.l.s8.bf16 %v3182
    %v3939 = vunpack.c.l.s8.bf16 %v3183
    %v3940 = vunpack.c.l.s8.bf16 %v3184
    %v3941 = vunpack.c.l.s8.bf16 %v3185
    %v3942 = vunpack.c.l.s8.bf16 %v3186
    %v3943 = vunpack.c.l.s8.bf16 %v3187
    %v3944 = vunpack.c.l.s8.bf16 %v3188
    %v3945 = vunpack.c.l.s8.bf16 %v3189
    %v3946 = vunpack.c.l.s8.bf16 %v3190
    %v3947 = vunpack.c.l.s8.bf16 %v3191
    %v3948 = vunpack.c.h.s8.bf16 %v3174
    %v3949 = vunpack.c.h.s8.bf16 %v3175
    %v3950 = vunpack.c.h.s8.bf16 %v3176
    %v3951 = vunpack.c.h.s8.bf16 %v3177
    %v3952 = vunpack.c.h.s8.bf16 %v3178
    %v3953 = vunpack.c.h.s8.bf16 %v3179
    %v3954 = vunpack.c.h.s8.bf16 %v3180
    %v3955 = vunpack.c.h.s8.bf16 %v3181
    %v3956 = vunpack.c.h.s8.bf16 %v3182
    %v3957 = vunpack.c.h.s8.bf16 %v3183
    %v3958 = vunpack.c.h.s8.bf16 %v3184
    %v3959 = vunpack.c.h.s8.bf16 %v3185
    %v3960 = vunpack.c.h.s8.bf16 %v3186
    %v3961 = vunpack.c.h.s8.bf16 %v3187
    %v3962 = vunpack.c.h.s8.bf16 %v3188
    %v3963 = vunpack.c.h.s8.bf16 %v3189
    %v3964 = vunpack.c.h.s8.bf16 %v3190
    %v3965 = vunpack.c.h.s8.bf16 %v3191
    %v3966 = vunpack.c.l.s8.bf16 %v3192
    %v3967 = vunpack.c.l.s8.bf16 %v3193
    %v3968 = vunpack.c.l.s8.bf16 %v3194
    %v3969 = vunpack.c.l.s8.bf16 %v3195
    %v3970 = vunpack.c.l.s8.bf16 %v3196
    %v3971 = vunpack.c.l.s8.bf16 %v3197
    %v3972 = vunpack.c.l.s8.bf16 %v3198
    %v3973 = vunpack.c.l.s8.bf16 %v3199
    %v3974 = vunpack.c.l.s8.bf16 %v3200
    %v3975 = vunpack.c.l.s8.bf16 %v3201
    %v3976 = vunpack.c.l.s8.bf16 %v3202
    %v3977 = vunpack.c.l.s8.bf16 %v3203
    %v3978 = vunpack.c.l.s8.bf16 %v3204
    %v3979 = vunpack.c.l.s8.bf16 %v3205
    %v3980 = vunpack.c.l.s8.bf16 %v3206
    %v3981 = vunpack.c.l.s8.bf16 %v3207
    %v3982 = vunpack.c.l.s8.bf16 %v3208
    %v3983 = vunpack.c.l.s8.bf16 %v3209
    %v3984 = vunpack.c.h.s8.bf16 %v3192
    %v3985 = vunpack.c.h.s8.bf16 %v3193
    %v3986 = vunpack.c.h.s8.bf16 %v3194
    %v3987 = vunpack.c.h.s8.bf16 %v3195
    %v3988 = vunpack.c.h.s8.bf16 %v3196
    %v3989 = vunpack.c.h.s8.bf16 %v3197
    %v3990 = vunpack.c.h.s8.bf16 %v3198
    %v3991 = vunpack.c.h.s8.bf16 %v3199
    %v3992 = vunpack.c.h.s8.bf16 %v3200
    %v3993 = vunpack.c.h.s8.bf16 %v3201
    %v3994 = vunpack.c.h.s8.bf16 %v3202
    %v3995 = vunpack.c.h.s8.bf16 %v3203
    %v3996 = vunpack.c.h.s8.bf16 %v3204
    %v3997 = vunpack.c.h.s8.bf16 %v3205
    %v3998 = vunpack.c.h.s8.bf16 %v3206
    %v3999 = vunpack.c.h.s8.bf16 %v3207
    %v4000 = vunpack.c.h.s8.bf16 %v3208
    %v4001 = vunpack.c.h.s8.bf16 %v3209
    %v4002 = vunpack.c.l.s8.bf16 %v3210
    %v4003 = vunpack.c.l.s8.bf16 %v3211
    %v4004 = vunpack.c.l.s8.bf16 %v3212
    %v4005 = vunpack.c.l.s8.bf16 %v3213
    %v4006 = vunpack.c.l.s8.bf16 %v3214
    %v4007 = vunpack.c.l.s8.bf16 %v3215
    %v4008 = vunpack.c.l.s8.bf16 %v3216
    %v4009 = vunpack.c.l.s8.bf16 %v3217
    %v4010 = vunpack.c.l.s8.bf16 %v3218
    %v4011 = vunpack.c.l.s8.bf16 %v3219
    %v4012 = vunpack.c.l.s8.bf16 %v3220
    %v4013 = vunpack.c.l.s8.bf16 %v3221
    %v4014 = vunpack.c.l.s8.bf16 %v3222
    %v4015 = vunpack.c.l.s8.bf16 %v3223
    %v4016 = vunpack.c.l.s8.bf16 %v3224
    %v4017 = vunpack.c.l.s8.bf16 %v3225
    %v4018 = vunpack.c.l.s8.bf16 %v3226
    %v4019 = vunpack.c.l.s8.bf16 %v3227
    %v4020 = vunpack.c.h.s8.bf16 %v3210
    %v4021 = vunpack.c.h.s8.bf16 %v3211
    %v4022 = vunpack.c.h.s8.bf16 %v3212
    %v4023 = vunpack.c.h.s8.bf16 %v3213
    %v4024 = vunpack.c.h.s8.bf16 %v3214
    %v4025 = vunpack.c.h.s8.bf16 %v3215
    %v4026 = vunpack.c.h.s8.bf16 %v3216
    %v4027 = vunpack.c.h.s8.bf16 %v3217
    %v4028 = vunpack.c.h.s8.bf16 %v3218
    %v4029 = vunpack.c.h.s8.bf16 %v3219
    %v4030 = vunpack.c.h.s8.bf16 %v3220
    %v4031 = vunpack.c.h.s8.bf16 %v3221
    %v4032 = vunpack.c.h.s8.bf16 %v3222
    %v4033 = vunpack.c.h.s8.bf16 %v3223
    %v4034 = vunpack.c.h.s8.bf16 %v3224
    %v4035 = vunpack.c.h.s8.bf16 %v3225
    %v4036 = vunpack.c.h.s8.bf16 %v3226
    %v4037 = vunpack.c.h.s8.bf16 %v3227
    %v4038 = vunpack.c.l.s8.bf16 %v3228
    %v4039 = vunpack.c.l.s8.bf16 %v3229
    %v4040 = vunpack.c.l.s8.bf16 %v3230
    %v4041 = vunpack.c.l.s8.bf16 %v3231
    %v4042 = vunpack.c.l.s8.bf16 %v3232
    %v4043 = vunpack.c.l.s8.bf16 %v3233
    %v4044 = vunpack.c.l.s8.bf16 %v3234
    %v4045 = vunpack.c.l.s8.bf16 %v3235
    %v4046 = vunpack.c.l.s8.bf16 %v3236
    %v4047 = vunpack.c.l.s8.bf16 %v3237
    %v4048 = vunpack.c.l.s8.bf16 %v3238
    %v4049 = vunpack.c.l.s8.bf16 %v3239
    %v4050 = vunpack.c.l.s8.bf16 %v3240
    %v4051 = vunpack.c.l.s8.bf16 %v3241
    %v4052 = vunpack.c.l.s8.bf16 %v3242
    %v4053 = vunpack.c.l.s8.bf16 %v3243
    %v4054 = vunpack.c.l.s8.bf16 %v3244
    %v4055 = vunpack.c.l.s8.bf16 %v3245
    %v4056 = vunpack.c.h.s8.bf16 %v3228
    %v4057 = vunpack.c.h.s8.bf16 %v3229
    %v4058 = vunpack.c.h.s8.bf16 %v3230
    %v4059 = vunpack.c.h.s8.bf16 %v3231
    %v4060 = vunpack.c.h.s8.bf16 %v3232
    %v4061 = vunpack.c.h.s8.bf16 %v3233
    %v4062 = vunpack.c.h.s8.bf16 %v3234
    %v4063 = vunpack.c.h.s8.bf16 %v3235
    %v4064 = vunpack.c.h.s8.bf16 %v3236
    %v4065 = vunpack.c.h.s8.bf16 %v3237
    %v4066 = vunpack.c.h.s8.bf16 %v3238
    %v4067 = vunpack.c.h.s8.bf16 %v3239
    %v4068 = vunpack.c.h.s8.bf16 %v3240
    %v4069 = vunpack.c.h.s8.bf16 %v3241
    %v4070 = vunpack.c.h.s8.bf16 %v3242
    %v4071 = vunpack.c.h.s8.bf16 %v3243
    %v4072 = vunpack.c.h.s8.bf16 %v3244
    %v4073 = vunpack.c.h.s8.bf16 %v3245
    %v4074 = vunpack.c.l.s8.bf16 %v3246
    %v4075 = vunpack.c.l.s8.bf16 %v3247
    %v4076 = vunpack.c.l.s8.bf16 %v3248
    %v4077 = vunpack.c.l.s8.bf16 %v3249
    %v4078 = vunpack.c.l.s8.bf16 %v3250
    %v4079 = vunpack.c.l.s8.bf16 %v3251
    %v4080 = vunpack.c.l.s8.bf16 %v3252
    %v4081 = vunpack.c.l.s8.bf16 %v3253
    %v4082 = vunpack.c.l.s8.bf16 %v3254
    %v4083 = vunpack.c.l.s8.bf16 %v3255
    %v4084 = vunpack.c.l.s8.bf16 %v3256
    %v4085 = vunpack.c.l.s8.bf16 %v3257
    %v4086 = vunpack.c.l.s8.bf16 %v3258
    %v4087 = vunpack.c.l.s8.bf16 %v3259
    %v4088 = vunpack.c.l.s8.bf16 %v3260
    %v4089 = vunpack.c.l.s8.bf16 %v3261
    %v4090 = vunpack.c.l.s8.bf16 %v3262
    %v4091 = vunpack.c.l.s8.bf16 %v3263
    %v4092 = vunpack.c.h.s8.bf16 %v3246
    %v4093 = vunpack.c.h.s8.bf16 %v3247
    %v4094 = vunpack.c.h.s8.bf16 %v3248
    %v4095 = vunpack.c.h.s8.bf16 %v3249
    %v4096 = vunpack.c.h.s8.bf16 %v3250
    %v4097 = vunpack.c.h.s8.bf16 %v3251
    %v4098 = vunpack.c.h.s8.bf16 %v3252
    %v4099 = vunpack.c.h.s8.bf16 %v3253
    %v4100 = vunpack.c.h.s8.bf16 %v3254
    %v4101 = vunpack.c.h.s8.bf16 %v3255
    %v4102 = vunpack.c.h.s8.bf16 %v3256
    %v4103 = vunpack.c.h.s8.bf16 %v3257
    %v4104 = vunpack.c.h.s8.bf16 %v3258
    %v4105 = vunpack.c.h.s8.bf16 %v3259
    %v4106 = vunpack.c.h.s8.bf16 %v3260
    %v4107 = vunpack.c.h.s8.bf16 %v3261
    %v4108 = vunpack.c.h.s8.bf16 %v3262
    %v4109 = vunpack.c.h.s8.bf16 %v3263
    %v4110 = vunpack.c.l.s8.bf16 %v3264
    %v4111 = vunpack.c.l.s8.bf16 %v3265
    %v4112 = vunpack.c.l.s8.bf16 %v3266
    %v4113 = vunpack.c.l.s8.bf16 %v3267
    %v4114 = vunpack.c.l.s8.bf16 %v3268
    %v4115 = vunpack.c.l.s8.bf16 %v3269
    %v4116 = vunpack.c.l.s8.bf16 %v3270
    %v4117 = vunpack.c.l.s8.bf16 %v3271
    %v4118 = vunpack.c.l.s8.bf16 %v3272
    %v4119 = vunpack.c.l.s8.bf16 %v3273
    %v4120 = vunpack.c.l.s8.bf16 %v3274
    %v4121 = vunpack.c.l.s8.bf16 %v3275
    %v4122 = vunpack.c.l.s8.bf16 %v3276
    %v4123 = vunpack.c.l.s8.bf16 %v3277
    %v4124 = vunpack.c.l.s8.bf16 %v3278
    %v4125 = vunpack.c.l.s8.bf16 %v3279
    %v4126 = vunpack.c.l.s8.bf16 %v3280
    %v4127 = vunpack.c.l.s8.bf16 %v3281
    %v4128 = vunpack.c.h.s8.bf16 %v3264
    %v4129 = vunpack.c.h.s8.bf16 %v3265
    %v4130 = vunpack.c.h.s8.bf16 %v3266
    %v4131 = vunpack.c.h.s8.bf16 %v3267
    %v4132 = vunpack.c.h.s8.bf16 %v3268
    %v4133 = vunpack.c.h.s8.bf16 %v3269
    %v4134 = vunpack.c.h.s8.bf16 %v3270
    %v4135 = vunpack.c.h.s8.bf16 %v3271
    %v4136 = vunpack.c.h.s8.bf16 %v3272
    %v4137 = vunpack.c.h.s8.bf16 %v3273
    %v4138 = vunpack.c.h.s8.bf16 %v3274
    %v4139 = vunpack.c.h.s8.bf16 %v3275
    %v4140 = vunpack.c.h.s8.bf16 %v3276
    %v4141 = vunpack.c.h.s8.bf16 %v3277
    %v4142 = vunpack.c.h.s8.bf16 %v3278
    %v4143 = vunpack.c.h.s8.bf16 %v3279
    %v4144 = vunpack.c.h.s8.bf16 %v3280
    %v4145 = vunpack.c.h.s8.bf16 %v3281
    %4146 = vmatprep.subr.bf16.mxu0 %v3283
    %4147 = vmatpush1.bf16.msra.mxu0 %v3282
    %4148 = vmatprep.subr.bf16.mxu0 %v3301
    %4149 = vmatpush1.bf16.msra.mxu0 %v3300
    %4150 = vmatprep.subr.bf16.mxu0 %v3319
    %4151 = vmatpush1.bf16.msra.mxu0 %v3318
    %4152 = vmatprep.subr.bf16.mxu0 %v3337
    %4153 = vmatpush1.bf16.msra.mxu0 %v3336
    %4154 = vmatprep.subr.bf16.mxu0 %v3355
    %4155 = vmatpush1.bf16.msra.mxu0 %v3354
    %4156 = vmatprep.subr.bf16.mxu0 %v3373
    %4157 = vmatpush1.bf16.msra.mxu0 %v3372
    %4158 = vmatprep.subr.bf16.mxu0 %v3391
    %4159 = vmatpush1.bf16.msra.mxu0 %v3390
    %4160 = vmatprep.subr.bf16.mxu0 %v3409
    %4161 = vmatpush1.bf16.msra.mxu0 %v3408
    %4162 = vmatprep.subr.bf16.mxu0 %v3427
    %4163 = vmatpush1.bf16.msra.mxu0 %v3426
    %4164 = vmatprep.subr.bf16.mxu0 %v3445
    %4165 = vmatpush1.bf16.msra.mxu0 %v3444
    %4166 = vmatprep.subr.bf16.mxu0 %v3463
    %4167 = vmatpush1.bf16.msra.mxu0 %v3462
    %4168 = vmatprep.subr.bf16.mxu0 %v3481
    %4169 = vmatpush1.bf16.msra.mxu0 %v3480
    %4170 = vmatprep.subr.bf16.mxu0 %v3499
    %4171 = vmatpush1.bf16.msra.mxu0 %v3498
    %4172 = vmatprep.subr.bf16.mxu0 %v3517
    %4173 = vmatpush1.bf16.msra.mxu0 %v3516
    %4174 = vmatprep.subr.bf16.mxu0 %v3535
    %4175 = vmatpush1.bf16.msra.mxu0 %v3534
    %4176 = vmatprep.subr.bf16.mxu0 %v3553
    %4177 = vmatpush1.bf16.msra.mxu0 %v3552
    %4178 = vmatprep.mubr.bf16.mxu0 %v2845
    %4179 = vmatmul.mubr.bf16.gmra.mrb[0].mxu0 %v2844
    %v4180 = vpop.f32.mrb[0].mxu0
    %v4181 = vadd.f32 0.0, %v4180
    %v4182 = vpop.f32.mrb[0].mxu0
    %v4183 = vadd.f32 0.0, %v4182
    %v4184 = vpop.f32.mrb[0].mxu0
    %v4185 = vpop.f32.mrb[0].mxu0
    %4186 = vdwg.mxu0
    %4187 = vmatprep.subr.bf16.mxu0 %v3571
    %4188 = vmatpush1.bf16.msra.mxu0 %v3570
    %4189 = vmatprep.subr.bf16.mxu0 %v3589
    %4190 = vmatpush1.bf16.msra.mxu0 %v3588
    %4191 = vmatprep.subr.bf16.mxu0 %v3607
    %4192 = vmatpush1.bf16.msra.mxu0 %v3606
    %4193 = vmatprep.subr.bf16.mxu0 %v3625
    %4194 = vmatpush1.bf16.msra.mxu0 %v3624
    %4195 = vmatprep.subr.bf16.mxu0 %v3643
    %4196 = vmatpush1.bf16.msra.mxu0 %v3642
    %4197 = vmatprep.subr.bf16.mxu0 %v3661
    %4198 = vmatpush1.bf16.msra.mxu0 %v3660
    %4199 = vmatprep.subr.bf16.mxu0 %v3679
    %4200 = vmatpush1.bf16.msra.mxu0 %v3678
    %4201 = vmatprep.subr.bf16.mxu0 %v3697
    %4202 = vmatpush1.bf16.msra.mxu0 %v3696
    %4203 = vmatprep.subr.bf16.mxu0 %v3715
    %4204 = vmatpush1.bf16.msra.mxu0 %v3714
    %4205 = vmatprep.subr.bf16.mxu0 %v3733
    %4206 = vmatpush1.bf16.msra.mxu0 %v3732
    %4207 = vmatprep.subr.bf16.mxu0 %v3751
    %4208 = vmatpush1.bf16.msra.mxu0 %v3750
    %4209 = vmatprep.subr.bf16.mxu0 %v3769
    %4210 = vmatpush1.bf16.msra.mxu0 %v3768
    %4211 = vmatprep.subr.bf16.mxu0 %v3787
    %4212 = vmatpush1.bf16.msra.mxu0 %v3786
    %4213 = vmatprep.subr.bf16.mxu0 %v3805
    %4214 = vmatpush1.bf16.msra.mxu0 %v3804
    %4215 = vmatprep.subr.bf16.mxu0 %v3823
    %4216 = vmatpush1.bf16.msra.mxu0 %v3822
    %4217 = vmatprep.subr.bf16.mxu0 %v3841
    %4218 = vmatpush1.bf16.msra.mxu0 %v3840
    %4219 = vmatprep.mubr.bf16.mxu0 %v2847
    %4220 = vmatmul.mubr.bf16.gmra.mrb[0].mxu0 %v2846
    %v4221 = vpop.f32.mrb[0].mxu0
    %v4222 = vadd.f32 %v4181, %v4221
    %v4223 = vpop.f32.mrb[0].mxu0
    %v4224 = vadd.f32 %v4183, %v4223
    %v4225 = vpop.f32.mrb[0].mxu0
    %v4226 = vpop.f32.mrb[0].mxu0
    %4227 = vdwg.mxu0
    %4228 = vmatprep.subr.bf16.mxu0 %v3859
    %4229 = vmatpush1.bf16.msra.mxu0 %v3858
    %4230 = vmatprep.subr.bf16.mxu0 %v3877
    %4231 = vmatpush1.bf16.msra.mxu0 %v3876
    %4232 = vmatprep.subr.bf16.mxu0 %v3895
    %4233 = vmatpush1.bf16.msra.mxu0 %v3894
    %4234 = vmatprep.subr.bf16.mxu0 %v3913
    %4235 = vmatpush1.bf16.msra.mxu0 %v3912
    %4236 = vmatprep.subr.bf16.mxu0 %v3931
    %4237 = vmatpush1.bf16.msra.mxu0 %v3930
    %4238 = vmatprep.subr.bf16.mxu0 %v3949
    %4239 = vmatpush1.bf16.msra.mxu0 %v3948
    %4240 = vmatprep.subr.bf16.mxu0 %v3967
    %4241 = vmatpush1.bf16.msra.mxu0 %v3966
    %4242 = vmatprep.subr.bf16.mxu0 %v3985
    %4243 = vmatpush1.bf16.msra.mxu0 %v3984
    %4244 = vmatprep.subr.bf16.mxu0 %v4003
    %4245 = vmatpush1.bf16.msra.mxu0 %v4002
    %4246 = vmatprep.subr.bf16.mxu0 %v4021
    %4247 = vmatpush1.bf16.msra.mxu0 %v4020
    %4248 = vmatprep.subr.bf16.mxu0 %v4039
    %4249 = vmatpush1.bf16.msra.mxu0 %v4038
    %4250 = vmatprep.subr.bf16.mxu0 %v4057
    %4251 = vmatpush1.bf16.msra.mxu0 %v4056
    %4252 = vmatprep.subr.bf16.mxu0 %v4075
    %4253 = vmatpush1.bf16.msra.mxu0 %v4074
    %4254 = vmatprep.subr.bf16.mxu0 %v4093
    %4255 = vmatpush1.bf16.msra.mxu0 %v4092
    %4256 = vmatprep.subr.bf16.mxu0 %v4111
    %4257 = vmatpush1.bf16.msra.mxu0 %v4110
    %4258 = vmatprep.subr.bf16.mxu0 %v4129
    %4259 = vmatpush1.bf16.msra.mxu0 %v4128
    %4260 = vmatprep.mubr.bf16.mxu0 %v2849
    %4261 = vmatmul.mubr.bf16.gmra.mrb[0].mxu0 %v2848
    %v4262 = vpop.f32.mrb[0].mxu0
    %v4263 = vadd.f32 %v4222, %v4262
    %v4264 = vpop.f32.mrb[0].mxu0
    %v4265 = vadd.f32 %v4224, %v4264
    %v4266 = vpop.f32.mrb[0].mxu0
    %v4267 = vpop.f32.mrb[0].mxu0
    %4268 = vdwg.mxu0
    %4269 = vmatprep.subr.bf16.mxu0 %v3285
    %4270 = vmatpush1.bf16.msra.mxu0 %v3284
    %4271 = vmatprep.subr.bf16.mxu0 %v3303
    %4272 = vmatpush1.bf16.msra.mxu0 %v3302
    %4273 = vmatprep.subr.bf16.mxu0 %v3321
    %4274 = vmatpush1.bf16.msra.mxu0 %v3320
    %4275 = vmatprep.subr.bf16.mxu0 %v3339
    %4276 = vmatpush1.bf16.msra.mxu0 %v3338
    %4277 = vmatprep.subr.bf16.mxu0 %v3357
    %4278 = vmatpush1.bf16.msra.mxu0 %v3356
    %4279 = vmatprep.subr.bf16.mxu0 %v3375
    %4280 = vmatpush1.bf16.msra.mxu0 %v3374
    %4281 = vmatprep.subr.bf16.mxu0 %v3393
    %4282 = vmatpush1.bf16.msra.mxu0 %v3392
    %4283 = vmatprep.subr.bf16.mxu0 %v3411
    %4284 = vmatpush1.bf16.msra.mxu0 %v3410
    %4285 = vmatprep.subr.bf16.mxu0 %v3429
    %4286 = vmatpush1.bf16.msra.mxu0 %v3428
    %4287 = vmatprep.subr.bf16.mxu0 %v3447
    %4288 = vmatpush1.bf16.msra.mxu0 %v3446
    %4289 = vmatprep.subr.bf16.mxu0 %v3465
    %4290 = vmatpush1.bf16.msra.mxu0 %v3464
    %4291 = vmatprep.subr.bf16.mxu0 %v3483
    %4292 = vmatpush1.bf16.msra.mxu0 %v3482
    %4293 = vmatprep.subr.bf16.mxu0 %v3501
    %4294 = vmatpush1.bf16.msra.mxu0 %v3500
    %4295 = vmatprep.subr.bf16.mxu0 %v3519
    %4296 = vmatpush1.bf16.msra.mxu0 %v3518
    %4297 = vmatprep.subr.bf16.mxu0 %v3537
    %4298 = vmatpush1.bf16.msra.mxu0 %v3536
    %4299 = vmatprep.subr.bf16.mxu0 %v3555
    %4300 = vmatpush1.bf16.msra.mxu0 %v3554
    %4301 = vmatprep.mubr.bf16.mxu0 %v2845
    %4302 = vmatmul.mubr.bf16.gmra.mrb[0].mxu0 %v2844
    %v4303 = vpop.f32.mrb[0].mxu0
    %v4304 = vadd.f32 0.0, %v4303
    %v4305 = vpop.f32.mrb[0].mxu0
    %v4306 = vadd.f32 0.0, %v4305
    %v4307 = vpop.f32.mrb[0].mxu0
    %v4308 = vpop.f32.mrb[0].mxu0
    %4309 = vdwg.mxu0
    %4310 = vmatprep.subr.bf16.mxu0 %v3573
    %4311 = vmatpush1.bf16.msra.mxu0 %v3572
    %4312 = vmatprep.subr.bf16.mxu0 %v3591
    %4313 = vmatpush1.bf16.msra.mxu0 %v3590
    %4314 = vmatprep.subr.bf16.mxu0 %v3609
    %4315 = vmatpush1.bf16.msra.mxu0 %v3608
    %4316 = vmatprep.subr.bf16.mxu0 %v3627
    %4317 = vmatpush1.bf16.msra.mxu0 %v3626
    %4318 = vmatprep.subr.bf16.mxu0 %v3645
    %4319 = vmatpush1.bf16.msra.mxu0 %v3644
    %4320 = vmatprep.subr.bf16.mxu0 %v3663
    %4321 = vmatpush1.bf16.msra.mxu0 %v3662
    %4322 = vmatprep.subr.bf16.mxu0 %v3681
    %4323 = vmatpush1.bf16.msra.mxu0 %v3680
    %4324 = vmatprep.subr.bf16.mxu0 %v3699
    %4325 = vmatpush1.bf16.msra.mxu0 %v3698
    %4326 = vmatprep.subr.bf16.mxu0 %v3717
    %4327 = vmatpush1.bf16.msra.mxu0 %v3716
    %4328 = vmatprep.subr.bf16.mxu0 %v3735
    %4329 = vmatpush1.bf16.msra.mxu0 %v3734
    %4330 = vmatprep.subr.bf16.mxu0 %v3753
    %4331 = vmatpush1.bf16.msra.mxu0 %v3752
    %4332 = vmatprep.subr.bf16.mxu0 %v3771
    %4333 = vmatpush1.bf16.msra.mxu0 %v3770
    %4334 = vmatprep.subr.bf16.mxu0 %v3789
    %4335 = vmatpush1.bf16.msra.mxu0 %v3788
    %4336 = vmatprep.subr.bf16.mxu0 %v3807
    %4337 = vmatpush1.bf16.msra.mxu0 %v3806
    %4338 = vmatprep.subr.bf16.mxu0 %v3825
    %4339 = vmatpush1.bf16.msra.mxu0 %v3824
    %4340 = vmatprep.subr.bf16.mxu0 %v3843
    %4341 = vmatpush1.bf16.msra.mxu0 %v3842
    %4342 = vmatprep.mubr.bf16.mxu0 %v2847
    %4343 = vmatmul.mubr.bf16.gmra.mrb[0].mxu0 %v2846
    %v4344 = vpop.f32.mrb[0].mxu0
    %v4345 = vadd.f32 %v4304, %v4344
    %v4346 = vpop.f32.mrb[0].mxu0
    %v4347 = vadd.f32 %v4306, %v4346
    %v4348 = vpop.f32.mrb[0].mxu0
    %v4349 = vpop.f32.mrb[0].mxu0
    %4350 = vdwg.mxu0
    %4351 = vmatprep.subr.bf16.mxu0 %v3861
    %4352 = vmatpush1.bf16.msra.mxu0 %v3860
    %4353 = vmatprep.subr.bf16.mxu0 %v3879
    %4354 = vmatpush1.bf16.msra.mxu0 %v3878
    %4355 = vmatprep.subr.bf16.mxu0 %v3897
    %4356 = vmatpush1.bf16.msra.mxu0 %v3896
    %4357 = vmatprep.subr.bf16.mxu0 %v3915
    %4358 = vmatpush1.bf16.msra.mxu0 %v3914
    %4359 = vmatprep.subr.bf16.mxu0 %v3933
    %4360 = vmatpush1.bf16.msra.mxu0 %v3932
    %4361 = vmatprep.subr.bf16.mxu0 %v3951
    %4362 = vmatpush1.bf16.msra.mxu0 %v3950
    %4363 = vmatprep.subr.bf16.mxu0 %v3969
    %4364 = vmatpush1.bf16.msra.mxu0 %v3968
    %4365 = vmatprep.subr.bf16.mxu0 %v3987
    %4366 = vmatpush1.bf16.msra.mxu0 %v3986
    %4367 = vmatprep.subr.bf16.mxu0 %v4005
    %4368 = vmatpush1.bf16.msra.mxu0 %v4004
    %4369 = vmatprep.subr.bf16.mxu0 %v4023
    %4370 = vmatpush1.bf16.msra.mxu0 %v4022
    %4371 = vmatprep.subr.bf16.mxu0 %v4041
    %4372 = vmatpush1.bf16.msra.mxu0 %v4040
    %4373 = vmatprep.subr.bf16.mxu0 %v4059
    %4374 = vmatpush1.bf16.msra.mxu0 %v4058
    %4375 = vmatprep.subr.bf16.mxu0 %v4077
    %4376 = vmatpush1.bf16.msra.mxu0 %v4076
    %4377 = vmatprep.subr.bf16.mxu0 %v4095
    %4378 = vmatpush1.bf16.msra.mxu0 %v4094
    %4379 = vmatprep.subr.bf16.mxu0 %v4113
    %4380 = vmatpush1.bf16.msra.mxu0 %v4112
    %4381 = vmatprep.subr.bf16.mxu0 %v4131
    %4382 = vmatpush1.bf16.msra.mxu0 %v4130
    %4383 = vmatprep.mubr.bf16.mxu0 %v2849
    %4384 = vmatmul.mubr.bf16.gmra.mrb[0].mxu0 %v2848
    %v4385 = vpop.f32.mrb[0].mxu0
    %v4386 = vadd.f32 %v4345, %v4385
    %v4387 = vpop.f32.mrb[0].mxu0
    %v4388 = vadd.f32 %v4347, %v4387
    %v4389 = vpop.f32.mrb[0].mxu0
    %v4390 = vpop.f32.mrb[0].mxu0
    %4391 = vdwg.mxu0
    %4392 = vmatprep.subr.bf16.mxu0 %v3287
    %4393 = vmatpush1.bf16.msra.mxu0 %v3286
    %4394 = vmatprep.subr.bf16.mxu0 %v3305
    %4395 = vmatpush1.bf16.msra.mxu0 %v3304
    %4396 = vmatprep.subr.bf16.mxu0 %v3323
    %4397 = vmatpush1.bf16.msra.mxu0 %v3322
    %4398 = vmatprep.subr.bf16.mxu0 %v3341
    %4399 = vmatpush1.bf16.msra.mxu0 %v3340
    %4400 = vmatprep.subr.bf16.mxu0 %v3359
    %4401 = vmatpush1.bf16.msra.mxu0 %v3358
    %4402 = vmatprep.subr.bf16.mxu0 %v3377
    %4403 = vmatpush1.bf16.msra.mxu0 %v3376
    %4404 = vmatprep.subr.bf16.mxu0 %v3395
    %4405 = vmatpush1.bf16.msra.mxu0 %v3394
    %4406 = vmatprep.subr.bf16.mxu0 %v3413
    %4407 = vmatpush1.bf16.msra.mxu0 %v3412
    %4408 = vmatprep.subr.bf16.mxu0 %v3431
    %4409 = vmatpush1.bf16.msra.mxu0 %v3430
    %4410 = vmatprep.subr.bf16.mxu0 %v3449
    %4411 = vmatpush1.bf16.msra.mxu0 %v3448
    %4412 = vmatprep.subr.bf16.mxu0 %v3467
    %4413 = vmatpush1.bf16.msra.mxu0 %v3466
    %4414 = vmatprep.subr.bf16.mxu0 %v3485
    %4415 = vmatpush1.bf16.msra.mxu0 %v3484
    %4416 = vmatprep.subr.bf16.mxu0 %v3503
    %4417 = vmatpush1.bf16.msra.mxu0 %v3502
    %4418 = vmatprep.subr.bf16.mxu0 %v3521
    %4419 = vmatpush1.bf16.msra.mxu0 %v3520
    %4420 = vmatprep.subr.bf16.mxu0 %v3539
    %4421 = vmatpush1.bf16.msra.mxu0 %v3538
    %4422 = vmatprep.subr.bf16.mxu0 %v3557
    %4423 = vmatpush1.bf16.msra.mxu0 %v3556
    %4424 = vmatprep.mubr.bf16.mxu0 %v2845
    %4425 = vmatmul.mubr.bf16.gmra.mrb[0].mxu0 %v2844
    %v4426 = vpop.f32.mrb[0].mxu0
    %v4427 = vadd.f32 0.0, %v4426
    %v4428 = vpop.f32.mrb[0].mxu0
    %v4429 = vadd.f32 0.0, %v4428
    %v4430 = vpop.f32.mrb[0].mxu0
    %v4431 = vpop.f32.mrb[0].mxu0
    %4432 = vdwg.mxu0
    %4433 = vmatprep.subr.bf16.mxu0 %v3575
    %4434 = vmatpush1.bf16.msra.mxu0 %v3574
    %4435 = vmatprep.subr.bf16.mxu0 %v3593
    %4436 = vmatpush1.bf16.msra.mxu0 %v3592
    %4437 = vmatprep.subr.bf16.mxu0 %v3611
    %4438 = vmatpush1.bf16.msra.mxu0 %v3610
    %4439 = vmatprep.subr.bf16.mxu0 %v3629
    %4440 = vmatpush1.bf16.msra.mxu0 %v3628
    %4441 = vmatprep.subr.bf16.mxu0 %v3647
    %4442 = vmatpush1.bf16.msra.mxu0 %v3646
    %4443 = vmatprep.subr.bf16.mxu0 %v3665
    %4444 = vmatpush1.bf16.msra.mxu0 %v3664
    %4445 = vmatprep.subr.bf16.mxu0 %v3683
    %4446 = vmatpush1.bf16.msra.mxu0 %v3682
    %4447 = vmatprep.subr.bf16.mxu0 %v3701
    %4448 = vmatpush1.bf16.msra.mxu0 %v3700
    %4449 = vmatprep.subr.bf16.mxu0 %v3719
    %4450 = vmatpush1.bf16.msra.mxu0 %v3718
    %4451 = vmatprep.subr.bf16.mxu0 %v3737
    %4452 = vmatpush1.bf16.msra.mxu0 %v3736
    %4453 = vmatprep.subr.bf16.mxu0 %v3755
    %4454 = vmatpush1.bf16.msra.mxu0 %v3754
    %4455 = vmatprep.subr.bf16.mxu0 %v3773
    %4456 = vmatpush1.bf16.msra.mxu0 %v3772
    %4457 = vmatprep.subr.bf16.mxu0 %v3791
    %4458 = vmatpush1.bf16.msra.mxu0 %v3790
    %4459 = vmatprep.subr.bf16.mxu0 %v3809
    %4460 = vmatpush1.bf16.msra.mxu0 %v3808
    %4461 = vmatprep.subr.bf16.mxu0 %v3827
    %4462 = vmatpush1.bf16.msra.mxu0 %v3826
    %4463 = vmatprep.subr.bf16.mxu0 %v3845
    %4464 = vmatpush1.bf16.msra.mxu0 %v3844
    %4465 = vmatprep.mubr.bf16.mxu0 %v2847
    %4466 = vmatmul.mubr.bf16.gmra.mrb[0].mxu0 %v2846
    %v4467 = vpop.f32.mrb[0].mxu0
    %v4468 = vadd.f32 %v4427, %v4467
    %v4469 = vpop.f32.mrb[0].mxu0
    %v4470 = vadd.f32 %v4429, %v4469
    %v4471 = vpop.f32.mrb[0].mxu0
    %v4472 = vpop.f32.mrb[0].mxu0
    %4473 = vdwg.mxu0
    %4474 = vmatprep.subr.bf16.mxu0 %v3863
    %4475 = vmatpush1.bf16.msra.mxu0 %v3862
    %4476 = vmatprep.subr.bf16.mxu0 %v3881
    %4477 = vmatpush1.bf16.msra.mxu0 %v3880
    %4478 = vmatprep.subr.bf16.mxu0 %v3899
    %4479 = vmatpush1.bf16.msra.mxu0 %v3898
    %4480 = vmatprep.subr.bf16.mxu0 %v3917
    %4481 = vmatpush1.bf16.msra.mxu0 %v3916
    %4482 = vmatprep.subr.bf16.mxu0 %v3935
    %4483 = vmatpush1.bf16.msra.mxu0 %v3934
    %4484 = vmatprep.subr.bf16.mxu0 %v3953
    %4485 = vmatpush1.bf16.msra.mxu0 %v3952
    %4486 = vmatprep.subr.bf16.mxu0 %v3971
    %4487 = vmatpush1.bf16.msra.mxu0 %v3970
    %4488 = vmatprep.subr.bf16.mxu0 %v3989
    %4489 = vmatpush1.bf16.msra.mxu0 %v3988
    %4490 = vmatprep.subr.bf16.mxu0 %v4007
    %4491 = vmatpush1.bf16.msra.mxu0 %v4006
    %4492 = vmatprep.subr.bf16.mxu0 %v4025
    %4493 = vmatpush1.bf16.msra.mxu0 %v4024
    %4494 = vmatprep.subr.bf16.mxu0 %v4043
    %4495 = vmatpush1.bf16.msra.mxu0 %v4042
    %4496 = vmatprep.subr.bf16.mxu0 %v4061
    %4497 = vmatpush1.bf16.msra.mxu0 %v4060
    %4498 = vmatprep.subr.bf16.mxu0 %v4079
    %4499 = vmatpush1.bf16.msra.mxu0 %v4078
    %4500 = vmatprep.subr.bf16.mxu0 %v4097
    %4501 = vmatpush1.bf16.msra.mxu0 %v4096
    %4502 = vmatprep.subr.bf16.mxu0 %v4115
    %4503 = vmatpush1.bf16.msra.mxu0 %v4114
    %4504 = vmatprep.subr.bf16.mxu0 %v4133
    %4505 = vmatpush1.bf16.msra.mxu0 %v4132
    %4506 = vmatprep.mubr.bf16.mxu0 %v2849
    %4507 = vmatmul.mubr.bf16.gmra.mrb[0].mxu0 %v2848
    %v4508 = vpop.f32.mrb[0].mxu0
    %v4509 = vadd.f32 %v4468, %v4508
    %v4510 = vpop.f32.mrb[0].mxu0
    %v4511 = vadd.f32 %v4470, %v4510
    %v4512 = vpop.f32.mrb[0].mxu0
    %v4513 = vpop.f32.mrb[0].mxu0
    %4514 = vdwg.mxu0
    %4515 = vmatprep.subr.bf16.mxu0 %v3289
    %4516 = vmatpush1.bf16.msra.mxu0 %v3288
    %4517 = vmatprep.subr.bf16.mxu0 %v3307
    %4518 = vmatpush1.bf16.msra.mxu0 %v3306
    %4519 = vmatprep.subr.bf16.mxu0 %v3325
    %4520 = vmatpush1.bf16.msra.mxu0 %v3324
    %4521 = vmatprep.subr.bf16.mxu0 %v3343
    %4522 = vmatpush1.bf16.msra.mxu0 %v3342
    %4523 = vmatprep.subr.bf16.mxu0 %v3361
    %4524 = vmatpush1.bf16.msra.mxu0 %v3360
    %4525 = vmatprep.subr.bf16.mxu0 %v3379
    %4526 = vmatpush1.bf16.msra.mxu0 %v3378
    %4527 = vmatprep.subr.bf16.mxu0 %v3397
    %4528 = vmatpush1.bf16.msra.mxu0 %v3396
    %4529 = vmatprep.subr.bf16.mxu0 %v3415
    %4530 = vmatpush1.bf16.msra.mxu0 %v3414
    %4531 = vmatprep.subr.bf16.mxu0 %v3433
    %4532 = vmatpush1.bf16.msra.mxu0 %v3432
    %4533 = vmatprep.subr.bf16.mxu0 %v3451
    %4534 = vmatpush1.bf16.msra.mxu0 %v3450
    %4535 = vmatprep.subr.bf16.mxu0 %v3469
    %4536 = vmatpush1.bf16.msra.mxu0 %v3468
    %4537 = vmatprep.subr.bf16.mxu0 %v3487
    %4538 = vmatpush1.bf16.msra.mxu0 %v3486
    %4539 = vmatprep.subr.bf16.mxu0 %v3505
    %4540 = vmatpush1.bf16.msra.mxu0 %v3504
    %4541 = vmatprep.subr.bf16.mxu0 %v3523
    %4542 = vmatpush1.bf16.msra.mxu0 %v3522
    %4543 = vmatprep.subr.bf16.mxu0 %v3541
    %4544 = vmatpush1.bf16.msra.mxu0 %v3540
    %4545 = vmatprep.subr.bf16.mxu0 %v3559
    %4546 = vmatpush1.bf16.msra.mxu0 %v3558
    %4547 = vmatprep.mubr.bf16.mxu0 %v2845
    %4548 = vmatmul.mubr.bf16.gmra.mrb[0].mxu0 %v2844
    %v4549 = vpop.f32.mrb[0].mxu0
    %v4550 = vadd.f32 0.0, %v4549
    %v4551 = vpop.f32.mrb[0].mxu0
    %v4552 = vadd.f32 0.0, %v4551
    %v4553 = vpop.f32.mrb[0].mxu0
    %v4554 = vpop.f32.mrb[0].mxu0
    %4555 = vdwg.mxu0
    %4556 = vmatprep.subr.bf16.mxu0 %v3577
    %4557 = vmatpush1.bf16.msra.mxu0 %v3576
    %4558 = vmatprep.subr.bf16.mxu0 %v3595
    %4559 = vmatpush1.bf16.msra.mxu0 %v3594
    %4560 = vmatprep.subr.bf16.mxu0 %v3613
    %4561 = vmatpush1.bf16.msra.mxu0 %v3612
    %4562 = vmatprep.subr.bf16.mxu0 %v3631
    %4563 = vmatpush1.bf16.msra.mxu0 %v3630
    %4564 = vmatprep.subr.bf16.mxu0 %v3649
    %4565 = vmatpush1.bf16.msra.mxu0 %v3648
    %4566 = vmatprep.subr.bf16.mxu0 %v3667
    %4567 = vmatpush1.bf16.msra.mxu0 %v3666
    %4568 = vmatprep.subr.bf16.mxu0 %v3685
    %4569 = vmatpush1.bf16.msra.mxu0 %v3684
    %4570 = vmatprep.subr.bf16.mxu0 %v3703
    %4571 = vmatpush1.bf16.msra.mxu0 %v3702
    %4572 = vmatprep.subr.bf16.mxu0 %v3721
    %4573 = vmatpush1.bf16.msra.mxu0 %v3720
    %4574 = vmatprep.subr.bf16.mxu0 %v3739
    %4575 = vmatpush1.bf16.msra.mxu0 %v3738
    %4576 = vmatprep.subr.bf16.mxu0 %v3757
    %4577 = vmatpush1.bf16.msra.mxu0 %v3756
    %4578 = vmatprep.subr.bf16.mxu0 %v3775
    %4579 = vmatpush1.bf16.msra.mxu0 %v3774
    %4580 = vmatprep.subr.bf16.mxu0 %v3793
    %4581 = vmatpush1.bf16.msra.mxu0 %v3792
    %4582 = vmatprep.subr.bf16.mxu0 %v3811
    %4583 = vmatpush1.bf16.msra.mxu0 %v3810
    %4584 = vmatprep.subr.bf16.mxu0 %v3829
    %4585 = vmatpush1.bf16.msra.mxu0 %v3828
    %4586 = vmatprep.subr.bf16.mxu0 %v3847
    %4587 = vmatpush1.bf16.msra.mxu0 %v3846
    %4588 = vmatprep.mubr.bf16.mxu0 %v2847
    %4589 = vmatmul.mubr.bf16.gmra.mrb[0].mxu0 %v2846
    %v4590 = vpop.f32.mrb[0].mxu0
    %v4591 = vadd.f32 %v4550, %v4590
    %v4592 = vpop.f32.mrb[0].mxu0
    %v4593 = vadd.f32 %v4552, %v4592
    %v4594 = vpop.f32.mrb[0].mxu0
    %v4595 = vpop.f32.mrb[0].mxu0
    %4596 = vdwg.mxu0
    %4597 = vmatprep.subr.bf16.mxu0 %v3865
    %4598 = vmatpush1.bf16.msra.mxu0 %v3864
    %4599 = vmatprep.subr.bf16.mxu0 %v3883
    %4600 = vmatpush1.bf16.msra.mxu0 %v3882
    %4601 = vmatprep.subr.bf16.mxu0 %v3901
    %4602 = vmatpush1.bf16.msra.mxu0 %v3900
    %4603 = vmatprep.subr.bf16.mxu0 %v3919
    %4604 = vmatpush1.bf16.msra.mxu0 %v3918
    %4605 = vmatprep.subr.bf16.mxu0 %v3937
    %4606 = vmatpush1.bf16.msra.mxu0 %v3936
    %4607 = vmatprep.subr.bf16.mxu0 %v3955
    %4608 = vmatpush1.bf16.msra.mxu0 %v3954
    %4609 = vmatprep.subr.bf16.mxu0 %v3973
    %4610 = vmatpush1.bf16.msra.mxu0 %v3972
    %4611 = vmatprep.subr.bf16.mxu0 %v3991
    %4612 = vmatpush1.bf16.msra.mxu0 %v3990
    %4613 = vmatprep.subr.bf16.mxu0 %v4009
    %4614 = vmatpush1.bf16.msra.mxu0 %v4008
    %4615 = vmatprep.subr.bf16.mxu0 %v4027
    %4616 = vmatpush1.bf16.msra.mxu0 %v4026
    %4617 = vmatprep.subr.bf16.mxu0 %v4045
    %4618 = vmatpush1.bf16.msra.mxu0 %v4044
    %4619 = vmatprep.subr.bf16.mxu0 %v4063
    %4620 = vmatpush1.bf16.msra.mxu0 %v4062
    %4621 = vmatprep.subr.bf16.mxu0 %v4081
    %4622 = vmatpush1.bf16.msra.mxu0 %v4080
    %4623 = vmatprep.subr.bf16.mxu0 %v4099
    %4624 = vmatpush1.bf16.msra.mxu0 %v4098
    %4625 = vmatprep.subr.bf16.mxu0 %v4117
    %4626 = vmatpush1.bf16.msra.mxu0 %v4116
    %4627 = vmatprep.subr.bf16.mxu0 %v4135
    %4628 = vmatpush1.bf16.msra.mxu0 %v4134
    %4629 = vmatprep.mubr.bf16.mxu0 %v2849
    %4630 = vmatmul.mubr.bf16.gmra.mrb[0].mxu0 %v2848
    %v4631 = vpop.f32.mrb[0].mxu0
    %v4632 = vadd.f32 %v4591, %v4631
    %v4633 = vpop.f32.mrb[0].mxu0
    %v4634 = vadd.f32 %v4593, %v4633
    %v4635 = vpop.f32.mrb[0].mxu0
    %v4636 = vpop.f32.mrb[0].mxu0
    %4637 = vdwg.mxu0
    %4638 = vmatprep.subr.bf16.mxu0 %v3291
    %4639 = vmatpush1.bf16.msra.mxu0 %v3290
    %4640 = vmatprep.subr.bf16.mxu0 %v3309
    %4641 = vmatpush1.bf16.msra.mxu0 %v3308
    %4642 = vmatprep.subr.bf16.mxu0 %v3327
    %4643 = vmatpush1.bf16.msra.mxu0 %v3326
    %4644 = vmatprep.subr.bf16.mxu0 %v3345
    %4645 = vmatpush1.bf16.msra.mxu0 %v3344
    %4646 = vmatprep.subr.bf16.mxu0 %v3363
    %4647 = vmatpush1.bf16.msra.mxu0 %v3362
    %4648 = vmatprep.subr.bf16.mxu0 %v3381
    %4649 = vmatpush1.bf16.msra.mxu0 %v3380
    %4650 = vmatprep.subr.bf16.mxu0 %v3399
    %4651 = vmatpush1.bf16.msra.mxu0 %v3398
    %4652 = vmatprep.subr.bf16.mxu0 %v3417
    %4653 = vmatpush1.bf16.msra.mxu0 %v3416
    %4654 = vmatprep.subr.bf16.mxu0 %v3435
    %4655 = vmatpush1.bf16.msra.mxu0 %v3434
    %4656 = vmatprep.subr.bf16.mxu0 %v3453
    %4657 = vmatpush1.bf16.msra.mxu0 %v3452
    %4658 = vmatprep.subr.bf16.mxu0 %v3471
    %4659 = vmatpush1.bf16.msra.mxu0 %v3470
    %4660 = vmatprep.subr.bf16.mxu0 %v3489
    %4661 = vmatpush1.bf16.msra.mxu0 %v3488
    %4662 = vmatprep.subr.bf16.mxu0 %v3507
    %4663 = vmatpush1.bf16.msra.mxu0 %v3506
    %4664 = vmatprep.subr.bf16.mxu0 %v3525
    %4665 = vmatpush1.bf16.msra.mxu0 %v3524
    %4666 = vmatprep.subr.bf16.mxu0 %v3543
    %4667 = vmatpush1.bf16.msra.mxu0 %v3542
    %4668 = vmatprep.subr.bf16.mxu0 %v3561
    %4669 = vmatpush1.bf16.msra.mxu0 %v3560
    %4670 = vmatprep.mubr.bf16.mxu0 %v2845
    %4671 = vmatmul.mubr.bf16.gmra.mrb[0].mxu0 %v2844
    %v4672 = vpop.f32.mrb[0].mxu0
    %v4673 = vadd.f32 0.0, %v4672
    %v4674 = vpop.f32.mrb[0].mxu0
    %v4675 = vadd.f32 0.0, %v4674
    %v4676 = vpop.f32.mrb[0].mxu0
    %v4677 = vpop.f32.mrb[0].mxu0
    %4678 = vdwg.mxu0
    %4679 = vmatprep.subr.bf16.mxu0 %v3579
    %4680 = vmatpush1.bf16.msra.mxu0 %v3578
    %4681 = vmatprep.subr.bf16.mxu0 %v3597
    %4682 = vmatpush1.bf16.msra.mxu0 %v3596
    %4683 = vmatprep.subr.bf16.mxu0 %v3615
    %4684 = vmatpush1.bf16.msra.mxu0 %v3614
    %4685 = vmatprep.subr.bf16.mxu0 %v3633
    %4686 = vmatpush1.bf16.msra.mxu0 %v3632
    %4687 = vmatprep.subr.bf16.mxu0 %v3651
    %4688 = vmatpush1.bf16.msra.mxu0 %v3650
    %4689 = vmatprep.subr.bf16.mxu0 %v3669
    %4690 = vmatpush1.bf16.msra.mxu0 %v3668
    %4691 = vmatprep.subr.bf16.mxu0 %v3687
    %4692 = vmatpush1.bf16.msra.mxu0 %v3686
    %4693 = vmatprep.subr.bf16.mxu0 %v3705
    %4694 = vmatpush1.bf16.msra.mxu0 %v3704
    %4695 = vmatprep.subr.bf16.mxu0 %v3723
    %4696 = vmatpush1.bf16.msra.mxu0 %v3722
    %4697 = vmatprep.subr.bf16.mxu0 %v3741
    %4698 = vmatpush1.bf16.msra.mxu0 %v3740
    %4699 = vmatprep.subr.bf16.mxu0 %v3759
    %4700 = vmatpush1.bf16.msra.mxu0 %v3758
    %4701 = vmatprep.subr.bf16.mxu0 %v3777
    %4702 = vmatpush1.bf16.msra.mxu0 %v3776
    %4703 = vmatprep.subr.bf16.mxu0 %v3795
    %4704 = vmatpush1.bf16.msra.mxu0 %v3794
    %4705 = vmatprep.subr.bf16.mxu0 %v3813
    %4706 = vmatpush1.bf16.msra.mxu0 %v3812
    %4707 = vmatprep.subr.bf16.mxu0 %v3831
    %4708 = vmatpush1.bf16.msra.mxu0 %v3830
    %4709 = vmatprep.subr.bf16.mxu0 %v3849
    %4710 = vmatpush1.bf16.msra.mxu0 %v3848
    %4711 = vmatprep.mubr.bf16.mxu0 %v2847
    %4712 = vmatmul.mubr.bf16.gmra.mrb[0].mxu0 %v2846
    %v4713 = vpop.f32.mrb[0].mxu0
    %v4714 = vadd.f32 %v4673, %v4713
    %v4715 = vpop.f32.mrb[0].mxu0
    %v4716 = vadd.f32 %v4675, %v4715
    %v4717 = vpop.f32.mrb[0].mxu0
    %v4718 = vpop.f32.mrb[0].mxu0
    %4719 = vdwg.mxu0
    %4720 = vmatprep.subr.bf16.mxu0 %v3867
    %4721 = vmatpush1.bf16.msra.mxu0 %v3866
    %4722 = vmatprep.subr.bf16.mxu0 %v3885
    %4723 = vmatpush1.bf16.msra.mxu0 %v3884
    %4724 = vmatprep.subr.bf16.mxu0 %v3903
    %4725 = vmatpush1.bf16.msra.mxu0 %v3902
    %4726 = vmatprep.subr.bf16.mxu0 %v3921
    %4727 = vmatpush1.bf16.msra.mxu0 %v3920
    %4728 = vmatprep.subr.bf16.mxu0 %v3939
    %4729 = vmatpush1.bf16.msra.mxu0 %v3938
    %4730 = vmatprep.subr.bf16.mxu0 %v3957
    %4731 = vmatpush1.bf16.msra.mxu0 %v3956
    %4732 = vmatprep.subr.bf16.mxu0 %v3975
    %4733 = vmatpush1.bf16.msra.mxu0 %v3974
    %4734 = vmatprep.subr.bf16.mxu0 %v3993
    %4735 = vmatpush1.bf16.msra.mxu0 %v3992
    %4736 = vmatprep.subr.bf16.mxu0 %v4011
    %4737 = vmatpush1.bf16.msra.mxu0 %v4010
    %4738 = vmatprep.subr.bf16.mxu0 %v4029
    %4739 = vmatpush1.bf16.msra.mxu0 %v4028
    %4740 = vmatprep.subr.bf16.mxu0 %v4047
    %4741 = vmatpush1.bf16.msra.mxu0 %v4046
    %4742 = vmatprep.subr.bf16.mxu0 %v4065
    %4743 = vmatpush1.bf16.msra.mxu0 %v4064
    %4744 = vmatprep.subr.bf16.mxu0 %v4083
    %4745 = vmatpush1.bf16.msra.mxu0 %v4082
    %4746 = vmatprep.subr.bf16.mxu0 %v4101
    %4747 = vmatpush1.bf16.msra.mxu0 %v4100
    %4748 = vmatprep.subr.bf16.mxu0 %v4119
    %4749 = vmatpush1.bf16.msra.mxu0 %v4118
    %4750 = vmatprep.subr.bf16.mxu0 %v4137
    %4751 = vmatpush1.bf16.msra.mxu0 %v4136
    %4752 = vmatprep.mubr.bf16.mxu0 %v2849
    %4753 = vmatmul.mubr.bf16.gmra.mrb[0].mxu0 %v2848
    %v4754 = vpop.f32.mrb[0].mxu0
    %v4755 = vadd.f32 %v4714, %v4754
    %v4756 = vpop.f32.mrb[0].mxu0
    %v4757 = vadd.f32 %v4716, %v4756
    %v4758 = vpop.f32.mrb[0].mxu0
    %v4759 = vpop.f32.mrb[0].mxu0
    %4760 = vdwg.mxu0
    %4761 = vmatprep.subr.bf16.mxu0 %v3293
    %4762 = vmatpush1.bf16.msra.mxu0 %v3292
    %4763 = vmatprep.subr.bf16.mxu0 %v3311
    %4764 = vmatpush1.bf16.msra.mxu0 %v3310
    %4765 = vmatprep.subr.bf16.mxu0 %v3329
    %4766 = vmatpush1.bf16.msra.mxu0 %v3328
    %4767 = vmatprep.subr.bf16.mxu0 %v3347
    %4768 = vmatpush1.bf16.msra.mxu0 %v3346
    %4769 = vmatprep.subr.bf16.mxu0 %v3365
    %4770 = vmatpush1.bf16.msra.mxu0 %v3364
    %4771 = vmatprep.subr.bf16.mxu0 %v3383
    %4772 = vmatpush1.bf16.msra.mxu0 %v3382
    %4773 = vmatprep.subr.bf16.mxu0 %v3401
    %4774 = vmatpush1.bf16.msra.mxu0 %v3400
    %4775 = vmatprep.subr.bf16.mxu0 %v3419
    %4776 = vmatpush1.bf16.msra.mxu0 %v3418
    %4777 = vmatprep.subr.bf16.mxu0 %v3437
    %4778 = vmatpush1.bf16.msra.mxu0 %v3436
    %4779 = vmatprep.subr.bf16.mxu0 %v3455
    %4780 = vmatpush1.bf16.msra.mxu0 %v3454
    %4781 = vmatprep.subr.bf16.mxu0 %v3473
    %4782 = vmatpush1.bf16.msra.mxu0 %v3472
    %4783 = vmatprep.subr.bf16.mxu0 %v3491
    %4784 = vmatpush1.bf16.msra.mxu0 %v3490
    %4785 = vmatprep.subr.bf16.mxu0 %v3509
    %4786 = vmatpush1.bf16.msra.mxu0 %v3508
    %4787 = vmatprep.subr.bf16.mxu0 %v3527
    %4788 = vmatpush1.bf16.msra.mxu0 %v3526
    %4789 = vmatprep.subr.bf16.mxu0 %v3545
    %4790 = vmatpush1.bf16.msra.mxu0 %v3544
    %4791 = vmatprep.subr.bf16.mxu0 %v3563
    %4792 = vmatpush1.bf16.msra.mxu0 %v3562
    %4793 = vmatprep.mubr.bf16.mxu0 %v2845
    %4794 = vmatmul.mubr.bf16.gmra.mrb[0].mxu0 %v2844
    %v4795 = vpop.f32.mrb[0].mxu0
    %v4796 = vadd.f32 0.0, %v4795
    %v4797 = vpop.f32.mrb[0].mxu0
    %v4798 = vadd.f32 0.0, %v4797
    %v4799 = vpop.f32.mrb[0].mxu0
    %v4800 = vpop.f32.mrb[0].mxu0
    %4801 = vdwg.mxu0
    %4802 = vmatprep.subr.bf16.mxu0 %v3581
    %4803 = vmatpush1.bf16.msra.mxu0 %v3580
    %4804 = vmatprep.subr.bf16.mxu0 %v3599
    %4805 = vmatpush1.bf16.msra.mxu0 %v3598
    %4806 = vmatprep.subr.bf16.mxu0 %v3617
    %4807 = vmatpush1.bf16.msra.mxu0 %v3616
    %4808 = vmatprep.subr.bf16.mxu0 %v3635
    %4809 = vmatpush1.bf16.msra.mxu0 %v3634
    %4810 = vmatprep.subr.bf16.mxu0 %v3653
    %4811 = vmatpush1.bf16.msra.mxu0 %v3652
    %4812 = vmatprep.subr.bf16.mxu0 %v3671
    %4813 = vmatpush1.bf16.msra.mxu0 %v3670
    %4814 = vmatprep.subr.bf16.mxu0 %v3689
    %4815 = vmatpush1.bf16.msra.mxu0 %v3688
    %4816 = vmatprep.subr.bf16.mxu0 %v3707
    %4817 = vmatpush1.bf16.msra.mxu0 %v3706
    %4818 = vmatprep.subr.bf16.mxu0 %v3725
    %4819 = vmatpush1.bf16.msra.mxu0 %v3724
    %4820 = vmatprep.subr.bf16.mxu0 %v3743
    %4821 = vmatpush1.bf16.msra.mxu0 %v3742
    %4822 = vmatprep.subr.bf16.mxu0 %v3761
    %4823 = vmatpush1.bf16.msra.mxu0 %v3760
    %4824 = vmatprep.subr.bf16.mxu0 %v3779
    %4825 = vmatpush1.bf16.msra.mxu0 %v3778
    %4826 = vmatprep.subr.bf16.mxu0 %v3797
    %4827 = vmatpush1.bf16.msra.mxu0 %v3796
    %4828 = vmatprep.subr.bf16.mxu0 %v3815
    %4829 = vmatpush1.bf16.msra.mxu0 %v3814
    %4830 = vmatprep.subr.bf16.mxu0 %v3833
    %4831 = vmatpush1.bf16.msra.mxu0 %v3832
    %4832 = vmatprep.subr.bf16.mxu0 %v3851
    %4833 = vmatpush1.bf16.msra.mxu0 %v3850
    %4834 = vmatprep.mubr.bf16.mxu0 %v2847
    %4835 = vmatmul.mubr.bf16.gmra.mrb[0].mxu0 %v2846
    %v4836 = vpop.f32.mrb[0].mxu0
    %v4837 = vadd.f32 %v4796, %v4836
    %v4838 = vpop.f32.mrb[0].mxu0
    %v4839 = vadd.f32 %v4798, %v4838
    %v4840 = vpop.f32.mrb[0].mxu0
    %v4841 = vpop.f32.mrb[0].mxu0
    %4842 = vdwg.mxu0
    %4843 = vmatprep.subr.bf16.mxu0 %v3869
    %4844 = vmatpush1.bf16.msra.mxu0 %v3868
    %4845 = vmatprep.subr.bf16.mxu0 %v3887
    %4846 = vmatpush1.bf16.msra.mxu0 %v3886
    %4847 = vmatprep.subr.bf16.mxu0 %v3905
    %4848 = vmatpush1.bf16.msra.mxu0 %v3904
    %4849 = vmatprep.subr.bf16.mxu0 %v3923
    %4850 = vmatpush1.bf16.msra.mxu0 %v3922
    %4851 = vmatprep.subr.bf16.mxu0 %v3941
    %4852 = vmatpush1.bf16.msra.mxu0 %v3940
    %4853 = vmatprep.subr.bf16.mxu0 %v3959
    %4854 = vmatpush1.bf16.msra.mxu0 %v3958
    %4855 = vmatprep.subr.bf16.mxu0 %v3977
    %4856 = vmatpush1.bf16.msra.mxu0 %v3976
    %4857 = vmatprep.subr.bf16.mxu0 %v3995
    %4858 = vmatpush1.bf16.msra.mxu0 %v3994
    %4859 = vmatprep.subr.bf16.mxu0 %v4013
    %4860 = vmatpush1.bf16.msra.mxu0 %v4012
    %4861 = vmatprep.subr.bf16.mxu0 %v4031
    %4862 = vmatpush1.bf16.msra.mxu0 %v4030
    %4863 = vmatprep.subr.bf16.mxu0 %v4049
    %4864 = vmatpush1.bf16.msra.mxu0 %v4048
    %4865 = vmatprep.subr.bf16.mxu0 %v4067
    %4866 = vmatpush1.bf16.msra.mxu0 %v4066
    %4867 = vmatprep.subr.bf16.mxu0 %v4085
    %4868 = vmatpush1.bf16.msra.mxu0 %v4084
    %4869 = vmatprep.subr.bf16.mxu0 %v4103
    %4870 = vmatpush1.bf16.msra.mxu0 %v4102
    %4871 = vmatprep.subr.bf16.mxu0 %v4121
    %4872 = vmatpush1.bf16.msra.mxu0 %v4120
    %4873 = vmatprep.subr.bf16.mxu0 %v4139
    %4874 = vmatpush1.bf16.msra.mxu0 %v4138
    %4875 = vmatprep.mubr.bf16.mxu0 %v2849
    %4876 = vmatmul.mubr.bf16.gmra.mrb[0].mxu0 %v2848
    %v4877 = vpop.f32.mrb[0].mxu0
    %v4878 = vadd.f32 %v4837, %v4877
    %v4879 = vpop.f32.mrb[0].mxu0
    %v4880 = vadd.f32 %v4839, %v4879
    %v4881 = vpop.f32.mrb[0].mxu0
    %v4882 = vpop.f32.mrb[0].mxu0
    %4883 = vdwg.mxu0
    %4884 = vmatprep.subr.bf16.mxu0 %v3295
    %4885 = vmatpush1.bf16.msra.mxu0 %v3294
    %4886 = vmatprep.subr.bf16.mxu0 %v3313
    %4887 = vmatpush1.bf16.msra.mxu0 %v3312
    %4888 = vmatprep.subr.bf16.mxu0 %v3331
    %4889 = vmatpush1.bf16.msra.mxu0 %v3330
    %4890 = vmatprep.subr.bf16.mxu0 %v3349
    %4891 = vmatpush1.bf16.msra.mxu0 %v3348
    %4892 = vmatprep.subr.bf16.mxu0 %v3367
    %4893 = vmatpush1.bf16.msra.mxu0 %v3366
    %4894 = vmatprep.subr.bf16.mxu0 %v3385
    %4895 = vmatpush1.bf16.msra.mxu0 %v3384
    %4896 = vmatprep.subr.bf16.mxu0 %v3403
    %4897 = vmatpush1.bf16.msra.mxu0 %v3402
    %4898 = vmatprep.subr.bf16.mxu0 %v3421
    %4899 = vmatpush1.bf16.msra.mxu0 %v3420
    %4900 = vmatprep.subr.bf16.mxu0 %v3439
    %4901 = vmatpush1.bf16.msra.mxu0 %v3438
    %4902 = vmatprep.subr.bf16.mxu0 %v3457
    %4903 = vmatpush1.bf16.msra.mxu0 %v3456
    %4904 = vmatprep.subr.bf16.mxu0 %v3475
    %4905 = vmatpush1.bf16.msra.mxu0 %v3474
    %4906 = vmatprep.subr.bf16.mxu0 %v3493
    %4907 = vmatpush1.bf16.msra.mxu0 %v3492
    %4908 = vmatprep.subr.bf16.mxu0 %v3511
    %4909 = vmatpush1.bf16.msra.mxu0 %v3510
    %4910 = vmatprep.subr.bf16.mxu0 %v3529
    %4911 = vmatpush1.bf16.msra.mxu0 %v3528
    %4912 = vmatprep.subr.bf16.mxu0 %v3547
    %4913 = vmatpush1.bf16.msra.mxu0 %v3546
    %4914 = vmatprep.subr.bf16.mxu0 %v3565
    %4915 = vmatpush1.bf16.msra.mxu0 %v3564
    %4916 = vmatprep.mubr.bf16.mxu0 %v2845
    %4917 = vmatmul.mubr.bf16.gmra.mrb[0].mxu0 %v2844
    %v4918 = vpop.f32.mrb[0].mxu0
    %v4919 = vadd.f32 0.0, %v4918
    %v4920 = vpop.f32.mrb[0].mxu0
    %v4921 = vadd.f32 0.0, %v4920
    %v4922 = vpop.f32.mrb[0].mxu0
    %v4923 = vpop.f32.mrb[0].mxu0
    %4924 = vdwg.mxu0
    %4925 = vmatprep.subr.bf16.mxu0 %v3583
    %4926 = vmatpush1.bf16.msra.mxu0 %v3582
    %4927 = vmatprep.subr.bf16.mxu0 %v3601
    %4928 = vmatpush1.bf16.msra.mxu0 %v3600
    %4929 = vmatprep.subr.bf16.mxu0 %v3619
    %4930 = vmatpush1.bf16.msra.mxu0 %v3618
    %4931 = vmatprep.subr.bf16.mxu0 %v3637
    %4932 = vmatpush1.bf16.msra.mxu0 %v3636
    %4933 = vmatprep.subr.bf16.mxu0 %v3655
    %4934 = vmatpush1.bf16.msra.mxu0 %v3654
    %4935 = vmatprep.subr.bf16.mxu0 %v3673
    %4936 = vmatpush1.bf16.msra.mxu0 %v3672
    %4937 = vmatprep.subr.bf16.mxu0 %v3691
    %4938 = vmatpush1.bf16.msra.mxu0 %v3690
    %4939 = vmatprep.subr.bf16.mxu0 %v3709
    %4940 = vmatpush1.bf16.msra.mxu0 %v3708
    %4941 = vmatprep.subr.bf16.mxu0 %v3727
    %4942 = vmatpush1.bf16.msra.mxu0 %v3726
    %4943 = vmatprep.subr.bf16.mxu0 %v3745
    %4944 = vmatpush1.bf16.msra.mxu0 %v3744
    %4945 = vmatprep.subr.bf16.mxu0 %v3763
    %4946 = vmatpush1.bf16.msra.mxu0 %v3762
    %4947 = vmatprep.subr.bf16.mxu0 %v3781
    %4948 = vmatpush1.bf16.msra.mxu0 %v3780
    %4949 = vmatprep.subr.bf16.mxu0 %v3799
    %4950 = vmatpush1.bf16.msra.mxu0 %v3798
    %4951 = vmatprep.subr.bf16.mxu0 %v3817
    %4952 = vmatpush1.bf16.msra.mxu0 %v3816
    %4953 = vmatprep.subr.bf16.mxu0 %v3835
    %4954 = vmatpush1.bf16.msra.mxu0 %v3834
    %4955 = vmatprep.subr.bf16.mxu0 %v3853
    %4956 = vmatpush1.bf16.msra.mxu0 %v3852
    %4957 = vmatprep.mubr.bf16.mxu0 %v2847
    %4958 = vmatmul.mubr.bf16.gmra.mrb[0].mxu0 %v2846
    %v4959 = vpop.f32.mrb[0].mxu0
    %v4960 = vadd.f32 %v4919, %v4959
    %v4961 = vpop.f32.mrb[0].mxu0
    %v4962 = vadd.f32 %v4921, %v4961
    %v4963 = vpop.f32.mrb[0].mxu0
    %v4964 = vpop.f32.mrb[0].mxu0
    %4965 = vdwg.mxu0
    %4966 = vmatprep.subr.bf16.mxu0 %v3871
    %4967 = vmatpush1.bf16.msra.mxu0 %v3870
    %4968 = vmatprep.subr.bf16.mxu0 %v3889
    %4969 = vmatpush1.bf16.msra.mxu0 %v3888
    %4970 = vmatprep.subr.bf16.mxu0 %v3907
    %4971 = vmatpush1.bf16.msra.mxu0 %v3906
    %4972 = vmatprep.subr.bf16.mxu0 %v3925
    %4973 = vmatpush1.bf16.msra.mxu0 %v3924
    %4974 = vmatprep.subr.bf16.mxu0 %v3943
    %4975 = vmatpush1.bf16.msra.mxu0 %v3942
    %4976 = vmatprep.subr.bf16.mxu0 %v3961
    %4977 = vmatpush1.bf16.msra.mxu0 %v3960
    %4978 = vmatprep.subr.bf16.mxu0 %v3979
    %4979 = vmatpush1.bf16.msra.mxu0 %v3978
    %4980 = vmatprep.subr.bf16.mxu0 %v3997
    %4981 = vmatpush1.bf16.msra.mxu0 %v3996
    %4982 = vmatprep.subr.bf16.mxu0 %v4015
    %4983 = vmatpush1.bf16.msra.mxu0 %v4014
    %4984 = vmatprep.subr.bf16.mxu0 %v4033
    %4985 = vmatpush1.bf16.msra.mxu0 %v4032
    %4986 = vmatprep.subr.bf16.mxu0 %v4051
    %4987 = vmatpush1.bf16.msra.mxu0 %v4050
    %4988 = vmatprep.subr.bf16.mxu0 %v4069
    %4989 = vmatpush1.bf16.msra.mxu0 %v4068
    %4990 = vmatprep.subr.bf16.mxu0 %v4087
    %4991 = vmatpush1.bf16.msra.mxu0 %v4086
    %4992 = vmatprep.subr.bf16.mxu0 %v4105
    %4993 = vmatpush1.bf16.msra.mxu0 %v4104
    %4994 = vmatprep.subr.bf16.mxu0 %v4123
    %4995 = vmatpush1.bf16.msra.mxu0 %v4122
    %4996 = vmatprep.subr.bf16.mxu0 %v4141
    %4997 = vmatpush1.bf16.msra.mxu0 %v4140
    %4998 = vmatprep.mubr.bf16.mxu0 %v2849
    %4999 = vmatmul.mubr.bf16.gmra.mrb[0].mxu0 %v2848
    %v5000 = vpop.f32.mrb[0].mxu0
    %v5001 = vadd.f32 %v4960, %v5000
    %v5002 = vpop.f32.mrb[0].mxu0
    %v5003 = vadd.f32 %v4962, %v5002
    %v5004 = vpop.f32.mrb[0].mxu0
    %v5005 = vpop.f32.mrb[0].mxu0
    %5006 = vdwg.mxu0
    %5007 = vmatprep.subr.bf16.mxu0 %v3297
    %5008 = vmatpush1.bf16.msra.mxu0 %v3296
    %5009 = vmatprep.subr.bf16.mxu0 %v3315
    %5010 = vmatpush1.bf16.msra.mxu0 %v3314
    %5011 = vmatprep.subr.bf16.mxu0 %v3333
    %5012 = vmatpush1.bf16.msra.mxu0 %v3332
    %5013 = vmatprep.subr.bf16.mxu0 %v3351
    %5014 = vmatpush1.bf16.msra.mxu0 %v3350
    %5015 = vmatprep.subr.bf16.mxu0 %v3369
    %5016 = vmatpush1.bf16.msra.mxu0 %v3368
    %5017 = vmatprep.subr.bf16.mxu0 %v3387
    %5018 = vmatpush1.bf16.msra.mxu0 %v3386
    %5019 = vmatprep.subr.bf16.mxu0 %v3405
    %5020 = vmatpush1.bf16.msra.mxu0 %v3404
    %5021 = vmatprep.subr.bf16.mxu0 %v3423
    %5022 = vmatpush1.bf16.msra.mxu0 %v3422
    %5023 = vmatprep.subr.bf16.mxu0 %v3441
    %5024 = vmatpush1.bf16.msra.mxu0 %v3440
    %5025 = vmatprep.subr.bf16.mxu0 %v3459
    %5026 = vmatpush1.bf16.msra.mxu0 %v3458
    %5027 = vmatprep.subr.bf16.mxu0 %v3477
    %5028 = vmatpush1.bf16.msra.mxu0 %v3476
    %5029 = vmatprep.subr.bf16.mxu0 %v3495
    %5030 = vmatpush1.bf16.msra.mxu0 %v3494
    %5031 = vmatprep.subr.bf16.mxu0 %v3513
    %5032 = vmatpush1.bf16.msra.mxu0 %v3512
    %5033 = vmatprep.subr.bf16.mxu0 %v3531
    %5034 = vmatpush1.bf16.msra.mxu0 %v3530
    %5035 = vmatprep.subr.bf16.mxu0 %v3549
    %5036 = vmatpush1.bf16.msra.mxu0 %v3548
    %5037 = vmatprep.subr.bf16.mxu0 %v3567
    %5038 = vmatpush1.bf16.msra.mxu0 %v3566
    %5039 = vmatprep.mubr.bf16.mxu0 %v2845
    %5040 = vmatmul.mubr.bf16.gmra.mrb[0].mxu0 %v2844
    %v5041 = vpop.f32.mrb[0].mxu0
    %v5042 = vadd.f32 0.0, %v5041
    %v5043 = vpop.f32.mrb[0].mxu0
    %v5044 = vadd.f32 0.0, %v5043
    %v5045 = vpop.f32.mrb[0].mxu0
    %v5046 = vpop.f32.mrb[0].mxu0
    %5047 = vdwg.mxu0
    %5048 = vmatprep.subr.bf16.mxu0 %v3585
    %5049 = vmatpush1.bf16.msra.mxu0 %v3584
    %5050 = vmatprep.subr.bf16.mxu0 %v3603
    %5051 = vmatpush1.bf16.msra.mxu0 %v3602
    %5052 = vmatprep.subr.bf16.mxu0 %v3621
    %5053 = vmatpush1.bf16.msra.mxu0 %v3620
    %5054 = vmatprep.subr.bf16.mxu0 %v3639
    %5055 = vmatpush1.bf16.msra.mxu0 %v3638
    %5056 = vmatprep.subr.bf16.mxu0 %v3657
    %5057 = vmatpush1.bf16.msra.mxu0 %v3656
    %5058 = vmatprep.subr.bf16.mxu0 %v3675
    %5059 = vmatpush1.bf16.msra.mxu0 %v3674
    %5060 = vmatprep.subr.bf16.mxu0 %v3693
    %5061 = vmatpush1.bf16.msra.mxu0 %v3692
    %5062 = vmatprep.subr.bf16.mxu0 %v3711
    %5063 = vmatpush1.bf16.msra.mxu0 %v3710
    %5064 = vmatprep.subr.bf16.mxu0 %v3729
    %5065 = vmatpush1.bf16.msra.mxu0 %v3728
    %5066 = vmatprep.subr.bf16.mxu0 %v3747
    %5067 = vmatpush1.bf16.msra.mxu0 %v3746
    %5068 = vmatprep.subr.bf16.mxu0 %v3765
    %5069 = vmatpush1.bf16.msra.mxu0 %v3764
    %5070 = vmatprep.subr.bf16.mxu0 %v3783
    %5071 = vmatpush1.bf16.msra.mxu0 %v3782
    %5072 = vmatprep.subr.bf16.mxu0 %v3801
    %5073 = vmatpush1.bf16.msra.mxu0 %v3800
    %5074 = vmatprep.subr.bf16.mxu0 %v3819
    %5075 = vmatpush1.bf16.msra.mxu0 %v3818
    %5076 = vmatprep.subr.bf16.mxu0 %v3837
    %5077 = vmatpush1.bf16.msra.mxu0 %v3836
    %5078 = vmatprep.subr.bf16.mxu0 %v3855
    %5079 = vmatpush1.bf16.msra.mxu0 %v3854
    %5080 = vmatprep.mubr.bf16.mxu0 %v2847
    %5081 = vmatmul.mubr.bf16.gmra.mrb[0].mxu0 %v2846
    %v5082 = vpop.f32.mrb[0].mxu0
    %v5083 = vadd.f32 %v5042, %v5082
    %v5084 = vpop.f32.mrb[0].mxu0
    %v5085 = vadd.f32 %v5044, %v5084
    %v5086 = vpop.f32.mrb[0].mxu0
    %v5087 = vpop.f32.mrb[0].mxu0
    %5088 = vdwg.mxu0
    %5089 = vmatprep.subr.bf16.mxu0 %v3873
    %5090 = vmatpush1.bf16.msra.mxu0 %v3872
    %5091 = vmatprep.subr.bf16.mxu0 %v3891
    %5092 = vmatpush1.bf16.msra.mxu0 %v3890
    %5093 = vmatprep.subr.bf16.mxu0 %v3909
    %5094 = vmatpush1.bf16.msra.mxu0 %v3908
    %5095 = vmatprep.subr.bf16.mxu0 %v3927
    %5096 = vmatpush1.bf16.msra.mxu0 %v3926
    %5097 = vmatprep.subr.bf16.mxu0 %v3945
    %5098 = vmatpush1.bf16.msra.mxu0 %v3944
    %5099 = vmatprep.subr.bf16.mxu0 %v3963
    %5100 = vmatpush1.bf16.msra.mxu0 %v3962
    %5101 = vmatprep.subr.bf16.mxu0 %v3981
    %5102 = vmatpush1.bf16.msra.mxu0 %v3980
    %5103 = vmatprep.subr.bf16.mxu0 %v3999
    %5104 = vmatpush1.bf16.msra.mxu0 %v3998
    %5105 = vmatprep.subr.bf16.mxu0 %v4017
    %5106 = vmatpush1.bf16.msra.mxu0 %v4016
    %5107 = vmatprep.subr.bf16.mxu0 %v4035
    %5108 = vmatpush1.bf16.msra.mxu0 %v4034
    %5109 = vmatprep.subr.bf16.mxu0 %v4053
    %5110 = vmatpush1.bf16.msra.mxu0 %v4052
    %5111 = vmatprep.subr.bf16.mxu0 %v4071
    %5112 = vmatpush1.bf16.msra.mxu0 %v4070
    %5113 = vmatprep.subr.bf16.mxu0 %v4089
    %5114 = vmatpush1.bf16.msra.mxu0 %v4088
    %5115 = vmatprep.subr.bf16.mxu0 %v4107
    %5116 = vmatpush1.bf16.msra.mxu0 %v4106
    %5117 = vmatprep.subr.bf16.mxu0 %v4125
    %5118 = vmatpush1.bf16.msra.mxu0 %v4124
    %5119 = vmatprep.subr.bf16.mxu0 %v4143
    %5120 = vmatpush1.bf16.msra.mxu0 %v4142
    %5121 = vmatprep.mubr.bf16.mxu0 %v2849
    %5122 = vmatmul.mubr.bf16.gmra.mrb[0].mxu0 %v2848
    %v5123 = vpop.f32.mrb[0].mxu0
    %v5124 = vadd.f32 %v5083, %v5123
    %v5125 = vpop.f32.mrb[0].mxu0
    %v5126 = vadd.f32 %v5085, %v5125
    %v5127 = vpop.f32.mrb[0].mxu0
    %v5128 = vpop.f32.mrb[0].mxu0
    %5129 = vdwg.mxu0
    %5130 = vmatprep.subr.bf16.mxu0 %v3299
    %5131 = vmatpush1.bf16.msra.mxu0 %v3298
    %5132 = vmatprep.subr.bf16.mxu0 %v3317
    %5133 = vmatpush1.bf16.msra.mxu0 %v3316
    %5134 = vmatprep.subr.bf16.mxu0 %v3335
    %5135 = vmatpush1.bf16.msra.mxu0 %v3334
    %5136 = vmatprep.subr.bf16.mxu0 %v3353
    %5137 = vmatpush1.bf16.msra.mxu0 %v3352
    %5138 = vmatprep.subr.bf16.mxu0 %v3371
    %5139 = vmatpush1.bf16.msra.mxu0 %v3370
    %5140 = vmatprep.subr.bf16.mxu0 %v3389
    %5141 = vmatpush1.bf16.msra.mxu0 %v3388
    %5142 = vmatprep.subr.bf16.mxu0 %v3407
    %5143 = vmatpush1.bf16.msra.mxu0 %v3406
    %5144 = vmatprep.subr.bf16.mxu0 %v3425
    %5145 = vmatpush1.bf16.msra.mxu0 %v3424
    %5146 = vmatprep.subr.bf16.mxu0 %v3443
    %5147 = vmatpush1.bf16.msra.mxu0 %v3442
    %5148 = vmatprep.subr.bf16.mxu0 %v3461
    %5149 = vmatpush1.bf16.msra.mxu0 %v3460
    %5150 = vmatprep.subr.bf16.mxu0 %v3479
    %5151 = vmatpush1.bf16.msra.mxu0 %v3478
    %5152 = vmatprep.subr.bf16.mxu0 %v3497
    %5153 = vmatpush1.bf16.msra.mxu0 %v3496
    %5154 = vmatprep.subr.bf16.mxu0 %v3515
    %5155 = vmatpush1.bf16.msra.mxu0 %v3514
    %5156 = vmatprep.subr.bf16.mxu0 %v3533
    %5157 = vmatpush1.bf16.msra.mxu0 %v3532
    %5158 = vmatprep.subr.bf16.mxu0 %v3551
    %5159 = vmatpush1.bf16.msra.mxu0 %v3550
    %5160 = vmatprep.subr.bf16.mxu0 %v3569
    %5161 = vmatpush1.bf16.msra.mxu0 %v3568
    %5162 = vmatprep.mubr.bf16.mxu0 %v2845
    %5163 = vmatmul.mubr.bf16.gmra.mrb[0].mxu0 %v2844
    %v5164 = vpop.f32.mrb[0].mxu0
    %v5165 = vadd.f32 0.0, %v5164
    %v5166 = vpop.f32.mrb[0].mxu0
    %v5167 = vadd.f32 0.0, %v5166
    %v5168 = vpop.f32.mrb[0].mxu0
    %v5169 = vpop.f32.mrb[0].mxu0
    %5170 = vdwg.mxu0
    %5171 = vmatprep.subr.bf16.mxu0 %v3587
    %5172 = vmatpush1.bf16.msra.mxu0 %v3586
    %5173 = vmatprep.subr.bf16.mxu0 %v3605
    %5174 = vmatpush1.bf16.msra.mxu0 %v3604
    %5175 = vmatprep.subr.bf16.mxu0 %v3623
    %5176 = vmatpush1.bf16.msra.mxu0 %v3622
    %5177 = vmatprep.subr.bf16.mxu0 %v3641
    %5178 = vmatpush1.bf16.msra.mxu0 %v3640
    %5179 = vmatprep.subr.bf16.mxu0 %v3659
    %5180 = vmatpush1.bf16.msra.mxu0 %v3658
    %5181 = vmatprep.subr.bf16.mxu0 %v3677
    %5182 = vmatpush1.bf16.msra.mxu0 %v3676
    %5183 = vmatprep.subr.bf16.mxu0 %v3695
    %5184 = vmatpush1.bf16.msra.mxu0 %v3694
    %5185 = vmatprep.subr.bf16.mxu0 %v3713
    %5186 = vmatpush1.bf16.msra.mxu0 %v3712
    %5187 = vmatprep.subr.bf16.mxu0 %v3731
    %5188 = vmatpush1.bf16.msra.mxu0 %v3730
    %5189 = vmatprep.subr.bf16.mxu0 %v3749
    %5190 = vmatpush1.bf16.msra.mxu0 %v3748
    %5191 = vmatprep.subr.bf16.mxu0 %v3767
    %5192 = vmatpush1.bf16.msra.mxu0 %v3766
    %5193 = vmatprep.subr.bf16.mxu0 %v3785
    %5194 = vmatpush1.bf16.msra.mxu0 %v3784
    %5195 = vmatprep.subr.bf16.mxu0 %v3803
    %5196 = vmatpush1.bf16.msra.mxu0 %v3802
    %5197 = vmatprep.subr.bf16.mxu0 %v3821
    %5198 = vmatpush1.bf16.msra.mxu0 %v3820
    %5199 = vmatprep.subr.bf16.mxu0 %v3839
    %5200 = vmatpush1.bf16.msra.mxu0 %v3838
    %5201 = vmatprep.subr.bf16.mxu0 %v3857
    %5202 = vmatpush1.bf16.msra.mxu0 %v3856
    %5203 = vmatprep.mubr.bf16.mxu0 %v2847
    %5204 = vmatmul.mubr.bf16.gmra.mrb[0].mxu0 %v2846
    %v5205 = vpop.f32.mrb[0].mxu0
    %v5206 = vadd.f32 %v5165, %v5205
    %v5207 = vpop.f32.mrb[0].mxu0
    %v5208 = vadd.f32 %v5167, %v5207
    %v5209 = vpop.f32.mrb[0].mxu0
    %v5210 = vpop.f32.mrb[0].mxu0
    %5211 = vdwg.mxu0
    %5212 = vmatprep.subr.bf16.mxu0 %v3875
    %5213 = vmatpush1.bf16.msra.mxu0 %v3874
    %5214 = vmatprep.subr.bf16.mxu0 %v3893
    %5215 = vmatpush1.bf16.msra.mxu0 %v3892
    %5216 = vmatprep.subr.bf16.mxu0 %v3911
    %5217 = vmatpush1.bf16.msra.mxu0 %v3910
    %5218 = vmatprep.subr.bf16.mxu0 %v3929
    %5219 = vmatpush1.bf16.msra.mxu0 %v3928
    %5220 = vmatprep.subr.bf16.mxu0 %v3947
    %5221 = vmatpush1.bf16.msra.mxu0 %v3946
    %5222 = vmatprep.subr.bf16.mxu0 %v3965
    %5223 = vmatpush1.bf16.msra.mxu0 %v3964
    %5224 = vmatprep.subr.bf16.mxu0 %v3983
    %5225 = vmatpush1.bf16.msra.mxu0 %v3982
    %5226 = vmatprep.subr.bf16.mxu0 %v4001
    %5227 = vmatpush1.bf16.msra.mxu0 %v4000
    %5228 = vmatprep.subr.bf16.mxu0 %v4019
    %5229 = vmatpush1.bf16.msra.mxu0 %v4018
    %5230 = vmatprep.subr.bf16.mxu0 %v4037
    %5231 = vmatpush1.bf16.msra.mxu0 %v4036
    %5232 = vmatprep.subr.bf16.mxu0 %v4055
    %5233 = vmatpush1.bf16.msra.mxu0 %v4054
    %5234 = vmatprep.subr.bf16.mxu0 %v4073
    %5235 = vmatpush1.bf16.msra.mxu0 %v4072
    %5236 = vmatprep.subr.bf16.mxu0 %v4091
    %5237 = vmatpush1.bf16.msra.mxu0 %v4090
    %5238 = vmatprep.subr.bf16.mxu0 %v4109
    %5239 = vmatpush1.bf16.msra.mxu0 %v4108
    %5240 = vmatprep.subr.bf16.mxu0 %v4127
    %5241 = vmatpush1.bf16.msra.mxu0 %v4126
    %5242 = vmatprep.subr.bf16.mxu0 %v4145
    %5243 = vmatpush1.bf16.msra.mxu0 %v4144
    %5244 = vmatprep.mubr.bf16.mxu0 %v2849
    %5245 = vmatmul.mubr.bf16.gmra.mrb[0].mxu0 %v2848
    %v5246 = vpop.f32.mrb[0].mxu0
    %v5247 = vadd.f32 %v5206, %v5246
    %v5248 = vpop.f32.mrb[0].mxu0
    %v5249 = vadd.f32 %v5208, %v5248
    %v5250 = vpop.f32.mrb[0].mxu0
    %v5251 = vpop.f32.mrb[0].mxu0
    %5252 = vdwg.mxu0
    %v5256 = vlaneseq
    %v5257 = vshrl.u32 %v5256, 7
    %v5258 = vsub.s32 0, %v5257
    %v5259 = vrot.slane %v95, %v5258
    %v5260 = vlaneseq
    %v5261 = vshrl.u32 %v5260, 7
    %v5262 = vsub.s32 1, %v5261
    %v5263 = vrot.slane %v95, %v5262
    %v5264 = vlaneseq
    %v5265 = vshrl.u32 %v5264, 7
    %v5266 = vsub.s32 2, %v5265
    %v5267 = vrot.slane %v95, %v5266
    %v5268 = vlaneseq
    %v5269 = vshrl.u32 %v5268, 7
    %v5270 = vsub.s32 3, %v5269
    %v5271 = vrot.slane %v95, %v5270
    %v5272 = vlaneseq
    %v5273 = vshrl.u32 %v5272, 7
    %v5274 = vsub.s32 4, %v5273
    %v5275 = vrot.slane %v95, %v5274
    %v5276 = vlaneseq
    %v5277 = vshrl.u32 %v5276, 7
    %v5278 = vsub.s32 5, %v5277
    %v5279 = vrot.slane %v95, %v5278
    %v5280 = vlaneseq
    %v5281 = vshrl.u32 %v5280, 7
    %v5282 = vsub.s32 6, %v5281
    %v5283 = vrot.slane %v95, %v5282
    %v5284 = vlaneseq
    %v5285 = vshrl.u32 %v5284, 7
    %v5286 = vsub.s32 7, %v5285
    %v5287 = vrot.slane %v95, %v5286
    %v5288 = vlaneseq
    %v5289 = vshrl.u32 %v5288, 7
    %v5290 = vsub.s32 0, %v5289
    %v5291 = vrot.slane %v99, %v5290
    %v5292 = vlaneseq
    %v5293 = vshrl.u32 %v5292, 7
    %v5294 = vsub.s32 1, %v5293
    %v5295 = vrot.slane %v99, %v5294
    %v5296 = vlaneseq
    %v5297 = vshrl.u32 %v5296, 7
    %v5298 = vsub.s32 2, %v5297
    %v5299 = vrot.slane %v99, %v5298
    %v5300 = vlaneseq
    %v5301 = vshrl.u32 %v5300, 7
    %v5302 = vsub.s32 3, %v5301
    %v5303 = vrot.slane %v99, %v5302
    %v5304 = vlaneseq
    %v5305 = vshrl.u32 %v5304, 7
    %v5306 = vsub.s32 4, %v5305
    %v5307 = vrot.slane %v99, %v5306
    %v5308 = vlaneseq
    %v5309 = vshrl.u32 %v5308, 7
    %v5310 = vsub.s32 5, %v5309
    %v5311 = vrot.slane %v99, %v5310
    %v5312 = vlaneseq
    %v5313 = vshrl.u32 %v5312, 7
    %v5314 = vsub.s32 6, %v5313
    %v5315 = vrot.slane %v99, %v5314
    %v5316 = vlaneseq
    %v5317 = vshrl.u32 %v5316, 7
    %v5318 = vsub.s32 7, %v5317
    %v5319 = vrot.slane %v99, %v5318
    %v5320 = vlaneseq
    %v5321 = vshrl.u32 %v5320, 7
    %v5322 = vsub.s32 0, %v5321
    %v5323 = vrot.slane %v101, %v5322
    %v5324 = vlaneseq
    %v5325 = vshrl.u32 %v5324, 7
    %v5326 = vsub.s32 1, %v5325
    %v5327 = vrot.slane %v101, %v5326
    %v5346 = vmul.f32 %v4263, %v5259
    %v5347 = vmul.f32 %v4265, %v5263
    %v5348 = vmul.f32 %v4386, %v5267
    %v5349 = vmul.f32 %v4388, %v5271
    %v5350 = vmul.f32 %v4509, %v5275
    %v5351 = vmul.f32 %v4511, %v5279
    %v5352 = vmul.f32 %v4632, %v5283
    %v5353 = vmul.f32 %v4634, %v5287
    %v5354 = vmul.f32 %v4755, %v5291
    %v5355 = vmul.f32 %v4757, %v5295
    %v5356 = vmul.f32 %v4878, %v5299
    %v5357 = vmul.f32 %v4880, %v5303
    %v5358 = vmul.f32 %v5001, %v5307
    %v5359 = vmul.f32 %v5003, %v5311
    %v5360 = vmul.f32 %v5124, %v5315
    %v5361 = vmul.f32 %v5126, %v5319
    %v5362 = vmul.f32 %v5247, %v5323
    %v5363 = vmul.f32 %v5249, %v5327
    %v5367 = vlaneseq
    %v5368 = vshrl.u32 %v5367, 7
    %v5369 = vsub.s32 0, %v5368
    %v5370 = vrot.slane %v105, %v5369
    %v5371 = vlaneseq
    %v5372 = vshrl.u32 %v5371, 7
    %v5373 = vsub.s32 1, %v5372
    %v5374 = vrot.slane %v105, %v5373
    %v5375 = vlaneseq
    %v5376 = vshrl.u32 %v5375, 7
    %v5377 = vsub.s32 2, %v5376
    %v5378 = vrot.slane %v105, %v5377
    %v5379 = vlaneseq
    %v5380 = vshrl.u32 %v5379, 7
    %v5381 = vsub.s32 3, %v5380
    %v5382 = vrot.slane %v105, %v5381
    %v5383 = vlaneseq
    %v5384 = vshrl.u32 %v5383, 7
    %v5385 = vsub.s32 4, %v5384
    %v5386 = vrot.slane %v105, %v5385
    %v5387 = vlaneseq
    %v5388 = vshrl.u32 %v5387, 7
    %v5389 = vsub.s32 5, %v5388
    %v5390 = vrot.slane %v105, %v5389
    %v5391 = vlaneseq
    %v5392 = vshrl.u32 %v5391, 7
    %v5393 = vsub.s32 6, %v5392
    %v5394 = vrot.slane %v105, %v5393
    %v5395 = vlaneseq
    %v5396 = vshrl.u32 %v5395, 7
    %v5397 = vsub.s32 7, %v5396
    %v5398 = vrot.slane %v105, %v5397
    %v5399 = vlaneseq
    %v5400 = vshrl.u32 %v5399, 7
    %v5401 = vsub.s32 0, %v5400
    %v5402 = vrot.slane %v109, %v5401
    %v5403 = vlaneseq
    %v5404 = vshrl.u32 %v5403, 7
    %v5405 = vsub.s32 1, %v5404
    %v5406 = vrot.slane %v109, %v5405
    %v5407 = vlaneseq
    %v5408 = vshrl.u32 %v5407, 7
    %v5409 = vsub.s32 2, %v5408
    %v5410 = vrot.slane %v109, %v5409
    %v5411 = vlaneseq
    %v5412 = vshrl.u32 %v5411, 7
    %v5413 = vsub.s32 3, %v5412
    %v5414 = vrot.slane %v109, %v5413
    %v5415 = vlaneseq
    %v5416 = vshrl.u32 %v5415, 7
    %v5417 = vsub.s32 4, %v5416
    %v5418 = vrot.slane %v109, %v5417
    %v5419 = vlaneseq
    %v5420 = vshrl.u32 %v5419, 7
    %v5421 = vsub.s32 5, %v5420
    %v5422 = vrot.slane %v109, %v5421
    %v5423 = vlaneseq
    %v5424 = vshrl.u32 %v5423, 7
    %v5425 = vsub.s32 6, %v5424
    %v5426 = vrot.slane %v109, %v5425
    %v5427 = vlaneseq
    %v5428 = vshrl.u32 %v5427, 7
    %v5429 = vsub.s32 7, %v5428
    %v5430 = vrot.slane %v109, %v5429
    %v5431 = vlaneseq
    %v5432 = vshrl.u32 %v5431, 7
    %v5433 = vsub.s32 0, %v5432
    %v5434 = vrot.slane %v111, %v5433
    %v5435 = vlaneseq
    %v5436 = vshrl.u32 %v5435, 7
    %v5437 = vsub.s32 1, %v5436
    %v5438 = vrot.slane %v111, %v5437
    %v5457 = vadd.f32 %v5346, %v5370
    %v5458 = vadd.f32 %v5347, %v5374
    %v5459 = vadd.f32 %v5348, %v5378
    %v5460 = vadd.f32 %v5349, %v5382
    %v5461 = vadd.f32 %v5350, %v5386
    %v5462 = vadd.f32 %v5351, %v5390
    %v5463 = vadd.f32 %v5352, %v5394
    %v5464 = vadd.f32 %v5353, %v5398
    %v5465 = vadd.f32 %v5354, %v5402
    %v5466 = vadd.f32 %v5355, %v5406
    %v5467 = vadd.f32 %v5356, %v5410
    %v5468 = vadd.f32 %v5357, %v5414
    %v5469 = vadd.f32 %v5358, %v5418
    %v5470 = vadd.f32 %v5359, %v5422
    %v5471 = vadd.f32 %v5360, %v5426
    %v5472 = vadd.f32 %v5361, %v5430
    %v5473 = vadd.f32 %v5362, %v5434
    %v5474 = vadd.f32 %v5363, %v5438
    %v5475 = vxor.u32 %v5457, 2147483648
    %v5476 = vxor.u32 %v5458, 2147483648
    %v5477 = vxor.u32 %v5459, 2147483648
    %v5478 = vmul.f32 %v5475, 1.442695
    %v5479 = vpow.pop %v5478
    %v5480 = vmul.f32 %v5476, 1.442695
    %v5481 = vpow.pop %v5480
    %v5482 = vmul.f32 %v5477, 1.442695
    %v5483 = vpow.pop %v5482
    %v5484 = vadd.f32 %v5479, 1.0
    %v5485 = vadd.f32 %v5481, 1.0
    %v5486 = vadd.f32 %v5483, 1.0
    %v5487 = vrcp.pop %v5484
    %v5488 = vmul.f32 1.0, %v5487
    %v5489 = vrcp.pop %v5485
    %v5490 = vmul.f32 1.0, %v5489
    %v5491 = vrcp.pop %v5486
    %v5492 = vmul.f32 1.0, %v5491
    %v5493 = vtanh.pop %v5460
    %v5494 = vtanh.pop %v5461
    %v5495 = vtanh.pop %v5462
    %v5496 = vxor.u32 %v5463, 2147483648
    %v5497 = vxor.u32 %v5464, 2147483648
    %v5498 = vxor.u32 %v5465, 2147483648
    %v5499 = vmul.f32 %v5496, 1.442695
    %v5500 = vpow.pop %v5499
    %v5501 = vmul.f32 %v5497, 1.442695
    %v5502 = vpow.pop %v5501
    %v5503 = vmul.f32 %v5498, 1.442695
    %v5504 = vpow.pop %v5503
    %v5505 = vadd.f32 %v5500, 1.0
    %v5506 = vadd.f32 %v5502, 1.0
    %v5507 = vadd.f32 %v5504, 1.0
    %v5508 = vrcp.pop %v5505
    %v5509 = vmul.f32 1.0, %v5508
    %v5510 = vrcp.pop %v5506
    %v5511 = vmul.f32 1.0, %v5510
    %v5512 = vrcp.pop %v5507
    %v5513 = vmul.f32 1.0, %v5512
    %v5514 = vmul.f32 %v5488, %v5493
    %v5515 = vmul.f32 %v5490, %v5494
    %v5516 = vmul.f32 %v5492, %v5495
    %v5517 = vtanh.pop %v5514
    %v5518 = vtanh.pop %v5515
    %v5519 = vtanh.pop %v5516
    %v5520 = vmul.f32 %v5509, %v5517
    %v5521 = vmul.f32 %v5511, %v5518
    %v5522 = vmul.f32 %v5513, %v5519
    %v5523 = vxor.u32 %v5466, 2147483648
    %v5524 = vxor.u32 %v5467, 2147483648
    %v5525 = vxor.u32 %v5468, 2147483648
    %v5526 = vmul.f32 %v5523, 1.442695
    %v5527 = vpow.pop %v5526
    %v5528 = vmul.f32 %v5524, 1.442695
    %v5529 = vpow.pop %v5528
    %v5530 = vmul.f32 %v5525, 1.442695
    %v5531 = vpow.pop %v5530
    %v5532 = vadd.f32 %v5527, 1.0
    %v5533 = vadd.f32 %v5529, 1.0
    %v5534 = vadd.f32 %v5531, 1.0
    %v5535 = vrcp.pop %v5532
    %v5536 = vmul.f32 1.0, %v5535
    %v5537 = vrcp.pop %v5533
    %v5538 = vmul.f32 1.0, %v5537
    %v5539 = vrcp.pop %v5534
    %v5540 = vmul.f32 1.0, %v5539
    %v5541 = vtanh.pop %v5469
    %v5542 = vtanh.pop %v5470
    %v5543 = vtanh.pop %v5471
    %v5544 = vxor.u32 %v5472, 2147483648
    %v5545 = vxor.u32 %v5473, 2147483648
    %v5546 = vxor.u32 %v5474, 2147483648
    %v5547 = vmul.f32 %v5544, 1.442695
    %v5548 = vpow.pop %v5547
    %v5549 = vmul.f32 %v5545, 1.442695
    %v5550 = vpow.pop %v5549
    %v5551 = vmul.f32 %v5546, 1.442695
    %v5552 = vpow.pop %v5551
    %v5553 = vadd.f32 %v5548, 1.0
    %v5554 = vadd.f32 %v5550, 1.0
    %v5555 = vadd.f32 %v5552, 1.0
    %v5556 = vrcp.pop %v5553
    %v5557 = vmul.f32 1.0, %v5556
    %v5558 = vrcp.pop %v5554
    %v5559 = vmul.f32 1.0, %v5558
    %v5560 = vrcp.pop %v5555
    %v5561 = vmul.f32 1.0, %v5560
    %v5562 = vmul.f32 %v5536, %v5541
    %v5563 = vmul.f32 %v5538, %v5542
    %v5564 = vmul.f32 %v5540, %v5543
    %v5565 = vtanh.pop %v5562
    %v5566 = vtanh.pop %v5563
    %v5567 = vtanh.pop %v5564
    %v5568 = vmul.f32 %v5557, %v5565
    %v5569 = vmul.f32 %v5559, %v5566
    %v5570 = vmul.f32 %v5561, %v5567
    %v5571 = vpack.c.bf16 %v5520, %v5520
    %v5572 = vpack.c.bf16 %v5521, %v5521
    %v5573 = vpack.c.bf16 %v5522, %v5522
    %v5574 = vpack.c.bf16 %v5568, %v5568
    %v5575 = vpack.c.bf16 %v5569, %v5569
    %v5576 = vpack.c.bf16 %v5570, %v5570
    %v5577 = vld [vmem:[%s4] sm:$0xf]
    %v5578 = vld [vmem:[%s4 + $0x4] sm:$0xf]
    %v5579 = vld [vmem:[%s4 + $0x8] sm:$0xf]
    %v5580 = vld [vmem:[%s4 + $0xc] sm:$0xf]
    %v5581 = vld [vmem:[%s4 + $0x10] sm:$0xf]
    %v5582 = vld [vmem:[%s4 + $0x14] sm:$0xf]
    %v5583 = vld [vmem:[%s4 + $0x18] sm:$0xf]
    %v5584 = vld [vmem:[%s4 + $0x1c] sm:$0xf]
    %v5585 = vld [vmem:[%s4 + $0x20] sm:$0xf]
    %v5586 = vld [vmem:[%s4 + $0x24] sm:$0xf]
    %v5587 = vld [vmem:[%s4 + $0x28] sm:$0xf]
    %v5588 = vld [vmem:[%s4 + $0x2c] sm:$0xf]
    %v5589 = vld [vmem:[%s4 + $0x30] sm:$0xf]
    %v5590 = vld [vmem:[%s4 + $0x34] sm:$0xf]
    %v5591 = vld [vmem:[%s4 + $0x38] sm:$0xf]
    %v5592 = vld [vmem:[%s4 + $0x3c] sm:$0xf]
    %v5593 = vld [vmem:[%s4 + $0x40] sm:$0xf]
    %v5594 = vld [vmem:[%s4 + $0x44] sm:$0xf]
    %v5595 = vld [vmem:[%s4 + $0x48] sm:$0xf]
    %v5596 = vld [vmem:[%s4 + $0x4c] sm:$0xf]
    %v5597 = vld [vmem:[%s4 + $0x50] sm:$0xf]
    %v5598 = vld [vmem:[%s4 + $0x54] sm:$0xf]
    %v5599 = vld [vmem:[%s4 + $0x58] sm:$0xf]
    %v5600 = vld [vmem:[%s4 + $0x5c] sm:$0xf]
    %v5601 = vld [vmem:[%s4 + $0x60] sm:$0xf]
    %v5602 = vld [vmem:[%s4 + $0x64] sm:$0xf]
    %v5603 = vld [vmem:[%s4 + $0x68] sm:$0xf]
    %v5604 = vld [vmem:[%s4 + $0x6c] sm:$0xf]
    %v5605 = vld [vmem:[%s4 + $0x70] sm:$0xf]
    %v5606 = vld [vmem:[%s4 + $0x74] sm:$0xf]
    %v5607 = vld [vmem:[%s4 + $0x78] sm:$0xf]
    %v5608 = vld [vmem:[%s4 + $0x7c] sm:$0xf]
    %v5609 = vld [vmem:[%s4 + $0x80] sm:$0xf]
    %v5610 = vld [vmem:[%s4 + $0x84] sm:$0xf]
    %v5611 = vld [vmem:[%s4 + $0x88] sm:$0xf]
    %v5612 = vld [vmem:[%s4 + $0x8c] sm:$0xf]
    %v5613 = vld [vmem:[%s4 + $0x90] sm:$0xf]
    %v5614 = vld [vmem:[%s4 + $0x94] sm:$0xf]
    %v5615 = vld [vmem:[%s4 + $0x98] sm:$0xf]
    %v5616 = vld [vmem:[%s4 + $0x9c] sm:$0xf]
    %v5617 = vld [vmem:[%s4 + $0xa0] sm:$0xf]
    %v5618 = vld [vmem:[%s4 + $0xa4] sm:$0xf]
    %v5619 = vld [vmem:[%s4 + $0xa8] sm:$0xf]
    %v5620 = vld [vmem:[%s4 + $0xac] sm:$0xf]
    %v5621 = vld [vmem:[%s4 + $0xb0] sm:$0xf]
    %v5622 = vld [vmem:[%s4 + $0xb4] sm:$0xf]
    %v5623 = vld [vmem:[%s4 + $0xb8] sm:$0xf]
    %v5624 = vld [vmem:[%s4 + $0xbc] sm:$0xf]
    %v5625 = vld [vmem:[%s4 + $0xc0] sm:$0xf]
    %v5626 = vld [vmem:[%s4 + $0xc4] sm:$0xf]
    %v5627 = vld [vmem:[%s4 + $0xc8] sm:$0xf]
    %v5628 = vld [vmem:[%s4 + $0xcc] sm:$0xf]
    %v5629 = vld [vmem:[%s4 + $0xd0] sm:$0xf]
    %v5630 = vld [vmem:[%s4 + $0xd4] sm:$0xf]
    %v5631 = vld [vmem:[%s4 + $0xd8] sm:$0xf]
    %v5632 = vld [vmem:[%s4 + $0xdc] sm:$0xf]
    %v5633 = vld [vmem:[%s4 + $0xe0] sm:$0xf]
    %v5634 = vld [vmem:[%s4 + $0xe4] sm:$0xf]
    %v5635 = vld [vmem:[%s4 + $0xe8] sm:$0xf]
    %v5636 = vld [vmem:[%s4 + $0xec] sm:$0xf]
    %v5637 = vld [vmem:[%s4 + $0xf0] sm:$0xf]
    %v5638 = vld [vmem:[%s4 + $0xf4] sm:$0xf]
    %v5639 = vld [vmem:[%s4 + $0xf8] sm:$0xf]
    %v5640 = vld [vmem:[%s4 + $0xfc] sm:$0xf]
    %v5641 = vld [vmem:[%s4 + $0x100] sm:$0xf]
    %v5642 = vld [vmem:[%s4 + $0x104] sm:$0xf]
    %v5643 = vld [vmem:[%s4 + $0x108] sm:$0xf]
    %v5644 = vld [vmem:[%s4 + $0x10c] sm:$0xf]
    %v5645 = vld [vmem:[%s4 + $0x110] sm:$0xf]
    %v5646 = vld [vmem:[%s4 + $0x114] sm:$0xf]
    %v5647 = vld [vmem:[%s4 + $0x118] sm:$0xf]
    %v5648 = vld [vmem:[%s4 + $0x11c] sm:$0xf]
    %v5649 = vld [vmem:[%s4 + $0x120] sm:$0xf]
    %v5650 = vld [vmem:[%s4 + $0x124] sm:$0xf]
    %v5651 = vld [vmem:[%s4 + $0x128] sm:$0xf]
    %v5652 = vld [vmem:[%s4 + $0x12c] sm:$0xf]
    %v5653 = vld [vmem:[%s4 + $0x130] sm:$0xf]
    %v5654 = vld [vmem:[%s4 + $0x134] sm:$0xf]
    %v5655 = vld [vmem:[%s4 + $0x138] sm:$0xf]
    %v5656 = vld [vmem:[%s4 + $0x13c] sm:$0xf]
    %v5657 = vld [vmem:[%s4 + $0x140] sm:$0xf]
    %v5658 = vld [vmem:[%s4 + $0x144] sm:$0xf]
    %v5659 = vld [vmem:[%s4 + $0x148] sm:$0xf]
    %v5660 = vld [vmem:[%s4 + $0x14c] sm:$0xf]
    %v5661 = vld [vmem:[%s4 + $0x150] sm:$0xf]
    %v5662 = vld [vmem:[%s4 + $0x154] sm:$0xf]
    %v5663 = vld [vmem:[%s4 + $0x158] sm:$0xf]
    %v5664 = vld [vmem:[%s4 + $0x15c] sm:$0xf]
    %v5665 = vld [vmem:[%s4 + $0x160] sm:$0xf]
    %v5666 = vld [vmem:[%s4 + $0x164] sm:$0xf]
    %v5667 = vld [vmem:[%s4 + $0x168] sm:$0xf]
    %v5668 = vld [vmem:[%s4 + $0x16c] sm:$0xf]
    %v5669 = vld [vmem:[%s4 + $0x170] sm:$0xf]
    %v5670 = vld [vmem:[%s4 + $0x174] sm:$0xf]
    %v5671 = vld [vmem:[%s4 + $0x178] sm:$0xf]
    %v5672 = vld [vmem:[%s4 + $0x17c] sm:$0xf]
    %v5769 = vunpack.c.l.b16 %v5577
    %v5770 = vunpack.c.l.b16 %v5578
    %v5771 = vunpack.c.l.b16 %v5579
    %v5772 = vunpack.c.l.b16 %v5580
    %v5773 = vunpack.c.l.b16 %v5581
    %v5774 = vunpack.c.l.b16 %v5582
    %v5775 = vunpack.c.l.b16 %v5583
    %v5776 = vunpack.c.l.b16 %v5584
    %v5777 = vunpack.c.l.b16 %v5585
    %v5778 = vunpack.c.l.b16 %v5586
    %v5779 = vunpack.c.l.b16 %v5587
    %v5780 = vunpack.c.l.b16 %v5588
    %v5781 = vunpack.c.l.b16 %v5589
    %v5782 = vunpack.c.l.b16 %v5590
    %v5783 = vunpack.c.l.b16 %v5591
    %v5784 = vunpack.c.l.b16 %v5592
    %v5785 = vunpack.c.l.b16 %v5593
    %v5786 = vunpack.c.l.b16 %v5594
    %v5787 = vunpack.c.l.b16 %v5595
    %v5788 = vunpack.c.l.b16 %v5596
    %v5789 = vunpack.c.l.b16 %v5597
    %v5790 = vunpack.c.l.b16 %v5598
    %v5791 = vunpack.c.l.b16 %v5599
    %v5792 = vunpack.c.l.b16 %v5600
    %v5793 = vunpack.c.l.b16 %v5601
    %v5794 = vunpack.c.l.b16 %v5602
    %v5795 = vunpack.c.l.b16 %v5603
    %v5796 = vunpack.c.l.b16 %v5604
    %v5797 = vunpack.c.l.b16 %v5605
    %v5798 = vunpack.c.l.b16 %v5606
    %v5799 = vunpack.c.l.b16 %v5607
    %v5800 = vunpack.c.l.b16 %v5608
    %v5801 = vunpack.c.l.b16 %v5609
    %v5802 = vunpack.c.l.b16 %v5610
    %v5803 = vunpack.c.l.b16 %v5611
    %v5804 = vunpack.c.l.b16 %v5612
    %v5805 = vunpack.c.l.b16 %v5613
    %v5806 = vunpack.c.l.b16 %v5614
    %v5807 = vunpack.c.l.b16 %v5615
    %v5808 = vunpack.c.l.b16 %v5616
    %v5809 = vunpack.c.l.b16 %v5617
    %v5810 = vunpack.c.l.b16 %v5618
    %v5811 = vunpack.c.l.b16 %v5619
    %v5812 = vunpack.c.l.b16 %v5620
    %v5813 = vunpack.c.l.b16 %v5621
    %v5814 = vunpack.c.l.b16 %v5622
    %v5815 = vunpack.c.l.b16 %v5623
    %v5816 = vunpack.c.l.b16 %v5624
    %v5817 = vunpack.c.l.b16 %v5625
    %v5818 = vunpack.c.l.b16 %v5626
    %v5819 = vunpack.c.l.b16 %v5627
    %v5820 = vunpack.c.l.b16 %v5628
    %v5821 = vunpack.c.l.b16 %v5629
    %v5822 = vunpack.c.l.b16 %v5630
    %v5823 = vunpack.c.l.b16 %v5631
    %v5824 = vunpack.c.l.b16 %v5632
    %v5825 = vunpack.c.l.b16 %v5633
    %v5826 = vunpack.c.l.b16 %v5634
    %v5827 = vunpack.c.l.b16 %v5635
    %v5828 = vunpack.c.l.b16 %v5636
    %v5829 = vunpack.c.l.b16 %v5637
    %v5830 = vunpack.c.l.b16 %v5638
    %v5831 = vunpack.c.l.b16 %v5639
    %v5832 = vunpack.c.l.b16 %v5640
    %v5833 = vunpack.c.l.b16 %v5641
    %v5834 = vunpack.c.l.b16 %v5642
    %v5835 = vunpack.c.l.b16 %v5643
    %v5836 = vunpack.c.l.b16 %v5644
    %v5837 = vunpack.c.l.b16 %v5645
    %v5838 = vunpack.c.l.b16 %v5646
    %v5839 = vunpack.c.l.b16 %v5647
    %v5840 = vunpack.c.l.b16 %v5648
    %v5841 = vunpack.c.l.b16 %v5649
    %v5842 = vunpack.c.l.b16 %v5650
    %v5843 = vunpack.c.l.b16 %v5651
    %v5844 = vunpack.c.l.b16 %v5652
    %v5845 = vunpack.c.l.b16 %v5653
    %v5846 = vunpack.c.l.b16 %v5654
    %v5847 = vunpack.c.l.b16 %v5655
    %v5848 = vunpack.c.l.b16 %v5656
    %v5849 = vunpack.c.l.b16 %v5657
    %v5850 = vunpack.c.l.b16 %v5658
    %v5851 = vunpack.c.l.b16 %v5659
    %v5852 = vunpack.c.l.b16 %v5660
    %v5853 = vunpack.c.l.b16 %v5661
    %v5854 = vunpack.c.l.b16 %v5662
    %v5855 = vunpack.c.l.b16 %v5663
    %v5856 = vunpack.c.l.b16 %v5664
    %v5857 = vunpack.c.l.b16 %v5665
    %v5858 = vunpack.c.l.b16 %v5666
    %v5859 = vunpack.c.l.b16 %v5667
    %v5860 = vunpack.c.l.b16 %v5668
    %v5861 = vunpack.c.l.b16 %v5669
    %v5862 = vunpack.c.l.b16 %v5670
    %v5863 = vunpack.c.l.b16 %v5671
    %v5864 = vunpack.c.l.b16 %v5672
    %v5865 = vpack.c.b16 %v5770, %v5769
    %v5866 = vpack.c.b16 %v5772, %v5771
    %v5867 = vpack.c.b16 %v5774, %v5773
    %v5868 = vpack.c.b16 %v5776, %v5775
    %v5869 = vpack.c.b16 %v5778, %v5777
    %v5870 = vpack.c.b16 %v5780, %v5779
    %v5871 = vpack.c.b16 %v5782, %v5781
    %v5872 = vpack.c.b16 %v5784, %v5783
    %v5873 = vpack.c.b16 %v5786, %v5785
    %v5874 = vpack.c.b16 %v5788, %v5787
    %v5875 = vpack.c.b16 %v5790, %v5789
    %v5876 = vpack.c.b16 %v5792, %v5791
    %v5877 = vpack.c.b16 %v5794, %v5793
    %v5878 = vpack.c.b16 %v5796, %v5795
    %v5879 = vpack.c.b16 %v5798, %v5797
    %v5880 = vpack.c.b16 %v5800, %v5799
    %v5881 = vpack.c.b16 %v5802, %v5801
    %v5882 = vpack.c.b16 %v5804, %v5803
    %v5883 = vpack.c.b16 %v5806, %v5805
    %v5884 = vpack.c.b16 %v5808, %v5807
    %v5885 = vpack.c.b16 %v5810, %v5809
    %v5886 = vpack.c.b16 %v5812, %v5811
    %v5887 = vpack.c.b16 %v5814, %v5813
    %v5888 = vpack.c.b16 %v5816, %v5815
    %v5889 = vpack.c.b16 %v5818, %v5817
    %v5890 = vpack.c.b16 %v5820, %v5819
    %v5891 = vpack.c.b16 %v5822, %v5821
    %v5892 = vpack.c.b16 %v5824, %v5823
    %v5893 = vpack.c.b16 %v5826, %v5825
    %v5894 = vpack.c.b16 %v5828, %v5827
    %v5895 = vpack.c.b16 %v5830, %v5829
    %v5896 = vpack.c.b16 %v5832, %v5831
    %v5897 = vpack.c.b16 %v5834, %v5833
    %v5898 = vpack.c.b16 %v5836, %v5835
    %v5899 = vpack.c.b16 %v5838, %v5837
    %v5900 = vpack.c.b16 %v5840, %v5839
    %v5901 = vpack.c.b16 %v5842, %v5841
    %v5902 = vpack.c.b16 %v5844, %v5843
    %v5903 = vpack.c.b16 %v5846, %v5845
    %v5904 = vpack.c.b16 %v5848, %v5847
    %v5905 = vpack.c.b16 %v5850, %v5849
    %v5906 = vpack.c.b16 %v5852, %v5851
    %v5907 = vpack.c.b16 %v5854, %v5853
    %v5908 = vpack.c.b16 %v5856, %v5855
    %v5909 = vpack.c.b16 %v5858, %v5857
    %v5910 = vpack.c.b16 %v5860, %v5859
    %v5911 = vpack.c.b16 %v5862, %v5861
    %v5912 = vpack.c.b16 %v5864, %v5863
    %5961 = vmatprep.subr.bf16.mxu0 0
    %5962 = vmatpush1.bf16.msra.mxu0 %v5865
    %5963 = vmatprep.subr.bf16.mxu0 0
    %5964 = vmatpush1.bf16.msra.mxu0 %v5866
    %5965 = vmatprep.subr.bf16.mxu0 0
    %5966 = vmatpush1.bf16.msra.mxu0 %v5867
    %5967 = vmatprep.subr.bf16.mxu0 0
    %5968 = vmatpush1.bf16.msra.mxu0 %v5868
    %5969 = vmatprep.subr.bf16.mxu0 0
    %5970 = vmatpush1.bf16.msra.mxu0 %v5869
    %5971 = vmatprep.subr.bf16.mxu0 0
    %5972 = vmatpush1.bf16.msra.mxu0 %v5870
    %5973 = vmatprep.subr.bf16.mxu0 0
    %5974 = vmatpush1.bf16.msra.mxu0 %v5871
    %5975 = vmatprep.subr.bf16.mxu0 0
    %5976 = vmatpush1.bf16.msra.mxu0 %v5872
    %5977 = vmatprep.subr.bf16.mxu0 0
    %5978 = vmatpush1.bf16.msra.mxu0 %v5873
    %5979 = vmatprep.subr.bf16.mxu0 0
    %5980 = vmatpush1.bf16.msra.mxu0 %v5874
    %5981 = vmatprep.subr.bf16.mxu0 0
    %5982 = vmatpush1.bf16.msra.mxu0 %v5875
    %5983 = vmatprep.subr.bf16.mxu0 0
    %5984 = vmatpush1.bf16.msra.mxu0 %v5876
    %5985 = vmatprep.subr.bf16.mxu0 0
    %5986 = vmatpush1.bf16.msra.mxu0 %v5877
    %5987 = vmatprep.subr.bf16.mxu0 0
    %5988 = vmatpush1.bf16.msra.mxu0 %v5878
    %5989 = vmatprep.subr.bf16.mxu0 0
    %5990 = vmatpush1.bf16.msra.mxu0 %v5879
    %5991 = vmatprep.subr.bf16.mxu0 0
    %5992 = vmatpush1.bf16.msra.mxu0 %v5880
    %5993 = vmatprep.mubr.bf16.mxu0 %v5572
    %5994 = vmatmul.mubr.bf16.gmra.mrb[0].mxu0 %v5571
    %v5995 = vpop.f32.mrb[0].mxu0
    %v5996 = vadd.f32 0.0, %v5995
    %v5997 = vpop.f32.mrb[0].mxu0
    %v5998 = vpop.f32.mrb[0].mxu0
    %v5999 = vpop.f32.mrb[0].mxu0
    %6000 = vdwg.mxu0
    %6001 = vmatprep.subr.bf16.mxu0 0
    %6002 = vmatpush1.bf16.msra.mxu0 %v5881
    %6003 = vmatprep.subr.bf16.mxu0 0
    %6004 = vmatpush1.bf16.msra.mxu0 %v5882
    %6005 = vmatprep.subr.bf16.mxu0 0
    %6006 = vmatpush1.bf16.msra.mxu0 %v5883
    %6007 = vmatprep.subr.bf16.mxu0 0
    %6008 = vmatpush1.bf16.msra.mxu0 %v5884
    %6009 = vmatprep.subr.bf16.mxu0 0
    %6010 = vmatpush1.bf16.msra.mxu0 %v5885
    %6011 = vmatprep.subr.bf16.mxu0 0
    %6012 = vmatpush1.bf16.msra.mxu0 %v5886
    %6013 = vmatprep.subr.bf16.mxu0 0
    %6014 = vmatpush1.bf16.msra.mxu0 %v5887
    %6015 = vmatprep.subr.bf16.mxu0 0
    %6016 = vmatpush1.bf16.msra.mxu0 %v5888
    %6017 = vmatprep.subr.bf16.mxu0 0
    %6018 = vmatpush1.bf16.msra.mxu0 %v5889
    %6019 = vmatprep.subr.bf16.mxu0 0
    %6020 = vmatpush1.bf16.msra.mxu0 %v5890
    %6021 = vmatprep.subr.bf16.mxu0 0
    %6022 = vmatpush1.bf16.msra.mxu0 %v5891
    %6023 = vmatprep.subr.bf16.mxu0 0
    %6024 = vmatpush1.bf16.msra.mxu0 %v5892
    %6025 = vmatprep.subr.bf16.mxu0 0
    %6026 = vmatpush1.bf16.msra.mxu0 %v5893
    %6027 = vmatprep.subr.bf16.mxu0 0
    %6028 = vmatpush1.bf16.msra.mxu0 %v5894
    %6029 = vmatprep.subr.bf16.mxu0 0
    %6030 = vmatpush1.bf16.msra.mxu0 %v5895
    %6031 = vmatprep.subr.bf16.mxu0 0
    %6032 = vmatpush1.bf16.msra.mxu0 %v5896
    %6033 = vmatprep.mubr.bf16.mxu0 %v5574
    %6034 = vmatmul.mubr.bf16.gmra.mrb[0].mxu0 %v5573
    %v6035 = vpop.f32.mrb[0].mxu0
    %v6036 = vadd.f32 %v5996, %v6035
    %v6037 = vpop.f32.mrb[0].mxu0
    %v6038 = vpop.f32.mrb[0].mxu0
    %v6039 = vpop.f32.mrb[0].mxu0
    %6040 = vdwg.mxu0
    %6041 = vmatprep.subr.bf16.mxu0 0
    %6042 = vmatpush1.bf16.msra.mxu0 %v5897
    %6043 = vmatprep.subr.bf16.mxu0 0
    %6044 = vmatpush1.bf16.msra.mxu0 %v5898
    %6045 = vmatprep.subr.bf16.mxu0 0
    %6046 = vmatpush1.bf16.msra.mxu0 %v5899
    %6047 = vmatprep.subr.bf16.mxu0 0
    %6048 = vmatpush1.bf16.msra.mxu0 %v5900
    %6049 = vmatprep.subr.bf16.mxu0 0
    %6050 = vmatpush1.bf16.msra.mxu0 %v5901
    %6051 = vmatprep.subr.bf16.mxu0 0
    %6052 = vmatpush1.bf16.msra.mxu0 %v5902
    %6053 = vmatprep.subr.bf16.mxu0 0
    %6054 = vmatpush1.bf16.msra.mxu0 %v5903
    %6055 = vmatprep.subr.bf16.mxu0 0
    %6056 = vmatpush1.bf16.msra.mxu0 %v5904
    %6057 = vmatprep.subr.bf16.mxu0 0
    %6058 = vmatpush1.bf16.msra.mxu0 %v5905
    %6059 = vmatprep.subr.bf16.mxu0 0
    %6060 = vmatpush1.bf16.msra.mxu0 %v5906
    %6061 = vmatprep.subr.bf16.mxu0 0
    %6062 = vmatpush1.bf16.msra.mxu0 %v5907
    %6063 = vmatprep.subr.bf16.mxu0 0
    %6064 = vmatpush1.bf16.msra.mxu0 %v5908
    %6065 = vmatprep.subr.bf16.mxu0 0
    %6066 = vmatpush1.bf16.msra.mxu0 %v5909
    %6067 = vmatprep.subr.bf16.mxu0 0
    %6068 = vmatpush1.bf16.msra.mxu0 %v5910
    %6069 = vmatprep.subr.bf16.mxu0 0
    %6070 = vmatpush1.bf16.msra.mxu0 %v5911
    %6071 = vmatprep.subr.bf16.mxu0 0
    %6072 = vmatpush1.bf16.msra.mxu0 %v5912
    %6073 = vmatprep.mubr.bf16.mxu0 %v5576
    %6074 = vmatmul.mubr.bf16.gmra.mrb[0].mxu0 %v5575
    %v6075 = vpop.f32.mrb[0].mxu0
    %v6076 = vadd.f32 %v6036, %v6075
    %v6077 = vpop.f32.mrb[0].mxu0
    %v6078 = vpop.f32.mrb[0].mxu0
    %v6079 = vpop.f32.mrb[0].mxu0
    %6080 = vdwg.mxu0
    %vm6081 = vcmask 23568
    %v6082 = vsel %vm6081, %v6076, -inf
    %v6083 = vrot.slane %v6082, 4
    %v6084 = vmax.f32 %v6082, %v6083
    %v6085 = vrot.slane %v6084, 2
    %v6086 = vmax.f32 %v6084, %v6085
    %v6087 = vrot.slane %v6086, 1
    %v6088 = vmax.f32 %v6086, %v6087
    %v6089 = vsub.f32 %v6076, %v6088
    %v6090 = vmul.f32 %v6089, 1.442695
    %v6091 = vpow.pop %v6090
    %v6092 = vsel %vm6081, %v6091, 0.0
    %v6093 = vrot.slane %v6092, 4
    %v6094 = vadd.f32 %v6092, %v6093
    %v6095 = vrot.slane %v6094, 2
    %v6096 = vadd.f32 %v6094, %v6095
    %v6097 = vrot.slane %v6096, 1
    %v6098 = vadd.f32 %v6096, %v6097
    %v6099 = vrcp.pop %v6098
    %v6100 = vmul.f32 %v6091, %v6099
    %6102 = vset.pattern.permute.xlu0 2
    %6103 = vperm.xlu0 %6102, %v6100
    %v6104 = vpop.permute.xlu0 %6103
    %v6106 = vmul.f32 %v6076, %v6104
    %v6107 = vadd.f32 %v6106, %v112
    %vm6108 = vcmask 15360
    %6109 = vst.msk [vmem:[%s5] sm:$0xff] %vm6108, %v6107
    // Predicated region
    $region34: #{tpu_custom_call.1} parent=1 // pred_check
      _
    $region35: #{tpu_custom_call.1} parent=1 // pred_check_branch
      %6111 = sbr.rel (0) target = $region37
    $region36: #{tpu_custom_call.1} parent=1 // pred_region
      _
    $region37: #{tpu_custom_call.1} parent=1 // pred_fallthru
      _
    // Predicated region
    $region38: #{tpu_custom_call.1} parent=1 // pred_check
      _
    $region39: #{tpu_custom_call.1} parent=1 // pred_check_branch
      %6113 = sbr.rel (0) target = $region41
    $region40: #{tpu_custom_call.1} parent=1 // pred_region
      _
    $region41: #{tpu_custom_call.1} parent=1 // pred_fallthru
      _
    %6114 = vsyncpa [#allocation5], 1
    %6115 = vsyncpa [#allocation7], 1
  %6116 = vsyncmov [#allocation3]
  %s6117 = vpop.sfrf %6116
  %p6118 = scmp.eq.s32.totalorder %s6117, 0
  %p6119 = pneg %p6118
  %6121 = shalt.err (%p6119)

</llo_original>
